<compile_context>
chip_gen: v6e
topology: v6e:2x2x1
jax: 0.10.0
libtpu: 0.0.40
codegen_flags: <defaults>
</compile_context>

<pallas_src>
import functools

import jax
import jax.numpy as jnp
from jax.experimental import pallas as pl
from jax.experimental.pallas import tpu as pltpu


# ----------------------------------------------------------------------------
# Shared cell math (PyTorch gate order i, f, g, o; all f32).
# ----------------------------------------------------------------------------
def _lstm_cell(gates, c, H):
    i = jax.nn.sigmoid(gates[:, 0 * H:1 * H])
    f = jax.nn.sigmoid(gates[:, 1 * H:2 * H])
    g = jnp.tanh(gates[:, 2 * H:3 * H])
    o = jax.nn.sigmoid(gates[:, 3 * H:4 * H])
    c_new = f * c + i * g
    h_new = o * jnp.tanh(c_new)
    return h_new, c_new


# ----------------------------------------------------------------------------
# Layer-1 kernel: fused bidirectional LSTM over the whole (T, B_tile) block.
#   x_ref               : (T, Bt, E)  bf16   embedded inputs
#   wih_f/b             : (E, 4H)     bf16   per-direction input weights
#   whh_f/b             : (H, 4H)     bf16   per-direction recurrent weights
#   b_f/b_b             : (1, 4H)     f32    combined biases (b_ih + b_hh)
#   out_f/out_b         : (T, Bt, H)  bf16   per-time fwd / bwd hidden states
# ----------------------------------------------------------------------------
def _bilstm_l1_kernel(x_ref, wih_f_ref, wih_b_ref, whh_f_ref, whh_b_ref,
                      bf_ref, bb_ref, out_f_ref, out_b_ref):
    T, Bt, _ = x_ref.shape
    H = whh_f_ref.shape[0]
    wdt = whh_f_ref.dtype
    odt = out_f_ref.dtype
    # Hoisted bias loads (avoid reloading / re-broadcasting per unrolled step).
    b_f = bf_ref[...]
    b_b = bb_ref[...]

    def step(s, carry):
        h_f, c_f, h_b, c_b = carry
        sb = T - 1 - s
        # Fused input projection + recurrence: gates = x_t @ W_ih + h @ W_hh + b.
        # Separate per-direction streams -> no redundant loads, no lane select.
        g_f = (jnp.dot(x_ref[s], wih_f_ref[...],
                       preferred_element_type=jnp.float32)
               + jnp.dot(h_f.astype(wdt), whh_f_ref[...],
                         preferred_element_type=jnp.float32)
               + b_f)
        g_b = (jnp.dot(x_ref[sb], wih_b_ref[...],
                       preferred_element_type=jnp.float32)
               + jnp.dot(h_b.astype(wdt), whh_b_ref[...],
                         preferred_element_type=jnp.float32)
               + b_b)
        h_f, c_f = _lstm_cell(g_f, c_f, H)
        h_b, c_b = _lstm_cell(g_b, c_b, H)
        # Direct per-step output stores (lane-dense per direction, no scratch).
        out_f_ref[s] = h_f.astype(odt)
        out_b_ref[sb] = h_b.astype(odt)
        return (h_f, c_f, h_b, c_b)

    z = jnp.zeros((Bt, H), jnp.float32)
    jax.lax.fori_loop(0, T, step, (z, z, z, z), unroll=min(int(T), 8))


# ----------------------------------------------------------------------------
# Layer-2 kernel: bidirectional LSTM + fused Linear(2H -> 1) + sigmoid.
# Inputs are layer-1's separate fwd/bwd streams; the 2H-row W_ih is pre-split
# by source direction (ff/bf -> fwd gates, fb/bb -> bwd gates) so the fwd|bwd
# concat never happens.  Only a (Bt, 1) probability is written to HBM.
# ----------------------------------------------------------------------------
def _bilstm_l2_fc_kernel(of_ref, ob_ref,
                         wih_ff_ref, wih_bf_ref, wih_fb_ref, wih_bb_ref,
                         whh_f_ref, whh_b_ref, bf_ref, bb_ref,
                         fcwf_ref, fcwb_ref, fcb_ref, prob_ref):
    T, Bt, H = of_ref.shape
    wdt = whh_f_ref.dtype
    b_f = bf_ref[...]
    b_b = bb_ref[...]

    def step(s, carry):
        h_f, c_f, h_b, c_b, hb_T = carry
        sb = T - 1 - s
        g_f = (jnp.dot(of_ref[s], wih_ff_ref[...],
                       preferred_element_type=jnp.float32)
               + jnp.dot(ob_ref[s], wih_bf_ref[...],
                         preferred_element_type=jnp.float32)
               + jnp.dot(h_f.astype(wdt), whh_f_ref[...],
                         preferred_element_type=jnp.float32)
               + b_f)
        g_b = (jnp.dot(of_ref[sb], wih_fb_ref[...],
                       preferred_element_type=jnp.float32)
               + jnp.dot(ob_ref[sb], wih_bb_ref[...],
                         preferred_element_type=jnp.float32)
               + jnp.dot(h_b.astype(wdt), whh_b_ref[...],
                         preferred_element_type=jnp.float32)
               + b_b)
        h_f, c_f = _lstm_cell(g_f, c_f, H)
        h_b, c_b = _lstm_cell(g_b, c_b, H)
        # lstm_out[:, -1, :] needs h_bwd at time T-1, which the bwd direction
        # produces at its FIRST processed step (s == 0): capture it in the carry.
        hb_T = jnp.where(s == 0, h_b, hb_T)
        return (h_f, c_f, h_b, c_b, hb_T)

    z = jnp.zeros((Bt, H), jnp.float32)
    h_f, _, _, _, hb_T = jax.lax.fori_loop(
        0, T, step, (z, z, z, z, z), unroll=min(int(T), 8))

    # fc as a VPU multiply + cross-lane reduce (an N=1 MXU matmul would waste
    # the MXU).  h_fwd(T-1) is the final fwd carry, h_bwd(T-1) is hb_T.
    logit = (jnp.sum(h_f * fcwf_ref[...], axis=-1, keepdims=True)
             + jnp.sum(hb_T * fcwb_ref[...], axis=-1, keepdims=True)
             + fcb_ref[...])
    prob_ref[...] = jax.nn.sigmoid(logit)


# ----------------------------------------------------------------------------
# Wrappers
# ----------------------------------------------------------------------------
def _pick_b_tile(B):
    """Largest multiple-of-8 tile dividing B (bounds VMEM residency, enables
    pipelining / megacore sharding); fall back to the full batch for small B
    (a full-dim block always satisfies the (8,128) rule)."""
    for cand in (256, 128, 64, 32, 16, 8):
        if B % cand == 0:
            return cand
    return B


def _compiler_params(vmem_est_bytes):
    return pltpu.CompilerParams(
        dimension_semantics=("parallel",),
        vmem_limit_bytes=int(min(max(2 * vmem_est_bytes, 32 << 20), 100 << 20)),
    )


def bilstm_layer1(x, p):
    """(T, B, E) bf16 -> two (T, B, H) bf16 streams (fwd, bwd)."""
    T, B, E = x.shape
    H = p["whh_f"].shape[0]
    Bt = _pick_b_tile(B)
    grid = (B // Bt,)
    # Rough resident-set estimate: double-buffered x / out blocks + weights.
    est = (2 * (T * Bt * E * 2 + 2 * T * Bt * H * 2)
           + 2 * (E * 4 * H + H * 4 * H) * 2 + 2 * 4 * H * 4)
    full2d = lambda b: (0, 0)
    seq_in = pl.BlockSpec((T, Bt, E), lambda b: (0, b, 0))
    seq_out = pl.BlockSpec((T, Bt, H), lambda b: (0, b, 0))
    return pl.pallas_call(
        _bilstm_l1_kernel,
        out_shape=(jax.ShapeDtypeStruct((T, B, H), jnp.bfloat16),
                   jax.ShapeDtypeStruct((T, B, H), jnp.bfloat16)),
        grid=grid,
        in_specs=[
            seq_in,
            pl.BlockSpec(p["wih_f"].shape, full2d),
            pl.BlockSpec(p["wih_b"].shape, full2d),
            pl.BlockSpec(p["whh_f"].shape, full2d),
            pl.BlockSpec(p["whh_b"].shape, full2d),
            pl.BlockSpec(p["b_f"].shape, full2d),
            pl.BlockSpec(p["b_b"].shape, full2d),
        ],
        out_specs=(seq_out, seq_out),
        compiler_params=_compiler_params(est),
    )(x, p["wih_f"], p["wih_b"], p["whh_f"], p["whh_b"], p["b_f"], p["b_b"])


def bilstm_layer2_fc(out_f, out_b, p, fcw_f, fcw_b, fc_b):
    """Two (T, B, H) bf16 streams -> (B, 1) f32 probabilities."""
    T, B, H = out_f.shape
    Bt = _pick_b_tile(B)
    grid = (B // Bt,)
    est = (2 * (2 * T * Bt * H * 2 + Bt * 4)
           + (4 * H * 4 * H + 2 * H * 4 * H) * 2 + 2 * 4 * H * 4
           + 2 * H * 4 + 4)
    full2d = lambda b: (0, 0)
    seq_in = pl.BlockSpec((T, Bt, H), lambda b: (0, b, 0))
    return pl.pallas_call(
        _bilstm_l2_fc_kernel,
        out_shape=jax.ShapeDtypeStruct((B, 1), jnp.float32),
        grid=grid,
        in_specs=[
            seq_in, seq_in,
            pl.BlockSpec(p["wih_ff"].shape, full2d),
            pl.BlockSpec(p["wih_bf"].shape, full2d),
            pl.BlockSpec(p["wih_fb"].shape, full2d),
            pl.BlockSpec(p["wih_bb"].shape, full2d),
            pl.BlockSpec(p["whh_f"].shape, full2d),
            pl.BlockSpec(p["whh_b"].shape, full2d),
            pl.BlockSpec(p["b_f"].shape, full2d),
            pl.BlockSpec(p["b_b"].shape, full2d),
            pl.BlockSpec(fcw_f.shape, full2d),
            pl.BlockSpec(fcw_b.shape, full2d),
            pl.BlockSpec(fc_b.shape, full2d),
        ],
        out_specs=pl.BlockSpec((Bt, 1), lambda b: (b, 0)),
        compiler_params=_compiler_params(est),
    )(out_f, out_b, p["wih_ff"], p["wih_bf"], p["wih_fb"], p["wih_bb"],
      p["whh_f"], p["whh_b"], p["b_f"], p["b_b"], fcw_f, fcw_b, fc_b)


def lstm_model_forward(params, tokens):
    """tokens: (B, T) int32 -> (B, 1) f32 probabilities."""
    # Embedding lookup (gather) stays in XLA; dropout == identity (eval).
    emb = jnp.take(params["embedding"], tokens, axis=0)          # (B, T, E)
    x = jnp.transpose(emb, (1, 0, 2)).astype(jnp.bfloat16)       # (T, B, E)
    out_f, out_b = bilstm_layer1(x, params["l0"])
    # inter-layer dropout == identity (eval)
    return bilstm_layer2_fc(out_f, out_b, params["l1"],
                            params["fc_w_f"], params["fc_w_b"], params["fc_b"])


# ----------------------------------------------------------------------------
# Parameter construction (mirrors nn.Module shapes; PyTorch gate order i,f,g,o;
# weights stored pre-transposed (Din, 4H) and in bf16 for the MXU).
# ----------------------------------------------------------------------------
def init_params(key, vocab_size, embedding_dim, hidden_dim,
                weight_dtype=jnp.bfloat16):
    H = hidden_dim
    E = embedding_dim

    def uniform(k, shape, fan):
        bound = 1.0 / jnp.sqrt(jnp.float32(fan))
        return jax.random.uniform(k, shape, jnp.float32, -bound, bound)

    params = {}
    key, k = jax.random.split(key)
    params["embedding"] = jax.random.normal(k, (vocab_size, E), jnp.float32)

    def make_dir(key, din):
        key, k1, k2, k3, k4 = jax.random.split(key, 5)
        wih = uniform(k1, (din, 4 * H), H)
        whh = uniform(k2, (H, 4 * H), H)
        b = uniform(k3, (4 * H,), H) + uniform(k4, (4 * H,), H)   # b_ih + b_hh
        return key, wih, whh, b.reshape(1, 4 * H)

    # Layer 0 (input = embedding), separate dense per-direction weights.
    key, wih_f0, whh_f0, b_f0 = make_dir(key, E)
    key, wih_b0, whh_b0, b_b0 = make_dir(key, E)
    params["l0"] = {
        "wih_f": wih_f0.astype(weight_dtype), "wih_b": wih_b0.astype(weight_dtype),
        "whh_f": whh_f0.astype(weight_dtype), "whh_b": whh_b0.astype(weight_dtype),
        "b_f": b_f0, "b_b": b_b0,
    }

    # Layer 1 (input = [out_f | out_b], 2H wide).  Split W_ih rows by source
    # direction so the kernel never needs to concatenate layer-1's outputs.
    key, wih_f1, whh_f1, b_f1 = make_dir(key, 2 * H)
    key, wih_b1, whh_b1, b_b1 = make_dir(key, 2 * H)
    params["l1"] = {
        "wih_ff": wih_f1[:H].astype(weight_dtype),   # out_f -> fwd gates
        "wih_bf": wih_f1[H:].astype(weight_dtype),   # out_b -> fwd gates
        "wih_fb": wih_b1[:H].astype(weight_dtype),   # out_f -> bwd gates
        "wih_bb": wih_b1[H:].astype(weight_dtype),   # out_b -> bwd gates
        "whh_f": whh_f1.astype(weight_dtype), "whh_b": whh_b1.astype(weight_dtype),
        "b_f": b_f1, "b_b": b_b1,
    }

    key, k1, k2 = jax.random.split(key, 3)
    fc_w = uniform(k1, (1, 2 * H), 2 * H)
    params["fc_w_f"] = fc_w[:, :H]
    params["fc_w_b"] = fc_w[:, H:]
    params["fc_b"] = uniform(k2, (1, 1), 2 * H)
    return params


# ----------------------------------------------------------------------------
# Pure-JAX reference (mirrors the kernel's precision choices) for validation.
# ----------------------------------------------------------------------------
def _ref_dir(xs, wih, whh, b, H):
    wih = wih.astype(jnp.float32)
    whh = whh.astype(jnp.float32)
    B = xs.shape[1]

    def step(carry, x_t):
        h, c = carry
        g = (x_t.astype(jnp.float32) @ wih
             + h.astype(jnp.bfloat16).astype(jnp.float32) @ whh + b)
        i = jax.nn.sigmoid(g[:, 0 * H:1 * H])
        f = jax.nn.sigmoid(g[:, 1 * H:2 * H])
        gg = jnp.tanh(g[:, 2 * H:3 * H])
        o = jax.nn.sigmoid(g[:, 3 * H:4 * H])
        c = f * c + i * gg
        h = o * jnp.tanh(c)
        return (h, c), h

    z = jnp.zeros((B, H), jnp.float32)
    _, hs = jax.lax.scan(step, (z, z), xs)
    return hs


def lstm_model_reference(params, tokens):
    emb = jnp.take(params["embedding"], tokens, axis=0)
    x = jnp.transpose(emb, (1, 0, 2)).astype(jnp.bfloat16)
    l0, l1 = params["l0"], params["l1"]
    H = l0["whh_f"].shape[0]

    hf1 = _ref_dir(x, l0["wih_f"], l0["whh_f"], l0["b_f"], H).astype(jnp.bfloat16)
    hb1 = _ref_dir(x[::-1], l0["wih_b"], l0["whh_b"], l0["b_b"], H)[::-1]
    hb1 = hb1.astype(jnp.bfloat16)

    x2 = jnp.concatenate([hf1, hb1], axis=-1)
    wih_f = jnp.concatenate([l1["wih_ff"], l1["wih_bf"]], axis=0)
    wih_b = jnp.concatenate([l1["wih_fb"], l1["wih_bb"]], axis=0)
    hf2 = _ref_dir(x2, wih_f, l1["whh_f"], l1["b_f"], H)
    hb2 = _ref_dir(x2[::-1], wih_b, l1["whh_b"], l1["b_b"], H)[::-1]

    last = jnp.concatenate([hf2[-1], hb2[-1]], axis=-1)
    fc_w = jnp.concatenate([params["fc_w_f"], params["fc_w_b"]], axis=-1)
    logit = last @ fc_w.T + params["fc_b"]
    return jax.nn.sigmoid(logit)


if __name__ == "__main__":
    vocab_size = 64
    embedding_dim = 16
    hidden_dim = 32
    batch = 2
    seq_len = 8

    key = jax.random.PRNGKey(0)
    key, pkey, tkey = jax.random.split(key, 3)
    params = init_params(pkey, vocab_size, embedding_dim, hidden_dim)
    tokens = jax.random.randint(tkey, (batch, seq_len), 0, vocab_size, jnp.int32)

    fwd = jax.jit(functools.partial(lstm_model_forward, params))
    out = fwd(tokens)
    jax.block_until_ready(out)

    ref = jax.jit(functools.partial(lstm_model_reference, params))(tokens)
    jax.block_until_ready(ref)

    assert out.shape == (batch, 1), out.shape
    assert bool(jnp.all(jnp.isfinite(out)))
    assert bool(jnp.all((out >= 0.0) & (out <= 1.0)))
    assert bool(jnp.max(jnp.abs(out - ref)) < 1e-2), (out, ref)
    print("KERNEL_OK")
</pallas_src>

<mosaic_0001>
module attributes {stable_mosaic.version = 11 : i64} {
  func.func @_bilstm_l1_kernel(%arg0: i32, %arg1: memref<8x2x16xbf16, #tpu.memory_space<vmem>>, %arg2: memref<16x128xbf16, #tpu.memory_space<vmem>>, %arg3: memref<16x128xbf16, #tpu.memory_space<vmem>>, %arg4: memref<32x128xbf16, #tpu.memory_space<vmem>>, %arg5: memref<32x128xbf16, #tpu.memory_space<vmem>>, %arg6: memref<1x128xf32, #tpu.memory_space<vmem>>, %arg7: memref<1x128xf32, #tpu.memory_space<vmem>>, %arg8: memref<8x2x32xbf16, #tpu.memory_space<vmem>>, %arg9: memref<8x2x32xbf16, #tpu.memory_space<vmem>>) attributes {dimension_semantics = [#tpu.dimension_semantics<parallel>], iteration_bounds = array<i64: 1>, scalar_prefetch = 0 : i64, scratch_operands = 0 : i64, tpu.core_type = #tpu.core_type<tc>, window_params = [{transform_indices = @transform_0, window_bounds = array<i64: 8, 2, 16>}, {pipeline_mode = #tpu.pipeline_mode<synchronous>, transform_indices = @transform_1, window_bounds = array<i64: 16, 128>}, {pipeline_mode = #tpu.pipeline_mode<synchronous>, transform_indices = @transform_2, window_bounds = array<i64: 16, 128>}, {pipeline_mode = #tpu.pipeline_mode<synchronous>, transform_indices = @transform_3, window_bounds = array<i64: 32, 128>}, {pipeline_mode = #tpu.pipeline_mode<synchronous>, transform_indices = @transform_4, window_bounds = array<i64: 32, 128>}, {pipeline_mode = #tpu.pipeline_mode<synchronous>, transform_indices = @transform_5, window_bounds = array<i64: 1, 128>}, {pipeline_mode = #tpu.pipeline_mode<synchronous>, transform_indices = @transform_6, window_bounds = array<i64: 1, 128>}, {transform_indices = @transform_7, window_bounds = array<i64: 8, 2, 32>}, {transform_indices = @transform_8, window_bounds = array<i64: 8, 2, 32>}]} {
    %c0 = arith.constant 0 : index
    %c0_0 = arith.constant 0 : index
    %0 = vector.load %arg6[%c0, %c0_0] : memref<1x128xf32, #tpu.memory_space<vmem>>, vector<1x128xf32>
    %c0_1 = arith.constant 0 : index
    %c0_2 = arith.constant 0 : index
    %1 = vector.load %arg7[%c0_1, %c0_2] : memref<1x128xf32, #tpu.memory_space<vmem>>, vector<1x128xf32>
    %cst = arith.constant 0.000000e+00 : f32
    %2 = vector.broadcast %cst : f32 to vector<2x32xf32>
    %c0_i32 = arith.constant 0 : i32
    %c7_i32 = arith.constant 7 : i32
    %3 = arith.subi %c7_i32, %c0_i32 : i32
    %4 = arith.index_cast %c0_i32 : i32 to index
    %c0_3 = arith.constant 0 : index
    %c0_4 = arith.constant 0 : index
    %5 = vector.load %arg1[%4, %c0_3, %c0_4] : memref<8x2x16xbf16, #tpu.memory_space<vmem>>, vector<1x2x16xbf16>
    %6 = vector.shape_cast %5 : vector<1x2x16xbf16> to vector<2x16xbf16>
    %c0_5 = arith.constant 0 : index
    %c0_6 = arith.constant 0 : index
    %7 = vector.load %arg2[%c0_5, %c0_6] : memref<16x128xbf16, #tpu.memory_space<vmem>>, vector<16x128xbf16>
    %cst_7 = arith.constant dense<0.000000e+00> : vector<2x128xf32>
    %8 = tpu.matmul %6, %7, %cst_7 {dimension_numbers = #tpu.dot_dimension_numbers<[1], [0], [0], [1], [0, 0, 1, 1], [], []>} : vector<2x16xbf16>, vector<16x128xbf16>, vector<2x128xf32> -> vector<2x128xf32>
    %9 = arith.truncf %2 : vector<2x32xf32> to vector<2x32xbf16>
    %c0_8 = arith.constant 0 : index
    %c0_9 = arith.constant 0 : index
    %10 = vector.load %arg4[%c0_8, %c0_9] : memref<32x128xbf16, #tpu.memory_space<vmem>>, vector<32x128xbf16>
    %cst_10 = arith.constant dense<0.000000e+00> : vector<2x128xf32>
    %11 = tpu.matmul %9, %10, %cst_10 {dimension_numbers = #tpu.dot_dimension_numbers<[1], [0], [0], [1], [0, 0, 1, 1], [], []>} : vector<2x32xbf16>, vector<32x128xbf16>, vector<2x128xf32> -> vector<2x128xf32>
    %12 = arith.addf %8, %11 : vector<2x128xf32>
    %13 = vector.broadcast %0 : vector<1x128xf32> to vector<2x128xf32>
    %14 = arith.addf %12, %13 : vector<2x128xf32>
    %15 = arith.index_cast %3 : i32 to index
    %c0_11 = arith.constant 0 : index
    %c0_12 = arith.constant 0 : index
    %16 = vector.load %arg1[%15, %c0_11, %c0_12] : memref<8x2x16xbf16, #tpu.memory_space<vmem>>, vector<1x2x16xbf16>
    %17 = vector.shape_cast %16 : vector<1x2x16xbf16> to vector<2x16xbf16>
    %c0_13 = arith.constant 0 : index
    %c0_14 = arith.constant 0 : index
    %18 = vector.load %arg3[%c0_13, %c0_14] : memref<16x128xbf16, #tpu.memory_space<vmem>>, vector<16x128xbf16>
    %cst_15 = arith.constant dense<0.000000e+00> : vector<2x128xf32>
    %19 = tpu.matmul %17, %18, %cst_15 {dimension_numbers = #tpu.dot_dimension_numbers<[1], [0], [0], [1], [0, 0, 1, 1], [], []>} : vector<2x16xbf16>, vector<16x128xbf16>, vector<2x128xf32> -> vector<2x128xf32>
    %20 = arith.truncf %2 : vector<2x32xf32> to vector<2x32xbf16>
    %c0_16 = arith.constant 0 : index
    %c0_17 = arith.constant 0 : index
    %21 = vector.load %arg5[%c0_16, %c0_17] : memref<32x128xbf16, #tpu.memory_space<vmem>>, vector<32x128xbf16>
    %cst_18 = arith.constant dense<0.000000e+00> : vector<2x128xf32>
    %22 = tpu.matmul %20, %21, %cst_18 {dimension_numbers = #tpu.dot_dimension_numbers<[1], [0], [0], [1], [0, 0, 1, 1], [], []>} : vector<2x32xbf16>, vector<32x128xbf16>, vector<2x128xf32> -> vector<2x128xf32>
    %23 = arith.addf %19, %22 : vector<2x128xf32>
    %24 = vector.broadcast %1 : vector<1x128xf32> to vector<2x128xf32>
    %25 = arith.addf %23, %24 : vector<2x128xf32>
    %26 = vector.extract_strided_slice %14 {offsets = [0, 0], sizes = [2, 32], strides = [1, 1]} : vector<2x128xf32> to vector<2x32xf32>
    %27 = arith.negf %26 : vector<2x32xf32>
    %28 = math.exp %27 : vector<2x32xf32>
    %cst_19 = arith.constant 1.000000e+00 : f32
    %29 = vector.broadcast %cst_19 : f32 to vector<2x32xf32>
    %30 = arith.addf %29, %28 : vector<2x32xf32>
    %31 = arith.divf %29, %30 : vector<2x32xf32>
    %32 = vector.extract_strided_slice %14 {offsets = [0, 32], sizes = [2, 32], strides = [1, 1]} : vector<2x128xf32> to vector<2x32xf32>
    %33 = arith.negf %32 : vector<2x32xf32>
    %34 = math.exp %33 : vector<2x32xf32>
    %cst_20 = arith.constant 1.000000e+00 : f32
    %35 = vector.broadcast %cst_20 : f32 to vector<2x32xf32>
    %36 = arith.addf %35, %34 : vector<2x32xf32>
    %37 = arith.divf %35, %36 : vector<2x32xf32>
    %38 = vector.extract_strided_slice %14 {offsets = [0, 64], sizes = [2, 32], strides = [1, 1]} : vector<2x128xf32> to vector<2x32xf32>
    %39 = math.tanh %38 : vector<2x32xf32>
    %40 = vector.extract_strided_slice %14 {offsets = [0, 96], sizes = [2, 32], strides = [1, 1]} : vector<2x128xf32> to vector<2x32xf32>
    %41 = arith.negf %40 : vector<2x32xf32>
    %42 = math.exp %41 : vector<2x32xf32>
    %cst_21 = arith.constant 1.000000e+00 : f32
    %43 = vector.broadcast %cst_21 : f32 to vector<2x32xf32>
    %44 = arith.addf %43, %42 : vector<2x32xf32>
    %45 = arith.divf %43, %44 : vector<2x32xf32>
    %46 = arith.mulf %37, %2 : vector<2x32xf32>
    %47 = arith.mulf %31, %39 : vector<2x32xf32>
    %48 = arith.addf %46, %47 : vector<2x32xf32>
    %49 = math.tanh %48 : vector<2x32xf32>
    %50 = arith.mulf %45, %49 : vector<2x32xf32>
    %51 = vector.extract_strided_slice %25 {offsets = [0, 0], sizes = [2, 32], strides = [1, 1]} : vector<2x128xf32> to vector<2x32xf32>
    %52 = arith.negf %51 : vector<2x32xf32>
    %53 = math.exp %52 : vector<2x32xf32>
    %cst_22 = arith.constant 1.000000e+00 : f32
    %54 = vector.broadcast %cst_22 : f32 to vector<2x32xf32>
    %55 = arith.addf %54, %53 : vector<2x32xf32>
    %56 = arith.divf %54, %55 : vector<2x32xf32>
    %57 = vector.extract_strided_slice %25 {offsets = [0, 32], sizes = [2, 32], strides = [1, 1]} : vector<2x128xf32> to vector<2x32xf32>
    %58 = arith.negf %57 : vector<2x32xf32>
    %59 = math.exp %58 : vector<2x32xf32>
    %cst_23 = arith.constant 1.000000e+00 : f32
    %60 = vector.broadcast %cst_23 : f32 to vector<2x32xf32>
    %61 = arith.addf %60, %59 : vector<2x32xf32>
    %62 = arith.divf %60, %61 : vector<2x32xf32>
    %63 = vector.extract_strided_slice %25 {offsets = [0, 64], sizes = [2, 32], strides = [1, 1]} : vector<2x128xf32> to vector<2x32xf32>
    %64 = math.tanh %63 : vector<2x32xf32>
    %65 = vector.extract_strided_slice %25 {offsets = [0, 96], sizes = [2, 32], strides = [1, 1]} : vector<2x128xf32> to vector<2x32xf32>
    %66 = arith.negf %65 : vector<2x32xf32>
    %67 = math.exp %66 : vector<2x32xf32>
    %cst_24 = arith.constant 1.000000e+00 : f32
    %68 = vector.broadcast %cst_24 : f32 to vector<2x32xf32>
    %69 = arith.addf %68, %67 : vector<2x32xf32>
    %70 = arith.divf %68, %69 : vector<2x32xf32>
    %71 = arith.mulf %62, %2 : vector<2x32xf32>
    %72 = arith.mulf %56, %64 : vector<2x32xf32>
    %73 = arith.addf %71, %72 : vector<2x32xf32>
    %74 = math.tanh %73 : vector<2x32xf32>
    %75 = arith.mulf %70, %74 : vector<2x32xf32>
    %76 = arith.truncf %50 : vector<2x32xf32> to vector<2x32xbf16>
    %77 = arith.index_cast %c0_i32 : i32 to index
    %c0_25 = arith.constant 0 : index
    %c0_26 = arith.constant 0 : index
    %78 = vector.load %arg8[%77, %c0_25, %c0_26] : memref<8x2x32xbf16, #tpu.memory_space<vmem>>, vector<1x2x32xbf16>
    %79 = vector.shape_cast %78 : vector<1x2x32xbf16> to vector<2x32xbf16>
    %80 = vector.shape_cast %76 : vector<2x32xbf16> to vector<1x2x32xbf16>
    tpu.vector_store %arg8[%77, %c0_25, %c0_26], %80 {strides = array<i32>} : memref<8x2x32xbf16, #tpu.memory_space<vmem>>, vector<1x2x32xbf16>,
    %81 = arith.truncf %75 : vector<2x32xf32> to vector<2x32xbf16>
    %82 = arith.index_cast %3 : i32 to index
    %c0_27 = arith.constant 0 : index
    %c0_28 = arith.constant 0 : index
    %83 = vector.load %arg9[%82, %c0_27, %c0_28] : memref<8x2x32xbf16, #tpu.memory_space<vmem>>, vector<1x2x32xbf16>
    %84 = vector.shape_cast %83 : vector<1x2x32xbf16> to vector<2x32xbf16>
    %85 = vector.shape_cast %81 : vector<2x32xbf16> to vector<1x2x32xbf16>
    tpu.vector_store %arg9[%82, %c0_27, %c0_28], %85 {strides = array<i32>} : memref<8x2x32xbf16, #tpu.memory_space<vmem>>, vector<1x2x32xbf16>,
    %c1_i32 = arith.constant 1 : i32
    %c7_i32_29 = arith.constant 7 : i32
    %86 = arith.subi %c7_i32_29, %c1_i32 : i32
    %87 = arith.index_cast %c1_i32 : i32 to index
    %c0_30 = arith.constant 0 : index
    %c0_31 = arith.constant 0 : index
    %88 = vector.load %arg1[%87, %c0_30, %c0_31] : memref<8x2x16xbf16, #tpu.memory_space<vmem>>, vector<1x2x16xbf16>
    %89 = vector.shape_cast %88 : vector<1x2x16xbf16> to vector<2x16xbf16>
    %c0_32 = arith.constant 0 : index
    %c0_33 = arith.constant 0 : index
    %90 = vector.load %arg2[%c0_32, %c0_33] : memref<16x128xbf16, #tpu.memory_space<vmem>>, vector<16x128xbf16>
    %cst_34 = arith.constant dense<0.000000e+00> : vector<2x128xf32>
    %91 = tpu.matmul %89, %90, %cst_34 {dimension_numbers = #tpu.dot_dimension_numbers<[1], [0], [0], [1], [0, 0, 1, 1], [], []>} : vector<2x16xbf16>, vector<16x128xbf16>, vector<2x128xf32> -> vector<2x128xf32>
    %92 = arith.truncf %50 : vector<2x32xf32> to vector<2x32xbf16>
    %c0_35 = arith.constant 0 : index
    %c0_36 = arith.constant 0 : index
    %93 = vector.load %arg4[%c0_35, %c0_36] : memref<32x128xbf16, #tpu.memory_space<vmem>>, vector<32x128xbf16>
    %cst_37 = arith.constant dense<0.000000e+00> : vector<2x128xf32>
    %94 = tpu.matmul %92, %93, %cst_37 {dimension_numbers = #tpu.dot_dimension_numbers<[1], [0], [0], [1], [0, 0, 1, 1], [], []>} : vector<2x32xbf16>, vector<32x128xbf16>, vector<2x128xf32> -> vector<2x128xf32>
    %95 = arith.addf %91, %94 : vector<2x128xf32>
    %96 = vector.broadcast %0 : vector<1x128xf32> to vector<2x128xf32>
    %97 = arith.addf %95, %96 : vector<2x128xf32>
    %98 = arith.index_cast %86 : i32 to index
    %c0_38 = arith.constant 0 : index
    %c0_39 = arith.constant 0 : index
    %99 = vector.load %arg1[%98, %c0_38, %c0_39] : memref<8x2x16xbf16, #tpu.memory_space<vmem>>, vector<1x2x16xbf16>
    %100 = vector.shape_cast %99 : vector<1x2x16xbf16> to vector<2x16xbf16>
    %c0_40 = arith.constant 0 : index
    %c0_41 = arith.constant 0 : index
    %101 = vector.load %arg3[%c0_40, %c0_41] : memref<16x128xbf16, #tpu.memory_space<vmem>>, vector<16x128xbf16>
    %cst_42 = arith.constant dense<0.000000e+00> : vector<2x128xf32>
    %102 = tpu.matmul %100, %101, %cst_42 {dimension_numbers = #tpu.dot_dimension_numbers<[1], [0], [0], [1], [0, 0, 1, 1], [], []>} : vector<2x16xbf16>, vector<16x128xbf16>, vector<2x128xf32> -> vector<2x128xf32>
    %103 = arith.truncf %75 : vector<2x32xf32> to vector<2x32xbf16>
    %c0_43 = arith.constant 0 : index
    %c0_44 = arith.constant 0 : index
    %104 = vector.load %arg5[%c0_43, %c0_44] : memref<32x128xbf16, #tpu.memory_space<vmem>>, vector<32x128xbf16>
    %cst_45 = arith.constant dense<0.000000e+00> : vector<2x128xf32>
    %105 = tpu.matmul %103, %104, %cst_45 {dimension_numbers = #tpu.dot_dimension_numbers<[1], [0], [0], [1], [0, 0, 1, 1], [], []>} : vector<2x32xbf16>, vector<32x128xbf16>, vector<2x128xf32> -> vector<2x128xf32>
    %106 = arith.addf %102, %105 : vector<2x128xf32>
    %107 = vector.broadcast %1 : vector<1x128xf32> to vector<2x128xf32>
    %108 = arith.addf %106, %107 : vector<2x128xf32>
    %109 = vector.extract_strided_slice %97 {offsets = [0, 0], sizes = [2, 32], strides = [1, 1]} : vector<2x128xf32> to vector<2x32xf32>
    %110 = arith.negf %109 : vector<2x32xf32>
    %111 = math.exp %110 : vector<2x32xf32>
    %cst_46 = arith.constant 1.000000e+00 : f32
    %112 = vector.broadcast %cst_46 : f32 to vector<2x32xf32>
    %113 = arith.addf %112, %111 : vector<2x32xf32>
    %114 = arith.divf %112, %113 : vector<2x32xf32>
    %115 = vector.extract_strided_slice %97 {offsets = [0, 32], sizes = [2, 32], strides = [1, 1]} : vector<2x128xf32> to vector<2x32xf32>
    %116 = arith.negf %115 : vector<2x32xf32>
    %117 = math.exp %116 : vector<2x32xf32>
    %cst_47 = arith.constant 1.000000e+00 : f32
    %118 = vector.broadcast %cst_47 : f32 to vector<2x32xf32>
    %119 = arith.addf %118, %117 : vector<2x32xf32>
    %120 = arith.divf %118, %119 : vector<2x32xf32>
    %121 = vector.extract_strided_slice %97 {offsets = [0, 64], sizes = [2, 32], strides = [1, 1]} : vector<2x128xf32> to vector<2x32xf32>
    %122 = math.tanh %121 : vector<2x32xf32>
    %123 = vector.extract_strided_slice %97 {offsets = [0, 96], sizes = [2, 32], strides = [1, 1]} : vector<2x128xf32> to vector<2x32xf32>
    %124 = arith.negf %123 : vector<2x32xf32>
    %125 = math.exp %124 : vector<2x32xf32>
    %cst_48 = arith.constant 1.000000e+00 : f32
    %126 = vector.broadcast %cst_48 : f32 to vector<2x32xf32>
    %127 = arith.addf %126, %125 : vector<2x32xf32>
    %128 = arith.divf %126, %127 : vector<2x32xf32>
    %129 = arith.mulf %120, %48 : vector<2x32xf32>
    %130 = arith.mulf %114, %122 : vector<2x32xf32>
    %131 = arith.addf %129, %130 : vector<2x32xf32>
    %132 = math.tanh %131 : vector<2x32xf32>
    %133 = arith.mulf %128, %132 : vector<2x32xf32>
    %134 = vector.extract_strided_slice %108 {offsets = [0, 0], sizes = [2, 32], strides = [1, 1]} : vector<2x128xf32> to vector<2x32xf32>
    %135 = arith.negf %134 : vector<2x32xf32>
    %136 = math.exp %135 : vector<2x32xf32>
    %cst_49 = arith.constant 1.000000e+00 : f32
    %137 = vector.broadcast %cst_49 : f32 to vector<2x32xf32>
    %138 = arith.addf %137, %136 : vector<2x32xf32>
    %139 = arith.divf %137, %138 : vector<2x32xf32>
    %140 = vector.extract_strided_slice %108 {offsets = [0, 32], sizes = [2, 32], strides = [1, 1]} : vector<2x128xf32> to vector<2x32xf32>
    %141 = arith.negf %140 : vector<2x32xf32>
    %142 = math.exp %141 : vector<2x32xf32>
    %cst_50 = arith.constant 1.000000e+00 : f32
    %143 = vector.broadcast %cst_50 : f32 to vector<2x32xf32>
    %144 = arith.addf %143, %142 : vector<2x32xf32>
    %145 = arith.divf %143, %144 : vector<2x32xf32>
    %146 = vector.extract_strided_slice %108 {offsets = [0, 64], sizes = [2, 32], strides = [1, 1]} : vector<2x128xf32> to vector<2x32xf32>
    %147 = math.tanh %146 : vector<2x32xf32>
    %148 = vector.extract_strided_slice %108 {offsets = [0, 96], sizes = [2, 32], strides = [1, 1]} : vector<2x128xf32> to vector<2x32xf32>
    %149 = arith.negf %148 : vector<2x32xf32>
    %150 = math.exp %149 : vector<2x32xf32>
    %cst_51 = arith.constant 1.000000e+00 : f32
    %151 = vector.broadcast %cst_51 : f32 to vector<2x32xf32>
    %152 = arith.addf %151, %150 : vector<2x32xf32>
    %153 = arith.divf %151, %152 : vector<2x32xf32>
    %154 = arith.mulf %145, %73 : vector<2x32xf32>
    %155 = arith.mulf %139, %147 : vector<2x32xf32>
    %156 = arith.addf %154, %155 : vector<2x32xf32>
    %157 = math.tanh %156 : vector<2x32xf32>
    %158 = arith.mulf %153, %157 : vector<2x32xf32>
    %159 = arith.truncf %133 : vector<2x32xf32> to vector<2x32xbf16>
    %160 = arith.index_cast %c1_i32 : i32 to index
    %c0_52 = arith.constant 0 : index
    %c0_53 = arith.constant 0 : index
    %161 = vector.load %arg8[%160, %c0_52, %c0_53] : memref<8x2x32xbf16, #tpu.memory_space<vmem>>, vector<1x2x32xbf16>
    %162 = vector.shape_cast %161 : vector<1x2x32xbf16> to vector<2x32xbf16>
    %163 = vector.shape_cast %159 : vector<2x32xbf16> to vector<1x2x32xbf16>
    tpu.vector_store %arg8[%160, %c0_52, %c0_53], %163 {strides = array<i32>} : memref<8x2x32xbf16, #tpu.memory_space<vmem>>, vector<1x2x32xbf16>,
    %164 = arith.truncf %158 : vector<2x32xf32> to vector<2x32xbf16>
    %165 = arith.index_cast %86 : i32 to index
    %c0_54 = arith.constant 0 : index
    %c0_55 = arith.constant 0 : index
    %166 = vector.load %arg9[%165, %c0_54, %c0_55] : memref<8x2x32xbf16, #tpu.memory_space<vmem>>, vector<1x2x32xbf16>
    %167 = vector.shape_cast %166 : vector<1x2x32xbf16> to vector<2x32xbf16>
    %168 = vector.shape_cast %164 : vector<2x32xbf16> to vector<1x2x32xbf16>
    tpu.vector_store %arg9[%165, %c0_54, %c0_55], %168 {strides = array<i32>} : memref<8x2x32xbf16, #tpu.memory_space<vmem>>, vector<1x2x32xbf16>,
    %c2_i32 = arith.constant 2 : i32
    %c7_i32_56 = arith.constant 7 : i32
    %169 = arith.subi %c7_i32_56, %c2_i32 : i32
    %170 = arith.index_cast %c2_i32 : i32 to index
    %c0_57 = arith.constant 0 : index
    %c0_58 = arith.constant 0 : index
    %171 = vector.load %arg1[%170, %c0_57, %c0_58] : memref<8x2x16xbf16, #tpu.memory_space<vmem>>, vector<1x2x16xbf16>
    %172 = vector.shape_cast %171 : vector<1x2x16xbf16> to vector<2x16xbf16>
    %c0_59 = arith.constant 0 : index
    %c0_60 = arith.constant 0 : index
    %173 = vector.load %arg2[%c0_59, %c0_60] : memref<16x128xbf16, #tpu.memory_space<vmem>>, vector<16x128xbf16>
    %cst_61 = arith.constant dense<0.000000e+00> : vector<2x128xf32>
    %174 = tpu.matmul %172, %173, %cst_61 {dimension_numbers = #tpu.dot_dimension_numbers<[1], [0], [0], [1], [0, 0, 1, 1], [], []>} : vector<2x16xbf16>, vector<16x128xbf16>, vector<2x128xf32> -> vector<2x128xf32>
    %175 = arith.truncf %133 : vector<2x32xf32> to vector<2x32xbf16>
    %c0_62 = arith.constant 0 : index
    %c0_63 = arith.constant 0 : index
    %176 = vector.load %arg4[%c0_62, %c0_63] : memref<32x128xbf16, #tpu.memory_space<vmem>>, vector<32x128xbf16>
    %cst_64 = arith.constant dense<0.000000e+00> : vector<2x128xf32>
    %177 = tpu.matmul %175, %176, %cst_64 {dimension_numbers = #tpu.dot_dimension_numbers<[1], [0], [0], [1], [0, 0, 1, 1], [], []>} : vector<2x32xbf16>, vector<32x128xbf16>, vector<2x128xf32> -> vector<2x128xf32>
    %178 = arith.addf %174, %177 : vector<2x128xf32>
    %179 = vector.broadcast %0 : vector<1x128xf32> to vector<2x128xf32>
    %180 = arith.addf %178, %179 : vector<2x128xf32>
    %181 = arith.index_cast %169 : i32 to index
    %c0_65 = arith.constant 0 : index
    %c0_66 = arith.constant 0 : index
    %182 = vector.load %arg1[%181, %c0_65, %c0_66] : memref<8x2x16xbf16, #tpu.memory_space<vmem>>, vector<1x2x16xbf16>
    %183 = vector.shape_cast %182 : vector<1x2x16xbf16> to vector<2x16xbf16>
    %c0_67 = arith.constant 0 : index
    %c0_68 = arith.constant 0 : index
    %184 = vector.load %arg3[%c0_67, %c0_68] : memref<16x128xbf16, #tpu.memory_space<vmem>>, vector<16x128xbf16>
    %cst_69 = arith.constant dense<0.000000e+00> : vector<2x128xf32>
    %185 = tpu.matmul %183, %184, %cst_69 {dimension_numbers = #tpu.dot_dimension_numbers<[1], [0], [0], [1], [0, 0, 1, 1], [], []>} : vector<2x16xbf16>, vector<16x128xbf16>, vector<2x128xf32> -> vector<2x128xf32>
    %186 = arith.truncf %158 : vector<2x32xf32> to vector<2x32xbf16>
    %c0_70 = arith.constant 0 : index
    %c0_71 = arith.constant 0 : index
    %187 = vector.load %arg5[%c0_70, %c0_71] : memref<32x128xbf16, #tpu.memory_space<vmem>>, vector<32x128xbf16>
    %cst_72 = arith.constant dense<0.000000e+00> : vector<2x128xf32>
    %188 = tpu.matmul %186, %187, %cst_72 {dimension_numbers = #tpu.dot_dimension_numbers<[1], [0], [0], [1], [0, 0, 1, 1], [], []>} : vector<2x32xbf16>, vector<32x128xbf16>, vector<2x128xf32> -> vector<2x128xf32>
    %189 = arith.addf %185, %188 : vector<2x128xf32>
    %190 = vector.broadcast %1 : vector<1x128xf32> to vector<2x128xf32>
    %191 = arith.addf %189, %190 : vector<2x128xf32>
    %192 = vector.extract_strided_slice %180 {offsets = [0, 0], sizes = [2, 32], strides = [1, 1]} : vector<2x128xf32> to vector<2x32xf32>
    %193 = arith.negf %192 : vector<2x32xf32>
    %194 = math.exp %193 : vector<2x32xf32>
    %cst_73 = arith.constant 1.000000e+00 : f32
    %195 = vector.broadcast %cst_73 : f32 to vector<2x32xf32>
    %196 = arith.addf %195, %194 : vector<2x32xf32>
    %197 = arith.divf %195, %196 : vector<2x32xf32>
    %198 = vector.extract_strided_slice %180 {offsets = [0, 32], sizes = [2, 32], strides = [1, 1]} : vector<2x128xf32> to vector<2x32xf32>
    %199 = arith.negf %198 : vector<2x32xf32>
    %200 = math.exp %199 : vector<2x32xf32>
    %cst_74 = arith.constant 1.000000e+00 : f32
    %201 = vector.broadcast %cst_74 : f32 to vector<2x32xf32>
    %202 = arith.addf %201, %200 : vector<2x32xf32>
    %203 = arith.divf %201, %202 : vector<2x32xf32>
    %204 = vector.extract_strided_slice %180 {offsets = [0, 64], sizes = [2, 32], strides = [1, 1]} : vector<2x128xf32> to vector<2x32xf32>
    %205 = math.tanh %204 : vector<2x32xf32>
    %206 = vector.extract_strided_slice %180 {offsets = [0, 96], sizes = [2, 32], strides = [1, 1]} : vector<2x128xf32> to vector<2x32xf32>
    %207 = arith.negf %206 : vector<2x32xf32>
    %208 = math.exp %207 : vector<2x32xf32>
    %cst_75 = arith.constant 1.000000e+00 : f32
    %209 = vector.broadcast %cst_75 : f32 to vector<2x32xf32>
    %210 = arith.addf %209, %208 : vector<2x32xf32>
    %211 = arith.divf %209, %210 : vector<2x32xf32>
    %212 = arith.mulf %203, %131 : vector<2x32xf32>
    %213 = arith.mulf %197, %205 : vector<2x32xf32>
    %214 = arith.addf %212, %213 : vector<2x32xf32>
    %215 = math.tanh %214 : vector<2x32xf32>
    %216 = arith.mulf %211, %215 : vector<2x32xf32>
    %217 = vector.extract_strided_slice %191 {offsets = [0, 0], sizes = [2, 32], strides = [1, 1]} : vector<2x128xf32> to vector<2x32xf32>
    %218 = arith.negf %217 : vector<2x32xf32>
    %219 = math.exp %218 : vector<2x32xf32>
    %cst_76 = arith.constant 1.000000e+00 : f32
    %220 = vector.broadcast %cst_76 : f32 to vector<2x32xf32>
    %221 = arith.addf %220, %219 : vector<2x32xf32>
    %222 = arith.divf %220, %221 : vector<2x32xf32>
    %223 = vector.extract_strided_slice %191 {offsets = [0, 32], sizes = [2, 32], strides = [1, 1]} : vector<2x128xf32> to vector<2x32xf32>
    %224 = arith.negf %223 : vector<2x32xf32>
    %225 = math.exp %224 : vector<2x32xf32>
    %cst_77 = arith.constant 1.000000e+00 : f32
    %226 = vector.broadcast %cst_77 : f32 to vector<2x32xf32>
    %227 = arith.addf %226, %225 : vector<2x32xf32>
    %228 = arith.divf %226, %227 : vector<2x32xf32>
    %229 = vector.extract_strided_slice %191 {offsets = [0, 64], sizes = [2, 32], strides = [1, 1]} : vector<2x128xf32> to vector<2x32xf32>
    %230 = math.tanh %229 : vector<2x32xf32>
    %231 = vector.extract_strided_slice %191 {offsets = [0, 96], sizes = [2, 32], strides = [1, 1]} : vector<2x128xf32> to vector<2x32xf32>
    %232 = arith.negf %231 : vector<2x32xf32>
    %233 = math.exp %232 : vector<2x32xf32>
    %cst_78 = arith.constant 1.000000e+00 : f32
    %234 = vector.broadcast %cst_78 : f32 to vector<2x32xf32>
    %235 = arith.addf %234, %233 : vector<2x32xf32>
    %236 = arith.divf %234, %235 : vector<2x32xf32>
    %237 = arith.mulf %228, %156 : vector<2x32xf32>
    %238 = arith.mulf %222, %230 : vector<2x32xf32>
    %239 = arith.addf %237, %238 : vector<2x32xf32>
    %240 = math.tanh %239 : vector<2x32xf32>
    %241 = arith.mulf %236, %240 : vector<2x32xf32>
    %242 = arith.truncf %216 : vector<2x32xf32> to vector<2x32xbf16>
    %243 = arith.index_cast %c2_i32 : i32 to index
    %c0_79 = arith.constant 0 : index
    %c0_80 = arith.constant 0 : index
    %244 = vector.load %arg8[%243, %c0_79, %c0_80] : memref<8x2x32xbf16, #tpu.memory_space<vmem>>, vector<1x2x32xbf16>
    %245 = vector.shape_cast %244 : vector<1x2x32xbf16> to vector<2x32xbf16>
    %246 = vector.shape_cast %242 : vector<2x32xbf16> to vector<1x2x32xbf16>
    tpu.vector_store %arg8[%243, %c0_79, %c0_80], %246 {strides = array<i32>} : memref<8x2x32xbf16, #tpu.memory_space<vmem>>, vector<1x2x32xbf16>,
    %247 = arith.truncf %241 : vector<2x32xf32> to vector<2x32xbf16>
    %248 = arith.index_cast %169 : i32 to index
    %c0_81 = arith.constant 0 : index
    %c0_82 = arith.constant 0 : index
    %249 = vector.load %arg9[%248, %c0_81, %c0_82] : memref<8x2x32xbf16, #tpu.memory_space<vmem>>, vector<1x2x32xbf16>
    %250 = vector.shape_cast %249 : vector<1x2x32xbf16> to vector<2x32xbf16>
    %251 = vector.shape_cast %247 : vector<2x32xbf16> to vector<1x2x32xbf16>
    tpu.vector_store %arg9[%248, %c0_81, %c0_82], %251 {strides = array<i32>} : memref<8x2x32xbf16, #tpu.memory_space<vmem>>, vector<1x2x32xbf16>,
    %c3_i32 = arith.constant 3 : i32
    %c7_i32_83 = arith.constant 7 : i32
    %252 = arith.subi %c7_i32_83, %c3_i32 : i32
    %253 = arith.index_cast %c3_i32 : i32 to index
    %c0_84 = arith.constant 0 : index
    %c0_85 = arith.constant 0 : index
    %254 = vector.load %arg1[%253, %c0_84, %c0_85] : memref<8x2x16xbf16, #tpu.memory_space<vmem>>, vector<1x2x16xbf16>
    %255 = vector.shape_cast %254 : vector<1x2x16xbf16> to vector<2x16xbf16>
    %c0_86 = arith.constant 0 : index
    %c0_87 = arith.constant 0 : index
    %256 = vector.load %arg2[%c0_86, %c0_87] : memref<16x128xbf16, #tpu.memory_space<vmem>>, vector<16x128xbf16>
    %cst_88 = arith.constant dense<0.000000e+00> : vector<2x128xf32>
    %257 = tpu.matmul %255, %256, %cst_88 {dimension_numbers = #tpu.dot_dimension_numbers<[1], [0], [0], [1], [0, 0, 1, 1], [], []>} : vector<2x16xbf16>, vector<16x128xbf16>, vector<2x128xf32> -> vector<2x128xf32>
    %258 = arith.truncf %216 : vector<2x32xf32> to vector<2x32xbf16>
    %c0_89 = arith.constant 0 : index
    %c0_90 = arith.constant 0 : index
    %259 = vector.load %arg4[%c0_89, %c0_90] : memref<32x128xbf16, #tpu.memory_space<vmem>>, vector<32x128xbf16>
    %cst_91 = arith.constant dense<0.000000e+00> : vector<2x128xf32>
    %260 = tpu.matmul %258, %259, %cst_91 {dimension_numbers = #tpu.dot_dimension_numbers<[1], [0], [0], [1], [0, 0, 1, 1], [], []>} : vector<2x32xbf16>, vector<32x128xbf16>, vector<2x128xf32> -> vector<2x128xf32>
    %261 = arith.addf %257, %260 : vector<2x128xf32>
    %262 = vector.broadcast %0 : vector<1x128xf32> to vector<2x128xf32>
    %263 = arith.addf %261, %262 : vector<2x128xf32>
    %264 = arith.index_cast %252 : i32 to index
    %c0_92 = arith.constant 0 : index
    %c0_93 = arith.constant 0 : index
    %265 = vector.load %arg1[%264, %c0_92, %c0_93] : memref<8x2x16xbf16, #tpu.memory_space<vmem>>, vector<1x2x16xbf16>
    %266 = vector.shape_cast %265 : vector<1x2x16xbf16> to vector<2x16xbf16>
    %c0_94 = arith.constant 0 : index
    %c0_95 = arith.constant 0 : index
    %267 = vector.load %arg3[%c0_94, %c0_95] : memref<16x128xbf16, #tpu.memory_space<vmem>>, vector<16x128xbf16>
    %cst_96 = arith.constant dense<0.000000e+00> : vector<2x128xf32>
    %268 = tpu.matmul %266, %267, %cst_96 {dimension_numbers = #tpu.dot_dimension_numbers<[1], [0], [0], [1], [0, 0, 1, 1], [], []>} : vector<2x16xbf16>, vector<16x128xbf16>, vector<2x128xf32> -> vector<2x128xf32>
    %269 = arith.truncf %241 : vector<2x32xf32> to vector<2x32xbf16>
    %c0_97 = arith.constant 0 : index
    %c0_98 = arith.constant 0 : index
    %270 = vector.load %arg5[%c0_97, %c0_98] : memref<32x128xbf16, #tpu.memory_space<vmem>>, vector<32x128xbf16>
    %cst_99 = arith.constant dense<0.000000e+00> : vector<2x128xf32>
    %271 = tpu.matmul %269, %270, %cst_99 {dimension_numbers = #tpu.dot_dimension_numbers<[1], [0], [0], [1], [0, 0, 1, 1], [], []>} : vector<2x32xbf16>, vector<32x128xbf16>, vector<2x128xf32> -> vector<2x128xf32>
    %272 = arith.addf %268, %271 : vector<2x128xf32>
    %273 = vector.broadcast %1 : vector<1x128xf32> to vector<2x128xf32>
    %274 = arith.addf %272, %273 : vector<2x128xf32>
    %275 = vector.extract_strided_slice %263 {offsets = [0, 0], sizes = [2, 32], strides = [1, 1]} : vector<2x128xf32> to vector<2x32xf32>
    %276 = arith.negf %275 : vector<2x32xf32>
    %277 = math.exp %276 : vector<2x32xf32>
    %cst_100 = arith.constant 1.000000e+00 : f32
    %278 = vector.broadcast %cst_100 : f32 to vector<2x32xf32>
    %279 = arith.addf %278, %277 : vector<2x32xf32>
    %280 = arith.divf %278, %279 : vector<2x32xf32>
    %281 = vector.extract_strided_slice %263 {offsets = [0, 32], sizes = [2, 32], strides = [1, 1]} : vector<2x128xf32> to vector<2x32xf32>
    %282 = arith.negf %281 : vector<2x32xf32>
    %283 = math.exp %282 : vector<2x32xf32>
    %cst_101 = arith.constant 1.000000e+00 : f32
    %284 = vector.broadcast %cst_101 : f32 to vector<2x32xf32>
    %285 = arith.addf %284, %283 : vector<2x32xf32>
    %286 = arith.divf %284, %285 : vector<2x32xf32>
    %287 = vector.extract_strided_slice %263 {offsets = [0, 64], sizes = [2, 32], strides = [1, 1]} : vector<2x128xf32> to vector<2x32xf32>
    %288 = math.tanh %287 : vector<2x32xf32>
    %289 = vector.extract_strided_slice %263 {offsets = [0, 96], sizes = [2, 32], strides = [1, 1]} : vector<2x128xf32> to vector<2x32xf32>
    %290 = arith.negf %289 : vector<2x32xf32>
    %291 = math.exp %290 : vector<2x32xf32>
    %cst_102 = arith.constant 1.000000e+00 : f32
    %292 = vector.broadcast %cst_102 : f32 to vector<2x32xf32>
    %293 = arith.addf %292, %291 : vector<2x32xf32>
    %294 = arith.divf %292, %293 : vector<2x32xf32>
    %295 = arith.mulf %286, %214 : vector<2x32xf32>
    %296 = arith.mulf %280, %288 : vector<2x32xf32>
    %297 = arith.addf %295, %296 : vector<2x32xf32>
    %298 = math.tanh %297 : vector<2x32xf32>
    %299 = arith.mulf %294, %298 : vector<2x32xf32>
    %300 = vector.extract_strided_slice %274 {offsets = [0, 0], sizes = [2, 32], strides = [1, 1]} : vector<2x128xf32> to vector<2x32xf32>
    %301 = arith.negf %300 : vector<2x32xf32>
    %302 = math.exp %301 : vector<2x32xf32>
    %cst_103 = arith.constant 1.000000e+00 : f32
    %303 = vector.broadcast %cst_103 : f32 to vector<2x32xf32>
    %304 = arith.addf %303, %302 : vector<2x32xf32>
    %305 = arith.divf %303, %304 : vector<2x32xf32>
    %306 = vector.extract_strided_slice %274 {offsets = [0, 32], sizes = [2, 32], strides = [1, 1]} : vector<2x128xf32> to vector<2x32xf32>
    %307 = arith.negf %306 : vector<2x32xf32>
    %308 = math.exp %307 : vector<2x32xf32>
    %cst_104 = arith.constant 1.000000e+00 : f32
    %309 = vector.broadcast %cst_104 : f32 to vector<2x32xf32>
    %310 = arith.addf %309, %308 : vector<2x32xf32>
    %311 = arith.divf %309, %310 : vector<2x32xf32>
    %312 = vector.extract_strided_slice %274 {offsets = [0, 64], sizes = [2, 32], strides = [1, 1]} : vector<2x128xf32> to vector<2x32xf32>
    %313 = math.tanh %312 : vector<2x32xf32>
    %314 = vector.extract_strided_slice %274 {offsets = [0, 96], sizes = [2, 32], strides = [1, 1]} : vector<2x128xf32> to vector<2x32xf32>
    %315 = arith.negf %314 : vector<2x32xf32>
    %316 = math.exp %315 : vector<2x32xf32>
    %cst_105 = arith.constant 1.000000e+00 : f32
    %317 = vector.broadcast %cst_105 : f32 to vector<2x32xf32>
    %318 = arith.addf %317, %316 : vector<2x32xf32>
    %319 = arith.divf %317, %318 : vector<2x32xf32>
    %320 = arith.mulf %311, %239 : vector<2x32xf32>
    %321 = arith.mulf %305, %313 : vector<2x32xf32>
    %322 = arith.addf %320, %321 : vector<2x32xf32>
    %323 = math.tanh %322 : vector<2x32xf32>
    %324 = arith.mulf %319, %323 : vector<2x32xf32>
    %325 = arith.truncf %299 : vector<2x32xf32> to vector<2x32xbf16>
    %326 = arith.index_cast %c3_i32 : i32 to index
    %c0_106 = arith.constant 0 : index
    %c0_107 = arith.constant 0 : index
    %327 = vector.load %arg8[%326, %c0_106, %c0_107] : memref<8x2x32xbf16, #tpu.memory_space<vmem>>, vector<1x2x32xbf16>
    %328 = vector.shape_cast %327 : vector<1x2x32xbf16> to vector<2x32xbf16>
    %329 = vector.shape_cast %325 : vector<2x32xbf16> to vector<1x2x32xbf16>
    tpu.vector_store %arg8[%326, %c0_106, %c0_107], %329 {strides = array<i32>} : memref<8x2x32xbf16, #tpu.memory_space<vmem>>, vector<1x2x32xbf16>,
    %330 = arith.truncf %324 : vector<2x32xf32> to vector<2x32xbf16>
    %331 = arith.index_cast %252 : i32 to index
    %c0_108 = arith.constant 0 : index
    %c0_109 = arith.constant 0 : index
    %332 = vector.load %arg9[%331, %c0_108, %c0_109] : memref<8x2x32xbf16, #tpu.memory_space<vmem>>, vector<1x2x32xbf16>
    %333 = vector.shape_cast %332 : vector<1x2x32xbf16> to vector<2x32xbf16>
    %334 = vector.shape_cast %330 : vector<2x32xbf16> to vector<1x2x32xbf16>
    tpu.vector_store %arg9[%331, %c0_108, %c0_109], %334 {strides = array<i32>} : memref<8x2x32xbf16, #tpu.memory_space<vmem>>, vector<1x2x32xbf16>,
    %c4_i32 = arith.constant 4 : i32
    %c7_i32_110 = arith.constant 7 : i32
    %335 = arith.subi %c7_i32_110, %c4_i32 : i32
    %336 = arith.index_cast %c4_i32 : i32 to index
    %c0_111 = arith.constant 0 : index
    %c0_112 = arith.constant 0 : index
    %337 = vector.load %arg1[%336, %c0_111, %c0_112] : memref<8x2x16xbf16, #tpu.memory_space<vmem>>, vector<1x2x16xbf16>
    %338 = vector.shape_cast %337 : vector<1x2x16xbf16> to vector<2x16xbf16>
    %c0_113 = arith.constant 0 : index
    %c0_114 = arith.constant 0 : index
    %339 = vector.load %arg2[%c0_113, %c0_114] : memref<16x128xbf16, #tpu.memory_space<vmem>>, vector<16x128xbf16>
    %cst_115 = arith.constant dense<0.000000e+00> : vector<2x128xf32>
    %340 = tpu.matmul %338, %339, %cst_115 {dimension_numbers = #tpu.dot_dimension_numbers<[1], [0], [0], [1], [0, 0, 1, 1], [], []>} : vector<2x16xbf16>, vector<16x128xbf16>, vector<2x128xf32> -> vector<2x128xf32>
    %341 = arith.truncf %299 : vector<2x32xf32> to vector<2x32xbf16>
    %c0_116 = arith.constant 0 : index
    %c0_117 = arith.constant 0 : index
    %342 = vector.load %arg4[%c0_116, %c0_117] : memref<32x128xbf16, #tpu.memory_space<vmem>>, vector<32x128xbf16>
    %cst_118 = arith.constant dense<0.000000e+00> : vector<2x128xf32>
    %343 = tpu.matmul %341, %342, %cst_118 {dimension_numbers = #tpu.dot_dimension_numbers<[1], [0], [0], [1], [0, 0, 1, 1], [], []>} : vector<2x32xbf16>, vector<32x128xbf16>, vector<2x128xf32> -> vector<2x128xf32>
    %344 = arith.addf %340, %343 : vector<2x128xf32>
    %345 = vector.broadcast %0 : vector<1x128xf32> to vector<2x128xf32>
    %346 = arith.addf %344, %345 : vector<2x128xf32>
    %347 = arith.index_cast %335 : i32 to index
    %c0_119 = arith.constant 0 : index
    %c0_120 = arith.constant 0 : index
    %348 = vector.load %arg1[%347, %c0_119, %c0_120] : memref<8x2x16xbf16, #tpu.memory_space<vmem>>, vector<1x2x16xbf16>
    %349 = vector.shape_cast %348 : vector<1x2x16xbf16> to vector<2x16xbf16>
    %c0_121 = arith.constant 0 : index
    %c0_122 = arith.constant 0 : index
    %350 = vector.load %arg3[%c0_121, %c0_122] : memref<16x128xbf16, #tpu.memory_space<vmem>>, vector<16x128xbf16>
    %cst_123 = arith.constant dense<0.000000e+00> : vector<2x128xf32>
    %351 = tpu.matmul %349, %350, %cst_123 {dimension_numbers = #tpu.dot_dimension_numbers<[1], [0], [0], [1], [0, 0, 1, 1], [], []>} : vector<2x16xbf16>, vector<16x128xbf16>, vector<2x128xf32> -> vector<2x128xf32>
    %352 = arith.truncf %324 : vector<2x32xf32> to vector<2x32xbf16>
    %c0_124 = arith.constant 0 : index
    %c0_125 = arith.constant 0 : index
    %353 = vector.load %arg5[%c0_124, %c0_125] : memref<32x128xbf16, #tpu.memory_space<vmem>>, vector<32x128xbf16>
    %cst_126 = arith.constant dense<0.000000e+00> : vector<2x128xf32>
    %354 = tpu.matmul %352, %353, %cst_126 {dimension_numbers = #tpu.dot_dimension_numbers<[1], [0], [0], [1], [0, 0, 1, 1], [], []>} : vector<2x32xbf16>, vector<32x128xbf16>, vector<2x128xf32> -> vector<2x128xf32>
    %355 = arith.addf %351, %354 : vector<2x128xf32>
    %356 = vector.broadcast %1 : vector<1x128xf32> to vector<2x128xf32>
    %357 = arith.addf %355, %356 : vector<2x128xf32>
    %358 = vector.extract_strided_slice %346 {offsets = [0, 0], sizes = [2, 32], strides = [1, 1]} : vector<2x128xf32> to vector<2x32xf32>
    %359 = arith.negf %358 : vector<2x32xf32>
    %360 = math.exp %359 : vector<2x32xf32>
    %cst_127 = arith.constant 1.000000e+00 : f32
    %361 = vector.broadcast %cst_127 : f32 to vector<2x32xf32>
    %362 = arith.addf %361, %360 : vector<2x32xf32>
    %363 = arith.divf %361, %362 : vector<2x32xf32>
    %364 = vector.extract_strided_slice %346 {offsets = [0, 32], sizes = [2, 32], strides = [1, 1]} : vector<2x128xf32> to vector<2x32xf32>
    %365 = arith.negf %364 : vector<2x32xf32>
    %366 = math.exp %365 : vector<2x32xf32>
    %cst_128 = arith.constant 1.000000e+00 : f32
    %367 = vector.broadcast %cst_128 : f32 to vector<2x32xf32>
    %368 = arith.addf %367, %366 : vector<2x32xf32>
    %369 = arith.divf %367, %368 : vector<2x32xf32>
    %370 = vector.extract_strided_slice %346 {offsets = [0, 64], sizes = [2, 32], strides = [1, 1]} : vector<2x128xf32> to vector<2x32xf32>
    %371 = math.tanh %370 : vector<2x32xf32>
    %372 = vector.extract_strided_slice %346 {offsets = [0, 96], sizes = [2, 32], strides = [1, 1]} : vector<2x128xf32> to vector<2x32xf32>
    %373 = arith.negf %372 : vector<2x32xf32>
    %374 = math.exp %373 : vector<2x32xf32>
    %cst_129 = arith.constant 1.000000e+00 : f32
    %375 = vector.broadcast %cst_129 : f32 to vector<2x32xf32>
    %376 = arith.addf %375, %374 : vector<2x32xf32>
    %377 = arith.divf %375, %376 : vector<2x32xf32>
    %378 = arith.mulf %369, %297 : vector<2x32xf32>
    %379 = arith.mulf %363, %371 : vector<2x32xf32>
    %380 = arith.addf %378, %379 : vector<2x32xf32>
    %381 = math.tanh %380 : vector<2x32xf32>
    %382 = arith.mulf %377, %381 : vector<2x32xf32>
    %383 = vector.extract_strided_slice %357 {offsets = [0, 0], sizes = [2, 32], strides = [1, 1]} : vector<2x128xf32> to vector<2x32xf32>
    %384 = arith.negf %383 : vector<2x32xf32>
    %385 = math.exp %384 : vector<2x32xf32>
    %cst_130 = arith.constant 1.000000e+00 : f32
    %386 = vector.broadcast %cst_130 : f32 to vector<2x32xf32>
    %387 = arith.addf %386, %385 : vector<2x32xf32>
    %388 = arith.divf %386, %387 : vector<2x32xf32>
    %389 = vector.extract_strided_slice %357 {offsets = [0, 32], sizes = [2, 32], strides = [1, 1]} : vector<2x128xf32> to vector<2x32xf32>
    %390 = arith.negf %389 : vector<2x32xf32>
    %391 = math.exp %390 : vector<2x32xf32>
    %cst_131 = arith.constant 1.000000e+00 : f32
    %392 = vector.broadcast %cst_131 : f32 to vector<2x32xf32>
    %393 = arith.addf %392, %391 : vector<2x32xf32>
    %394 = arith.divf %392, %393 : vector<2x32xf32>
    %395 = vector.extract_strided_slice %357 {offsets = [0, 64], sizes = [2, 32], strides = [1, 1]} : vector<2x128xf32> to vector<2x32xf32>
    %396 = math.tanh %395 : vector<2x32xf32>
    %397 = vector.extract_strided_slice %357 {offsets = [0, 96], sizes = [2, 32], strides = [1, 1]} : vector<2x128xf32> to vector<2x32xf32>
    %398 = arith.negf %397 : vector<2x32xf32>
    %399 = math.exp %398 : vector<2x32xf32>
    %cst_132 = arith.constant 1.000000e+00 : f32
    %400 = vector.broadcast %cst_132 : f32 to vector<2x32xf32>
    %401 = arith.addf %400, %399 : vector<2x32xf32>
    %402 = arith.divf %400, %401 : vector<2x32xf32>
    %403 = arith.mulf %394, %322 : vector<2x32xf32>
    %404 = arith.mulf %388, %396 : vector<2x32xf32>
    %405 = arith.addf %403, %404 : vector<2x32xf32>
    %406 = math.tanh %405 : vector<2x32xf32>
    %407 = arith.mulf %402, %406 : vector<2x32xf32>
    %408 = arith.truncf %382 : vector<2x32xf32> to vector<2x32xbf16>
    %409 = arith.index_cast %c4_i32 : i32 to index
    %c0_133 = arith.constant 0 : index
    %c0_134 = arith.constant 0 : index
    %410 = vector.load %arg8[%409, %c0_133, %c0_134] : memref<8x2x32xbf16, #tpu.memory_space<vmem>>, vector<1x2x32xbf16>
    %411 = vector.shape_cast %410 : vector<1x2x32xbf16> to vector<2x32xbf16>
    %412 = vector.shape_cast %408 : vector<2x32xbf16> to vector<1x2x32xbf16>
    tpu.vector_store %arg8[%409, %c0_133, %c0_134], %412 {strides = array<i32>} : memref<8x2x32xbf16, #tpu.memory_space<vmem>>, vector<1x2x32xbf16>,
    %413 = arith.truncf %407 : vector<2x32xf32> to vector<2x32xbf16>
    %414 = arith.index_cast %335 : i32 to index
    %c0_135 = arith.constant 0 : index
    %c0_136 = arith.constant 0 : index
    %415 = vector.load %arg9[%414, %c0_135, %c0_136] : memref<8x2x32xbf16, #tpu.memory_space<vmem>>, vector<1x2x32xbf16>
    %416 = vector.shape_cast %415 : vector<1x2x32xbf16> to vector<2x32xbf16>
    %417 = vector.shape_cast %413 : vector<2x32xbf16> to vector<1x2x32xbf16>
    tpu.vector_store %arg9[%414, %c0_135, %c0_136], %417 {strides = array<i32>} : memref<8x2x32xbf16, #tpu.memory_space<vmem>>, vector<1x2x32xbf16>,
    %c5_i32 = arith.constant 5 : i32
    %c7_i32_137 = arith.constant 7 : i32
    %418 = arith.subi %c7_i32_137, %c5_i32 : i32
    %419 = arith.index_cast %c5_i32 : i32 to index
    %c0_138 = arith.constant 0 : index
    %c0_139 = arith.constant 0 : index
    %420 = vector.load %arg1[%419, %c0_138, %c0_139] : memref<8x2x16xbf16, #tpu.memory_space<vmem>>, vector<1x2x16xbf16>
    %421 = vector.shape_cast %420 : vector<1x2x16xbf16> to vector<2x16xbf16>
    %c0_140 = arith.constant 0 : index
    %c0_141 = arith.constant 0 : index
    %422 = vector.load %arg2[%c0_140, %c0_141] : memref<16x128xbf16, #tpu.memory_space<vmem>>, vector<16x128xbf16>
    %cst_142 = arith.constant dense<0.000000e+00> : vector<2x128xf32>
    %423 = tpu.matmul %421, %422, %cst_142 {dimension_numbers = #tpu.dot_dimension_numbers<[1], [0], [0], [1], [0, 0, 1, 1], [], []>} : vector<2x16xbf16>, vector<16x128xbf16>, vector<2x128xf32> -> vector<2x128xf32>
    %424 = arith.truncf %382 : vector<2x32xf32> to vector<2x32xbf16>
    %c0_143 = arith.constant 0 : index
    %c0_144 = arith.constant 0 : index
    %425 = vector.load %arg4[%c0_143, %c0_144] : memref<32x128xbf16, #tpu.memory_space<vmem>>, vector<32x128xbf16>
    %cst_145 = arith.constant dense<0.000000e+00> : vector<2x128xf32>
    %426 = tpu.matmul %424, %425, %cst_145 {dimension_numbers = #tpu.dot_dimension_numbers<[1], [0], [0], [1], [0, 0, 1, 1], [], []>} : vector<2x32xbf16>, vector<32x128xbf16>, vector<2x128xf32> -> vector<2x128xf32>
    %427 = arith.addf %423, %426 : vector<2x128xf32>
    %428 = vector.broadcast %0 : vector<1x128xf32> to vector<2x128xf32>
    %429 = arith.addf %427, %428 : vector<2x128xf32>
    %430 = arith.index_cast %418 : i32 to index
    %c0_146 = arith.constant 0 : index
    %c0_147 = arith.constant 0 : index
    %431 = vector.load %arg1[%430, %c0_146, %c0_147] : memref<8x2x16xbf16, #tpu.memory_space<vmem>>, vector<1x2x16xbf16>
    %432 = vector.shape_cast %431 : vector<1x2x16xbf16> to vector<2x16xbf16>
    %c0_148 = arith.constant 0 : index
    %c0_149 = arith.constant 0 : index
    %433 = vector.load %arg3[%c0_148, %c0_149] : memref<16x128xbf16, #tpu.memory_space<vmem>>, vector<16x128xbf16>
    %cst_150 = arith.constant dense<0.000000e+00> : vector<2x128xf32>
    %434 = tpu.matmul %432, %433, %cst_150 {dimension_numbers = #tpu.dot_dimension_numbers<[1], [0], [0], [1], [0, 0, 1, 1], [], []>} : vector<2x16xbf16>, vector<16x128xbf16>, vector<2x128xf32> -> vector<2x128xf32>
    %435 = arith.truncf %407 : vector<2x32xf32> to vector<2x32xbf16>
    %c0_151 = arith.constant 0 : index
    %c0_152 = arith.constant 0 : index
    %436 = vector.load %arg5[%c0_151, %c0_152] : memref<32x128xbf16, #tpu.memory_space<vmem>>, vector<32x128xbf16>
    %cst_153 = arith.constant dense<0.000000e+00> : vector<2x128xf32>
    %437 = tpu.matmul %435, %436, %cst_153 {dimension_numbers = #tpu.dot_dimension_numbers<[1], [0], [0], [1], [0, 0, 1, 1], [], []>} : vector<2x32xbf16>, vector<32x128xbf16>, vector<2x128xf32> -> vector<2x128xf32>
    %438 = arith.addf %434, %437 : vector<2x128xf32>
    %439 = vector.broadcast %1 : vector<1x128xf32> to vector<2x128xf32>
    %440 = arith.addf %438, %439 : vector<2x128xf32>
    %441 = vector.extract_strided_slice %429 {offsets = [0, 0], sizes = [2, 32], strides = [1, 1]} : vector<2x128xf32> to vector<2x32xf32>
    %442 = arith.negf %441 : vector<2x32xf32>
    %443 = math.exp %442 : vector<2x32xf32>
    %cst_154 = arith.constant 1.000000e+00 : f32
    %444 = vector.broadcast %cst_154 : f32 to vector<2x32xf32>
    %445 = arith.addf %444, %443 : vector<2x32xf32>
    %446 = arith.divf %444, %445 : vector<2x32xf32>
    %447 = vector.extract_strided_slice %429 {offsets = [0, 32], sizes = [2, 32], strides = [1, 1]} : vector<2x128xf32> to vector<2x32xf32>
    %448 = arith.negf %447 : vector<2x32xf32>
    %449 = math.exp %448 : vector<2x32xf32>
    %cst_155 = arith.constant 1.000000e+00 : f32
    %450 = vector.broadcast %cst_155 : f32 to vector<2x32xf32>
    %451 = arith.addf %450, %449 : vector<2x32xf32>
    %452 = arith.divf %450, %451 : vector<2x32xf32>
    %453 = vector.extract_strided_slice %429 {offsets = [0, 64], sizes = [2, 32], strides = [1, 1]} : vector<2x128xf32> to vector<2x32xf32>
    %454 = math.tanh %453 : vector<2x32xf32>
    %455 = vector.extract_strided_slice %429 {offsets = [0, 96], sizes = [2, 32], strides = [1, 1]} : vector<2x128xf32> to vector<2x32xf32>
    %456 = arith.negf %455 : vector<2x32xf32>
    %457 = math.exp %456 : vector<2x32xf32>
    %cst_156 = arith.constant 1.000000e+00 : f32
    %458 = vector.broadcast %cst_156 : f32 to vector<2x32xf32>
    %459 = arith.addf %458, %457 : vector<2x32xf32>
    %460 = arith.divf %458, %459 : vector<2x32xf32>
    %461 = arith.mulf %452, %380 : vector<2x32xf32>
    %462 = arith.mulf %446, %454 : vector<2x32xf32>
    %463 = arith.addf %461, %462 : vector<2x32xf32>
    %464 = math.tanh %463 : vector<2x32xf32>
    %465 = arith.mulf %460, %464 : vector<2x32xf32>
    %466 = vector.extract_strided_slice %440 {offsets = [0, 0], sizes = [2, 32], strides = [1, 1]} : vector<2x128xf32> to vector<2x32xf32>
    %467 = arith.negf %466 : vector<2x32xf32>
    %468 = math.exp %467 : vector<2x32xf32>
    %cst_157 = arith.constant 1.000000e+00 : f32
    %469 = vector.broadcast %cst_157 : f32 to vector<2x32xf32>
    %470 = arith.addf %469, %468 : vector<2x32xf32>
    %471 = arith.divf %469, %470 : vector<2x32xf32>
    %472 = vector.extract_strided_slice %440 {offsets = [0, 32], sizes = [2, 32], strides = [1, 1]} : vector<2x128xf32> to vector<2x32xf32>
    %473 = arith.negf %472 : vector<2x32xf32>
    %474 = math.exp %473 : vector<2x32xf32>
    %cst_158 = arith.constant 1.000000e+00 : f32
    %475 = vector.broadcast %cst_158 : f32 to vector<2x32xf32>
    %476 = arith.addf %475, %474 : vector<2x32xf32>
    %477 = arith.divf %475, %476 : vector<2x32xf32>
    %478 = vector.extract_strided_slice %440 {offsets = [0, 64], sizes = [2, 32], strides = [1, 1]} : vector<2x128xf32> to vector<2x32xf32>
    %479 = math.tanh %478 : vector<2x32xf32>
    %480 = vector.extract_strided_slice %440 {offsets = [0, 96], sizes = [2, 32], strides = [1, 1]} : vector<2x128xf32> to vector<2x32xf32>
    %481 = arith.negf %480 : vector<2x32xf32>
    %482 = math.exp %481 : vector<2x32xf32>
    %cst_159 = arith.constant 1.000000e+00 : f32
    %483 = vector.broadcast %cst_159 : f32 to vector<2x32xf32>
    %484 = arith.addf %483, %482 : vector<2x32xf32>
    %485 = arith.divf %483, %484 : vector<2x32xf32>
    %486 = arith.mulf %477, %405 : vector<2x32xf32>
    %487 = arith.mulf %471, %479 : vector<2x32xf32>
    %488 = arith.addf %486, %487 : vector<2x32xf32>
    %489 = math.tanh %488 : vector<2x32xf32>
    %490 = arith.mulf %485, %489 : vector<2x32xf32>
    %491 = arith.truncf %465 : vector<2x32xf32> to vector<2x32xbf16>
    %492 = arith.index_cast %c5_i32 : i32 to index
    %c0_160 = arith.constant 0 : index
    %c0_161 = arith.constant 0 : index
    %493 = vector.load %arg8[%492, %c0_160, %c0_161] : memref<8x2x32xbf16, #tpu.memory_space<vmem>>, vector<1x2x32xbf16>
    %494 = vector.shape_cast %493 : vector<1x2x32xbf16> to vector<2x32xbf16>
    %495 = vector.shape_cast %491 : vector<2x32xbf16> to vector<1x2x32xbf16>
    tpu.vector_store %arg8[%492, %c0_160, %c0_161], %495 {strides = array<i32>} : memref<8x2x32xbf16, #tpu.memory_space<vmem>>, vector<1x2x32xbf16>,
    %496 = arith.truncf %490 : vector<2x32xf32> to vector<2x32xbf16>
    %497 = arith.index_cast %418 : i32 to index
    %c0_162 = arith.constant 0 : index
    %c0_163 = arith.constant 0 : index
    %498 = vector.load %arg9[%497, %c0_162, %c0_163] : memref<8x2x32xbf16, #tpu.memory_space<vmem>>, vector<1x2x32xbf16>
    %499 = vector.shape_cast %498 : vector<1x2x32xbf16> to vector<2x32xbf16>
    %500 = vector.shape_cast %496 : vector<2x32xbf16> to vector<1x2x32xbf16>
    tpu.vector_store %arg9[%497, %c0_162, %c0_163], %500 {strides = array<i32>} : memref<8x2x32xbf16, #tpu.memory_space<vmem>>, vector<1x2x32xbf16>,
    %c6_i32 = arith.constant 6 : i32
    %c7_i32_164 = arith.constant 7 : i32
    %501 = arith.subi %c7_i32_164, %c6_i32 : i32
    %502 = arith.index_cast %c6_i32 : i32 to index
    %c0_165 = arith.constant 0 : index
    %c0_166 = arith.constant 0 : index
    %503 = vector.load %arg1[%502, %c0_165, %c0_166] : memref<8x2x16xbf16, #tpu.memory_space<vmem>>, vector<1x2x16xbf16>
    %504 = vector.shape_cast %503 : vector<1x2x16xbf16> to vector<2x16xbf16>
    %c0_167 = arith.constant 0 : index
    %c0_168 = arith.constant 0 : index
    %505 = vector.load %arg2[%c0_167, %c0_168] : memref<16x128xbf16, #tpu.memory_space<vmem>>, vector<16x128xbf16>
    %cst_169 = arith.constant dense<0.000000e+00> : vector<2x128xf32>
    %506 = tpu.matmul %504, %505, %cst_169 {dimension_numbers = #tpu.dot_dimension_numbers<[1], [0], [0], [1], [0, 0, 1, 1], [], []>} : vector<2x16xbf16>, vector<16x128xbf16>, vector<2x128xf32> -> vector<2x128xf32>
    %507 = arith.truncf %465 : vector<2x32xf32> to vector<2x32xbf16>
    %c0_170 = arith.constant 0 : index
    %c0_171 = arith.constant 0 : index
    %508 = vector.load %arg4[%c0_170, %c0_171] : memref<32x128xbf16, #tpu.memory_space<vmem>>, vector<32x128xbf16>
    %cst_172 = arith.constant dense<0.000000e+00> : vector<2x128xf32>
    %509 = tpu.matmul %507, %508, %cst_172 {dimension_numbers = #tpu.dot_dimension_numbers<[1], [0], [0], [1], [0, 0, 1, 1], [], []>} : vector<2x32xbf16>, vector<32x128xbf16>, vector<2x128xf32> -> vector<2x128xf32>
    %510 = arith.addf %506, %509 : vector<2x128xf32>
    %511 = vector.broadcast %0 : vector<1x128xf32> to vector<2x128xf32>
    %512 = arith.addf %510, %511 : vector<2x128xf32>
    %513 = arith.index_cast %501 : i32 to index
    %c0_173 = arith.constant 0 : index
    %c0_174 = arith.constant 0 : index
    %514 = vector.load %arg1[%513, %c0_173, %c0_174] : memref<8x2x16xbf16, #tpu.memory_space<vmem>>, vector<1x2x16xbf16>
    %515 = vector.shape_cast %514 : vector<1x2x16xbf16> to vector<2x16xbf16>
    %c0_175 = arith.constant 0 : index
    %c0_176 = arith.constant 0 : index
    %516 = vector.load %arg3[%c0_175, %c0_176] : memref<16x128xbf16, #tpu.memory_space<vmem>>, vector<16x128xbf16>
    %cst_177 = arith.constant dense<0.000000e+00> : vector<2x128xf32>
    %517 = tpu.matmul %515, %516, %cst_177 {dimension_numbers = #tpu.dot_dimension_numbers<[1], [0], [0], [1], [0, 0, 1, 1], [], []>} : vector<2x16xbf16>, vector<16x128xbf16>, vector<2x128xf32> -> vector<2x128xf32>
    %518 = arith.truncf %490 : vector<2x32xf32> to vector<2x32xbf16>
    %c0_178 = arith.constant 0 : index
    %c0_179 = arith.constant 0 : index
    %519 = vector.load %arg5[%c0_178, %c0_179] : memref<32x128xbf16, #tpu.memory_space<vmem>>, vector<32x128xbf16>
    %cst_180 = arith.constant dense<0.000000e+00> : vector<2x128xf32>
    %520 = tpu.matmul %518, %519, %cst_180 {dimension_numbers = #tpu.dot_dimension_numbers<[1], [0], [0], [1], [0, 0, 1, 1], [], []>} : vector<2x32xbf16>, vector<32x128xbf16>, vector<2x128xf32> -> vector<2x128xf32>
    %521 = arith.addf %517, %520 : vector<2x128xf32>
    %522 = vector.broadcast %1 : vector<1x128xf32> to vector<2x128xf32>
    %523 = arith.addf %521, %522 : vector<2x128xf32>
    %524 = vector.extract_strided_slice %512 {offsets = [0, 0], sizes = [2, 32], strides = [1, 1]} : vector<2x128xf32> to vector<2x32xf32>
    %525 = arith.negf %524 : vector<2x32xf32>
    %526 = math.exp %525 : vector<2x32xf32>
    %cst_181 = arith.constant 1.000000e+00 : f32
    %527 = vector.broadcast %cst_181 : f32 to vector<2x32xf32>
    %528 = arith.addf %527, %526 : vector<2x32xf32>
    %529 = arith.divf %527, %528 : vector<2x32xf32>
    %530 = vector.extract_strided_slice %512 {offsets = [0, 32], sizes = [2, 32], strides = [1, 1]} : vector<2x128xf32> to vector<2x32xf32>
    %531 = arith.negf %530 : vector<2x32xf32>
    %532 = math.exp %531 : vector<2x32xf32>
    %cst_182 = arith.constant 1.000000e+00 : f32
    %533 = vector.broadcast %cst_182 : f32 to vector<2x32xf32>
    %534 = arith.addf %533, %532 : vector<2x32xf32>
    %535 = arith.divf %533, %534 : vector<2x32xf32>
    %536 = vector.extract_strided_slice %512 {offsets = [0, 64], sizes = [2, 32], strides = [1, 1]} : vector<2x128xf32> to vector<2x32xf32>
    %537 = math.tanh %536 : vector<2x32xf32>
    %538 = vector.extract_strided_slice %512 {offsets = [0, 96], sizes = [2, 32], strides = [1, 1]} : vector<2x128xf32> to vector<2x32xf32>
    %539 = arith.negf %538 : vector<2x32xf32>
    %540 = math.exp %539 : vector<2x32xf32>
    %cst_183 = arith.constant 1.000000e+00 : f32
    %541 = vector.broadcast %cst_183 : f32 to vector<2x32xf32>
    %542 = arith.addf %541, %540 : vector<2x32xf32>
    %543 = arith.divf %541, %542 : vector<2x32xf32>
    %544 = arith.mulf %535, %463 : vector<2x32xf32>
    %545 = arith.mulf %529, %537 : vector<2x32xf32>
    %546 = arith.addf %544, %545 : vector<2x32xf32>
    %547 = math.tanh %546 : vector<2x32xf32>
    %548 = arith.mulf %543, %547 : vector<2x32xf32>
    %549 = vector.extract_strided_slice %523 {offsets = [0, 0], sizes = [2, 32], strides = [1, 1]} : vector<2x128xf32> to vector<2x32xf32>
    %550 = arith.negf %549 : vector<2x32xf32>
    %551 = math.exp %550 : vector<2x32xf32>
    %cst_184 = arith.constant 1.000000e+00 : f32
    %552 = vector.broadcast %cst_184 : f32 to vector<2x32xf32>
    %553 = arith.addf %552, %551 : vector<2x32xf32>
    %554 = arith.divf %552, %553 : vector<2x32xf32>
    %555 = vector.extract_strided_slice %523 {offsets = [0, 32], sizes = [2, 32], strides = [1, 1]} : vector<2x128xf32> to vector<2x32xf32>
    %556 = arith.negf %555 : vector<2x32xf32>
    %557 = math.exp %556 : vector<2x32xf32>
    %cst_185 = arith.constant 1.000000e+00 : f32
    %558 = vector.broadcast %cst_185 : f32 to vector<2x32xf32>
    %559 = arith.addf %558, %557 : vector<2x32xf32>
    %560 = arith.divf %558, %559 : vector<2x32xf32>
    %561 = vector.extract_strided_slice %523 {offsets = [0, 64], sizes = [2, 32], strides = [1, 1]} : vector<2x128xf32> to vector<2x32xf32>
    %562 = math.tanh %561 : vector<2x32xf32>
    %563 = vector.extract_strided_slice %523 {offsets = [0, 96], sizes = [2, 32], strides = [1, 1]} : vector<2x128xf32> to vector<2x32xf32>
    %564 = arith.negf %563 : vector<2x32xf32>
    %565 = math.exp %564 : vector<2x32xf32>
    %cst_186 = arith.constant 1.000000e+00 : f32
    %566 = vector.broadcast %cst_186 : f32 to vector<2x32xf32>
    %567 = arith.addf %566, %565 : vector<2x32xf32>
    %568 = arith.divf %566, %567 : vector<2x32xf32>
    %569 = arith.mulf %560, %488 : vector<2x32xf32>
    %570 = arith.mulf %554, %562 : vector<2x32xf32>
    %571 = arith.addf %569, %570 : vector<2x32xf32>
    %572 = math.tanh %571 : vector<2x32xf32>
    %573 = arith.mulf %568, %572 : vector<2x32xf32>
    %574 = arith.truncf %548 : vector<2x32xf32> to vector<2x32xbf16>
    %575 = arith.index_cast %c6_i32 : i32 to index
    %c0_187 = arith.constant 0 : index
    %c0_188 = arith.constant 0 : index
    %576 = vector.load %arg8[%575, %c0_187, %c0_188] : memref<8x2x32xbf16, #tpu.memory_space<vmem>>, vector<1x2x32xbf16>
    %577 = vector.shape_cast %576 : vector<1x2x32xbf16> to vector<2x32xbf16>
    %578 = vector.shape_cast %574 : vector<2x32xbf16> to vector<1x2x32xbf16>
    tpu.vector_store %arg8[%575, %c0_187, %c0_188], %578 {strides = array<i32>} : memref<8x2x32xbf16, #tpu.memory_space<vmem>>, vector<1x2x32xbf16>,
    %579 = arith.truncf %573 : vector<2x32xf32> to vector<2x32xbf16>
    %580 = arith.index_cast %501 : i32 to index
    %c0_189 = arith.constant 0 : index
    %c0_190 = arith.constant 0 : index
    %581 = vector.load %arg9[%580, %c0_189, %c0_190] : memref<8x2x32xbf16, #tpu.memory_space<vmem>>, vector<1x2x32xbf16>
    %582 = vector.shape_cast %581 : vector<1x2x32xbf16> to vector<2x32xbf16>
    %583 = vector.shape_cast %579 : vector<2x32xbf16> to vector<1x2x32xbf16>
    tpu.vector_store %arg9[%580, %c0_189, %c0_190], %583 {strides = array<i32>} : memref<8x2x32xbf16, #tpu.memory_space<vmem>>, vector<1x2x32xbf16>,
    %c7_i32_191 = arith.constant 7 : i32
    %c7_i32_192 = arith.constant 7 : i32
    %584 = arith.subi %c7_i32_192, %c7_i32_191 : i32
    %585 = arith.index_cast %c7_i32_191 : i32 to index
    %c0_193 = arith.constant 0 : index
    %c0_194 = arith.constant 0 : index
    %586 = vector.load %arg1[%585, %c0_193, %c0_194] : memref<8x2x16xbf16, #tpu.memory_space<vmem>>, vector<1x2x16xbf16>
    %587 = vector.shape_cast %586 : vector<1x2x16xbf16> to vector<2x16xbf16>
    %c0_195 = arith.constant 0 : index
    %c0_196 = arith.constant 0 : index
    %588 = vector.load %arg2[%c0_195, %c0_196] : memref<16x128xbf16, #tpu.memory_space<vmem>>, vector<16x128xbf16>
    %cst_197 = arith.constant dense<0.000000e+00> : vector<2x128xf32>
    %589 = tpu.matmul %587, %588, %cst_197 {dimension_numbers = #tpu.dot_dimension_numbers<[1], [0], [0], [1], [0, 0, 1, 1], [], []>} : vector<2x16xbf16>, vector<16x128xbf16>, vector<2x128xf32> -> vector<2x128xf32>
    %590 = arith.truncf %548 : vector<2x32xf32> to vector<2x32xbf16>
    %c0_198 = arith.constant 0 : index
    %c0_199 = arith.constant 0 : index
    %591 = vector.load %arg4[%c0_198, %c0_199] : memref<32x128xbf16, #tpu.memory_space<vmem>>, vector<32x128xbf16>
    %cst_200 = arith.constant dense<0.000000e+00> : vector<2x128xf32>
    %592 = tpu.matmul %590, %591, %cst_200 {dimension_numbers = #tpu.dot_dimension_numbers<[1], [0], [0], [1], [0, 0, 1, 1], [], []>} : vector<2x32xbf16>, vector<32x128xbf16>, vector<2x128xf32> -> vector<2x128xf32>
    %593 = arith.addf %589, %592 : vector<2x128xf32>
    %594 = vector.broadcast %0 : vector<1x128xf32> to vector<2x128xf32>
    %595 = arith.addf %593, %594 : vector<2x128xf32>
    %596 = arith.index_cast %584 : i32 to index
    %c0_201 = arith.constant 0 : index
    %c0_202 = arith.constant 0 : index
    %597 = vector.load %arg1[%596, %c0_201, %c0_202] : memref<8x2x16xbf16, #tpu.memory_space<vmem>>, vector<1x2x16xbf16>
    %598 = vector.shape_cast %597 : vector<1x2x16xbf16> to vector<2x16xbf16>
    %c0_203 = arith.constant 0 : index
    %c0_204 = arith.constant 0 : index
    %599 = vector.load %arg3[%c0_203, %c0_204] : memref<16x128xbf16, #tpu.memory_space<vmem>>, vector<16x128xbf16>
    %cst_205 = arith.constant dense<0.000000e+00> : vector<2x128xf32>
    %600 = tpu.matmul %598, %599, %cst_205 {dimension_numbers = #tpu.dot_dimension_numbers<[1], [0], [0], [1], [0, 0, 1, 1], [], []>} : vector<2x16xbf16>, vector<16x128xbf16>, vector<2x128xf32> -> vector<2x128xf32>
    %601 = arith.truncf %573 : vector<2x32xf32> to vector<2x32xbf16>
    %c0_206 = arith.constant 0 : index
    %c0_207 = arith.constant 0 : index
    %602 = vector.load %arg5[%c0_206, %c0_207] : memref<32x128xbf16, #tpu.memory_space<vmem>>, vector<32x128xbf16>
    %cst_208 = arith.constant dense<0.000000e+00> : vector<2x128xf32>
    %603 = tpu.matmul %601, %602, %cst_208 {dimension_numbers = #tpu.dot_dimension_numbers<[1], [0], [0], [1], [0, 0, 1, 1], [], []>} : vector<2x32xbf16>, vector<32x128xbf16>, vector<2x128xf32> -> vector<2x128xf32>
    %604 = arith.addf %600, %603 : vector<2x128xf32>
    %605 = vector.broadcast %1 : vector<1x128xf32> to vector<2x128xf32>
    %606 = arith.addf %604, %605 : vector<2x128xf32>
    %607 = vector.extract_strided_slice %595 {offsets = [0, 0], sizes = [2, 32], strides = [1, 1]} : vector<2x128xf32> to vector<2x32xf32>
    %608 = arith.negf %607 : vector<2x32xf32>
    %609 = math.exp %608 : vector<2x32xf32>
    %cst_209 = arith.constant 1.000000e+00 : f32
    %610 = vector.broadcast %cst_209 : f32 to vector<2x32xf32>
    %611 = arith.addf %610, %609 : vector<2x32xf32>
    %612 = arith.divf %610, %611 : vector<2x32xf32>
    %613 = vector.extract_strided_slice %595 {offsets = [0, 32], sizes = [2, 32], strides = [1, 1]} : vector<2x128xf32> to vector<2x32xf32>
    %614 = arith.negf %613 : vector<2x32xf32>
    %615 = math.exp %614 : vector<2x32xf32>
    %cst_210 = arith.constant 1.000000e+00 : f32
    %616 = vector.broadcast %cst_210 : f32 to vector<2x32xf32>
    %617 = arith.addf %616, %615 : vector<2x32xf32>
    %618 = arith.divf %616, %617 : vector<2x32xf32>
    %619 = vector.extract_strided_slice %595 {offsets = [0, 64], sizes = [2, 32], strides = [1, 1]} : vector<2x128xf32> to vector<2x32xf32>
    %620 = math.tanh %619 : vector<2x32xf32>
    %621 = vector.extract_strided_slice %595 {offsets = [0, 96], sizes = [2, 32], strides = [1, 1]} : vector<2x128xf32> to vector<2x32xf32>
    %622 = arith.negf %621 : vector<2x32xf32>
    %623 = math.exp %622 : vector<2x32xf32>
    %cst_211 = arith.constant 1.000000e+00 : f32
    %624 = vector.broadcast %cst_211 : f32 to vector<2x32xf32>
    %625 = arith.addf %624, %623 : vector<2x32xf32>
    %626 = arith.divf %624, %625 : vector<2x32xf32>
    %627 = arith.mulf %618, %546 : vector<2x32xf32>
    %628 = arith.mulf %612, %620 : vector<2x32xf32>
    %629 = arith.addf %627, %628 : vector<2x32xf32>
    %630 = math.tanh %629 : vector<2x32xf32>
    %631 = arith.mulf %626, %630 : vector<2x32xf32>
    %632 = vector.extract_strided_slice %606 {offsets = [0, 0], sizes = [2, 32], strides = [1, 1]} : vector<2x128xf32> to vector<2x32xf32>
    %633 = arith.negf %632 : vector<2x32xf32>
    %634 = math.exp %633 : vector<2x32xf32>
    %cst_212 = arith.constant 1.000000e+00 : f32
    %635 = vector.broadcast %cst_212 : f32 to vector<2x32xf32>
    %636 = arith.addf %635, %634 : vector<2x32xf32>
    %637 = arith.divf %635, %636 : vector<2x32xf32>
    %638 = vector.extract_strided_slice %606 {offsets = [0, 32], sizes = [2, 32], strides = [1, 1]} : vector<2x128xf32> to vector<2x32xf32>
    %639 = arith.negf %638 : vector<2x32xf32>
    %640 = math.exp %639 : vector<2x32xf32>
    %cst_213 = arith.constant 1.000000e+00 : f32
    %641 = vector.broadcast %cst_213 : f32 to vector<2x32xf32>
    %642 = arith.addf %641, %640 : vector<2x32xf32>
    %643 = arith.divf %641, %642 : vector<2x32xf32>
    %644 = vector.extract_strided_slice %606 {offsets = [0, 64], sizes = [2, 32], strides = [1, 1]} : vector<2x128xf32> to vector<2x32xf32>
    %645 = math.tanh %644 : vector<2x32xf32>
    %646 = vector.extract_strided_slice %606 {offsets = [0, 96], sizes = [2, 32], strides = [1, 1]} : vector<2x128xf32> to vector<2x32xf32>
    %647 = arith.negf %646 : vector<2x32xf32>
    %648 = math.exp %647 : vector<2x32xf32>
    %cst_214 = arith.constant 1.000000e+00 : f32
    %649 = vector.broadcast %cst_214 : f32 to vector<2x32xf32>
    %650 = arith.addf %649, %648 : vector<2x32xf32>
    %651 = arith.divf %649, %650 : vector<2x32xf32>
    %652 = arith.mulf %643, %571 : vector<2x32xf32>
    %653 = arith.mulf %637, %645 : vector<2x32xf32>
    %654 = arith.addf %652, %653 : vector<2x32xf32>
    %655 = math.tanh %654 : vector<2x32xf32>
    %656 = arith.mulf %651, %655 : vector<2x32xf32>
    %657 = arith.truncf %631 : vector<2x32xf32> to vector<2x32xbf16>
    %658 = arith.index_cast %c7_i32_191 : i32 to index
    %c0_215 = arith.constant 0 : index
    %c0_216 = arith.constant 0 : index
    %659 = vector.load %arg8[%658, %c0_215, %c0_216] : memref<8x2x32xbf16, #tpu.memory_space<vmem>>, vector<1x2x32xbf16>
    %660 = vector.shape_cast %659 : vector<1x2x32xbf16> to vector<2x32xbf16>
    %661 = vector.shape_cast %657 : vector<2x32xbf16> to vector<1x2x32xbf16>
    tpu.vector_store %arg8[%658, %c0_215, %c0_216], %661 {strides = array<i32>} : memref<8x2x32xbf16, #tpu.memory_space<vmem>>, vector<1x2x32xbf16>,
    %662 = arith.truncf %656 : vector<2x32xf32> to vector<2x32xbf16>
    %663 = arith.index_cast %584 : i32 to index
    %c0_217 = arith.constant 0 : index
    %c0_218 = arith.constant 0 : index
    %664 = vector.load %arg9[%663, %c0_217, %c0_218] : memref<8x2x32xbf16, #tpu.memory_space<vmem>>, vector<1x2x32xbf16>
    %665 = vector.shape_cast %664 : vector<1x2x32xbf16> to vector<2x32xbf16>
    %666 = vector.shape_cast %662 : vector<2x32xbf16> to vector<1x2x32xbf16>
    tpu.vector_store %arg9[%663, %c0_217, %c0_218], %666 {strides = array<i32>} : memref<8x2x32xbf16, #tpu.memory_space<vmem>>, vector<1x2x32xbf16>,
    %c8_i32 = arith.constant 8 : i32
    return
  }
  func.func @transform_0(%arg0: i32) -> (i32, i32, i32) {
    %c0_i32 = arith.constant 0 : i32
    %c0_i32_0 = arith.constant 0 : i32
    %c0_i32_1 = arith.constant 0 : i32
    return %c0_i32, %arg0, %c0_i32_0 : i32, i32, i32
  }
  func.func @transform_1(%arg0: i32) -> (i32, i32) {
    %c0_i32 = arith.constant 0 : i32
    %c0_i32_0 = arith.constant 0 : i32
    %c0_i32_1 = arith.constant 0 : i32
    return %c0_i32, %c0_i32_0 : i32, i32
  }
  func.func @transform_2(%arg0: i32) -> (i32, i32) {
    %c0_i32 = arith.constant 0 : i32
    %c0_i32_0 = arith.constant 0 : i32
    %c0_i32_1 = arith.constant 0 : i32
    return %c0_i32, %c0_i32_0 : i32, i32
  }
  func.func @transform_3(%arg0: i32) -> (i32, i32) {
    %c0_i32 = arith.constant 0 : i32
    %c0_i32_0 = arith.constant 0 : i32
    %c0_i32_1 = arith.constant 0 : i32
    return %c0_i32, %c0_i32_0 : i32, i32
  }
  func.func @transform_4(%arg0: i32) -> (i32, i32) {
    %c0_i32 = arith.constant 0 : i32
    %c0_i32_0 = arith.constant 0 : i32
    %c0_i32_1 = arith.constant 0 : i32
    return %c0_i32, %c0_i32_0 : i32, i32
  }
  func.func @transform_5(%arg0: i32) -> (i32, i32) {
    %c0_i32 = arith.constant 0 : i32
    %c0_i32_0 = arith.constant 0 : i32
    %c0_i32_1 = arith.constant 0 : i32
    return %c0_i32, %c0_i32_0 : i32, i32
  }
  func.func @transform_6(%arg0: i32) -> (i32, i32) {
    %c0_i32 = arith.constant 0 : i32
    %c0_i32_0 = arith.constant 0 : i32
    %c0_i32_1 = arith.constant 0 : i32
    return %c0_i32, %c0_i32_0 : i32, i32
  }
  func.func @transform_7(%arg0: i32) -> (i32, i32, i32) {
    %c0_i32 = arith.constant 0 : i32
    %c0_i32_0 = arith.constant 0 : i32
    %c0_i32_1 = arith.constant 0 : i32
    return %c0_i32, %arg0, %c0_i32_0 : i32, i32, i32
  }
  func.func @transform_8(%arg0: i32) -> (i32, i32, i32) {
    %c0_i32 = arith.constant 0 : i32
    %c0_i32_0 = arith.constant 0 : i32
    %c0_i32_1 = arith.constant 0 : i32
    return %c0_i32, %arg0, %c0_i32_0 : i32, i32, i32
  }
}

module attributes {stable_mosaic.version = 11 : i64} {
  func.func @_bilstm_l2_fc_kernel(%arg0: i32, %arg1: memref<8x2x32xbf16, #tpu.memory_space<vmem>>, %arg2: memref<8x2x32xbf16, #tpu.memory_space<vmem>>, %arg3: memref<32x128xbf16, #tpu.memory_space<vmem>>, %arg4: memref<32x128xbf16, #tpu.memory_space<vmem>>, %arg5: memref<32x128xbf16, #tpu.memory_space<vmem>>, %arg6: memref<32x128xbf16, #tpu.memory_space<vmem>>, %arg7: memref<32x128xbf16, #tpu.memory_space<vmem>>, %arg8: memref<32x128xbf16, #tpu.memory_space<vmem>>, %arg9: memref<1x128xf32, #tpu.memory_space<vmem>>, %arg10: memref<1x128xf32, #tpu.memory_space<vmem>>, %arg11: memref<1x32xf32, #tpu.memory_space<vmem>>, %arg12: memref<1x32xf32, #tpu.memory_space<vmem>>, %arg13: memref<1x1xf32, #tpu.memory_space<vmem>>, %arg14: memref<2x1xf32, #tpu.memory_space<vmem>>) attributes {dimension_semantics = [#tpu.dimension_semantics<parallel>], iteration_bounds = array<i64: 1>, scalar_prefetch = 0 : i64, scratch_operands = 0 : i64, tpu.core_type = #tpu.core_type<tc>, window_params = [{transform_indices = @transform_0, window_bounds = array<i64: 8, 2, 32>}, {transform_indices = @transform_1, window_bounds = array<i64: 8, 2, 32>}, {pipeline_mode = #tpu.pipeline_mode<synchronous>, transform_indices = @transform_2, window_bounds = array<i64: 32, 128>}, {pipeline_mode = #tpu.pipeline_mode<synchronous>, transform_indices = @transform_3, window_bounds = array<i64: 32, 128>}, {pipeline_mode = #tpu.pipeline_mode<synchronous>, transform_indices = @transform_4, window_bounds = array<i64: 32, 128>}, {pipeline_mode = #tpu.pipeline_mode<synchronous>, transform_indices = @transform_5, window_bounds = array<i64: 32, 128>}, {pipeline_mode = #tpu.pipeline_mode<synchronous>, transform_indices = @transform_6, window_bounds = array<i64: 32, 128>}, {pipeline_mode = #tpu.pipeline_mode<synchronous>, transform_indices = @transform_7, window_bounds = array<i64: 32, 128>}, {pipeline_mode = #tpu.pipeline_mode<synchronous>, transform_indices = @transform_8, window_bounds = array<i64: 1, 128>}, {pipeline_mode = #tpu.pipeline_mode<synchronous>, transform_indices = @transform_9, window_bounds = array<i64: 1, 128>}, {pipeline_mode = #tpu.pipeline_mode<synchronous>, transform_indices = @transform_10, window_bounds = array<i64: 1, 32>}, {pipeline_mode = #tpu.pipeline_mode<synchronous>, transform_indices = @transform_11, window_bounds = array<i64: 1, 32>}, {pipeline_mode = #tpu.pipeline_mode<synchronous>, transform_indices = @transform_12, window_bounds = array<i64: 1, 1>}, {transform_indices = @transform_13, window_bounds = array<i64: 2, 1>}]} {
    %c0 = arith.constant 0 : index
    %c0_0 = arith.constant 0 : index
    %0 = vector.load %arg9[%c0, %c0_0] : memref<1x128xf32, #tpu.memory_space<vmem>>, vector<1x128xf32>
    %c0_1 = arith.constant 0 : index
    %c0_2 = arith.constant 0 : index
    %1 = vector.load %arg10[%c0_1, %c0_2] : memref<1x128xf32, #tpu.memory_space<vmem>>, vector<1x128xf32>
    %cst = arith.constant 0.000000e+00 : f32
    %2 = vector.broadcast %cst : f32 to vector<2x32xf32>
    %c0_i32 = arith.constant 0 : i32
    %c7_i32 = arith.constant 7 : i32
    %3 = arith.subi %c7_i32, %c0_i32 : i32
    %4 = arith.index_cast %c0_i32 : i32 to index
    %c0_3 = arith.constant 0 : index
    %c0_4 = arith.constant 0 : index
    %5 = vector.load %arg1[%4, %c0_3, %c0_4] : memref<8x2x32xbf16, #tpu.memory_space<vmem>>, vector<1x2x32xbf16>
    %6 = vector.shape_cast %5 : vector<1x2x32xbf16> to vector<2x32xbf16>
    %c0_5 = arith.constant 0 : index
    %c0_6 = arith.constant 0 : index
    %7 = vector.load %arg3[%c0_5, %c0_6] : memref<32x128xbf16, #tpu.memory_space<vmem>>, vector<32x128xbf16>
    %cst_7 = arith.constant dense<0.000000e+00> : vector<2x128xf32>
    %8 = tpu.matmul %6, %7, %cst_7 {dimension_numbers = #tpu.dot_dimension_numbers<[1], [0], [0], [1], [0, 0, 1, 1], [], []>} : vector<2x32xbf16>, vector<32x128xbf16>, vector<2x128xf32> -> vector<2x128xf32>
    %9 = arith.index_cast %c0_i32 : i32 to index
    %c0_8 = arith.constant 0 : index
    %c0_9 = arith.constant 0 : index
    %10 = vector.load %arg2[%9, %c0_8, %c0_9] : memref<8x2x32xbf16, #tpu.memory_space<vmem>>, vector<1x2x32xbf16>
    %11 = vector.shape_cast %10 : vector<1x2x32xbf16> to vector<2x32xbf16>
    %c0_10 = arith.constant 0 : index
    %c0_11 = arith.constant 0 : index
    %12 = vector.load %arg4[%c0_10, %c0_11] : memref<32x128xbf16, #tpu.memory_space<vmem>>, vector<32x128xbf16>
    %cst_12 = arith.constant dense<0.000000e+00> : vector<2x128xf32>
    %13 = tpu.matmul %11, %12, %cst_12 {dimension_numbers = #tpu.dot_dimension_numbers<[1], [0], [0], [1], [0, 0, 1, 1], [], []>} : vector<2x32xbf16>, vector<32x128xbf16>, vector<2x128xf32> -> vector<2x128xf32>
    %14 = arith.addf %8, %13 : vector<2x128xf32>
    %15 = arith.truncf %2 : vector<2x32xf32> to vector<2x32xbf16>
    %c0_13 = arith.constant 0 : index
    %c0_14 = arith.constant 0 : index
    %16 = vector.load %arg7[%c0_13, %c0_14] : memref<32x128xbf16, #tpu.memory_space<vmem>>, vector<32x128xbf16>
    %cst_15 = arith.constant dense<0.000000e+00> : vector<2x128xf32>
    %17 = tpu.matmul %15, %16, %cst_15 {dimension_numbers = #tpu.dot_dimension_numbers<[1], [0], [0], [1], [0, 0, 1, 1], [], []>} : vector<2x32xbf16>, vector<32x128xbf16>, vector<2x128xf32> -> vector<2x128xf32>
    %18 = arith.addf %14, %17 : vector<2x128xf32>
    %19 = vector.broadcast %0 : vector<1x128xf32> to vector<2x128xf32>
    %20 = arith.addf %18, %19 : vector<2x128xf32>
    %21 = arith.index_cast %3 : i32 to index
    %c0_16 = arith.constant 0 : index
    %c0_17 = arith.constant 0 : index
    %22 = vector.load %arg1[%21, %c0_16, %c0_17] : memref<8x2x32xbf16, #tpu.memory_space<vmem>>, vector<1x2x32xbf16>
    %23 = vector.shape_cast %22 : vector<1x2x32xbf16> to vector<2x32xbf16>
    %c0_18 = arith.constant 0 : index
    %c0_19 = arith.constant 0 : index
    %24 = vector.load %arg5[%c0_18, %c0_19] : memref<32x128xbf16, #tpu.memory_space<vmem>>, vector<32x128xbf16>
    %cst_20 = arith.constant dense<0.000000e+00> : vector<2x128xf32>
    %25 = tpu.matmul %23, %24, %cst_20 {dimension_numbers = #tpu.dot_dimension_numbers<[1], [0], [0], [1], [0, 0, 1, 1], [], []>} : vector<2x32xbf16>, vector<32x128xbf16>, vector<2x128xf32> -> vector<2x128xf32>
    %26 = arith.index_cast %3 : i32 to index
    %c0_21 = arith.constant 0 : index
    %c0_22 = arith.constant 0 : index
    %27 = vector.load %arg2[%26, %c0_21, %c0_22] : memref<8x2x32xbf16, #tpu.memory_space<vmem>>, vector<1x2x32xbf16>
    %28 = vector.shape_cast %27 : vector<1x2x32xbf16> to vector<2x32xbf16>
    %c0_23 = arith.constant 0 : index
    %c0_24 = arith.constant 0 : index
    %29 = vector.load %arg6[%c0_23, %c0_24] : memref<32x128xbf16, #tpu.memory_space<vmem>>, vector<32x128xbf16>
    %cst_25 = arith.constant dense<0.000000e+00> : vector<2x128xf32>
    %30 = tpu.matmul %28, %29, %cst_25 {dimension_numbers = #tpu.dot_dimension_numbers<[1], [0], [0], [1], [0, 0, 1, 1], [], []>} : vector<2x32xbf16>, vector<32x128xbf16>, vector<2x128xf32> -> vector<2x128xf32>
    %31 = arith.addf %25, %30 : vector<2x128xf32>
    %32 = arith.truncf %2 : vector<2x32xf32> to vector<2x32xbf16>
    %c0_26 = arith.constant 0 : index
    %c0_27 = arith.constant 0 : index
    %33 = vector.load %arg8[%c0_26, %c0_27] : memref<32x128xbf16, #tpu.memory_space<vmem>>, vector<32x128xbf16>
    %cst_28 = arith.constant dense<0.000000e+00> : vector<2x128xf32>
    %34 = tpu.matmul %32, %33, %cst_28 {dimension_numbers = #tpu.dot_dimension_numbers<[1], [0], [0], [1], [0, 0, 1, 1], [], []>} : vector<2x32xbf16>, vector<32x128xbf16>, vector<2x128xf32> -> vector<2x128xf32>
    %35 = arith.addf %31, %34 : vector<2x128xf32>
    %36 = vector.broadcast %1 : vector<1x128xf32> to vector<2x128xf32>
    %37 = arith.addf %35, %36 : vector<2x128xf32>
    %38 = vector.extract_strided_slice %20 {offsets = [0, 0], sizes = [2, 32], strides = [1, 1]} : vector<2x128xf32> to vector<2x32xf32>
    %39 = arith.negf %38 : vector<2x32xf32>
    %40 = math.exp %39 : vector<2x32xf32>
    %cst_29 = arith.constant 1.000000e+00 : f32
    %41 = vector.broadcast %cst_29 : f32 to vector<2x32xf32>
    %42 = arith.addf %41, %40 : vector<2x32xf32>
    %43 = arith.divf %41, %42 : vector<2x32xf32>
    %44 = vector.extract_strided_slice %20 {offsets = [0, 32], sizes = [2, 32], strides = [1, 1]} : vector<2x128xf32> to vector<2x32xf32>
    %45 = arith.negf %44 : vector<2x32xf32>
    %46 = math.exp %45 : vector<2x32xf32>
    %cst_30 = arith.constant 1.000000e+00 : f32
    %47 = vector.broadcast %cst_30 : f32 to vector<2x32xf32>
    %48 = arith.addf %47, %46 : vector<2x32xf32>
    %49 = arith.divf %47, %48 : vector<2x32xf32>
    %50 = vector.extract_strided_slice %20 {offsets = [0, 64], sizes = [2, 32], strides = [1, 1]} : vector<2x128xf32> to vector<2x32xf32>
    %51 = math.tanh %50 : vector<2x32xf32>
    %52 = vector.extract_strided_slice %20 {offsets = [0, 96], sizes = [2, 32], strides = [1, 1]} : vector<2x128xf32> to vector<2x32xf32>
    %53 = arith.negf %52 : vector<2x32xf32>
    %54 = math.exp %53 : vector<2x32xf32>
    %cst_31 = arith.constant 1.000000e+00 : f32
    %55 = vector.broadcast %cst_31 : f32 to vector<2x32xf32>
    %56 = arith.addf %55, %54 : vector<2x32xf32>
    %57 = arith.divf %55, %56 : vector<2x32xf32>
    %58 = arith.mulf %49, %2 : vector<2x32xf32>
    %59 = arith.mulf %43, %51 : vector<2x32xf32>
    %60 = arith.addf %58, %59 : vector<2x32xf32>
    %61 = math.tanh %60 : vector<2x32xf32>
    %62 = arith.mulf %57, %61 : vector<2x32xf32>
    %63 = vector.extract_strided_slice %37 {offsets = [0, 0], sizes = [2, 32], strides = [1, 1]} : vector<2x128xf32> to vector<2x32xf32>
    %64 = arith.negf %63 : vector<2x32xf32>
    %65 = math.exp %64 : vector<2x32xf32>
    %cst_32 = arith.constant 1.000000e+00 : f32
    %66 = vector.broadcast %cst_32 : f32 to vector<2x32xf32>
    %67 = arith.addf %66, %65 : vector<2x32xf32>
    %68 = arith.divf %66, %67 : vector<2x32xf32>
    %69 = vector.extract_strided_slice %37 {offsets = [0, 32], sizes = [2, 32], strides = [1, 1]} : vector<2x128xf32> to vector<2x32xf32>
    %70 = arith.negf %69 : vector<2x32xf32>
    %71 = math.exp %70 : vector<2x32xf32>
    %cst_33 = arith.constant 1.000000e+00 : f32
    %72 = vector.broadcast %cst_33 : f32 to vector<2x32xf32>
    %73 = arith.addf %72, %71 : vector<2x32xf32>
    %74 = arith.divf %72, %73 : vector<2x32xf32>
    %75 = vector.extract_strided_slice %37 {offsets = [0, 64], sizes = [2, 32], strides = [1, 1]} : vector<2x128xf32> to vector<2x32xf32>
    %76 = math.tanh %75 : vector<2x32xf32>
    %77 = vector.extract_strided_slice %37 {offsets = [0, 96], sizes = [2, 32], strides = [1, 1]} : vector<2x128xf32> to vector<2x32xf32>
    %78 = arith.negf %77 : vector<2x32xf32>
    %79 = math.exp %78 : vector<2x32xf32>
    %cst_34 = arith.constant 1.000000e+00 : f32
    %80 = vector.broadcast %cst_34 : f32 to vector<2x32xf32>
    %81 = arith.addf %80, %79 : vector<2x32xf32>
    %82 = arith.divf %80, %81 : vector<2x32xf32>
    %83 = arith.mulf %74, %2 : vector<2x32xf32>
    %84 = arith.mulf %68, %76 : vector<2x32xf32>
    %85 = arith.addf %83, %84 : vector<2x32xf32>
    %86 = math.tanh %85 : vector<2x32xf32>
    %87 = arith.mulf %82, %86 : vector<2x32xf32>
    %c0_i32_35 = arith.constant 0 : i32
    %88 = arith.cmpi eq, %c0_i32, %c0_i32_35 : i32
    %89 = arith.select %88, %87, %2 : vector<2x32xf32>
    %c1_i32 = arith.constant 1 : i32
    %c7_i32_36 = arith.constant 7 : i32
    %90 = arith.subi %c7_i32_36, %c1_i32 : i32
    %91 = arith.index_cast %c1_i32 : i32 to index
    %c0_37 = arith.constant 0 : index
    %c0_38 = arith.constant 0 : index
    %92 = vector.load %arg1[%91, %c0_37, %c0_38] : memref<8x2x32xbf16, #tpu.memory_space<vmem>>, vector<1x2x32xbf16>
    %93 = vector.shape_cast %92 : vector<1x2x32xbf16> to vector<2x32xbf16>
    %c0_39 = arith.constant 0 : index
    %c0_40 = arith.constant 0 : index
    %94 = vector.load %arg3[%c0_39, %c0_40] : memref<32x128xbf16, #tpu.memory_space<vmem>>, vector<32x128xbf16>
    %cst_41 = arith.constant dense<0.000000e+00> : vector<2x128xf32>
    %95 = tpu.matmul %93, %94, %cst_41 {dimension_numbers = #tpu.dot_dimension_numbers<[1], [0], [0], [1], [0, 0, 1, 1], [], []>} : vector<2x32xbf16>, vector<32x128xbf16>, vector<2x128xf32> -> vector<2x128xf32>
    %96 = arith.index_cast %c1_i32 : i32 to index
    %c0_42 = arith.constant 0 : index
    %c0_43 = arith.constant 0 : index
    %97 = vector.load %arg2[%96, %c0_42, %c0_43] : memref<8x2x32xbf16, #tpu.memory_space<vmem>>, vector<1x2x32xbf16>
    %98 = vector.shape_cast %97 : vector<1x2x32xbf16> to vector<2x32xbf16>
    %c0_44 = arith.constant 0 : index
    %c0_45 = arith.constant 0 : index
    %99 = vector.load %arg4[%c0_44, %c0_45] : memref<32x128xbf16, #tpu.memory_space<vmem>>, vector<32x128xbf16>
    %cst_46 = arith.constant dense<0.000000e+00> : vector<2x128xf32>
    %100 = tpu.matmul %98, %99, %cst_46 {dimension_numbers = #tpu.dot_dimension_numbers<[1], [0], [0], [1], [0, 0, 1, 1], [], []>} : vector<2x32xbf16>, vector<32x128xbf16>, vector<2x128xf32> -> vector<2x128xf32>
    %101 = arith.addf %95, %100 : vector<2x128xf32>
    %102 = arith.truncf %62 : vector<2x32xf32> to vector<2x32xbf16>
    %c0_47 = arith.constant 0 : index
    %c0_48 = arith.constant 0 : index
    %103 = vector.load %arg7[%c0_47, %c0_48] : memref<32x128xbf16, #tpu.memory_space<vmem>>, vector<32x128xbf16>
    %cst_49 = arith.constant dense<0.000000e+00> : vector<2x128xf32>
    %104 = tpu.matmul %102, %103, %cst_49 {dimension_numbers = #tpu.dot_dimension_numbers<[1], [0], [0], [1], [0, 0, 1, 1], [], []>} : vector<2x32xbf16>, vector<32x128xbf16>, vector<2x128xf32> -> vector<2x128xf32>
    %105 = arith.addf %101, %104 : vector<2x128xf32>
    %106 = vector.broadcast %0 : vector<1x128xf32> to vector<2x128xf32>
    %107 = arith.addf %105, %106 : vector<2x128xf32>
    %108 = arith.index_cast %90 : i32 to index
    %c0_50 = arith.constant 0 : index
    %c0_51 = arith.constant 0 : index
    %109 = vector.load %arg1[%108, %c0_50, %c0_51] : memref<8x2x32xbf16, #tpu.memory_space<vmem>>, vector<1x2x32xbf16>
    %110 = vector.shape_cast %109 : vector<1x2x32xbf16> to vector<2x32xbf16>
    %c0_52 = arith.constant 0 : index
    %c0_53 = arith.constant 0 : index
    %111 = vector.load %arg5[%c0_52, %c0_53] : memref<32x128xbf16, #tpu.memory_space<vmem>>, vector<32x128xbf16>
    %cst_54 = arith.constant dense<0.000000e+00> : vector<2x128xf32>
    %112 = tpu.matmul %110, %111, %cst_54 {dimension_numbers = #tpu.dot_dimension_numbers<[1], [0], [0], [1], [0, 0, 1, 1], [], []>} : vector<2x32xbf16>, vector<32x128xbf16>, vector<2x128xf32> -> vector<2x128xf32>
    %113 = arith.index_cast %90 : i32 to index
    %c0_55 = arith.constant 0 : index
    %c0_56 = arith.constant 0 : index
    %114 = vector.load %arg2[%113, %c0_55, %c0_56] : memref<8x2x32xbf16, #tpu.memory_space<vmem>>, vector<1x2x32xbf16>
    %115 = vector.shape_cast %114 : vector<1x2x32xbf16> to vector<2x32xbf16>
    %c0_57 = arith.constant 0 : index
    %c0_58 = arith.constant 0 : index
    %116 = vector.load %arg6[%c0_57, %c0_58] : memref<32x128xbf16, #tpu.memory_space<vmem>>, vector<32x128xbf16>
    %cst_59 = arith.constant dense<0.000000e+00> : vector<2x128xf32>
    %117 = tpu.matmul %115, %116, %cst_59 {dimension_numbers = #tpu.dot_dimension_numbers<[1], [0], [0], [1], [0, 0, 1, 1], [], []>} : vector<2x32xbf16>, vector<32x128xbf16>, vector<2x128xf32> -> vector<2x128xf32>
    %118 = arith.addf %112, %117 : vector<2x128xf32>
    %119 = arith.truncf %87 : vector<2x32xf32> to vector<2x32xbf16>
    %c0_60 = arith.constant 0 : index
    %c0_61 = arith.constant 0 : index
    %120 = vector.load %arg8[%c0_60, %c0_61] : memref<32x128xbf16, #tpu.memory_space<vmem>>, vector<32x128xbf16>
    %cst_62 = arith.constant dense<0.000000e+00> : vector<2x128xf32>
    %121 = tpu.matmul %119, %120, %cst_62 {dimension_numbers = #tpu.dot_dimension_numbers<[1], [0], [0], [1], [0, 0, 1, 1], [], []>} : vector<2x32xbf16>, vector<32x128xbf16>, vector<2x128xf32> -> vector<2x128xf32>
    %122 = arith.addf %118, %121 : vector<2x128xf32>
    %123 = vector.broadcast %1 : vector<1x128xf32> to vector<2x128xf32>
    %124 = arith.addf %122, %123 : vector<2x128xf32>
    %125 = vector.extract_strided_slice %107 {offsets = [0, 0], sizes = [2, 32], strides = [1, 1]} : vector<2x128xf32> to vector<2x32xf32>
    %126 = arith.negf %125 : vector<2x32xf32>
    %127 = math.exp %126 : vector<2x32xf32>
    %cst_63 = arith.constant 1.000000e+00 : f32
    %128 = vector.broadcast %cst_63 : f32 to vector<2x32xf32>
    %129 = arith.addf %128, %127 : vector<2x32xf32>
    %130 = arith.divf %128, %129 : vector<2x32xf32>
    %131 = vector.extract_strided_slice %107 {offsets = [0, 32], sizes = [2, 32], strides = [1, 1]} : vector<2x128xf32> to vector<2x32xf32>
    %132 = arith.negf %131 : vector<2x32xf32>
    %133 = math.exp %132 : vector<2x32xf32>
    %cst_64 = arith.constant 1.000000e+00 : f32
    %134 = vector.broadcast %cst_64 : f32 to vector<2x32xf32>
    %135 = arith.addf %134, %133 : vector<2x32xf32>
    %136 = arith.divf %134, %135 : vector<2x32xf32>
    %137 = vector.extract_strided_slice %107 {offsets = [0, 64], sizes = [2, 32], strides = [1, 1]} : vector<2x128xf32> to vector<2x32xf32>
    %138 = math.tanh %137 : vector<2x32xf32>
    %139 = vector.extract_strided_slice %107 {offsets = [0, 96], sizes = [2, 32], strides = [1, 1]} : vector<2x128xf32> to vector<2x32xf32>
    %140 = arith.negf %139 : vector<2x32xf32>
    %141 = math.exp %140 : vector<2x32xf32>
    %cst_65 = arith.constant 1.000000e+00 : f32
    %142 = vector.broadcast %cst_65 : f32 to vector<2x32xf32>
    %143 = arith.addf %142, %141 : vector<2x32xf32>
    %144 = arith.divf %142, %143 : vector<2x32xf32>
    %145 = arith.mulf %136, %60 : vector<2x32xf32>
    %146 = arith.mulf %130, %138 : vector<2x32xf32>
    %147 = arith.addf %145, %146 : vector<2x32xf32>
    %148 = math.tanh %147 : vector<2x32xf32>
    %149 = arith.mulf %144, %148 : vector<2x32xf32>
    %150 = vector.extract_strided_slice %124 {offsets = [0, 0], sizes = [2, 32], strides = [1, 1]} : vector<2x128xf32> to vector<2x32xf32>
    %151 = arith.negf %150 : vector<2x32xf32>
    %152 = math.exp %151 : vector<2x32xf32>
    %cst_66 = arith.constant 1.000000e+00 : f32
    %153 = vector.broadcast %cst_66 : f32 to vector<2x32xf32>
    %154 = arith.addf %153, %152 : vector<2x32xf32>
    %155 = arith.divf %153, %154 : vector<2x32xf32>
    %156 = vector.extract_strided_slice %124 {offsets = [0, 32], sizes = [2, 32], strides = [1, 1]} : vector<2x128xf32> to vector<2x32xf32>
    %157 = arith.negf %156 : vector<2x32xf32>
    %158 = math.exp %157 : vector<2x32xf32>
    %cst_67 = arith.constant 1.000000e+00 : f32
    %159 = vector.broadcast %cst_67 : f32 to vector<2x32xf32>
    %160 = arith.addf %159, %158 : vector<2x32xf32>
    %161 = arith.divf %159, %160 : vector<2x32xf32>
    %162 = vector.extract_strided_slice %124 {offsets = [0, 64], sizes = [2, 32], strides = [1, 1]} : vector<2x128xf32> to vector<2x32xf32>
    %163 = math.tanh %162 : vector<2x32xf32>
    %164 = vector.extract_strided_slice %124 {offsets = [0, 96], sizes = [2, 32], strides = [1, 1]} : vector<2x128xf32> to vector<2x32xf32>
    %165 = arith.negf %164 : vector<2x32xf32>
    %166 = math.exp %165 : vector<2x32xf32>
    %cst_68 = arith.constant 1.000000e+00 : f32
    %167 = vector.broadcast %cst_68 : f32 to vector<2x32xf32>
    %168 = arith.addf %167, %166 : vector<2x32xf32>
    %169 = arith.divf %167, %168 : vector<2x32xf32>
    %170 = arith.mulf %161, %85 : vector<2x32xf32>
    %171 = arith.mulf %155, %163 : vector<2x32xf32>
    %172 = arith.addf %170, %171 : vector<2x32xf32>
    %173 = math.tanh %172 : vector<2x32xf32>
    %174 = arith.mulf %169, %173 : vector<2x32xf32>
    %c0_i32_69 = arith.constant 0 : i32
    %175 = arith.cmpi eq, %c1_i32, %c0_i32_69 : i32
    %176 = arith.select %175, %174, %89 : vector<2x32xf32>
    %c2_i32 = arith.constant 2 : i32
    %c7_i32_70 = arith.constant 7 : i32
    %177 = arith.subi %c7_i32_70, %c2_i32 : i32
    %178 = arith.index_cast %c2_i32 : i32 to index
    %c0_71 = arith.constant 0 : index
    %c0_72 = arith.constant 0 : index
    %179 = vector.load %arg1[%178, %c0_71, %c0_72] : memref<8x2x32xbf16, #tpu.memory_space<vmem>>, vector<1x2x32xbf16>
    %180 = vector.shape_cast %179 : vector<1x2x32xbf16> to vector<2x32xbf16>
    %c0_73 = arith.constant 0 : index
    %c0_74 = arith.constant 0 : index
    %181 = vector.load %arg3[%c0_73, %c0_74] : memref<32x128xbf16, #tpu.memory_space<vmem>>, vector<32x128xbf16>
    %cst_75 = arith.constant dense<0.000000e+00> : vector<2x128xf32>
    %182 = tpu.matmul %180, %181, %cst_75 {dimension_numbers = #tpu.dot_dimension_numbers<[1], [0], [0], [1], [0, 0, 1, 1], [], []>} : vector<2x32xbf16>, vector<32x128xbf16>, vector<2x128xf32> -> vector<2x128xf32>
    %183 = arith.index_cast %c2_i32 : i32 to index
    %c0_76 = arith.constant 0 : index
    %c0_77 = arith.constant 0 : index
    %184 = vector.load %arg2[%183, %c0_76, %c0_77] : memref<8x2x32xbf16, #tpu.memory_space<vmem>>, vector<1x2x32xbf16>
    %185 = vector.shape_cast %184 : vector<1x2x32xbf16> to vector<2x32xbf16>
    %c0_78 = arith.constant 0 : index
    %c0_79 = arith.constant 0 : index
    %186 = vector.load %arg4[%c0_78, %c0_79] : memref<32x128xbf16, #tpu.memory_space<vmem>>, vector<32x128xbf16>
    %cst_80 = arith.constant dense<0.000000e+00> : vector<2x128xf32>
    %187 = tpu.matmul %185, %186, %cst_80 {dimension_numbers = #tpu.dot_dimension_numbers<[1], [0], [0], [1], [0, 0, 1, 1], [], []>} : vector<2x32xbf16>, vector<32x128xbf16>, vector<2x128xf32> -> vector<2x128xf32>
    %188 = arith.addf %182, %187 : vector<2x128xf32>
    %189 = arith.truncf %149 : vector<2x32xf32> to vector<2x32xbf16>
    %c0_81 = arith.constant 0 : index
    %c0_82 = arith.constant 0 : index
    %190 = vector.load %arg7[%c0_81, %c0_82] : memref<32x128xbf16, #tpu.memory_space<vmem>>, vector<32x128xbf16>
    %cst_83 = arith.constant dense<0.000000e+00> : vector<2x128xf32>
    %191 = tpu.matmul %189, %190, %cst_83 {dimension_numbers = #tpu.dot_dimension_numbers<[1], [0], [0], [1], [0, 0, 1, 1], [], []>} : vector<2x32xbf16>, vector<32x128xbf16>, vector<2x128xf32> -> vector<2x128xf32>
    %192 = arith.addf %188, %191 : vector<2x128xf32>
    %193 = vector.broadcast %0 : vector<1x128xf32> to vector<2x128xf32>
    %194 = arith.addf %192, %193 : vector<2x128xf32>
    %195 = arith.index_cast %177 : i32 to index
    %c0_84 = arith.constant 0 : index
    %c0_85 = arith.constant 0 : index
    %196 = vector.load %arg1[%195, %c0_84, %c0_85] : memref<8x2x32xbf16, #tpu.memory_space<vmem>>, vector<1x2x32xbf16>
    %197 = vector.shape_cast %196 : vector<1x2x32xbf16> to vector<2x32xbf16>
    %c0_86 = arith.constant 0 : index
    %c0_87 = arith.constant 0 : index
    %198 = vector.load %arg5[%c0_86, %c0_87] : memref<32x128xbf16, #tpu.memory_space<vmem>>, vector<32x128xbf16>
    %cst_88 = arith.constant dense<0.000000e+00> : vector<2x128xf32>
    %199 = tpu.matmul %197, %198, %cst_88 {dimension_numbers = #tpu.dot_dimension_numbers<[1], [0], [0], [1], [0, 0, 1, 1], [], []>} : vector<2x32xbf16>, vector<32x128xbf16>, vector<2x128xf32> -> vector<2x128xf32>
    %200 = arith.index_cast %177 : i32 to index
    %c0_89 = arith.constant 0 : index
    %c0_90 = arith.constant 0 : index
    %201 = vector.load %arg2[%200, %c0_89, %c0_90] : memref<8x2x32xbf16, #tpu.memory_space<vmem>>, vector<1x2x32xbf16>
    %202 = vector.shape_cast %201 : vector<1x2x32xbf16> to vector<2x32xbf16>
    %c0_91 = arith.constant 0 : index
    %c0_92 = arith.constant 0 : index
    %203 = vector.load %arg6[%c0_91, %c0_92] : memref<32x128xbf16, #tpu.memory_space<vmem>>, vector<32x128xbf16>
    %cst_93 = arith.constant dense<0.000000e+00> : vector<2x128xf32>
    %204 = tpu.matmul %202, %203, %cst_93 {dimension_numbers = #tpu.dot_dimension_numbers<[1], [0], [0], [1], [0, 0, 1, 1], [], []>} : vector<2x32xbf16>, vector<32x128xbf16>, vector<2x128xf32> -> vector<2x128xf32>
    %205 = arith.addf %199, %204 : vector<2x128xf32>
    %206 = arith.truncf %174 : vector<2x32xf32> to vector<2x32xbf16>
    %c0_94 = arith.constant 0 : index
    %c0_95 = arith.constant 0 : index
    %207 = vector.load %arg8[%c0_94, %c0_95] : memref<32x128xbf16, #tpu.memory_space<vmem>>, vector<32x128xbf16>
    %cst_96 = arith.constant dense<0.000000e+00> : vector<2x128xf32>
    %208 = tpu.matmul %206, %207, %cst_96 {dimension_numbers = #tpu.dot_dimension_numbers<[1], [0], [0], [1], [0, 0, 1, 1], [], []>} : vector<2x32xbf16>, vector<32x128xbf16>, vector<2x128xf32> -> vector<2x128xf32>
    %209 = arith.addf %205, %208 : vector<2x128xf32>
    %210 = vector.broadcast %1 : vector<1x128xf32> to vector<2x128xf32>
    %211 = arith.addf %209, %210 : vector<2x128xf32>
    %212 = vector.extract_strided_slice %194 {offsets = [0, 0], sizes = [2, 32], strides = [1, 1]} : vector<2x128xf32> to vector<2x32xf32>
    %213 = arith.negf %212 : vector<2x32xf32>
    %214 = math.exp %213 : vector<2x32xf32>
    %cst_97 = arith.constant 1.000000e+00 : f32
    %215 = vector.broadcast %cst_97 : f32 to vector<2x32xf32>
    %216 = arith.addf %215, %214 : vector<2x32xf32>
    %217 = arith.divf %215, %216 : vector<2x32xf32>
    %218 = vector.extract_strided_slice %194 {offsets = [0, 32], sizes = [2, 32], strides = [1, 1]} : vector<2x128xf32> to vector<2x32xf32>
    %219 = arith.negf %218 : vector<2x32xf32>
    %220 = math.exp %219 : vector<2x32xf32>
    %cst_98 = arith.constant 1.000000e+00 : f32
    %221 = vector.broadcast %cst_98 : f32 to vector<2x32xf32>
    %222 = arith.addf %221, %220 : vector<2x32xf32>
    %223 = arith.divf %221, %222 : vector<2x32xf32>
    %224 = vector.extract_strided_slice %194 {offsets = [0, 64], sizes = [2, 32], strides = [1, 1]} : vector<2x128xf32> to vector<2x32xf32>
    %225 = math.tanh %224 : vector<2x32xf32>
    %226 = vector.extract_strided_slice %194 {offsets = [0, 96], sizes = [2, 32], strides = [1, 1]} : vector<2x128xf32> to vector<2x32xf32>
    %227 = arith.negf %226 : vector<2x32xf32>
    %228 = math.exp %227 : vector<2x32xf32>
    %cst_99 = arith.constant 1.000000e+00 : f32
    %229 = vector.broadcast %cst_99 : f32 to vector<2x32xf32>
    %230 = arith.addf %229, %228 : vector<2x32xf32>
    %231 = arith.divf %229, %230 : vector<2x32xf32>
    %232 = arith.mulf %223, %147 : vector<2x32xf32>
    %233 = arith.mulf %217, %225 : vector<2x32xf32>
    %234 = arith.addf %232, %233 : vector<2x32xf32>
    %235 = math.tanh %234 : vector<2x32xf32>
    %236 = arith.mulf %231, %235 : vector<2x32xf32>
    %237 = vector.extract_strided_slice %211 {offsets = [0, 0], sizes = [2, 32], strides = [1, 1]} : vector<2x128xf32> to vector<2x32xf32>
    %238 = arith.negf %237 : vector<2x32xf32>
    %239 = math.exp %238 : vector<2x32xf32>
    %cst_100 = arith.constant 1.000000e+00 : f32
    %240 = vector.broadcast %cst_100 : f32 to vector<2x32xf32>
    %241 = arith.addf %240, %239 : vector<2x32xf32>
    %242 = arith.divf %240, %241 : vector<2x32xf32>
    %243 = vector.extract_strided_slice %211 {offsets = [0, 32], sizes = [2, 32], strides = [1, 1]} : vector<2x128xf32> to vector<2x32xf32>
    %244 = arith.negf %243 : vector<2x32xf32>
    %245 = math.exp %244 : vector<2x32xf32>
    %cst_101 = arith.constant 1.000000e+00 : f32
    %246 = vector.broadcast %cst_101 : f32 to vector<2x32xf32>
    %247 = arith.addf %246, %245 : vector<2x32xf32>
    %248 = arith.divf %246, %247 : vector<2x32xf32>
    %249 = vector.extract_strided_slice %211 {offsets = [0, 64], sizes = [2, 32], strides = [1, 1]} : vector<2x128xf32> to vector<2x32xf32>
    %250 = math.tanh %249 : vector<2x32xf32>
    %251 = vector.extract_strided_slice %211 {offsets = [0, 96], sizes = [2, 32], strides = [1, 1]} : vector<2x128xf32> to vector<2x32xf32>
    %252 = arith.negf %251 : vector<2x32xf32>
    %253 = math.exp %252 : vector<2x32xf32>
    %cst_102 = arith.constant 1.000000e+00 : f32
    %254 = vector.broadcast %cst_102 : f32 to vector<2x32xf32>
    %255 = arith.addf %254, %253 : vector<2x32xf32>
    %256 = arith.divf %254, %255 : vector<2x32xf32>
    %257 = arith.mulf %248, %172 : vector<2x32xf32>
    %258 = arith.mulf %242, %250 : vector<2x32xf32>
    %259 = arith.addf %257, %258 : vector<2x32xf32>
    %260 = math.tanh %259 : vector<2x32xf32>
    %261 = arith.mulf %256, %260 : vector<2x32xf32>
    %c0_i32_103 = arith.constant 0 : i32
    %262 = arith.cmpi eq, %c2_i32, %c0_i32_103 : i32
    %263 = arith.select %262, %261, %176 : vector<2x32xf32>
    %c3_i32 = arith.constant 3 : i32
    %c7_i32_104 = arith.constant 7 : i32
    %264 = arith.subi %c7_i32_104, %c3_i32 : i32
    %265 = arith.index_cast %c3_i32 : i32 to index
    %c0_105 = arith.constant 0 : index
    %c0_106 = arith.constant 0 : index
    %266 = vector.load %arg1[%265, %c0_105, %c0_106] : memref<8x2x32xbf16, #tpu.memory_space<vmem>>, vector<1x2x32xbf16>
    %267 = vector.shape_cast %266 : vector<1x2x32xbf16> to vector<2x32xbf16>
    %c0_107 = arith.constant 0 : index
    %c0_108 = arith.constant 0 : index
    %268 = vector.load %arg3[%c0_107, %c0_108] : memref<32x128xbf16, #tpu.memory_space<vmem>>, vector<32x128xbf16>
    %cst_109 = arith.constant dense<0.000000e+00> : vector<2x128xf32>
    %269 = tpu.matmul %267, %268, %cst_109 {dimension_numbers = #tpu.dot_dimension_numbers<[1], [0], [0], [1], [0, 0, 1, 1], [], []>} : vector<2x32xbf16>, vector<32x128xbf16>, vector<2x128xf32> -> vector<2x128xf32>
    %270 = arith.index_cast %c3_i32 : i32 to index
    %c0_110 = arith.constant 0 : index
    %c0_111 = arith.constant 0 : index
    %271 = vector.load %arg2[%270, %c0_110, %c0_111] : memref<8x2x32xbf16, #tpu.memory_space<vmem>>, vector<1x2x32xbf16>
    %272 = vector.shape_cast %271 : vector<1x2x32xbf16> to vector<2x32xbf16>
    %c0_112 = arith.constant 0 : index
    %c0_113 = arith.constant 0 : index
    %273 = vector.load %arg4[%c0_112, %c0_113] : memref<32x128xbf16, #tpu.memory_space<vmem>>, vector<32x128xbf16>
    %cst_114 = arith.constant dense<0.000000e+00> : vector<2x128xf32>
    %274 = tpu.matmul %272, %273, %cst_114 {dimension_numbers = #tpu.dot_dimension_numbers<[1], [0], [0], [1], [0, 0, 1, 1], [], []>} : vector<2x32xbf16>, vector<32x128xbf16>, vector<2x128xf32> -> vector<2x128xf32>
    %275 = arith.addf %269, %274 : vector<2x128xf32>
    %276 = arith.truncf %236 : vector<2x32xf32> to vector<2x32xbf16>
    %c0_115 = arith.constant 0 : index
    %c0_116 = arith.constant 0 : index
    %277 = vector.load %arg7[%c0_115, %c0_116] : memref<32x128xbf16, #tpu.memory_space<vmem>>, vector<32x128xbf16>
    %cst_117 = arith.constant dense<0.000000e+00> : vector<2x128xf32>
    %278 = tpu.matmul %276, %277, %cst_117 {dimension_numbers = #tpu.dot_dimension_numbers<[1], [0], [0], [1], [0, 0, 1, 1], [], []>} : vector<2x32xbf16>, vector<32x128xbf16>, vector<2x128xf32> -> vector<2x128xf32>
    %279 = arith.addf %275, %278 : vector<2x128xf32>
    %280 = vector.broadcast %0 : vector<1x128xf32> to vector<2x128xf32>
    %281 = arith.addf %279, %280 : vector<2x128xf32>
    %282 = arith.index_cast %264 : i32 to index
    %c0_118 = arith.constant 0 : index
    %c0_119 = arith.constant 0 : index
    %283 = vector.load %arg1[%282, %c0_118, %c0_119] : memref<8x2x32xbf16, #tpu.memory_space<vmem>>, vector<1x2x32xbf16>
    %284 = vector.shape_cast %283 : vector<1x2x32xbf16> to vector<2x32xbf16>
    %c0_120 = arith.constant 0 : index
    %c0_121 = arith.constant 0 : index
    %285 = vector.load %arg5[%c0_120, %c0_121] : memref<32x128xbf16, #tpu.memory_space<vmem>>, vector<32x128xbf16>
    %cst_122 = arith.constant dense<0.000000e+00> : vector<2x128xf32>
    %286 = tpu.matmul %284, %285, %cst_122 {dimension_numbers = #tpu.dot_dimension_numbers<[1], [0], [0], [1], [0, 0, 1, 1], [], []>} : vector<2x32xbf16>, vector<32x128xbf16>, vector<2x128xf32> -> vector<2x128xf32>
    %287 = arith.index_cast %264 : i32 to index
    %c0_123 = arith.constant 0 : index
    %c0_124 = arith.constant 0 : index
    %288 = vector.load %arg2[%287, %c0_123, %c0_124] : memref<8x2x32xbf16, #tpu.memory_space<vmem>>, vector<1x2x32xbf16>
    %289 = vector.shape_cast %288 : vector<1x2x32xbf16> to vector<2x32xbf16>
    %c0_125 = arith.constant 0 : index
    %c0_126 = arith.constant 0 : index
    %290 = vector.load %arg6[%c0_125, %c0_126] : memref<32x128xbf16, #tpu.memory_space<vmem>>, vector<32x128xbf16>
    %cst_127 = arith.constant dense<0.000000e+00> : vector<2x128xf32>
    %291 = tpu.matmul %289, %290, %cst_127 {dimension_numbers = #tpu.dot_dimension_numbers<[1], [0], [0], [1], [0, 0, 1, 1], [], []>} : vector<2x32xbf16>, vector<32x128xbf16>, vector<2x128xf32> -> vector<2x128xf32>
    %292 = arith.addf %286, %291 : vector<2x128xf32>
    %293 = arith.truncf %261 : vector<2x32xf32> to vector<2x32xbf16>
    %c0_128 = arith.constant 0 : index
    %c0_129 = arith.constant 0 : index
    %294 = vector.load %arg8[%c0_128, %c0_129] : memref<32x128xbf16, #tpu.memory_space<vmem>>, vector<32x128xbf16>
    %cst_130 = arith.constant dense<0.000000e+00> : vector<2x128xf32>
    %295 = tpu.matmul %293, %294, %cst_130 {dimension_numbers = #tpu.dot_dimension_numbers<[1], [0], [0], [1], [0, 0, 1, 1], [], []>} : vector<2x32xbf16>, vector<32x128xbf16>, vector<2x128xf32> -> vector<2x128xf32>
    %296 = arith.addf %292, %295 : vector<2x128xf32>
    %297 = vector.broadcast %1 : vector<1x128xf32> to vector<2x128xf32>
    %298 = arith.addf %296, %297 : vector<2x128xf32>
    %299 = vector.extract_strided_slice %281 {offsets = [0, 0], sizes = [2, 32], strides = [1, 1]} : vector<2x128xf32> to vector<2x32xf32>
    %300 = arith.negf %299 : vector<2x32xf32>
    %301 = math.exp %300 : vector<2x32xf32>
    %cst_131 = arith.constant 1.000000e+00 : f32
    %302 = vector.broadcast %cst_131 : f32 to vector<2x32xf32>
    %303 = arith.addf %302, %301 : vector<2x32xf32>
    %304 = arith.divf %302, %303 : vector<2x32xf32>
    %305 = vector.extract_strided_slice %281 {offsets = [0, 32], sizes = [2, 32], strides = [1, 1]} : vector<2x128xf32> to vector<2x32xf32>
    %306 = arith.negf %305 : vector<2x32xf32>
    %307 = math.exp %306 : vector<2x32xf32>
    %cst_132 = arith.constant 1.000000e+00 : f32
    %308 = vector.broadcast %cst_132 : f32 to vector<2x32xf32>
    %309 = arith.addf %308, %307 : vector<2x32xf32>
    %310 = arith.divf %308, %309 : vector<2x32xf32>
    %311 = vector.extract_strided_slice %281 {offsets = [0, 64], sizes = [2, 32], strides = [1, 1]} : vector<2x128xf32> to vector<2x32xf32>
    %312 = math.tanh %311 : vector<2x32xf32>
    %313 = vector.extract_strided_slice %281 {offsets = [0, 96], sizes = [2, 32], strides = [1, 1]} : vector<2x128xf32> to vector<2x32xf32>
    %314 = arith.negf %313 : vector<2x32xf32>
    %315 = math.exp %314 : vector<2x32xf32>
    %cst_133 = arith.constant 1.000000e+00 : f32
    %316 = vector.broadcast %cst_133 : f32 to vector<2x32xf32>
    %317 = arith.addf %316, %315 : vector<2x32xf32>
    %318 = arith.divf %316, %317 : vector<2x32xf32>
    %319 = arith.mulf %310, %234 : vector<2x32xf32>
    %320 = arith.mulf %304, %312 : vector<2x32xf32>
    %321 = arith.addf %319, %320 : vector<2x32xf32>
    %322 = math.tanh %321 : vector<2x32xf32>
    %323 = arith.mulf %318, %322 : vector<2x32xf32>
    %324 = vector.extract_strided_slice %298 {offsets = [0, 0], sizes = [2, 32], strides = [1, 1]} : vector<2x128xf32> to vector<2x32xf32>
    %325 = arith.negf %324 : vector<2x32xf32>
    %326 = math.exp %325 : vector<2x32xf32>
    %cst_134 = arith.constant 1.000000e+00 : f32
    %327 = vector.broadcast %cst_134 : f32 to vector<2x32xf32>
    %328 = arith.addf %327, %326 : vector<2x32xf32>
    %329 = arith.divf %327, %328 : vector<2x32xf32>
    %330 = vector.extract_strided_slice %298 {offsets = [0, 32], sizes = [2, 32], strides = [1, 1]} : vector<2x128xf32> to vector<2x32xf32>
    %331 = arith.negf %330 : vector<2x32xf32>
    %332 = math.exp %331 : vector<2x32xf32>
    %cst_135 = arith.constant 1.000000e+00 : f32
    %333 = vector.broadcast %cst_135 : f32 to vector<2x32xf32>
    %334 = arith.addf %333, %332 : vector<2x32xf32>
    %335 = arith.divf %333, %334 : vector<2x32xf32>
    %336 = vector.extract_strided_slice %298 {offsets = [0, 64], sizes = [2, 32], strides = [1, 1]} : vector<2x128xf32> to vector<2x32xf32>
    %337 = math.tanh %336 : vector<2x32xf32>
    %338 = vector.extract_strided_slice %298 {offsets = [0, 96], sizes = [2, 32], strides = [1, 1]} : vector<2x128xf32> to vector<2x32xf32>
    %339 = arith.negf %338 : vector<2x32xf32>
    %340 = math.exp %339 : vector<2x32xf32>
    %cst_136 = arith.constant 1.000000e+00 : f32
    %341 = vector.broadcast %cst_136 : f32 to vector<2x32xf32>
    %342 = arith.addf %341, %340 : vector<2x32xf32>
    %343 = arith.divf %341, %342 : vector<2x32xf32>
    %344 = arith.mulf %335, %259 : vector<2x32xf32>
    %345 = arith.mulf %329, %337 : vector<2x32xf32>
    %346 = arith.addf %344, %345 : vector<2x32xf32>
    %347 = math.tanh %346 : vector<2x32xf32>
    %348 = arith.mulf %343, %347 : vector<2x32xf32>
    %c0_i32_137 = arith.constant 0 : i32
    %349 = arith.cmpi eq, %c3_i32, %c0_i32_137 : i32
    %350 = arith.select %349, %348, %263 : vector<2x32xf32>
    %c4_i32 = arith.constant 4 : i32
    %c7_i32_138 = arith.constant 7 : i32
    %351 = arith.subi %c7_i32_138, %c4_i32 : i32
    %352 = arith.index_cast %c4_i32 : i32 to index
    %c0_139 = arith.constant 0 : index
    %c0_140 = arith.constant 0 : index
    %353 = vector.load %arg1[%352, %c0_139, %c0_140] : memref<8x2x32xbf16, #tpu.memory_space<vmem>>, vector<1x2x32xbf16>
    %354 = vector.shape_cast %353 : vector<1x2x32xbf16> to vector<2x32xbf16>
    %c0_141 = arith.constant 0 : index
    %c0_142 = arith.constant 0 : index
    %355 = vector.load %arg3[%c0_141, %c0_142] : memref<32x128xbf16, #tpu.memory_space<vmem>>, vector<32x128xbf16>
    %cst_143 = arith.constant dense<0.000000e+00> : vector<2x128xf32>
    %356 = tpu.matmul %354, %355, %cst_143 {dimension_numbers = #tpu.dot_dimension_numbers<[1], [0], [0], [1], [0, 0, 1, 1], [], []>} : vector<2x32xbf16>, vector<32x128xbf16>, vector<2x128xf32> -> vector<2x128xf32>
    %357 = arith.index_cast %c4_i32 : i32 to index
    %c0_144 = arith.constant 0 : index
    %c0_145 = arith.constant 0 : index
    %358 = vector.load %arg2[%357, %c0_144, %c0_145] : memref<8x2x32xbf16, #tpu.memory_space<vmem>>, vector<1x2x32xbf16>
    %359 = vector.shape_cast %358 : vector<1x2x32xbf16> to vector<2x32xbf16>
    %c0_146 = arith.constant 0 : index
    %c0_147 = arith.constant 0 : index
    %360 = vector.load %arg4[%c0_146, %c0_147] : memref<32x128xbf16, #tpu.memory_space<vmem>>, vector<32x128xbf16>
    %cst_148 = arith.constant dense<0.000000e+00> : vector<2x128xf32>
    %361 = tpu.matmul %359, %360, %cst_148 {dimension_numbers = #tpu.dot_dimension_numbers<[1], [0], [0], [1], [0, 0, 1, 1], [], []>} : vector<2x32xbf16>, vector<32x128xbf16>, vector<2x128xf32> -> vector<2x128xf32>
    %362 = arith.addf %356, %361 : vector<2x128xf32>
    %363 = arith.truncf %323 : vector<2x32xf32> to vector<2x32xbf16>
    %c0_149 = arith.constant 0 : index
    %c0_150 = arith.constant 0 : index
    %364 = vector.load %arg7[%c0_149, %c0_150] : memref<32x128xbf16, #tpu.memory_space<vmem>>, vector<32x128xbf16>
    %cst_151 = arith.constant dense<0.000000e+00> : vector<2x128xf32>
    %365 = tpu.matmul %363, %364, %cst_151 {dimension_numbers = #tpu.dot_dimension_numbers<[1], [0], [0], [1], [0, 0, 1, 1], [], []>} : vector<2x32xbf16>, vector<32x128xbf16>, vector<2x128xf32> -> vector<2x128xf32>
    %366 = arith.addf %362, %365 : vector<2x128xf32>
    %367 = vector.broadcast %0 : vector<1x128xf32> to vector<2x128xf32>
    %368 = arith.addf %366, %367 : vector<2x128xf32>
    %369 = arith.index_cast %351 : i32 to index
    %c0_152 = arith.constant 0 : index
    %c0_153 = arith.constant 0 : index
    %370 = vector.load %arg1[%369, %c0_152, %c0_153] : memref<8x2x32xbf16, #tpu.memory_space<vmem>>, vector<1x2x32xbf16>
    %371 = vector.shape_cast %370 : vector<1x2x32xbf16> to vector<2x32xbf16>
    %c0_154 = arith.constant 0 : index
    %c0_155 = arith.constant 0 : index
    %372 = vector.load %arg5[%c0_154, %c0_155] : memref<32x128xbf16, #tpu.memory_space<vmem>>, vector<32x128xbf16>
    %cst_156 = arith.constant dense<0.000000e+00> : vector<2x128xf32>
    %373 = tpu.matmul %371, %372, %cst_156 {dimension_numbers = #tpu.dot_dimension_numbers<[1], [0], [0], [1], [0, 0, 1, 1], [], []>} : vector<2x32xbf16>, vector<32x128xbf16>, vector<2x128xf32> -> vector<2x128xf32>
    %374 = arith.index_cast %351 : i32 to index
    %c0_157 = arith.constant 0 : index
    %c0_158 = arith.constant 0 : index
    %375 = vector.load %arg2[%374, %c0_157, %c0_158] : memref<8x2x32xbf16, #tpu.memory_space<vmem>>, vector<1x2x32xbf16>
    %376 = vector.shape_cast %375 : vector<1x2x32xbf16> to vector<2x32xbf16>
    %c0_159 = arith.constant 0 : index
    %c0_160 = arith.constant 0 : index
    %377 = vector.load %arg6[%c0_159, %c0_160] : memref<32x128xbf16, #tpu.memory_space<vmem>>, vector<32x128xbf16>
    %cst_161 = arith.constant dense<0.000000e+00> : vector<2x128xf32>
    %378 = tpu.matmul %376, %377, %cst_161 {dimension_numbers = #tpu.dot_dimension_numbers<[1], [0], [0], [1], [0, 0, 1, 1], [], []>} : vector<2x32xbf16>, vector<32x128xbf16>, vector<2x128xf32> -> vector<2x128xf32>
    %379 = arith.addf %373, %378 : vector<2x128xf32>
    %380 = arith.truncf %348 : vector<2x32xf32> to vector<2x32xbf16>
    %c0_162 = arith.constant 0 : index
    %c0_163 = arith.constant 0 : index
    %381 = vector.load %arg8[%c0_162, %c0_163] : memref<32x128xbf16, #tpu.memory_space<vmem>>, vector<32x128xbf16>
    %cst_164 = arith.constant dense<0.000000e+00> : vector<2x128xf32>
    %382 = tpu.matmul %380, %381, %cst_164 {dimension_numbers = #tpu.dot_dimension_numbers<[1], [0], [0], [1], [0, 0, 1, 1], [], []>} : vector<2x32xbf16>, vector<32x128xbf16>, vector<2x128xf32> -> vector<2x128xf32>
    %383 = arith.addf %379, %382 : vector<2x128xf32>
    %384 = vector.broadcast %1 : vector<1x128xf32> to vector<2x128xf32>
    %385 = arith.addf %383, %384 : vector<2x128xf32>
    %386 = vector.extract_strided_slice %368 {offsets = [0, 0], sizes = [2, 32], strides = [1, 1]} : vector<2x128xf32> to vector<2x32xf32>
    %387 = arith.negf %386 : vector<2x32xf32>
    %388 = math.exp %387 : vector<2x32xf32>
    %cst_165 = arith.constant 1.000000e+00 : f32
    %389 = vector.broadcast %cst_165 : f32 to vector<2x32xf32>
    %390 = arith.addf %389, %388 : vector<2x32xf32>
    %391 = arith.divf %389, %390 : vector<2x32xf32>
    %392 = vector.extract_strided_slice %368 {offsets = [0, 32], sizes = [2, 32], strides = [1, 1]} : vector<2x128xf32> to vector<2x32xf32>
    %393 = arith.negf %392 : vector<2x32xf32>
    %394 = math.exp %393 : vector<2x32xf32>
    %cst_166 = arith.constant 1.000000e+00 : f32
    %395 = vector.broadcast %cst_166 : f32 to vector<2x32xf32>
    %396 = arith.addf %395, %394 : vector<2x32xf32>
    %397 = arith.divf %395, %396 : vector<2x32xf32>
    %398 = vector.extract_strided_slice %368 {offsets = [0, 64], sizes = [2, 32], strides = [1, 1]} : vector<2x128xf32> to vector<2x32xf32>
    %399 = math.tanh %398 : vector<2x32xf32>
    %400 = vector.extract_strided_slice %368 {offsets = [0, 96], sizes = [2, 32], strides = [1, 1]} : vector<2x128xf32> to vector<2x32xf32>
    %401 = arith.negf %400 : vector<2x32xf32>
    %402 = math.exp %401 : vector<2x32xf32>
    %cst_167 = arith.constant 1.000000e+00 : f32
    %403 = vector.broadcast %cst_167 : f32 to vector<2x32xf32>
    %404 = arith.addf %403, %402 : vector<2x32xf32>
    %405 = arith.divf %403, %404 : vector<2x32xf32>
    %406 = arith.mulf %397, %321 : vector<2x32xf32>
    %407 = arith.mulf %391, %399 : vector<2x32xf32>
    %408 = arith.addf %406, %407 : vector<2x32xf32>
    %409 = math.tanh %408 : vector<2x32xf32>
    %410 = arith.mulf %405, %409 : vector<2x32xf32>
    %411 = vector.extract_strided_slice %385 {offsets = [0, 0], sizes = [2, 32], strides = [1, 1]} : vector<2x128xf32> to vector<2x32xf32>
    %412 = arith.negf %411 : vector<2x32xf32>
    %413 = math.exp %412 : vector<2x32xf32>
    %cst_168 = arith.constant 1.000000e+00 : f32
    %414 = vector.broadcast %cst_168 : f32 to vector<2x32xf32>
    %415 = arith.addf %414, %413 : vector<2x32xf32>
    %416 = arith.divf %414, %415 : vector<2x32xf32>
    %417 = vector.extract_strided_slice %385 {offsets = [0, 32], sizes = [2, 32], strides = [1, 1]} : vector<2x128xf32> to vector<2x32xf32>
    %418 = arith.negf %417 : vector<2x32xf32>
    %419 = math.exp %418 : vector<2x32xf32>
    %cst_169 = arith.constant 1.000000e+00 : f32
    %420 = vector.broadcast %cst_169 : f32 to vector<2x32xf32>
    %421 = arith.addf %420, %419 : vector<2x32xf32>
    %422 = arith.divf %420, %421 : vector<2x32xf32>
    %423 = vector.extract_strided_slice %385 {offsets = [0, 64], sizes = [2, 32], strides = [1, 1]} : vector<2x128xf32> to vector<2x32xf32>
    %424 = math.tanh %423 : vector<2x32xf32>
    %425 = vector.extract_strided_slice %385 {offsets = [0, 96], sizes = [2, 32], strides = [1, 1]} : vector<2x128xf32> to vector<2x32xf32>
    %426 = arith.negf %425 : vector<2x32xf32>
    %427 = math.exp %426 : vector<2x32xf32>
    %cst_170 = arith.constant 1.000000e+00 : f32
    %428 = vector.broadcast %cst_170 : f32 to vector<2x32xf32>
    %429 = arith.addf %428, %427 : vector<2x32xf32>
    %430 = arith.divf %428, %429 : vector<2x32xf32>
    %431 = arith.mulf %422, %346 : vector<2x32xf32>
    %432 = arith.mulf %416, %424 : vector<2x32xf32>
    %433 = arith.addf %431, %432 : vector<2x32xf32>
    %434 = math.tanh %433 : vector<2x32xf32>
    %435 = arith.mulf %430, %434 : vector<2x32xf32>
    %c0_i32_171 = arith.constant 0 : i32
    %436 = arith.cmpi eq, %c4_i32, %c0_i32_171 : i32
    %437 = arith.select %436, %435, %350 : vector<2x32xf32>
    %c5_i32 = arith.constant 5 : i32
    %c7_i32_172 = arith.constant 7 : i32
    %438 = arith.subi %c7_i32_172, %c5_i32 : i32
    %439 = arith.index_cast %c5_i32 : i32 to index
    %c0_173 = arith.constant 0 : index
    %c0_174 = arith.constant 0 : index
    %440 = vector.load %arg1[%439, %c0_173, %c0_174] : memref<8x2x32xbf16, #tpu.memory_space<vmem>>, vector<1x2x32xbf16>
    %441 = vector.shape_cast %440 : vector<1x2x32xbf16> to vector<2x32xbf16>
    %c0_175 = arith.constant 0 : index
    %c0_176 = arith.constant 0 : index
    %442 = vector.load %arg3[%c0_175, %c0_176] : memref<32x128xbf16, #tpu.memory_space<vmem>>, vector<32x128xbf16>
    %cst_177 = arith.constant dense<0.000000e+00> : vector<2x128xf32>
    %443 = tpu.matmul %441, %442, %cst_177 {dimension_numbers = #tpu.dot_dimension_numbers<[1], [0], [0], [1], [0, 0, 1, 1], [], []>} : vector<2x32xbf16>, vector<32x128xbf16>, vector<2x128xf32> -> vector<2x128xf32>
    %444 = arith.index_cast %c5_i32 : i32 to index
    %c0_178 = arith.constant 0 : index
    %c0_179 = arith.constant 0 : index
    %445 = vector.load %arg2[%444, %c0_178, %c0_179] : memref<8x2x32xbf16, #tpu.memory_space<vmem>>, vector<1x2x32xbf16>
    %446 = vector.shape_cast %445 : vector<1x2x32xbf16> to vector<2x32xbf16>
    %c0_180 = arith.constant 0 : index
    %c0_181 = arith.constant 0 : index
    %447 = vector.load %arg4[%c0_180, %c0_181] : memref<32x128xbf16, #tpu.memory_space<vmem>>, vector<32x128xbf16>
    %cst_182 = arith.constant dense<0.000000e+00> : vector<2x128xf32>
    %448 = tpu.matmul %446, %447, %cst_182 {dimension_numbers = #tpu.dot_dimension_numbers<[1], [0], [0], [1], [0, 0, 1, 1], [], []>} : vector<2x32xbf16>, vector<32x128xbf16>, vector<2x128xf32> -> vector<2x128xf32>
    %449 = arith.addf %443, %448 : vector<2x128xf32>
    %450 = arith.truncf %410 : vector<2x32xf32> to vector<2x32xbf16>
    %c0_183 = arith.constant 0 : index
    %c0_184 = arith.constant 0 : index
    %451 = vector.load %arg7[%c0_183, %c0_184] : memref<32x128xbf16, #tpu.memory_space<vmem>>, vector<32x128xbf16>
    %cst_185 = arith.constant dense<0.000000e+00> : vector<2x128xf32>
    %452 = tpu.matmul %450, %451, %cst_185 {dimension_numbers = #tpu.dot_dimension_numbers<[1], [0], [0], [1], [0, 0, 1, 1], [], []>} : vector<2x32xbf16>, vector<32x128xbf16>, vector<2x128xf32> -> vector<2x128xf32>
    %453 = arith.addf %449, %452 : vector<2x128xf32>
    %454 = vector.broadcast %0 : vector<1x128xf32> to vector<2x128xf32>
    %455 = arith.addf %453, %454 : vector<2x128xf32>
    %456 = arith.index_cast %438 : i32 to index
    %c0_186 = arith.constant 0 : index
    %c0_187 = arith.constant 0 : index
    %457 = vector.load %arg1[%456, %c0_186, %c0_187] : memref<8x2x32xbf16, #tpu.memory_space<vmem>>, vector<1x2x32xbf16>
    %458 = vector.shape_cast %457 : vector<1x2x32xbf16> to vector<2x32xbf16>
    %c0_188 = arith.constant 0 : index
    %c0_189 = arith.constant 0 : index
    %459 = vector.load %arg5[%c0_188, %c0_189] : memref<32x128xbf16, #tpu.memory_space<vmem>>, vector<32x128xbf16>
    %cst_190 = arith.constant dense<0.000000e+00> : vector<2x128xf32>
    %460 = tpu.matmul %458, %459, %cst_190 {dimension_numbers = #tpu.dot_dimension_numbers<[1], [0], [0], [1], [0, 0, 1, 1], [], []>} : vector<2x32xbf16>, vector<32x128xbf16>, vector<2x128xf32> -> vector<2x128xf32>
    %461 = arith.index_cast %438 : i32 to index
    %c0_191 = arith.constant 0 : index
    %c0_192 = arith.constant 0 : index
    %462 = vector.load %arg2[%461, %c0_191, %c0_192] : memref<8x2x32xbf16, #tpu.memory_space<vmem>>, vector<1x2x32xbf16>
    %463 = vector.shape_cast %462 : vector<1x2x32xbf16> to vector<2x32xbf16>
    %c0_193 = arith.constant 0 : index
    %c0_194 = arith.constant 0 : index
    %464 = vector.load %arg6[%c0_193, %c0_194] : memref<32x128xbf16, #tpu.memory_space<vmem>>, vector<32x128xbf16>
    %cst_195 = arith.constant dense<0.000000e+00> : vector<2x128xf32>
    %465 = tpu.matmul %463, %464, %cst_195 {dimension_numbers = #tpu.dot_dimension_numbers<[1], [0], [0], [1], [0, 0, 1, 1], [], []>} : vector<2x32xbf16>, vector<32x128xbf16>, vector<2x128xf32> -> vector<2x128xf32>
    %466 = arith.addf %460, %465 : vector<2x128xf32>
    %467 = arith.truncf %435 : vector<2x32xf32> to vector<2x32xbf16>
    %c0_196 = arith.constant 0 : index
    %c0_197 = arith.constant 0 : index
    %468 = vector.load %arg8[%c0_196, %c0_197] : memref<32x128xbf16, #tpu.memory_space<vmem>>, vector<32x128xbf16>
    %cst_198 = arith.constant dense<0.000000e+00> : vector<2x128xf32>
    %469 = tpu.matmul %467, %468, %cst_198 {dimension_numbers = #tpu.dot_dimension_numbers<[1], [0], [0], [1], [0, 0, 1, 1], [], []>} : vector<2x32xbf16>, vector<32x128xbf16>, vector<2x128xf32> -> vector<2x128xf32>
    %470 = arith.addf %466, %469 : vector<2x128xf32>
    %471 = vector.broadcast %1 : vector<1x128xf32> to vector<2x128xf32>
    %472 = arith.addf %470, %471 : vector<2x128xf32>
    %473 = vector.extract_strided_slice %455 {offsets = [0, 0], sizes = [2, 32], strides = [1, 1]} : vector<2x128xf32> to vector<2x32xf32>
    %474 = arith.negf %473 : vector<2x32xf32>
    %475 = math.exp %474 : vector<2x32xf32>
    %cst_199 = arith.constant 1.000000e+00 : f32
    %476 = vector.broadcast %cst_199 : f32 to vector<2x32xf32>
    %477 = arith.addf %476, %475 : vector<2x32xf32>
    %478 = arith.divf %476, %477 : vector<2x32xf32>
    %479 = vector.extract_strided_slice %455 {offsets = [0, 32], sizes = [2, 32], strides = [1, 1]} : vector<2x128xf32> to vector<2x32xf32>
    %480 = arith.negf %479 : vector<2x32xf32>
    %481 = math.exp %480 : vector<2x32xf32>
    %cst_200 = arith.constant 1.000000e+00 : f32
    %482 = vector.broadcast %cst_200 : f32 to vector<2x32xf32>
    %483 = arith.addf %482, %481 : vector<2x32xf32>
    %484 = arith.divf %482, %483 : vector<2x32xf32>
    %485 = vector.extract_strided_slice %455 {offsets = [0, 64], sizes = [2, 32], strides = [1, 1]} : vector<2x128xf32> to vector<2x32xf32>
    %486 = math.tanh %485 : vector<2x32xf32>
    %487 = vector.extract_strided_slice %455 {offsets = [0, 96], sizes = [2, 32], strides = [1, 1]} : vector<2x128xf32> to vector<2x32xf32>
    %488 = arith.negf %487 : vector<2x32xf32>
    %489 = math.exp %488 : vector<2x32xf32>
    %cst_201 = arith.constant 1.000000e+00 : f32
    %490 = vector.broadcast %cst_201 : f32 to vector<2x32xf32>
    %491 = arith.addf %490, %489 : vector<2x32xf32>
    %492 = arith.divf %490, %491 : vector<2x32xf32>
    %493 = arith.mulf %484, %408 : vector<2x32xf32>
    %494 = arith.mulf %478, %486 : vector<2x32xf32>
    %495 = arith.addf %493, %494 : vector<2x32xf32>
    %496 = math.tanh %495 : vector<2x32xf32>
    %497 = arith.mulf %492, %496 : vector<2x32xf32>
    %498 = vector.extract_strided_slice %472 {offsets = [0, 0], sizes = [2, 32], strides = [1, 1]} : vector<2x128xf32> to vector<2x32xf32>
    %499 = arith.negf %498 : vector<2x32xf32>
    %500 = math.exp %499 : vector<2x32xf32>
    %cst_202 = arith.constant 1.000000e+00 : f32
    %501 = vector.broadcast %cst_202 : f32 to vector<2x32xf32>
    %502 = arith.addf %501, %500 : vector<2x32xf32>
    %503 = arith.divf %501, %502 : vector<2x32xf32>
    %504 = vector.extract_strided_slice %472 {offsets = [0, 32], sizes = [2, 32], strides = [1, 1]} : vector<2x128xf32> to vector<2x32xf32>
    %505 = arith.negf %504 : vector<2x32xf32>
    %506 = math.exp %505 : vector<2x32xf32>
    %cst_203 = arith.constant 1.000000e+00 : f32
    %507 = vector.broadcast %cst_203 : f32 to vector<2x32xf32>
    %508 = arith.addf %507, %506 : vector<2x32xf32>
    %509 = arith.divf %507, %508 : vector<2x32xf32>
    %510 = vector.extract_strided_slice %472 {offsets = [0, 64], sizes = [2, 32], strides = [1, 1]} : vector<2x128xf32> to vector<2x32xf32>
    %511 = math.tanh %510 : vector<2x32xf32>
    %512 = vector.extract_strided_slice %472 {offsets = [0, 96], sizes = [2, 32], strides = [1, 1]} : vector<2x128xf32> to vector<2x32xf32>
    %513 = arith.negf %512 : vector<2x32xf32>
    %514 = math.exp %513 : vector<2x32xf32>
    %cst_204 = arith.constant 1.000000e+00 : f32
    %515 = vector.broadcast %cst_204 : f32 to vector<2x32xf32>
    %516 = arith.addf %515, %514 : vector<2x32xf32>
    %517 = arith.divf %515, %516 : vector<2x32xf32>
    %518 = arith.mulf %509, %433 : vector<2x32xf32>
    %519 = arith.mulf %503, %511 : vector<2x32xf32>
    %520 = arith.addf %518, %519 : vector<2x32xf32>
    %521 = math.tanh %520 : vector<2x32xf32>
    %522 = arith.mulf %517, %521 : vector<2x32xf32>
    %c0_i32_205 = arith.constant 0 : i32
    %523 = arith.cmpi eq, %c5_i32, %c0_i32_205 : i32
    %524 = arith.select %523, %522, %437 : vector<2x32xf32>
    %c6_i32 = arith.constant 6 : i32
    %c7_i32_206 = arith.constant 7 : i32
    %525 = arith.subi %c7_i32_206, %c6_i32 : i32
    %526 = arith.index_cast %c6_i32 : i32 to index
    %c0_207 = arith.constant 0 : index
    %c0_208 = arith.constant 0 : index
    %527 = vector.load %arg1[%526, %c0_207, %c0_208] : memref<8x2x32xbf16, #tpu.memory_space<vmem>>, vector<1x2x32xbf16>
    %528 = vector.shape_cast %527 : vector<1x2x32xbf16> to vector<2x32xbf16>
    %c0_209 = arith.constant 0 : index
    %c0_210 = arith.constant 0 : index
    %529 = vector.load %arg3[%c0_209, %c0_210] : memref<32x128xbf16, #tpu.memory_space<vmem>>, vector<32x128xbf16>
    %cst_211 = arith.constant dense<0.000000e+00> : vector<2x128xf32>
    %530 = tpu.matmul %528, %529, %cst_211 {dimension_numbers = #tpu.dot_dimension_numbers<[1], [0], [0], [1], [0, 0, 1, 1], [], []>} : vector<2x32xbf16>, vector<32x128xbf16>, vector<2x128xf32> -> vector<2x128xf32>
    %531 = arith.index_cast %c6_i32 : i32 to index
    %c0_212 = arith.constant 0 : index
    %c0_213 = arith.constant 0 : index
    %532 = vector.load %arg2[%531, %c0_212, %c0_213] : memref<8x2x32xbf16, #tpu.memory_space<vmem>>, vector<1x2x32xbf16>
    %533 = vector.shape_cast %532 : vector<1x2x32xbf16> to vector<2x32xbf16>
    %c0_214 = arith.constant 0 : index
    %c0_215 = arith.constant 0 : index
    %534 = vector.load %arg4[%c0_214, %c0_215] : memref<32x128xbf16, #tpu.memory_space<vmem>>, vector<32x128xbf16>
    %cst_216 = arith.constant dense<0.000000e+00> : vector<2x128xf32>
    %535 = tpu.matmul %533, %534, %cst_216 {dimension_numbers = #tpu.dot_dimension_numbers<[1], [0], [0], [1], [0, 0, 1, 1], [], []>} : vector<2x32xbf16>, vector<32x128xbf16>, vector<2x128xf32> -> vector<2x128xf32>
    %536 = arith.addf %530, %535 : vector<2x128xf32>
    %537 = arith.truncf %497 : vector<2x32xf32> to vector<2x32xbf16>
    %c0_217 = arith.constant 0 : index
    %c0_218 = arith.constant 0 : index
    %538 = vector.load %arg7[%c0_217, %c0_218] : memref<32x128xbf16, #tpu.memory_space<vmem>>, vector<32x128xbf16>
    %cst_219 = arith.constant dense<0.000000e+00> : vector<2x128xf32>
    %539 = tpu.matmul %537, %538, %cst_219 {dimension_numbers = #tpu.dot_dimension_numbers<[1], [0], [0], [1], [0, 0, 1, 1], [], []>} : vector<2x32xbf16>, vector<32x128xbf16>, vector<2x128xf32> -> vector<2x128xf32>
    %540 = arith.addf %536, %539 : vector<2x128xf32>
    %541 = vector.broadcast %0 : vector<1x128xf32> to vector<2x128xf32>
    %542 = arith.addf %540, %541 : vector<2x128xf32>
    %543 = arith.index_cast %525 : i32 to index
    %c0_220 = arith.constant 0 : index
    %c0_221 = arith.constant 0 : index
    %544 = vector.load %arg1[%543, %c0_220, %c0_221] : memref<8x2x32xbf16, #tpu.memory_space<vmem>>, vector<1x2x32xbf16>
    %545 = vector.shape_cast %544 : vector<1x2x32xbf16> to vector<2x32xbf16>
    %c0_222 = arith.constant 0 : index
    %c0_223 = arith.constant 0 : index
    %546 = vector.load %arg5[%c0_222, %c0_223] : memref<32x128xbf16, #tpu.memory_space<vmem>>, vector<32x128xbf16>
    %cst_224 = arith.constant dense<0.000000e+00> : vector<2x128xf32>
    %547 = tpu.matmul %545, %546, %cst_224 {dimension_numbers = #tpu.dot_dimension_numbers<[1], [0], [0], [1], [0, 0, 1, 1], [], []>} : vector<2x32xbf16>, vector<32x128xbf16>, vector<2x128xf32> -> vector<2x128xf32>
    %548 = arith.index_cast %525 : i32 to index
    %c0_225 = arith.constant 0 : index
    %c0_226 = arith.constant 0 : index
    %549 = vector.load %arg2[%548, %c0_225, %c0_226] : memref<8x2x32xbf16, #tpu.memory_space<vmem>>, vector<1x2x32xbf16>
    %550 = vector.shape_cast %549 : vector<1x2x32xbf16> to vector<2x32xbf16>
    %c0_227 = arith.constant 0 : index
    %c0_228 = arith.constant 0 : index
    %551 = vector.load %arg6[%c0_227, %c0_228] : memref<32x128xbf16, #tpu.memory_space<vmem>>, vector<32x128xbf16>
    %cst_229 = arith.constant dense<0.000000e+00> : vector<2x128xf32>
    %552 = tpu.matmul %550, %551, %cst_229 {dimension_numbers = #tpu.dot_dimension_numbers<[1], [0], [0], [1], [0, 0, 1, 1], [], []>} : vector<2x32xbf16>, vector<32x128xbf16>, vector<2x128xf32> -> vector<2x128xf32>
    %553 = arith.addf %547, %552 : vector<2x128xf32>
    %554 = arith.truncf %522 : vector<2x32xf32> to vector<2x32xbf16>
    %c0_230 = arith.constant 0 : index
    %c0_231 = arith.constant 0 : index
    %555 = vector.load %arg8[%c0_230, %c0_231] : memref<32x128xbf16, #tpu.memory_space<vmem>>, vector<32x128xbf16>
    %cst_232 = arith.constant dense<0.000000e+00> : vector<2x128xf32>
    %556 = tpu.matmul %554, %555, %cst_232 {dimension_numbers = #tpu.dot_dimension_numbers<[1], [0], [0], [1], [0, 0, 1, 1], [], []>} : vector<2x32xbf16>, vector<32x128xbf16>, vector<2x128xf32> -> vector<2x128xf32>
    %557 = arith.addf %553, %556 : vector<2x128xf32>
    %558 = vector.broadcast %1 : vector<1x128xf32> to vector<2x128xf32>
    %559 = arith.addf %557, %558 : vector<2x128xf32>
    %560 = vector.extract_strided_slice %542 {offsets = [0, 0], sizes = [2, 32], strides = [1, 1]} : vector<2x128xf32> to vector<2x32xf32>
    %561 = arith.negf %560 : vector<2x32xf32>
    %562 = math.exp %561 : vector<2x32xf32>
    %cst_233 = arith.constant 1.000000e+00 : f32
    %563 = vector.broadcast %cst_233 : f32 to vector<2x32xf32>
    %564 = arith.addf %563, %562 : vector<2x32xf32>
    %565 = arith.divf %563, %564 : vector<2x32xf32>
    %566 = vector.extract_strided_slice %542 {offsets = [0, 32], sizes = [2, 32], strides = [1, 1]} : vector<2x128xf32> to vector<2x32xf32>
    %567 = arith.negf %566 : vector<2x32xf32>
    %568 = math.exp %567 : vector<2x32xf32>
    %cst_234 = arith.constant 1.000000e+00 : f32
    %569 = vector.broadcast %cst_234 : f32 to vector<2x32xf32>
    %570 = arith.addf %569, %568 : vector<2x32xf32>
    %571 = arith.divf %569, %570 : vector<2x32xf32>
    %572 = vector.extract_strided_slice %542 {offsets = [0, 64], sizes = [2, 32], strides = [1, 1]} : vector<2x128xf32> to vector<2x32xf32>
    %573 = math.tanh %572 : vector<2x32xf32>
    %574 = vector.extract_strided_slice %542 {offsets = [0, 96], sizes = [2, 32], strides = [1, 1]} : vector<2x128xf32> to vector<2x32xf32>
    %575 = arith.negf %574 : vector<2x32xf32>
    %576 = math.exp %575 : vector<2x32xf32>
    %cst_235 = arith.constant 1.000000e+00 : f32
    %577 = vector.broadcast %cst_235 : f32 to vector<2x32xf32>
    %578 = arith.addf %577, %576 : vector<2x32xf32>
    %579 = arith.divf %577, %578 : vector<2x32xf32>
    %580 = arith.mulf %571, %495 : vector<2x32xf32>
    %581 = arith.mulf %565, %573 : vector<2x32xf32>
    %582 = arith.addf %580, %581 : vector<2x32xf32>
    %583 = math.tanh %582 : vector<2x32xf32>
    %584 = arith.mulf %579, %583 : vector<2x32xf32>
    %585 = vector.extract_strided_slice %559 {offsets = [0, 0], sizes = [2, 32], strides = [1, 1]} : vector<2x128xf32> to vector<2x32xf32>
    %586 = arith.negf %585 : vector<2x32xf32>
    %587 = math.exp %586 : vector<2x32xf32>
    %cst_236 = arith.constant 1.000000e+00 : f32
    %588 = vector.broadcast %cst_236 : f32 to vector<2x32xf32>
    %589 = arith.addf %588, %587 : vector<2x32xf32>
    %590 = arith.divf %588, %589 : vector<2x32xf32>
    %591 = vector.extract_strided_slice %559 {offsets = [0, 32], sizes = [2, 32], strides = [1, 1]} : vector<2x128xf32> to vector<2x32xf32>
    %592 = arith.negf %591 : vector<2x32xf32>
    %593 = math.exp %592 : vector<2x32xf32>
    %cst_237 = arith.constant 1.000000e+00 : f32
    %594 = vector.broadcast %cst_237 : f32 to vector<2x32xf32>
    %595 = arith.addf %594, %593 : vector<2x32xf32>
    %596 = arith.divf %594, %595 : vector<2x32xf32>
    %597 = vector.extract_strided_slice %559 {offsets = [0, 64], sizes = [2, 32], strides = [1, 1]} : vector<2x128xf32> to vector<2x32xf32>
    %598 = math.tanh %597 : vector<2x32xf32>
    %599 = vector.extract_strided_slice %559 {offsets = [0, 96], sizes = [2, 32], strides = [1, 1]} : vector<2x128xf32> to vector<2x32xf32>
    %600 = arith.negf %599 : vector<2x32xf32>
    %601 = math.exp %600 : vector<2x32xf32>
    %cst_238 = arith.constant 1.000000e+00 : f32
    %602 = vector.broadcast %cst_238 : f32 to vector<2x32xf32>
    %603 = arith.addf %602, %601 : vector<2x32xf32>
    %604 = arith.divf %602, %603 : vector<2x32xf32>
    %605 = arith.mulf %596, %520 : vector<2x32xf32>
    %606 = arith.mulf %590, %598 : vector<2x32xf32>
    %607 = arith.addf %605, %606 : vector<2x32xf32>
    %608 = math.tanh %607 : vector<2x32xf32>
    %609 = arith.mulf %604, %608 : vector<2x32xf32>
    %c0_i32_239 = arith.constant 0 : i32
    %610 = arith.cmpi eq, %c6_i32, %c0_i32_239 : i32
    %611 = arith.select %610, %609, %524 : vector<2x32xf32>
    %c7_i32_240 = arith.constant 7 : i32
    %c7_i32_241 = arith.constant 7 : i32
    %612 = arith.subi %c7_i32_241, %c7_i32_240 : i32
    %613 = arith.index_cast %c7_i32_240 : i32 to index
    %c0_242 = arith.constant 0 : index
    %c0_243 = arith.constant 0 : index
    %614 = vector.load %arg1[%613, %c0_242, %c0_243] : memref<8x2x32xbf16, #tpu.memory_space<vmem>>, vector<1x2x32xbf16>
    %615 = vector.shape_cast %614 : vector<1x2x32xbf16> to vector<2x32xbf16>
    %c0_244 = arith.constant 0 : index
    %c0_245 = arith.constant 0 : index
    %616 = vector.load %arg3[%c0_244, %c0_245] : memref<32x128xbf16, #tpu.memory_space<vmem>>, vector<32x128xbf16>
    %cst_246 = arith.constant dense<0.000000e+00> : vector<2x128xf32>
    %617 = tpu.matmul %615, %616, %cst_246 {dimension_numbers = #tpu.dot_dimension_numbers<[1], [0], [0], [1], [0, 0, 1, 1], [], []>} : vector<2x32xbf16>, vector<32x128xbf16>, vector<2x128xf32> -> vector<2x128xf32>
    %618 = arith.index_cast %c7_i32_240 : i32 to index
    %c0_247 = arith.constant 0 : index
    %c0_248 = arith.constant 0 : index
    %619 = vector.load %arg2[%618, %c0_247, %c0_248] : memref<8x2x32xbf16, #tpu.memory_space<vmem>>, vector<1x2x32xbf16>
    %620 = vector.shape_cast %619 : vector<1x2x32xbf16> to vector<2x32xbf16>
    %c0_249 = arith.constant 0 : index
    %c0_250 = arith.constant 0 : index
    %621 = vector.load %arg4[%c0_249, %c0_250] : memref<32x128xbf16, #tpu.memory_space<vmem>>, vector<32x128xbf16>
    %cst_251 = arith.constant dense<0.000000e+00> : vector<2x128xf32>
    %622 = tpu.matmul %620, %621, %cst_251 {dimension_numbers = #tpu.dot_dimension_numbers<[1], [0], [0], [1], [0, 0, 1, 1], [], []>} : vector<2x32xbf16>, vector<32x128xbf16>, vector<2x128xf32> -> vector<2x128xf32>
    %623 = arith.addf %617, %622 : vector<2x128xf32>
    %624 = arith.truncf %584 : vector<2x32xf32> to vector<2x32xbf16>
    %c0_252 = arith.constant 0 : index
    %c0_253 = arith.constant 0 : index
    %625 = vector.load %arg7[%c0_252, %c0_253] : memref<32x128xbf16, #tpu.memory_space<vmem>>, vector<32x128xbf16>
    %cst_254 = arith.constant dense<0.000000e+00> : vector<2x128xf32>
    %626 = tpu.matmul %624, %625, %cst_254 {dimension_numbers = #tpu.dot_dimension_numbers<[1], [0], [0], [1], [0, 0, 1, 1], [], []>} : vector<2x32xbf16>, vector<32x128xbf16>, vector<2x128xf32> -> vector<2x128xf32>
    %627 = arith.addf %623, %626 : vector<2x128xf32>
    %628 = vector.broadcast %0 : vector<1x128xf32> to vector<2x128xf32>
    %629 = arith.addf %627, %628 : vector<2x128xf32>
    %630 = arith.index_cast %612 : i32 to index
    %c0_255 = arith.constant 0 : index
    %c0_256 = arith.constant 0 : index
    %631 = vector.load %arg1[%630, %c0_255, %c0_256] : memref<8x2x32xbf16, #tpu.memory_space<vmem>>, vector<1x2x32xbf16>
    %632 = vector.shape_cast %631 : vector<1x2x32xbf16> to vector<2x32xbf16>
    %c0_257 = arith.constant 0 : index
    %c0_258 = arith.constant 0 : index
    %633 = vector.load %arg5[%c0_257, %c0_258] : memref<32x128xbf16, #tpu.memory_space<vmem>>, vector<32x128xbf16>
    %cst_259 = arith.constant dense<0.000000e+00> : vector<2x128xf32>
    %634 = tpu.matmul %632, %633, %cst_259 {dimension_numbers = #tpu.dot_dimension_numbers<[1], [0], [0], [1], [0, 0, 1, 1], [], []>} : vector<2x32xbf16>, vector<32x128xbf16>, vector<2x128xf32> -> vector<2x128xf32>
    %635 = arith.index_cast %612 : i32 to index
    %c0_260 = arith.constant 0 : index
    %c0_261 = arith.constant 0 : index
    %636 = vector.load %arg2[%635, %c0_260, %c0_261] : memref<8x2x32xbf16, #tpu.memory_space<vmem>>, vector<1x2x32xbf16>
    %637 = vector.shape_cast %636 : vector<1x2x32xbf16> to vector<2x32xbf16>
    %c0_262 = arith.constant 0 : index
    %c0_263 = arith.constant 0 : index
    %638 = vector.load %arg6[%c0_262, %c0_263] : memref<32x128xbf16, #tpu.memory_space<vmem>>, vector<32x128xbf16>
    %cst_264 = arith.constant dense<0.000000e+00> : vector<2x128xf32>
    %639 = tpu.matmul %637, %638, %cst_264 {dimension_numbers = #tpu.dot_dimension_numbers<[1], [0], [0], [1], [0, 0, 1, 1], [], []>} : vector<2x32xbf16>, vector<32x128xbf16>, vector<2x128xf32> -> vector<2x128xf32>
    %640 = arith.addf %634, %639 : vector<2x128xf32>
    %641 = arith.truncf %609 : vector<2x32xf32> to vector<2x32xbf16>
    %c0_265 = arith.constant 0 : index
    %c0_266 = arith.constant 0 : index
    %642 = vector.load %arg8[%c0_265, %c0_266] : memref<32x128xbf16, #tpu.memory_space<vmem>>, vector<32x128xbf16>
    %cst_267 = arith.constant dense<0.000000e+00> : vector<2x128xf32>
    %643 = tpu.matmul %641, %642, %cst_267 {dimension_numbers = #tpu.dot_dimension_numbers<[1], [0], [0], [1], [0, 0, 1, 1], [], []>} : vector<2x32xbf16>, vector<32x128xbf16>, vector<2x128xf32> -> vector<2x128xf32>
    %644 = arith.addf %640, %643 : vector<2x128xf32>
    %645 = vector.broadcast %1 : vector<1x128xf32> to vector<2x128xf32>
    %646 = arith.addf %644, %645 : vector<2x128xf32>
    %647 = vector.extract_strided_slice %629 {offsets = [0, 0], sizes = [2, 32], strides = [1, 1]} : vector<2x128xf32> to vector<2x32xf32>
    %648 = arith.negf %647 : vector<2x32xf32>
    %649 = math.exp %648 : vector<2x32xf32>
    %cst_268 = arith.constant 1.000000e+00 : f32
    %650 = vector.broadcast %cst_268 : f32 to vector<2x32xf32>
    %651 = arith.addf %650, %649 : vector<2x32xf32>
    %652 = arith.divf %650, %651 : vector<2x32xf32>
    %653 = vector.extract_strided_slice %629 {offsets = [0, 32], sizes = [2, 32], strides = [1, 1]} : vector<2x128xf32> to vector<2x32xf32>
    %654 = arith.negf %653 : vector<2x32xf32>
    %655 = math.exp %654 : vector<2x32xf32>
    %cst_269 = arith.constant 1.000000e+00 : f32
    %656 = vector.broadcast %cst_269 : f32 to vector<2x32xf32>
    %657 = arith.addf %656, %655 : vector<2x32xf32>
    %658 = arith.divf %656, %657 : vector<2x32xf32>
    %659 = vector.extract_strided_slice %629 {offsets = [0, 64], sizes = [2, 32], strides = [1, 1]} : vector<2x128xf32> to vector<2x32xf32>
    %660 = math.tanh %659 : vector<2x32xf32>
    %661 = vector.extract_strided_slice %629 {offsets = [0, 96], sizes = [2, 32], strides = [1, 1]} : vector<2x128xf32> to vector<2x32xf32>
    %662 = arith.negf %661 : vector<2x32xf32>
    %663 = math.exp %662 : vector<2x32xf32>
    %cst_270 = arith.constant 1.000000e+00 : f32
    %664 = vector.broadcast %cst_270 : f32 to vector<2x32xf32>
    %665 = arith.addf %664, %663 : vector<2x32xf32>
    %666 = arith.divf %664, %665 : vector<2x32xf32>
    %667 = arith.mulf %658, %582 : vector<2x32xf32>
    %668 = arith.mulf %652, %660 : vector<2x32xf32>
    %669 = arith.addf %667, %668 : vector<2x32xf32>
    %670 = math.tanh %669 : vector<2x32xf32>
    %671 = arith.mulf %666, %670 : vector<2x32xf32>
    %672 = vector.extract_strided_slice %646 {offsets = [0, 0], sizes = [2, 32], strides = [1, 1]} : vector<2x128xf32> to vector<2x32xf32>
    %673 = arith.negf %672 : vector<2x32xf32>
    %674 = math.exp %673 : vector<2x32xf32>
    %cst_271 = arith.constant 1.000000e+00 : f32
    %675 = vector.broadcast %cst_271 : f32 to vector<2x32xf32>
    %676 = arith.addf %675, %674 : vector<2x32xf32>
    %677 = arith.divf %675, %676 : vector<2x32xf32>
    %678 = vector.extract_strided_slice %646 {offsets = [0, 32], sizes = [2, 32], strides = [1, 1]} : vector<2x128xf32> to vector<2x32xf32>
    %679 = arith.negf %678 : vector<2x32xf32>
    %680 = math.exp %679 : vector<2x32xf32>
    %cst_272 = arith.constant 1.000000e+00 : f32
    %681 = vector.broadcast %cst_272 : f32 to vector<2x32xf32>
    %682 = arith.addf %681, %680 : vector<2x32xf32>
    %683 = arith.divf %681, %682 : vector<2x32xf32>
    %684 = vector.extract_strided_slice %646 {offsets = [0, 64], sizes = [2, 32], strides = [1, 1]} : vector<2x128xf32> to vector<2x32xf32>
    %685 = math.tanh %684 : vector<2x32xf32>
    %686 = vector.extract_strided_slice %646 {offsets = [0, 96], sizes = [2, 32], strides = [1, 1]} : vector<2x128xf32> to vector<2x32xf32>
    %687 = arith.negf %686 : vector<2x32xf32>
    %688 = math.exp %687 : vector<2x32xf32>
    %cst_273 = arith.constant 1.000000e+00 : f32
    %689 = vector.broadcast %cst_273 : f32 to vector<2x32xf32>
    %690 = arith.addf %689, %688 : vector<2x32xf32>
    %691 = arith.divf %689, %690 : vector<2x32xf32>
    %692 = arith.mulf %683, %607 : vector<2x32xf32>
    %693 = arith.mulf %677, %685 : vector<2x32xf32>
    %694 = arith.addf %692, %693 : vector<2x32xf32>
    %695 = math.tanh %694 : vector<2x32xf32>
    %696 = arith.mulf %691, %695 : vector<2x32xf32>
    %c0_i32_274 = arith.constant 0 : i32
    %697 = arith.cmpi eq, %c7_i32_240, %c0_i32_274 : i32
    %698 = arith.select %697, %696, %611 : vector<2x32xf32>
    %c8_i32 = arith.constant 8 : i32
    %c0_275 = arith.constant 0 : index
    %c0_276 = arith.constant 0 : index
    %699 = vector.load %arg11[%c0_275, %c0_276] : memref<1x32xf32, #tpu.memory_space<vmem>>, vector<1x32xf32>
    %700 = vector.broadcast %699 : vector<1x32xf32> to vector<2x32xf32>
    %701 = arith.mulf %671, %700 : vector<2x32xf32>
    %cst_277 = arith.constant dense<0.000000e+00> : vector<2xf32>
    %702 = vector.multi_reduction <add>, %701, %cst_277 [1] : vector<2x32xf32> to vector<2xf32>
    %703 = vector.shape_cast %702 : vector<2xf32> to vector<2x1xf32>
    %c0_278 = arith.constant 0 : index
    %c0_279 = arith.constant 0 : index
    %704 = vector.load %arg12[%c0_278, %c0_279] : memref<1x32xf32, #tpu.memory_space<vmem>>, vector<1x32xf32>
    %705 = vector.broadcast %704 : vector<1x32xf32> to vector<2x32xf32>
    %706 = arith.mulf %698, %705 : vector<2x32xf32>
    %cst_280 = arith.constant dense<0.000000e+00> : vector<2xf32>
    %707 = vector.multi_reduction <add>, %706, %cst_280 [1] : vector<2x32xf32> to vector<2xf32>
    %708 = vector.shape_cast %707 : vector<2xf32> to vector<2x1xf32>
    %709 = arith.addf %703, %708 : vector<2x1xf32>
    %c0_281 = arith.constant 0 : index
    %c0_282 = arith.constant 0 : index
    %710 = vector.load %arg13[%c0_281, %c0_282] : memref<1x1xf32, #tpu.memory_space<vmem>>, vector<1x1xf32>
    %711 = vector.broadcast %710 : vector<1x1xf32> to vector<2x1xf32>
    %712 = arith.addf %709, %711 : vector<2x1xf32>
    %713 = arith.negf %712 : vector<2x1xf32>
    %714 = math.exp %713 : vector<2x1xf32>
    %cst_283 = arith.constant 1.000000e+00 : f32
    %715 = vector.broadcast %cst_283 : f32 to vector<2x1xf32>
    %716 = arith.addf %715, %714 : vector<2x1xf32>
    %717 = arith.divf %715, %716 : vector<2x1xf32>
    %c0_284 = arith.constant 0 : index
    %c0_285 = arith.constant 0 : index
    %718 = vector.load %arg14[%c0_284, %c0_285] : memref<2x1xf32, #tpu.memory_space<vmem>>, vector<2x1xf32>
    tpu.vector_store %arg14[%c0_284, %c0_285], %717 {strides = array<i32>} : memref<2x1xf32, #tpu.memory_space<vmem>>, vector<2x1xf32>,
    return
  }
  func.func @transform_0(%arg0: i32) -> (i32, i32, i32) {
    %c0_i32 = arith.constant 0 : i32
    %c0_i32_0 = arith.constant 0 : i32
    %c0_i32_1 = arith.constant 0 : i32
    return %c0_i32, %arg0, %c0_i32_0 : i32, i32, i32
  }
  func.func @transform_1(%arg0: i32) -> (i32, i32, i32) {
    %c0_i32 = arith.constant 0 : i32
    %c0_i32_0 = arith.constant 0 : i32
    %c0_i32_1 = arith.constant 0 : i32
    return %c0_i32, %arg0, %c0_i32_0 : i32, i32, i32
  }
  func.func @transform_2(%arg0: i32) -> (i32, i32) {
    %c0_i32 = arith.constant 0 : i32
    %c0_i32_0 = arith.constant 0 : i32
    %c0_i32_1 = arith.constant 0 : i32
    return %c0_i32, %c0_i32_0 : i32, i32
  }
  func.func @transform_3(%arg0: i32) -> (i32, i32) {
    %c0_i32 = arith.constant 0 : i32
    %c0_i32_0 = arith.constant 0 : i32
    %c0_i32_1 = arith.constant 0 : i32
    return %c0_i32, %c0_i32_0 : i32, i32
  }
  func.func @transform_4(%arg0: i32) -> (i32, i32) {
    %c0_i32 = arith.constant 0 : i32
    %c0_i32_0 = arith.constant 0 : i32
    %c0_i32_1 = arith.constant 0 : i32
    return %c0_i32, %c0_i32_0 : i32, i32
  }
  func.func @transform_5(%arg0: i32) -> (i32, i32) {
    %c0_i32 = arith.constant 0 : i32
    %c0_i32_0 = arith.constant 0 : i32
    %c0_i32_1 = arith.constant 0 : i32
    return %c0_i32, %c0_i32_0 : i32, i32
  }
  func.func @transform_6(%arg0: i32) -> (i32, i32) {
    %c0_i32 = arith.constant 0 : i32
    %c0_i32_0 = arith.constant 0 : i32
    %c0_i32_1 = arith.constant 0 : i32
    return %c0_i32, %c0_i32_0 : i32, i32
  }
  func.func @transform_7(%arg0: i32) -> (i32, i32) {
    %c0_i32 = arith.constant 0 : i32
    %c0_i32_0 = arith.constant 0 : i32
    %c0_i32_1 = arith.constant 0 : i32
    return %c0_i32, %c0_i32_0 : i32, i32
  }
  func.func @transform_8(%arg0: i32) -> (i32, i32) {
    %c0_i32 = arith.constant 0 : i32
    %c0_i32_0 = arith.constant 0 : i32
    %c0_i32_1 = arith.constant 0 : i32
    return %c0_i32, %c0_i32_0 : i32, i32
  }
  func.func @transform_9(%arg0: i32) -> (i32, i32) {
    %c0_i32 = arith.constant 0 : i32
    %c0_i32_0 = arith.constant 0 : i32
    %c0_i32_1 = arith.constant 0 : i32
    return %c0_i32, %c0_i32_0 : i32, i32
  }
  func.func @transform_10(%arg0: i32) -> (i32, i32) {
    %c0_i32 = arith.constant 0 : i32
    %c0_i32_0 = arith.constant 0 : i32
    %c0_i32_1 = arith.constant 0 : i32
    return %c0_i32, %c0_i32_0 : i32, i32
  }
  func.func @transform_11(%arg0: i32) -> (i32, i32) {
    %c0_i32 = arith.constant 0 : i32
    %c0_i32_0 = arith.constant 0 : i32
    %c0_i32_1 = arith.constant 0 : i32
    return %c0_i32, %c0_i32_0 : i32, i32
  }
  func.func @transform_12(%arg0: i32) -> (i32, i32) {
    %c0_i32 = arith.constant 0 : i32
    %c0_i32_0 = arith.constant 0 : i32
    %c0_i32_1 = arith.constant 0 : i32
    return %c0_i32, %c0_i32_0 : i32, i32
  }
  func.func @transform_13(%arg0: i32) -> (i32, i32) {
    %c0_i32 = arith.constant 0 : i32
    %c0_i32_0 = arith.constant 0 : i32
    return %arg0, %c0_i32 : i32, i32
  }
}

</mosaic_0001>

<llo_original>
// kernel: lstm_model_forward.3
$region0: #{lstm_model_forward.3}
  #allocation0 [shape = 'u32[]', space=smem, size = 0x4, offset = 0x4, fixed_abs, tag = 'smem constant byte address 0x4 - core index']
  #allocation1 [shape = 'u32[144,128]{1,0:T(1,128)}', space=vmem, size = 0x12000, scoped, tag = 'internal scratch']
  #allocation2 [shape = 'f32[1,1]{1,0:T(1,128)S(1)}', space=vmem, size = 0x200, scoped, tag = 'scoped memory for lstm_model_forward.3']
  %s0 = inlined_call_operand.vmem [shape: bf16[8,2,32], index: 0, kind: input, shape index: {}]
  %s1 = inlined_call_operand.vmem [shape: bf16[8,2,32], index: 1, kind: input, shape index: {}]
  %s2 = inlined_call_operand.vmem [shape: bf16[32,128], index: 2, kind: input, shape index: {}]
  %s3 = inlined_call_operand.vmem [shape: bf16[32,128], index: 3, kind: input, shape index: {}]
  %s4 = inlined_call_operand.vmem [shape: bf16[32,128], index: 4, kind: input, shape index: {}]
  %s5 = inlined_call_operand.vmem [shape: bf16[32,128], index: 5, kind: input, shape index: {}]
  %s6 = inlined_call_operand.vmem [shape: bf16[32,128], index: 6, kind: input, shape index: {}]
  %s7 = inlined_call_operand.vmem [shape: bf16[32,128], index: 7, kind: input, shape index: {}]
  %s8 = inlined_call_operand.vmem [shape: f32[1,128], index: 8, kind: input, shape index: {}]
  %s9 = inlined_call_operand.vmem [shape: f32[1,128], index: 9, kind: input, shape index: {}]
  %s10 = inlined_call_operand.vmem [shape: f32[1,32], index: 10, kind: input, shape index: {}]
  %s11 = inlined_call_operand.vmem [shape: f32[1,32], index: 11, kind: input, shape index: {}]
  %s12 = inlined_call_operand.<no memory space> [shape: f32[1,1], index: 12, kind: input, shape index: {}]
  %s13 = inlined_call_operand.vmem [shape: f32[2,1], index: 13, kind: output, shape index: {}]
  %s14 = sld [smem:[#allocation0]]
  $region62: #{lstm_model_forward.3} parent=0
    _
  %s16 = ssub.s32 1, %s14
  %s17 = scalar_select 0, %s16, %s14
  %v18 = vstv %s12
  %19 = vst [vmem:[#allocation2] sm:$0x1] %v18
  // Predicated region
  $region2: #{lstm_model_forward.3} parent=0 // pred_check
    _
  $region3: #{lstm_model_forward.3} parent=0 // pred_check_branch
    %21 = sbr.rel (0) target = $region5
  $region4: #{lstm_model_forward.3} parent=0 // pred_region
    _
  $region5: #{lstm_model_forward.3} parent=0 // pred_fallthru
    _
  // Predicated region
  $region6: #{lstm_model_forward.3} parent=0 // pred_check
    _
  $region7: #{lstm_model_forward.3} parent=0 // pred_check_branch
    %23 = sbr.rel (0) target = $region9
  $region8: #{lstm_model_forward.3} parent=0 // pred_region
    _
  $region9: #{lstm_model_forward.3} parent=0 // pred_fallthru
    _
  // Predicated region
  $region10: #{lstm_model_forward.3} parent=0 // pred_check
    _
  $region11: #{lstm_model_forward.3} parent=0 // pred_check_branch
    %25 = sbr.rel (0) target = $region13
  $region12: #{lstm_model_forward.3} parent=0 // pred_region
    _
  $region13: #{lstm_model_forward.3} parent=0 // pred_fallthru
    _
  // Predicated region
  $region14: #{lstm_model_forward.3} parent=0 // pred_check
    _
  $region15: #{lstm_model_forward.3} parent=0 // pred_check_branch
    %27 = sbr.rel (0) target = $region17
  $region16: #{lstm_model_forward.3} parent=0 // pred_region
    _
  $region17: #{lstm_model_forward.3} parent=0 // pred_fallthru
    _
  // Predicated region
  $region18: #{lstm_model_forward.3} parent=0 // pred_check
    _
  $region19: #{lstm_model_forward.3} parent=0 // pred_check_branch
    %29 = sbr.rel (0) target = $region21
  $region20: #{lstm_model_forward.3} parent=0 // pred_region
    _
  $region21: #{lstm_model_forward.3} parent=0 // pred_fallthru
    _
  // Predicated region
  $region22: #{lstm_model_forward.3} parent=0 // pred_check
    _
  $region23: #{lstm_model_forward.3} parent=0 // pred_check_branch
    %31 = sbr.rel (0) target = $region25
  $region24: #{lstm_model_forward.3} parent=0 // pred_region
    _
  $region25: #{lstm_model_forward.3} parent=0 // pred_fallthru
    _
  // Predicated region
  $region26: #{lstm_model_forward.3} parent=0 // pred_check
    _
  $region27: #{lstm_model_forward.3} parent=0 // pred_check_branch
    %33 = sbr.rel (0) target = $region29
  $region28: #{lstm_model_forward.3} parent=0 // pred_region
    _
  $region29: #{lstm_model_forward.3} parent=0 // pred_fallthru
    _
  // Predicated region
  $region30: #{lstm_model_forward.3} parent=0 // pred_check
    _
  $region31: #{lstm_model_forward.3} parent=0 // pred_check_branch
    %35 = sbr.rel (0) target = $region33
  $region32: #{lstm_model_forward.3} parent=0 // pred_region
    _
  $region33: #{lstm_model_forward.3} parent=0 // pred_fallthru
    _
  // Predicated region
  $region34: #{lstm_model_forward.3} parent=0 // pred_check
    _
  $region35: #{lstm_model_forward.3} parent=0 // pred_check_branch
    %37 = sbr.rel (0) target = $region37
  $region36: #{lstm_model_forward.3} parent=0 // pred_region
    _
  $region37: #{lstm_model_forward.3} parent=0 // pred_fallthru
    _
  // Predicated region
  $region38: #{lstm_model_forward.3} parent=0 // pred_check
    _
  $region39: #{lstm_model_forward.3} parent=0 // pred_check_branch
    %39 = sbr.rel (0) target = $region41
  $region40: #{lstm_model_forward.3} parent=0 // pred_region
    _
  $region41: #{lstm_model_forward.3} parent=0 // pred_fallthru
    _
  // Predicated region
  $region42: #{lstm_model_forward.3} parent=0 // pred_check
    _
  $region43: #{lstm_model_forward.3} parent=0 // pred_check_branch
    %41 = sbr.rel (0) target = $region45
  $region44: #{lstm_model_forward.3} parent=0 // pred_region
    _
  $region45: #{lstm_model_forward.3} parent=0 // pred_fallthru
    _
  // Predicated region
  $region46: #{lstm_model_forward.3} parent=0 // pred_check
    _
  $region47: #{lstm_model_forward.3} parent=0 // pred_check_branch
    %43 = sbr.rel (0) target = $region49
  $region48: #{lstm_model_forward.3} parent=0 // pred_region
    _
  $region49: #{lstm_model_forward.3} parent=0 // pred_fallthru
    _
  // Predicated region
  $region50: #{lstm_model_forward.3} parent=0 // pred_check
    _
  $region51: #{lstm_model_forward.3} parent=0 // pred_check_branch
    %45 = sbr.rel (0) target = $region53
  $region52: #{lstm_model_forward.3} parent=0 // pred_region
    _
  $region53: #{lstm_model_forward.3} parent=0 // pred_fallthru
    _
  %v47 = vld [vmem:[%s8] sm:$0x1]
  %v48 = vld [vmem:[%s9] sm:$0x1]
  %v49 = vld [vmem:[%s0] sm:$0x1]
  %v50 = vld [vmem:[%s2] sm:$0xf]
  %v51 = vld [vmem:[%s2 + $0x4] sm:$0xf]
  %v52 = vld [vmem:[%s2 + $0x8] sm:$0xf]
  %v53 = vld [vmem:[%s2 + $0xc] sm:$0xf]
  %v54 = vld [vmem:[%s1] sm:$0x1]
  %v55 = vld [vmem:[%s3] sm:$0xf]
  %v56 = vld [vmem:[%s3 + $0x4] sm:$0xf]
  %v57 = vld [vmem:[%s3 + $0x8] sm:$0xf]
  %v58 = vld [vmem:[%s3 + $0xc] sm:$0xf]
  %v63 = vunpack.c.l.b16 %v55
  %v64 = vunpack.c.l.b16 %v56
  %v65 = vunpack.c.l.b16 %v57
  %v66 = vunpack.c.l.b16 %v58
  %v67 = vpack.c.b16 %v64, %v63
  %v68 = vpack.c.b16 %v66, %v65
  %vm71 = vcmask 261120
  %v73 = vsel %vm71, %v54, 0
  %75 = vmatprep.subr.bf16.mxu0 0
  %76 = vmatpush1.bf16.msra.mxu0 0
  %77 = vmatprep.subr.bf16.mxu0 0
  %78 = vmatpush1.bf16.msra.mxu0 0
  %79 = vmatprep.subr.bf16.mxu0 0
  %80 = vmatpush1.bf16.msra.mxu0 0
  %81 = vmatprep.subr.bf16.mxu0 0
  %82 = vmatpush1.bf16.msra.mxu0 0
  %83 = vmatprep.subr.bf16.mxu0 0
  %84 = vmatpush1.bf16.msra.mxu0 0
  %85 = vmatprep.subr.bf16.mxu0 0
  %86 = vmatpush1.bf16.msra.mxu0 0
  %87 = vmatprep.subr.bf16.mxu0 0
  %88 = vmatpush1.bf16.msra.mxu0 %v68
  %89 = vmatprep.subr.bf16.mxu0 0
  %90 = vmatpush1.bf16.msra.mxu0 %v67
  %91 = vmatprep.subr.bf16.mxu0 0
  %92 = vmatpush2.bf16.msra.mxu0 0
  %93 = vmatprep.subr.bf16.mxu0 0
  %94 = vmatpush2.bf16.msra.mxu0 0
  %95 = vmatprep.subr.bf16.mxu0 0
  %96 = vmatpush2.bf16.msra.mxu0 0
  %97 = vmatprep.subr.bf16.mxu0 0
  %98 = vmatpush2.bf16.msra.mxu0 0
  %99 = vmatprep.subr.bf16.mxu0 0
  %100 = vmatpush2.bf16.msra.mxu0 0
  %101 = vmatprep.subr.bf16.mxu0 0
  %102 = vmatpush2.bf16.msra.mxu0 0
  %103 = vmatprep.subr.bf16.mxu0 0
  %104 = vmatpush2.bf16.msra.mxu0 0
  %105 = vmatprep.subr.bf16.mxu0 0
  %106 = vmatpush2.bf16.msra.mxu0 0
  %107 = vmatprep.mubr.bf16.mxu0 0
  %108 = vmatmul.mubr.bf16.gmra.mxu0 %v73
  %v109 = vpop.f32.mrf.mxu0
  %v110 = vadd.f32 0.0, %v109
  %v111 = vpop.f32.mrf.mxu0
  %v112 = vpop.f32.mrf.mxu0
  %v113 = vpop.f32.mrf.mxu0
  %114 = vdwg.mxu0
  %v119 = vunpack.c.l.b16 %v50
  %v120 = vunpack.c.l.b16 %v51
  %v121 = vunpack.c.l.b16 %v52
  %v122 = vunpack.c.l.b16 %v53
  %v123 = vpack.c.b16 %v120, %v119
  %v124 = vpack.c.b16 %v122, %v121
  %v128 = vsel %vm71, %v49, 0
  %130 = vmatprep.subr.bf16.mxu0 0
  %131 = vmatpush1.bf16.msra.mxu0 0
  %132 = vmatprep.subr.bf16.mxu0 0
  %133 = vmatpush1.bf16.msra.mxu0 0
  %134 = vmatprep.subr.bf16.mxu0 0
  %135 = vmatpush1.bf16.msra.mxu0 0
  %136 = vmatprep.subr.bf16.mxu0 0
  %137 = vmatpush1.bf16.msra.mxu0 0
  %138 = vmatprep.subr.bf16.mxu0 0
  %139 = vmatpush1.bf16.msra.mxu0 0
  %140 = vmatprep.subr.bf16.mxu0 0
  %141 = vmatpush1.bf16.msra.mxu0 0
  %142 = vmatprep.subr.bf16.mxu0 0
  %143 = vmatpush1.bf16.msra.mxu0 %v124
  %144 = vmatprep.subr.bf16.mxu0 0
  %145 = vmatpush1.bf16.msra.mxu0 %v123
  %146 = vmatprep.subr.bf16.mxu0 0
  %147 = vmatpush2.bf16.msra.mxu0 0
  %148 = vmatprep.subr.bf16.mxu0 0
  %149 = vmatpush2.bf16.msra.mxu0 0
  %150 = vmatprep.subr.bf16.mxu0 0
  %151 = vmatpush2.bf16.msra.mxu0 0
  %152 = vmatprep.subr.bf16.mxu0 0
  %153 = vmatpush2.bf16.msra.mxu0 0
  %154 = vmatprep.subr.bf16.mxu0 0
  %155 = vmatpush2.bf16.msra.mxu0 0
  %156 = vmatprep.subr.bf16.mxu0 0
  %157 = vmatpush2.bf16.msra.mxu0 0
  %158 = vmatprep.subr.bf16.mxu0 0
  %159 = vmatpush2.bf16.msra.mxu0 0
  %160 = vmatprep.subr.bf16.mxu0 0
  %161 = vmatpush2.bf16.msra.mxu0 0
  %162 = vmatprep.mubr.bf16.mxu0 0
  %163 = vmatmul.mubr.bf16.gmra.mxu0 %v128
  %v164 = vpop.f32.mrf.mxu0
  %v165 = vadd.f32 %v110, %v164
  %v166 = vpop.f32.mrf.mxu0
  %v167 = vpop.f32.mrf.mxu0
  %v168 = vpop.f32.mrf.mxu0
  %169 = vdwg.mxu0
  %v170 = vld [vmem:[%s6] sm:$0xf]
  %v171 = vld [vmem:[%s6 + $0x4] sm:$0xf]
  %v172 = vld [vmem:[%s6 + $0x8] sm:$0xf]
  %v173 = vld [vmem:[%s6 + $0xc] sm:$0xf]
  %v178 = vunpack.c.l.b16 %v170
  %v179 = vunpack.c.l.b16 %v171
  %v180 = vunpack.c.l.b16 %v172
  %v181 = vunpack.c.l.b16 %v173
  %v182 = vpack.c.b16 %v179, %v178
  %v183 = vpack.c.b16 %v181, %v180
  %v187 = vsel %vm71, 0, 0
  %189 = vmatprep.subr.bf16.mxu0 0
  %190 = vmatpush1.bf16.msra.mxu0 0
  %191 = vmatprep.subr.bf16.mxu0 0
  %192 = vmatpush1.bf16.msra.mxu0 0
  %193 = vmatprep.subr.bf16.mxu0 0
  %194 = vmatpush1.bf16.msra.mxu0 0
  %195 = vmatprep.subr.bf16.mxu0 0
  %196 = vmatpush1.bf16.msra.mxu0 0
  %197 = vmatprep.subr.bf16.mxu0 0
  %198 = vmatpush1.bf16.msra.mxu0 0
  %199 = vmatprep.subr.bf16.mxu0 0
  %200 = vmatpush1.bf16.msra.mxu0 0
  %201 = vmatprep.subr.bf16.mxu0 0
  %202 = vmatpush1.bf16.msra.mxu0 %v183
  %203 = vmatprep.subr.bf16.mxu0 0
  %204 = vmatpush1.bf16.msra.mxu0 %v182
  %205 = vmatprep.subr.bf16.mxu0 0
  %206 = vmatpush2.bf16.msra.mxu0 0
  %207 = vmatprep.subr.bf16.mxu0 0
  %208 = vmatpush2.bf16.msra.mxu0 0
  %209 = vmatprep.subr.bf16.mxu0 0
  %210 = vmatpush2.bf16.msra.mxu0 0
  %211 = vmatprep.subr.bf16.mxu0 0
  %212 = vmatpush2.bf16.msra.mxu0 0
  %213 = vmatprep.subr.bf16.mxu0 0
  %214 = vmatpush2.bf16.msra.mxu0 0
  %215 = vmatprep.subr.bf16.mxu0 0
  %216 = vmatpush2.bf16.msra.mxu0 0
  %217 = vmatprep.subr.bf16.mxu0 0
  %218 = vmatpush2.bf16.msra.mxu0 0
  %219 = vmatprep.subr.bf16.mxu0 0
  %220 = vmatpush2.bf16.msra.mxu0 0
  %221 = vmatprep.mubr.bf16.mxu0 0
  %222 = vmatmul.mubr.bf16.gmra.mxu0 %v187
  %v223 = vpop.f32.mrf.mxu0
  %v224 = vadd.f32 0.0, %v223
  %v225 = vpop.f32.mrf.mxu0
  %v226 = vpop.f32.mrf.mxu0
  %v227 = vpop.f32.mrf.mxu0
  %228 = vdwg.mxu0
  %v229 = vadd.f32 %v165, %v224
  %v231 = vlaneseq
  %v232 = vshrl.u32 %v231, 7
  %v233 = vsub.s32 0, %v232
  %v234 = vrot.slane %v47, %v233
  %v236 = vadd.f32 %v229, %v234
  %s237 = scalar_lea.vmem %s0, 7
  %v238 = vld [vmem:[%s237] sm:$0x1]
  %v239 = vld [vmem:[%s4] sm:$0xf]
  %v240 = vld [vmem:[%s4 + $0x4] sm:$0xf]
  %v241 = vld [vmem:[%s4 + $0x8] sm:$0xf]
  %v242 = vld [vmem:[%s4 + $0xc] sm:$0xf]
  %s243 = scalar_lea.vmem %s1, 7
  %v244 = vld [vmem:[%s243] sm:$0x1]
  %v245 = vld [vmem:[%s5] sm:$0xf]
  %v246 = vld [vmem:[%s5 + $0x4] sm:$0xf]
  %v247 = vld [vmem:[%s5 + $0x8] sm:$0xf]
  %v248 = vld [vmem:[%s5 + $0xc] sm:$0xf]
  %v253 = vunpack.c.l.b16 %v245
  %v254 = vunpack.c.l.b16 %v246
  %v255 = vunpack.c.l.b16 %v247
  %v256 = vunpack.c.l.b16 %v248
  %v257 = vpack.c.b16 %v254, %v253
  %v258 = vpack.c.b16 %v256, %v255
  %v262 = vsel %vm71, %v244, 0
  %264 = vmatprep.subr.bf16.mxu0 0
  %265 = vmatpush1.bf16.msra.mxu0 0
  %266 = vmatprep.subr.bf16.mxu0 0
  %267 = vmatpush1.bf16.msra.mxu0 0
  %268 = vmatprep.subr.bf16.mxu0 0
  %269 = vmatpush1.bf16.msra.mxu0 0
  %270 = vmatprep.subr.bf16.mxu0 0
  %271 = vmatpush1.bf16.msra.mxu0 0
  %272 = vmatprep.subr.bf16.mxu0 0
  %273 = vmatpush1.bf16.msra.mxu0 0
  %274 = vmatprep.subr.bf16.mxu0 0
  %275 = vmatpush1.bf16.msra.mxu0 0
  %276 = vmatprep.subr.bf16.mxu0 0
  %277 = vmatpush1.bf16.msra.mxu0 %v258
  %278 = vmatprep.subr.bf16.mxu0 0
  %279 = vmatpush1.bf16.msra.mxu0 %v257
  %280 = vmatprep.subr.bf16.mxu0 0
  %281 = vmatpush2.bf16.msra.mxu0 0
  %282 = vmatprep.subr.bf16.mxu0 0
  %283 = vmatpush2.bf16.msra.mxu0 0
  %284 = vmatprep.subr.bf16.mxu0 0
  %285 = vmatpush2.bf16.msra.mxu0 0
  %286 = vmatprep.subr.bf16.mxu0 0
  %287 = vmatpush2.bf16.msra.mxu0 0
  %288 = vmatprep.subr.bf16.mxu0 0
  %289 = vmatpush2.bf16.msra.mxu0 0
  %290 = vmatprep.subr.bf16.mxu0 0
  %291 = vmatpush2.bf16.msra.mxu0 0
  %292 = vmatprep.subr.bf16.mxu0 0
  %293 = vmatpush2.bf16.msra.mxu0 0
  %294 = vmatprep.subr.bf16.mxu0 0
  %295 = vmatpush2.bf16.msra.mxu0 0
  %296 = vmatprep.mubr.bf16.mxu0 0
  %297 = vmatmul.mubr.bf16.gmra.mxu0 %v262
  %v298 = vpop.f32.mrf.mxu0
  %v299 = vadd.f32 0.0, %v298
  %v300 = vpop.f32.mrf.mxu0
  %v301 = vpop.f32.mrf.mxu0
  %v302 = vpop.f32.mrf.mxu0
  %303 = vdwg.mxu0
  %v308 = vunpack.c.l.b16 %v239
  %v309 = vunpack.c.l.b16 %v240
  %v310 = vunpack.c.l.b16 %v241
  %v311 = vunpack.c.l.b16 %v242
  %v312 = vpack.c.b16 %v309, %v308
  %v313 = vpack.c.b16 %v311, %v310
  %v317 = vsel %vm71, %v238, 0
  %319 = vmatprep.subr.bf16.mxu0 0
  %320 = vmatpush1.bf16.msra.mxu0 0
  %321 = vmatprep.subr.bf16.mxu0 0
  %322 = vmatpush1.bf16.msra.mxu0 0
  %323 = vmatprep.subr.bf16.mxu0 0
  %324 = vmatpush1.bf16.msra.mxu0 0
  %325 = vmatprep.subr.bf16.mxu0 0
  %326 = vmatpush1.bf16.msra.mxu0 0
  %327 = vmatprep.subr.bf16.mxu0 0
  %328 = vmatpush1.bf16.msra.mxu0 0
  %329 = vmatprep.subr.bf16.mxu0 0
  %330 = vmatpush1.bf16.msra.mxu0 0
  %331 = vmatprep.subr.bf16.mxu0 0
  %332 = vmatpush1.bf16.msra.mxu0 %v313
  %333 = vmatprep.subr.bf16.mxu0 0
  %334 = vmatpush1.bf16.msra.mxu0 %v312
  %335 = vmatprep.subr.bf16.mxu0 0
  %336 = vmatpush2.bf16.msra.mxu0 0
  %337 = vmatprep.subr.bf16.mxu0 0
  %338 = vmatpush2.bf16.msra.mxu0 0
  %339 = vmatprep.subr.bf16.mxu0 0
  %340 = vmatpush2.bf16.msra.mxu0 0
  %341 = vmatprep.subr.bf16.mxu0 0
  %342 = vmatpush2.bf16.msra.mxu0 0
  %343 = vmatprep.subr.bf16.mxu0 0
  %344 = vmatpush2.bf16.msra.mxu0 0
  %345 = vmatprep.subr.bf16.mxu0 0
  %346 = vmatpush2.bf16.msra.mxu0 0
  %347 = vmatprep.subr.bf16.mxu0 0
  %348 = vmatpush2.bf16.msra.mxu0 0
  %349 = vmatprep.subr.bf16.mxu0 0
  %350 = vmatpush2.bf16.msra.mxu0 0
  %351 = vmatprep.mubr.bf16.mxu0 0
  %352 = vmatmul.mubr.bf16.gmra.mxu0 %v317
  %v353 = vpop.f32.mrf.mxu0
  %v354 = vadd.f32 %v299, %v353
  %v355 = vpop.f32.mrf.mxu0
  %v356 = vpop.f32.mrf.mxu0
  %v357 = vpop.f32.mrf.mxu0
  %358 = vdwg.mxu0
  %v359 = vld [vmem:[%s7] sm:$0xf]
  %v360 = vld [vmem:[%s7 + $0x4] sm:$0xf]
  %v361 = vld [vmem:[%s7 + $0x8] sm:$0xf]
  %v362 = vld [vmem:[%s7 + $0xc] sm:$0xf]
  %v367 = vunpack.c.l.b16 %v359
  %v368 = vunpack.c.l.b16 %v360
  %v369 = vunpack.c.l.b16 %v361
  %v370 = vunpack.c.l.b16 %v362
  %v371 = vpack.c.b16 %v368, %v367
  %v372 = vpack.c.b16 %v370, %v369
  %375 = vmatprep.subr.bf16.mxu0 0
  %376 = vmatpush1.bf16.msra.mxu0 0
  %377 = vmatprep.subr.bf16.mxu0 0
  %378 = vmatpush1.bf16.msra.mxu0 0
  %379 = vmatprep.subr.bf16.mxu0 0
  %380 = vmatpush1.bf16.msra.mxu0 0
  %381 = vmatprep.subr.bf16.mxu0 0
  %382 = vmatpush1.bf16.msra.mxu0 0
  %383 = vmatprep.subr.bf16.mxu0 0
  %384 = vmatpush1.bf16.msra.mxu0 0
  %385 = vmatprep.subr.bf16.mxu0 0
  %386 = vmatpush1.bf16.msra.mxu0 0
  %387 = vmatprep.subr.bf16.mxu0 0
  %388 = vmatpush1.bf16.msra.mxu0 %v372
  %389 = vmatprep.subr.bf16.mxu0 0
  %390 = vmatpush1.bf16.msra.mxu0 %v371
  %391 = vmatprep.subr.bf16.mxu0 0
  %392 = vmatpush2.bf16.msra.mxu0 0
  %393 = vmatprep.subr.bf16.mxu0 0
  %394 = vmatpush2.bf16.msra.mxu0 0
  %395 = vmatprep.subr.bf16.mxu0 0
  %396 = vmatpush2.bf16.msra.mxu0 0
  %397 = vmatprep.subr.bf16.mxu0 0
  %398 = vmatpush2.bf16.msra.mxu0 0
  %399 = vmatprep.subr.bf16.mxu0 0
  %400 = vmatpush2.bf16.msra.mxu0 0
  %401 = vmatprep.subr.bf16.mxu0 0
  %402 = vmatpush2.bf16.msra.mxu0 0
  %403 = vmatprep.subr.bf16.mxu0 0
  %404 = vmatpush2.bf16.msra.mxu0 0
  %405 = vmatprep.subr.bf16.mxu0 0
  %406 = vmatpush2.bf16.msra.mxu0 0
  %407 = vmatprep.mubr.bf16.mxu0 0
  %408 = vmatmul.mubr.bf16.gmra.mxu0 %v187
  %v409 = vpop.f32.mrf.mxu0
  %v410 = vadd.f32 0.0, %v409
  %v411 = vpop.f32.mrf.mxu0
  %v412 = vpop.f32.mrf.mxu0
  %v413 = vpop.f32.mrf.mxu0
  %414 = vdwg.mxu0
  %v415 = vadd.f32 %v354, %v410
  %v417 = vlaneseq
  %v418 = vshrl.u32 %v417, 7
  %v419 = vsub.s32 0, %v418
  %v420 = vrot.slane %v48, %v419
  %v422 = vadd.f32 %v415, %v420
  %v423 = vxor.u32 %v236, 2147483648
  %v424 = vmul.f32 %v423, 1.442695
  %v425 = vpow.pop %v424
  %v426 = vadd.f32 %v425, 1.0
  %v427 = vrcp.pop %v426
  %v428 = vmul.f32 1.0, %v427
  %v429 = vtanh.pop %v236
  %v430 = vmul.f32 %v428, 0.0
  %432 = vrot.lane.b32.xlu0 %v429, 64
  %v433 = vpop.permute.xlu0 %432
  %v435 = vmul.f32 %v428, %v433
  %437 = vrot.lane.b32.xlu0 %v435, 32
  %v438 = vpop.permute.xlu0 %437
  %v440 = vadd.f32 %v430, %v438
  %v441 = vtanh.pop %v440
  %443 = vrot.lane.b32.xlu0 %v441, 64
  %v444 = vpop.permute.xlu0 %443
  %v446 = vmul.f32 %v428, %v444
  %v447 = vxor.u32 %v422, 2147483648
  %v448 = vmul.f32 %v447, 1.442695
  %v449 = vpow.pop %v448
  %v450 = vadd.f32 %v449, 1.0
  %v451 = vrcp.pop %v450
  %v452 = vmul.f32 1.0, %v451
  %v453 = vtanh.pop %v422
  %v454 = vmul.f32 %v452, 0.0
  %456 = vrot.lane.b32.xlu0 %v453, 64
  %v457 = vpop.permute.xlu0 %456
  %v459 = vmul.f32 %v452, %v457
  %461 = vrot.lane.b32.xlu0 %v459, 32
  %v462 = vpop.permute.xlu0 %461
  %v464 = vadd.f32 %v454, %v462
  %v465 = vtanh.pop %v464
  %467 = vrot.lane.b32.xlu0 %v465, 64
  %v468 = vpop.permute.xlu0 %467
  %v470 = vmul.f32 %v452, %v468
  %s471 = scalar_lea.vmem %s0, 1
  %v472 = vld [vmem:[%s471] sm:$0x1]
  %s473 = scalar_lea.vmem %s1, 1
  %v474 = vld [vmem:[%s473] sm:$0x1]
  %v476 = vsel %vm71, %v474, 0
  %478 = vmatprep.subr.bf16.mxu0 0
  %479 = vmatpush1.bf16.msra.mxu0 0
  %480 = vmatprep.subr.bf16.mxu0 0
  %481 = vmatpush1.bf16.msra.mxu0 0
  %482 = vmatprep.subr.bf16.mxu0 0
  %483 = vmatpush1.bf16.msra.mxu0 0
  %484 = vmatprep.subr.bf16.mxu0 0
  %485 = vmatpush1.bf16.msra.mxu0 0
  %486 = vmatprep.subr.bf16.mxu0 0
  %487 = vmatpush1.bf16.msra.mxu0 0
  %488 = vmatprep.subr.bf16.mxu0 0
  %489 = vmatpush1.bf16.msra.mxu0 0
  %490 = vmatprep.subr.bf16.mxu0 0
  %491 = vmatpush1.bf16.msra.mxu0 %v68
  %492 = vmatprep.subr.bf16.mxu0 0
  %493 = vmatpush1.bf16.msra.mxu0 %v67
  %494 = vmatprep.subr.bf16.mxu0 0
  %495 = vmatpush2.bf16.msra.mxu0 0
  %496 = vmatprep.subr.bf16.mxu0 0
  %497 = vmatpush2.bf16.msra.mxu0 0
  %498 = vmatprep.subr.bf16.mxu0 0
  %499 = vmatpush2.bf16.msra.mxu0 0
  %500 = vmatprep.subr.bf16.mxu0 0
  %501 = vmatpush2.bf16.msra.mxu0 0
  %502 = vmatprep.subr.bf16.mxu0 0
  %503 = vmatpush2.bf16.msra.mxu0 0
  %504 = vmatprep.subr.bf16.mxu0 0
  %505 = vmatpush2.bf16.msra.mxu0 0
  %506 = vmatprep.subr.bf16.mxu0 0
  %507 = vmatpush2.bf16.msra.mxu0 0
  %508 = vmatprep.subr.bf16.mxu0 0
  %509 = vmatpush2.bf16.msra.mxu0 0
  %510 = vmatprep.mubr.bf16.mxu0 0
  %511 = vmatmul.mubr.bf16.gmra.mxu0 %v476
  %v512 = vpop.f32.mrf.mxu0
  %v513 = vadd.f32 0.0, %v512
  %v514 = vpop.f32.mrf.mxu0
  %v515 = vpop.f32.mrf.mxu0
  %v516 = vpop.f32.mrf.mxu0
  %517 = vdwg.mxu0
  %v519 = vsel %vm71, %v472, 0
  %521 = vmatprep.subr.bf16.mxu0 0
  %522 = vmatpush1.bf16.msra.mxu0 0
  %523 = vmatprep.subr.bf16.mxu0 0
  %524 = vmatpush1.bf16.msra.mxu0 0
  %525 = vmatprep.subr.bf16.mxu0 0
  %526 = vmatpush1.bf16.msra.mxu0 0
  %527 = vmatprep.subr.bf16.mxu0 0
  %528 = vmatpush1.bf16.msra.mxu0 0
  %529 = vmatprep.subr.bf16.mxu0 0
  %530 = vmatpush1.bf16.msra.mxu0 0
  %531 = vmatprep.subr.bf16.mxu0 0
  %532 = vmatpush1.bf16.msra.mxu0 0
  %533 = vmatprep.subr.bf16.mxu0 0
  %534 = vmatpush1.bf16.msra.mxu0 %v124
  %535 = vmatprep.subr.bf16.mxu0 0
  %536 = vmatpush1.bf16.msra.mxu0 %v123
  %537 = vmatprep.subr.bf16.mxu0 0
  %538 = vmatpush2.bf16.msra.mxu0 0
  %539 = vmatprep.subr.bf16.mxu0 0
  %540 = vmatpush2.bf16.msra.mxu0 0
  %541 = vmatprep.subr.bf16.mxu0 0
  %542 = vmatpush2.bf16.msra.mxu0 0
  %543 = vmatprep.subr.bf16.mxu0 0
  %544 = vmatpush2.bf16.msra.mxu0 0
  %545 = vmatprep.subr.bf16.mxu0 0
  %546 = vmatpush2.bf16.msra.mxu0 0
  %547 = vmatprep.subr.bf16.mxu0 0
  %548 = vmatpush2.bf16.msra.mxu0 0
  %549 = vmatprep.subr.bf16.mxu0 0
  %550 = vmatpush2.bf16.msra.mxu0 0
  %551 = vmatprep.subr.bf16.mxu0 0
  %552 = vmatpush2.bf16.msra.mxu0 0
  %553 = vmatprep.mubr.bf16.mxu0 0
  %554 = vmatmul.mubr.bf16.gmra.mxu0 %v519
  %v555 = vpop.f32.mrf.mxu0
  %v556 = vadd.f32 %v513, %v555
  %v557 = vpop.f32.mrf.mxu0
  %v558 = vpop.f32.mrf.mxu0
  %v559 = vpop.f32.mrf.mxu0
  %560 = vdwg.mxu0
  %v561 = vpack.c.bf16 %v446, %v446
  %563 = vrot.lane.b32.xlu0 %v561, 32
  %v564 = vpop.permute.xlu0 %563
  %v566 = vsel %vm71, %v564, 0
  %568 = vmatprep.subr.bf16.mxu0 0
  %569 = vmatpush1.bf16.msra.mxu0 0
  %570 = vmatprep.subr.bf16.mxu0 0
  %571 = vmatpush1.bf16.msra.mxu0 0
  %572 = vmatprep.subr.bf16.mxu0 0
  %573 = vmatpush1.bf16.msra.mxu0 0
  %574 = vmatprep.subr.bf16.mxu0 0
  %575 = vmatpush1.bf16.msra.mxu0 0
  %576 = vmatprep.subr.bf16.mxu0 0
  %577 = vmatpush1.bf16.msra.mxu0 0
  %578 = vmatprep.subr.bf16.mxu0 0
  %579 = vmatpush1.bf16.msra.mxu0 0
  %580 = vmatprep.subr.bf16.mxu0 0
  %581 = vmatpush1.bf16.msra.mxu0 %v183
  %582 = vmatprep.subr.bf16.mxu0 0
  %583 = vmatpush1.bf16.msra.mxu0 %v182
  %584 = vmatprep.subr.bf16.mxu0 0
  %585 = vmatpush2.bf16.msra.mxu0 0
  %586 = vmatprep.subr.bf16.mxu0 0
  %587 = vmatpush2.bf16.msra.mxu0 0
  %588 = vmatprep.subr.bf16.mxu0 0
  %589 = vmatpush2.bf16.msra.mxu0 0
  %590 = vmatprep.subr.bf16.mxu0 0
  %591 = vmatpush2.bf16.msra.mxu0 0
  %592 = vmatprep.subr.bf16.mxu0 0
  %593 = vmatpush2.bf16.msra.mxu0 0
  %594 = vmatprep.subr.bf16.mxu0 0
  %595 = vmatpush2.bf16.msra.mxu0 0
  %596 = vmatprep.subr.bf16.mxu0 0
  %597 = vmatpush2.bf16.msra.mxu0 0
  %598 = vmatprep.subr.bf16.mxu0 0
  %599 = vmatpush2.bf16.msra.mxu0 0
  %600 = vmatprep.mubr.bf16.mxu0 0
  %601 = vmatmul.mubr.bf16.gmra.mxu0 %v566
  %v602 = vpop.f32.mrf.mxu0
  %v603 = vadd.f32 0.0, %v602
  %v604 = vpop.f32.mrf.mxu0
  %v605 = vpop.f32.mrf.mxu0
  %v606 = vpop.f32.mrf.mxu0
  %607 = vdwg.mxu0
  %v608 = vadd.f32 %v556, %v603
  %v609 = vadd.f32 %v608, %v234
  %v610 = vxor.u32 %v609, 2147483648
  %v611 = vmul.f32 %v610, 1.442695
  %v612 = vpow.pop %v611
  %v613 = vadd.f32 %v612, 1.0
  %v614 = vrcp.pop %v613
  %v615 = vmul.f32 1.0, %v614
  %v616 = vtanh.pop %v609
  %v617 = vmul.f32 %v615, %v440
  %619 = vrot.lane.b32.xlu0 %v616, 64
  %v620 = vpop.permute.xlu0 %619
  %v622 = vmul.f32 %v615, %v620
  %624 = vrot.lane.b32.xlu0 %v622, 32
  %v625 = vpop.permute.xlu0 %624
  %v627 = vadd.f32 %v617, %v625
  %v628 = vtanh.pop %v627
  %630 = vrot.lane.b32.xlu0 %v628, 64
  %v631 = vpop.permute.xlu0 %630
  %v633 = vmul.f32 %v615, %v631
  %s634 = scalar_lea.vmem %s0, 2
  %v635 = vld [vmem:[%s634] sm:$0x1]
  %s636 = scalar_lea.vmem %s1, 2
  %v637 = vld [vmem:[%s636] sm:$0x1]
  %v639 = vsel %vm71, %v637, 0
  %641 = vmatprep.subr.bf16.mxu0 0
  %642 = vmatpush1.bf16.msra.mxu0 0
  %643 = vmatprep.subr.bf16.mxu0 0
  %644 = vmatpush1.bf16.msra.mxu0 0
  %645 = vmatprep.subr.bf16.mxu0 0
  %646 = vmatpush1.bf16.msra.mxu0 0
  %647 = vmatprep.subr.bf16.mxu0 0
  %648 = vmatpush1.bf16.msra.mxu0 0
  %649 = vmatprep.subr.bf16.mxu0 0
  %650 = vmatpush1.bf16.msra.mxu0 0
  %651 = vmatprep.subr.bf16.mxu0 0
  %652 = vmatpush1.bf16.msra.mxu0 0
  %653 = vmatprep.subr.bf16.mxu0 0
  %654 = vmatpush1.bf16.msra.mxu0 %v68
  %655 = vmatprep.subr.bf16.mxu0 0
  %656 = vmatpush1.bf16.msra.mxu0 %v67
  %657 = vmatprep.subr.bf16.mxu0 0
  %658 = vmatpush2.bf16.msra.mxu0 0
  %659 = vmatprep.subr.bf16.mxu0 0
  %660 = vmatpush2.bf16.msra.mxu0 0
  %661 = vmatprep.subr.bf16.mxu0 0
  %662 = vmatpush2.bf16.msra.mxu0 0
  %663 = vmatprep.subr.bf16.mxu0 0
  %664 = vmatpush2.bf16.msra.mxu0 0
  %665 = vmatprep.subr.bf16.mxu0 0
  %666 = vmatpush2.bf16.msra.mxu0 0
  %667 = vmatprep.subr.bf16.mxu0 0
  %668 = vmatpush2.bf16.msra.mxu0 0
  %669 = vmatprep.subr.bf16.mxu0 0
  %670 = vmatpush2.bf16.msra.mxu0 0
  %671 = vmatprep.subr.bf16.mxu0 0
  %672 = vmatpush2.bf16.msra.mxu0 0
  %673 = vmatprep.mubr.bf16.mxu0 0
  %674 = vmatmul.mubr.bf16.gmra.mxu0 %v639
  %v675 = vpop.f32.mrf.mxu0
  %v676 = vadd.f32 0.0, %v675
  %v677 = vpop.f32.mrf.mxu0
  %v678 = vpop.f32.mrf.mxu0
  %v679 = vpop.f32.mrf.mxu0
  %680 = vdwg.mxu0
  %v682 = vsel %vm71, %v635, 0
  %684 = vmatprep.subr.bf16.mxu0 0
  %685 = vmatpush1.bf16.msra.mxu0 0
  %686 = vmatprep.subr.bf16.mxu0 0
  %687 = vmatpush1.bf16.msra.mxu0 0
  %688 = vmatprep.subr.bf16.mxu0 0
  %689 = vmatpush1.bf16.msra.mxu0 0
  %690 = vmatprep.subr.bf16.mxu0 0
  %691 = vmatpush1.bf16.msra.mxu0 0
  %692 = vmatprep.subr.bf16.mxu0 0
  %693 = vmatpush1.bf16.msra.mxu0 0
  %694 = vmatprep.subr.bf16.mxu0 0
  %695 = vmatpush1.bf16.msra.mxu0 0
  %696 = vmatprep.subr.bf16.mxu0 0
  %697 = vmatpush1.bf16.msra.mxu0 %v124
  %698 = vmatprep.subr.bf16.mxu0 0
  %699 = vmatpush1.bf16.msra.mxu0 %v123
  %700 = vmatprep.subr.bf16.mxu0 0
  %701 = vmatpush2.bf16.msra.mxu0 0
  %702 = vmatprep.subr.bf16.mxu0 0
  %703 = vmatpush2.bf16.msra.mxu0 0
  %704 = vmatprep.subr.bf16.mxu0 0
  %705 = vmatpush2.bf16.msra.mxu0 0
  %706 = vmatprep.subr.bf16.mxu0 0
  %707 = vmatpush2.bf16.msra.mxu0 0
  %708 = vmatprep.subr.bf16.mxu0 0
  %709 = vmatpush2.bf16.msra.mxu0 0
  %710 = vmatprep.subr.bf16.mxu0 0
  %711 = vmatpush2.bf16.msra.mxu0 0
  %712 = vmatprep.subr.bf16.mxu0 0
  %713 = vmatpush2.bf16.msra.mxu0 0
  %714 = vmatprep.subr.bf16.mxu0 0
  %715 = vmatpush2.bf16.msra.mxu0 0
  %716 = vmatprep.mubr.bf16.mxu0 0
  %717 = vmatmul.mubr.bf16.gmra.mxu0 %v682
  %v718 = vpop.f32.mrf.mxu0
  %v719 = vadd.f32 %v676, %v718
  %v720 = vpop.f32.mrf.mxu0
  %v721 = vpop.f32.mrf.mxu0
  %v722 = vpop.f32.mrf.mxu0
  %723 = vdwg.mxu0
  %v724 = vpack.c.bf16 %v633, %v633
  %726 = vrot.lane.b32.xlu0 %v724, 32
  %v727 = vpop.permute.xlu0 %726
  %v729 = vsel %vm71, %v727, 0
  %731 = vmatprep.subr.bf16.mxu0 0
  %732 = vmatpush1.bf16.msra.mxu0 0
  %733 = vmatprep.subr.bf16.mxu0 0
  %734 = vmatpush1.bf16.msra.mxu0 0
  %735 = vmatprep.subr.bf16.mxu0 0
  %736 = vmatpush1.bf16.msra.mxu0 0
  %737 = vmatprep.subr.bf16.mxu0 0
  %738 = vmatpush1.bf16.msra.mxu0 0
  %739 = vmatprep.subr.bf16.mxu0 0
  %740 = vmatpush1.bf16.msra.mxu0 0
  %741 = vmatprep.subr.bf16.mxu0 0
  %742 = vmatpush1.bf16.msra.mxu0 0
  %743 = vmatprep.subr.bf16.mxu0 0
  %744 = vmatpush1.bf16.msra.mxu0 %v183
  %745 = vmatprep.subr.bf16.mxu0 0
  %746 = vmatpush1.bf16.msra.mxu0 %v182
  %747 = vmatprep.subr.bf16.mxu0 0
  %748 = vmatpush2.bf16.msra.mxu0 0
  %749 = vmatprep.subr.bf16.mxu0 0
  %750 = vmatpush2.bf16.msra.mxu0 0
  %751 = vmatprep.subr.bf16.mxu0 0
  %752 = vmatpush2.bf16.msra.mxu0 0
  %753 = vmatprep.subr.bf16.mxu0 0
  %754 = vmatpush2.bf16.msra.mxu0 0
  %755 = vmatprep.subr.bf16.mxu0 0
  %756 = vmatpush2.bf16.msra.mxu0 0
  %757 = vmatprep.subr.bf16.mxu0 0
  %758 = vmatpush2.bf16.msra.mxu0 0
  %759 = vmatprep.subr.bf16.mxu0 0
  %760 = vmatpush2.bf16.msra.mxu0 0
  %761 = vmatprep.subr.bf16.mxu0 0
  %762 = vmatpush2.bf16.msra.mxu0 0
  %763 = vmatprep.mubr.bf16.mxu0 0
  %764 = vmatmul.mubr.bf16.gmra.mxu0 %v729
  %v765 = vpop.f32.mrf.mxu0
  %v766 = vadd.f32 0.0, %v765
  %v767 = vpop.f32.mrf.mxu0
  %v768 = vpop.f32.mrf.mxu0
  %v769 = vpop.f32.mrf.mxu0
  %770 = vdwg.mxu0
  %v771 = vadd.f32 %v719, %v766
  %v772 = vadd.f32 %v771, %v234
  %v773 = vxor.u32 %v772, 2147483648
  %v774 = vmul.f32 %v773, 1.442695
  %v775 = vpow.pop %v774
  %v776 = vadd.f32 %v775, 1.0
  %v777 = vrcp.pop %v776
  %v778 = vmul.f32 1.0, %v777
  %v779 = vtanh.pop %v772
  %v780 = vmul.f32 %v778, %v627
  %782 = vrot.lane.b32.xlu0 %v779, 64
  %v783 = vpop.permute.xlu0 %782
  %v785 = vmul.f32 %v778, %v783
  %787 = vrot.lane.b32.xlu0 %v785, 32
  %v788 = vpop.permute.xlu0 %787
  %v790 = vadd.f32 %v780, %v788
  %v791 = vtanh.pop %v790
  %793 = vrot.lane.b32.xlu0 %v791, 64
  %v794 = vpop.permute.xlu0 %793
  %v796 = vmul.f32 %v778, %v794
  %s797 = scalar_lea.vmem %s0, 3
  %v798 = vld [vmem:[%s797] sm:$0x1]
  %s799 = scalar_lea.vmem %s1, 3
  %v800 = vld [vmem:[%s799] sm:$0x1]
  %v802 = vsel %vm71, %v800, 0
  %804 = vmatprep.subr.bf16.mxu0 0
  %805 = vmatpush1.bf16.msra.mxu0 0
  %806 = vmatprep.subr.bf16.mxu0 0
  %807 = vmatpush1.bf16.msra.mxu0 0
  %808 = vmatprep.subr.bf16.mxu0 0
  %809 = vmatpush1.bf16.msra.mxu0 0
  %810 = vmatprep.subr.bf16.mxu0 0
  %811 = vmatpush1.bf16.msra.mxu0 0
  %812 = vmatprep.subr.bf16.mxu0 0
  %813 = vmatpush1.bf16.msra.mxu0 0
  %814 = vmatprep.subr.bf16.mxu0 0
  %815 = vmatpush1.bf16.msra.mxu0 0
  %816 = vmatprep.subr.bf16.mxu0 0
  %817 = vmatpush1.bf16.msra.mxu0 %v68
  %818 = vmatprep.subr.bf16.mxu0 0
  %819 = vmatpush1.bf16.msra.mxu0 %v67
  %820 = vmatprep.subr.bf16.mxu0 0
  %821 = vmatpush2.bf16.msra.mxu0 0
  %822 = vmatprep.subr.bf16.mxu0 0
  %823 = vmatpush2.bf16.msra.mxu0 0
  %824 = vmatprep.subr.bf16.mxu0 0
  %825 = vmatpush2.bf16.msra.mxu0 0
  %826 = vmatprep.subr.bf16.mxu0 0
  %827 = vmatpush2.bf16.msra.mxu0 0
  %828 = vmatprep.subr.bf16.mxu0 0
  %829 = vmatpush2.bf16.msra.mxu0 0
  %830 = vmatprep.subr.bf16.mxu0 0
  %831 = vmatpush2.bf16.msra.mxu0 0
  %832 = vmatprep.subr.bf16.mxu0 0
  %833 = vmatpush2.bf16.msra.mxu0 0
  %834 = vmatprep.subr.bf16.mxu0 0
  %835 = vmatpush2.bf16.msra.mxu0 0
  %836 = vmatprep.mubr.bf16.mxu0 0
  %837 = vmatmul.mubr.bf16.gmra.mxu0 %v802
  %v838 = vpop.f32.mrf.mxu0
  %v839 = vadd.f32 0.0, %v838
  %v840 = vpop.f32.mrf.mxu0
  %v841 = vpop.f32.mrf.mxu0
  %v842 = vpop.f32.mrf.mxu0
  %843 = vdwg.mxu0
  %v845 = vsel %vm71, %v798, 0
  %847 = vmatprep.subr.bf16.mxu0 0
  %848 = vmatpush1.bf16.msra.mxu0 0
  %849 = vmatprep.subr.bf16.mxu0 0
  %850 = vmatpush1.bf16.msra.mxu0 0
  %851 = vmatprep.subr.bf16.mxu0 0
  %852 = vmatpush1.bf16.msra.mxu0 0
  %853 = vmatprep.subr.bf16.mxu0 0
  %854 = vmatpush1.bf16.msra.mxu0 0
  %855 = vmatprep.subr.bf16.mxu0 0
  %856 = vmatpush1.bf16.msra.mxu0 0
  %857 = vmatprep.subr.bf16.mxu0 0
  %858 = vmatpush1.bf16.msra.mxu0 0
  %859 = vmatprep.subr.bf16.mxu0 0
  %860 = vmatpush1.bf16.msra.mxu0 %v124
  %861 = vmatprep.subr.bf16.mxu0 0
  %862 = vmatpush1.bf16.msra.mxu0 %v123
  %863 = vmatprep.subr.bf16.mxu0 0
  %864 = vmatpush2.bf16.msra.mxu0 0
  %865 = vmatprep.subr.bf16.mxu0 0
  %866 = vmatpush2.bf16.msra.mxu0 0
  %867 = vmatprep.subr.bf16.mxu0 0
  %868 = vmatpush2.bf16.msra.mxu0 0
  %869 = vmatprep.subr.bf16.mxu0 0
  %870 = vmatpush2.bf16.msra.mxu0 0
  %871 = vmatprep.subr.bf16.mxu0 0
  %872 = vmatpush2.bf16.msra.mxu0 0
  %873 = vmatprep.subr.bf16.mxu0 0
  %874 = vmatpush2.bf16.msra.mxu0 0
  %875 = vmatprep.subr.bf16.mxu0 0
  %876 = vmatpush2.bf16.msra.mxu0 0
  %877 = vmatprep.subr.bf16.mxu0 0
  %878 = vmatpush2.bf16.msra.mxu0 0
  %879 = vmatprep.mubr.bf16.mxu0 0
  %880 = vmatmul.mubr.bf16.gmra.mxu0 %v845
  %v881 = vpop.f32.mrf.mxu0
  %v882 = vadd.f32 %v839, %v881
  %v883 = vpop.f32.mrf.mxu0
  %v884 = vpop.f32.mrf.mxu0
  %v885 = vpop.f32.mrf.mxu0
  %886 = vdwg.mxu0
  %v887 = vpack.c.bf16 %v796, %v796
  %889 = vrot.lane.b32.xlu0 %v887, 32
  %v890 = vpop.permute.xlu0 %889
  %v892 = vsel %vm71, %v890, 0
  %894 = vmatprep.subr.bf16.mxu0 0
  %895 = vmatpush1.bf16.msra.mxu0 0
  %896 = vmatprep.subr.bf16.mxu0 0
  %897 = vmatpush1.bf16.msra.mxu0 0
  %898 = vmatprep.subr.bf16.mxu0 0
  %899 = vmatpush1.bf16.msra.mxu0 0
  %900 = vmatprep.subr.bf16.mxu0 0
  %901 = vmatpush1.bf16.msra.mxu0 0
  %902 = vmatprep.subr.bf16.mxu0 0
  %903 = vmatpush1.bf16.msra.mxu0 0
  %904 = vmatprep.subr.bf16.mxu0 0
  %905 = vmatpush1.bf16.msra.mxu0 0
  %906 = vmatprep.subr.bf16.mxu0 0
  %907 = vmatpush1.bf16.msra.mxu0 %v183
  %908 = vmatprep.subr.bf16.mxu0 0
  %909 = vmatpush1.bf16.msra.mxu0 %v182
  %910 = vmatprep.subr.bf16.mxu0 0
  %911 = vmatpush2.bf16.msra.mxu0 0
  %912 = vmatprep.subr.bf16.mxu0 0
  %913 = vmatpush2.bf16.msra.mxu0 0
  %914 = vmatprep.subr.bf16.mxu0 0
  %915 = vmatpush2.bf16.msra.mxu0 0
  %916 = vmatprep.subr.bf16.mxu0 0
  %917 = vmatpush2.bf16.msra.mxu0 0
  %918 = vmatprep.subr.bf16.mxu0 0
  %919 = vmatpush2.bf16.msra.mxu0 0
  %920 = vmatprep.subr.bf16.mxu0 0
  %921 = vmatpush2.bf16.msra.mxu0 0
  %922 = vmatprep.subr.bf16.mxu0 0
  %923 = vmatpush2.bf16.msra.mxu0 0
  %924 = vmatprep.subr.bf16.mxu0 0
  %925 = vmatpush2.bf16.msra.mxu0 0
  %926 = vmatprep.mubr.bf16.mxu0 0
  %927 = vmatmul.mubr.bf16.gmra.mxu0 %v892
  %v928 = vpop.f32.mrf.mxu0
  %v929 = vadd.f32 0.0, %v928
  %v930 = vpop.f32.mrf.mxu0
  %v931 = vpop.f32.mrf.mxu0
  %v932 = vpop.f32.mrf.mxu0
  %933 = vdwg.mxu0
  %v934 = vadd.f32 %v882, %v929
  %v935 = vadd.f32 %v934, %v234
  %v936 = vxor.u32 %v935, 2147483648
  %v937 = vmul.f32 %v936, 1.442695
  %v938 = vpow.pop %v937
  %v939 = vadd.f32 %v938, 1.0
  %v940 = vrcp.pop %v939
  %v941 = vmul.f32 1.0, %v940
  %v942 = vtanh.pop %v935
  %v943 = vmul.f32 %v941, %v790
  %945 = vrot.lane.b32.xlu0 %v942, 64
  %v946 = vpop.permute.xlu0 %945
  %v948 = vmul.f32 %v941, %v946
  %950 = vrot.lane.b32.xlu0 %v948, 32
  %v951 = vpop.permute.xlu0 %950
  %v953 = vadd.f32 %v943, %v951
  %v954 = vtanh.pop %v953
  %956 = vrot.lane.b32.xlu0 %v954, 64
  %v957 = vpop.permute.xlu0 %956
  %v959 = vmul.f32 %v941, %v957
  %s960 = scalar_lea.vmem %s0, 4
  %v961 = vld [vmem:[%s960] sm:$0x1]
  %s962 = scalar_lea.vmem %s1, 4
  %v963 = vld [vmem:[%s962] sm:$0x1]
  %v965 = vsel %vm71, %v963, 0
  %967 = vmatprep.subr.bf16.mxu0 0
  %968 = vmatpush1.bf16.msra.mxu0 0
  %969 = vmatprep.subr.bf16.mxu0 0
  %970 = vmatpush1.bf16.msra.mxu0 0
  %971 = vmatprep.subr.bf16.mxu0 0
  %972 = vmatpush1.bf16.msra.mxu0 0
  %973 = vmatprep.subr.bf16.mxu0 0
  %974 = vmatpush1.bf16.msra.mxu0 0
  %975 = vmatprep.subr.bf16.mxu0 0
  %976 = vmatpush1.bf16.msra.mxu0 0
  %977 = vmatprep.subr.bf16.mxu0 0
  %978 = vmatpush1.bf16.msra.mxu0 0
  %979 = vmatprep.subr.bf16.mxu0 0
  %980 = vmatpush1.bf16.msra.mxu0 %v68
  %981 = vmatprep.subr.bf16.mxu0 0
  %982 = vmatpush1.bf16.msra.mxu0 %v67
  %983 = vmatprep.subr.bf16.mxu0 0
  %984 = vmatpush2.bf16.msra.mxu0 0
  %985 = vmatprep.subr.bf16.mxu0 0
  %986 = vmatpush2.bf16.msra.mxu0 0
  %987 = vmatprep.subr.bf16.mxu0 0
  %988 = vmatpush2.bf16.msra.mxu0 0
  %989 = vmatprep.subr.bf16.mxu0 0
  %990 = vmatpush2.bf16.msra.mxu0 0
  %991 = vmatprep.subr.bf16.mxu0 0
  %992 = vmatpush2.bf16.msra.mxu0 0
  %993 = vmatprep.subr.bf16.mxu0 0
  %994 = vmatpush2.bf16.msra.mxu0 0
  %995 = vmatprep.subr.bf16.mxu0 0
  %996 = vmatpush2.bf16.msra.mxu0 0
  %997 = vmatprep.subr.bf16.mxu0 0
  %998 = vmatpush2.bf16.msra.mxu0 0
  %999 = vmatprep.mubr.bf16.mxu0 0
  %1000 = vmatmul.mubr.bf16.gmra.mxu0 %v965
  %v1001 = vpop.f32.mrf.mxu0
  %v1002 = vadd.f32 0.0, %v1001
  %v1003 = vpop.f32.mrf.mxu0
  %v1004 = vpop.f32.mrf.mxu0
  %v1005 = vpop.f32.mrf.mxu0
  %1006 = vdwg.mxu0
  %v1008 = vsel %vm71, %v961, 0
  %1010 = vmatprep.subr.bf16.mxu0 0
  %1011 = vmatpush1.bf16.msra.mxu0 0
  %1012 = vmatprep.subr.bf16.mxu0 0
  %1013 = vmatpush1.bf16.msra.mxu0 0
  %1014 = vmatprep.subr.bf16.mxu0 0
  %1015 = vmatpush1.bf16.msra.mxu0 0
  %1016 = vmatprep.subr.bf16.mxu0 0
  %1017 = vmatpush1.bf16.msra.mxu0 0
  %1018 = vmatprep.subr.bf16.mxu0 0
  %1019 = vmatpush1.bf16.msra.mxu0 0
  %1020 = vmatprep.subr.bf16.mxu0 0
  %1021 = vmatpush1.bf16.msra.mxu0 0
  %1022 = vmatprep.subr.bf16.mxu0 0
  %1023 = vmatpush1.bf16.msra.mxu0 %v124
  %1024 = vmatprep.subr.bf16.mxu0 0
  %1025 = vmatpush1.bf16.msra.mxu0 %v123
  %1026 = vmatprep.subr.bf16.mxu0 0
  %1027 = vmatpush2.bf16.msra.mxu0 0
  %1028 = vmatprep.subr.bf16.mxu0 0
  %1029 = vmatpush2.bf16.msra.mxu0 0
  %1030 = vmatprep.subr.bf16.mxu0 0
  %1031 = vmatpush2.bf16.msra.mxu0 0
  %1032 = vmatprep.subr.bf16.mxu0 0
  %1033 = vmatpush2.bf16.msra.mxu0 0
  %1034 = vmatprep.subr.bf16.mxu0 0
  %1035 = vmatpush2.bf16.msra.mxu0 0
  %1036 = vmatprep.subr.bf16.mxu0 0
  %1037 = vmatpush2.bf16.msra.mxu0 0
  %1038 = vmatprep.subr.bf16.mxu0 0
  %1039 = vmatpush2.bf16.msra.mxu0 0
  %1040 = vmatprep.subr.bf16.mxu0 0
  %1041 = vmatpush2.bf16.msra.mxu0 0
  %1042 = vmatprep.mubr.bf16.mxu0 0
  %1043 = vmatmul.mubr.bf16.gmra.mxu0 %v1008
  %v1044 = vpop.f32.mrf.mxu0
  %v1045 = vadd.f32 %v1002, %v1044
  %v1046 = vpop.f32.mrf.mxu0
  %v1047 = vpop.f32.mrf.mxu0
  %v1048 = vpop.f32.mrf.mxu0
  %1049 = vdwg.mxu0
  %v1050 = vpack.c.bf16 %v959, %v959
  %1052 = vrot.lane.b32.xlu0 %v1050, 32
  %v1053 = vpop.permute.xlu0 %1052
  %v1055 = vsel %vm71, %v1053, 0
  %1057 = vmatprep.subr.bf16.mxu0 0
  %1058 = vmatpush1.bf16.msra.mxu0 0
  %1059 = vmatprep.subr.bf16.mxu0 0
  %1060 = vmatpush1.bf16.msra.mxu0 0
  %1061 = vmatprep.subr.bf16.mxu0 0
  %1062 = vmatpush1.bf16.msra.mxu0 0
  %1063 = vmatprep.subr.bf16.mxu0 0
  %1064 = vmatpush1.bf16.msra.mxu0 0
  %1065 = vmatprep.subr.bf16.mxu0 0
  %1066 = vmatpush1.bf16.msra.mxu0 0
  %1067 = vmatprep.subr.bf16.mxu0 0
  %1068 = vmatpush1.bf16.msra.mxu0 0
  %1069 = vmatprep.subr.bf16.mxu0 0
  %1070 = vmatpush1.bf16.msra.mxu0 %v183
  %1071 = vmatprep.subr.bf16.mxu0 0
  %1072 = vmatpush1.bf16.msra.mxu0 %v182
  %1073 = vmatprep.subr.bf16.mxu0 0
  %1074 = vmatpush2.bf16.msra.mxu0 0
  %1075 = vmatprep.subr.bf16.mxu0 0
  %1076 = vmatpush2.bf16.msra.mxu0 0
  %1077 = vmatprep.subr.bf16.mxu0 0
  %1078 = vmatpush2.bf16.msra.mxu0 0
  %1079 = vmatprep.subr.bf16.mxu0 0
  %1080 = vmatpush2.bf16.msra.mxu0 0
  %1081 = vmatprep.subr.bf16.mxu0 0
  %1082 = vmatpush2.bf16.msra.mxu0 0
  %1083 = vmatprep.subr.bf16.mxu0 0
  %1084 = vmatpush2.bf16.msra.mxu0 0
  %1085 = vmatprep.subr.bf16.mxu0 0
  %1086 = vmatpush2.bf16.msra.mxu0 0
  %1087 = vmatprep.subr.bf16.mxu0 0
  %1088 = vmatpush2.bf16.msra.mxu0 0
  %1089 = vmatprep.mubr.bf16.mxu0 0
  %1090 = vmatmul.mubr.bf16.gmra.mxu0 %v1055
  %v1091 = vpop.f32.mrf.mxu0
  %v1092 = vadd.f32 0.0, %v1091
  %v1093 = vpop.f32.mrf.mxu0
  %v1094 = vpop.f32.mrf.mxu0
  %v1095 = vpop.f32.mrf.mxu0
  %1096 = vdwg.mxu0
  %v1097 = vadd.f32 %v1045, %v1092
  %v1098 = vadd.f32 %v1097, %v234
  %v1099 = vxor.u32 %v1098, 2147483648
  %v1100 = vmul.f32 %v1099, 1.442695
  %v1101 = vpow.pop %v1100
  %v1102 = vadd.f32 %v1101, 1.0
  %v1103 = vrcp.pop %v1102
  %v1104 = vmul.f32 1.0, %v1103
  %v1105 = vtanh.pop %v1098
  %v1106 = vmul.f32 %v1104, %v953
  %1108 = vrot.lane.b32.xlu0 %v1105, 64
  %v1109 = vpop.permute.xlu0 %1108
  %v1111 = vmul.f32 %v1104, %v1109
  %1113 = vrot.lane.b32.xlu0 %v1111, 32
  %v1114 = vpop.permute.xlu0 %1113
  %v1116 = vadd.f32 %v1106, %v1114
  %v1117 = vtanh.pop %v1116
  %1119 = vrot.lane.b32.xlu0 %v1117, 64
  %v1120 = vpop.permute.xlu0 %1119
  %v1122 = vmul.f32 %v1104, %v1120
  %s1123 = scalar_lea.vmem %s0, 5
  %v1124 = vld [vmem:[%s1123] sm:$0x1]
  %s1125 = scalar_lea.vmem %s1, 5
  %v1126 = vld [vmem:[%s1125] sm:$0x1]
  %v1128 = vsel %vm71, %v1126, 0
  %1130 = vmatprep.subr.bf16.mxu0 0
  %1131 = vmatpush1.bf16.msra.mxu0 0
  %1132 = vmatprep.subr.bf16.mxu0 0
  %1133 = vmatpush1.bf16.msra.mxu0 0
  %1134 = vmatprep.subr.bf16.mxu0 0
  %1135 = vmatpush1.bf16.msra.mxu0 0
  %1136 = vmatprep.subr.bf16.mxu0 0
  %1137 = vmatpush1.bf16.msra.mxu0 0
  %1138 = vmatprep.subr.bf16.mxu0 0
  %1139 = vmatpush1.bf16.msra.mxu0 0
  %1140 = vmatprep.subr.bf16.mxu0 0
  %1141 = vmatpush1.bf16.msra.mxu0 0
  %1142 = vmatprep.subr.bf16.mxu0 0
  %1143 = vmatpush1.bf16.msra.mxu0 %v68
  %1144 = vmatprep.subr.bf16.mxu0 0
  %1145 = vmatpush1.bf16.msra.mxu0 %v67
  %1146 = vmatprep.subr.bf16.mxu0 0
  %1147 = vmatpush2.bf16.msra.mxu0 0
  %1148 = vmatprep.subr.bf16.mxu0 0
  %1149 = vmatpush2.bf16.msra.mxu0 0
  %1150 = vmatprep.subr.bf16.mxu0 0
  %1151 = vmatpush2.bf16.msra.mxu0 0
  %1152 = vmatprep.subr.bf16.mxu0 0
  %1153 = vmatpush2.bf16.msra.mxu0 0
  %1154 = vmatprep.subr.bf16.mxu0 0
  %1155 = vmatpush2.bf16.msra.mxu0 0
  %1156 = vmatprep.subr.bf16.mxu0 0
  %1157 = vmatpush2.bf16.msra.mxu0 0
  %1158 = vmatprep.subr.bf16.mxu0 0
  %1159 = vmatpush2.bf16.msra.mxu0 0
  %1160 = vmatprep.subr.bf16.mxu0 0
  %1161 = vmatpush2.bf16.msra.mxu0 0
  %1162 = vmatprep.mubr.bf16.mxu0 0
  %1163 = vmatmul.mubr.bf16.gmra.mxu0 %v1128
  %v1164 = vpop.f32.mrf.mxu0
  %v1165 = vadd.f32 0.0, %v1164
  %v1166 = vpop.f32.mrf.mxu0
  %v1167 = vpop.f32.mrf.mxu0
  %v1168 = vpop.f32.mrf.mxu0
  %1169 = vdwg.mxu0
  %v1171 = vsel %vm71, %v1124, 0
  %1173 = vmatprep.subr.bf16.mxu0 0
  %1174 = vmatpush1.bf16.msra.mxu0 0
  %1175 = vmatprep.subr.bf16.mxu0 0
  %1176 = vmatpush1.bf16.msra.mxu0 0
  %1177 = vmatprep.subr.bf16.mxu0 0
  %1178 = vmatpush1.bf16.msra.mxu0 0
  %1179 = vmatprep.subr.bf16.mxu0 0
  %1180 = vmatpush1.bf16.msra.mxu0 0
  %1181 = vmatprep.subr.bf16.mxu0 0
  %1182 = vmatpush1.bf16.msra.mxu0 0
  %1183 = vmatprep.subr.bf16.mxu0 0
  %1184 = vmatpush1.bf16.msra.mxu0 0
  %1185 = vmatprep.subr.bf16.mxu0 0
  %1186 = vmatpush1.bf16.msra.mxu0 %v124
  %1187 = vmatprep.subr.bf16.mxu0 0
  %1188 = vmatpush1.bf16.msra.mxu0 %v123
  %1189 = vmatprep.subr.bf16.mxu0 0
  %1190 = vmatpush2.bf16.msra.mxu0 0
  %1191 = vmatprep.subr.bf16.mxu0 0
  %1192 = vmatpush2.bf16.msra.mxu0 0
  %1193 = vmatprep.subr.bf16.mxu0 0
  %1194 = vmatpush2.bf16.msra.mxu0 0
  %1195 = vmatprep.subr.bf16.mxu0 0
  %1196 = vmatpush2.bf16.msra.mxu0 0
  %1197 = vmatprep.subr.bf16.mxu0 0
  %1198 = vmatpush2.bf16.msra.mxu0 0
  %1199 = vmatprep.subr.bf16.mxu0 0
  %1200 = vmatpush2.bf16.msra.mxu0 0
  %1201 = vmatprep.subr.bf16.mxu0 0
  %1202 = vmatpush2.bf16.msra.mxu0 0
  %1203 = vmatprep.subr.bf16.mxu0 0
  %1204 = vmatpush2.bf16.msra.mxu0 0
  %1205 = vmatprep.mubr.bf16.mxu0 0
  %1206 = vmatmul.mubr.bf16.gmra.mxu0 %v1171
  %v1207 = vpop.f32.mrf.mxu0
  %v1208 = vadd.f32 %v1165, %v1207
  %v1209 = vpop.f32.mrf.mxu0
  %v1210 = vpop.f32.mrf.mxu0
  %v1211 = vpop.f32.mrf.mxu0
  %1212 = vdwg.mxu0
  %v1213 = vpack.c.bf16 %v1122, %v1122
  %1215 = vrot.lane.b32.xlu0 %v1213, 32
  %v1216 = vpop.permute.xlu0 %1215
  %v1218 = vsel %vm71, %v1216, 0
  %1220 = vmatprep.subr.bf16.mxu0 0
  %1221 = vmatpush1.bf16.msra.mxu0 0
  %1222 = vmatprep.subr.bf16.mxu0 0
  %1223 = vmatpush1.bf16.msra.mxu0 0
  %1224 = vmatprep.subr.bf16.mxu0 0
  %1225 = vmatpush1.bf16.msra.mxu0 0
  %1226 = vmatprep.subr.bf16.mxu0 0
  %1227 = vmatpush1.bf16.msra.mxu0 0
  %1228 = vmatprep.subr.bf16.mxu0 0
  %1229 = vmatpush1.bf16.msra.mxu0 0
  %1230 = vmatprep.subr.bf16.mxu0 0
  %1231 = vmatpush1.bf16.msra.mxu0 0
  %1232 = vmatprep.subr.bf16.mxu0 0
  %1233 = vmatpush1.bf16.msra.mxu0 %v183
  %1234 = vmatprep.subr.bf16.mxu0 0
  %1235 = vmatpush1.bf16.msra.mxu0 %v182
  %1236 = vmatprep.subr.bf16.mxu0 0
  %1237 = vmatpush2.bf16.msra.mxu0 0
  %1238 = vmatprep.subr.bf16.mxu0 0
  %1239 = vmatpush2.bf16.msra.mxu0 0
  %1240 = vmatprep.subr.bf16.mxu0 0
  %1241 = vmatpush2.bf16.msra.mxu0 0
  %1242 = vmatprep.subr.bf16.mxu0 0
  %1243 = vmatpush2.bf16.msra.mxu0 0
  %1244 = vmatprep.subr.bf16.mxu0 0
  %1245 = vmatpush2.bf16.msra.mxu0 0
  %1246 = vmatprep.subr.bf16.mxu0 0
  %1247 = vmatpush2.bf16.msra.mxu0 0
  %1248 = vmatprep.subr.bf16.mxu0 0
  %1249 = vmatpush2.bf16.msra.mxu0 0
  %1250 = vmatprep.subr.bf16.mxu0 0
  %1251 = vmatpush2.bf16.msra.mxu0 0
  %1252 = vmatprep.mubr.bf16.mxu0 0
  %1253 = vmatmul.mubr.bf16.gmra.mxu0 %v1218
  %v1254 = vpop.f32.mrf.mxu0
  %v1255 = vadd.f32 0.0, %v1254
  %v1256 = vpop.f32.mrf.mxu0
  %v1257 = vpop.f32.mrf.mxu0
  %v1258 = vpop.f32.mrf.mxu0
  %1259 = vdwg.mxu0
  %v1260 = vadd.f32 %v1208, %v1255
  %v1261 = vadd.f32 %v1260, %v234
  %v1262 = vxor.u32 %v1261, 2147483648
  %v1263 = vmul.f32 %v1262, 1.442695
  %v1264 = vpow.pop %v1263
  %v1265 = vadd.f32 %v1264, 1.0
  %v1266 = vrcp.pop %v1265
  %v1267 = vmul.f32 1.0, %v1266
  %v1268 = vtanh.pop %v1261
  %v1269 = vmul.f32 %v1267, %v1116
  %1271 = vrot.lane.b32.xlu0 %v1268, 64
  %v1272 = vpop.permute.xlu0 %1271
  %v1274 = vmul.f32 %v1267, %v1272
  %1276 = vrot.lane.b32.xlu0 %v1274, 32
  %v1277 = vpop.permute.xlu0 %1276
  %v1279 = vadd.f32 %v1269, %v1277
  %v1280 = vtanh.pop %v1279
  %1282 = vrot.lane.b32.xlu0 %v1280, 64
  %v1283 = vpop.permute.xlu0 %1282
  %v1285 = vmul.f32 %v1267, %v1283
  %s1286 = scalar_lea.vmem %s0, 6
  %v1287 = vld [vmem:[%s1286] sm:$0x1]
  %s1288 = scalar_lea.vmem %s1, 6
  %v1289 = vld [vmem:[%s1288] sm:$0x1]
  %v1291 = vsel %vm71, %v1289, 0
  %1293 = vmatprep.subr.bf16.mxu0 0
  %1294 = vmatpush1.bf16.msra.mxu0 0
  %1295 = vmatprep.subr.bf16.mxu0 0
  %1296 = vmatpush1.bf16.msra.mxu0 0
  %1297 = vmatprep.subr.bf16.mxu0 0
  %1298 = vmatpush1.bf16.msra.mxu0 0
  %1299 = vmatprep.subr.bf16.mxu0 0
  %1300 = vmatpush1.bf16.msra.mxu0 0
  %1301 = vmatprep.subr.bf16.mxu0 0
  %1302 = vmatpush1.bf16.msra.mxu0 0
  %1303 = vmatprep.subr.bf16.mxu0 0
  %1304 = vmatpush1.bf16.msra.mxu0 0
  %1305 = vmatprep.subr.bf16.mxu0 0
  %1306 = vmatpush1.bf16.msra.mxu0 %v68
  %1307 = vmatprep.subr.bf16.mxu0 0
  %1308 = vmatpush1.bf16.msra.mxu0 %v67
  %1309 = vmatprep.subr.bf16.mxu0 0
  %1310 = vmatpush2.bf16.msra.mxu0 0
  %1311 = vmatprep.subr.bf16.mxu0 0
  %1312 = vmatpush2.bf16.msra.mxu0 0
  %1313 = vmatprep.subr.bf16.mxu0 0
  %1314 = vmatpush2.bf16.msra.mxu0 0
  %1315 = vmatprep.subr.bf16.mxu0 0
  %1316 = vmatpush2.bf16.msra.mxu0 0
  %1317 = vmatprep.subr.bf16.mxu0 0
  %1318 = vmatpush2.bf16.msra.mxu0 0
  %1319 = vmatprep.subr.bf16.mxu0 0
  %1320 = vmatpush2.bf16.msra.mxu0 0
  %1321 = vmatprep.subr.bf16.mxu0 0
  %1322 = vmatpush2.bf16.msra.mxu0 0
  %1323 = vmatprep.subr.bf16.mxu0 0
  %1324 = vmatpush2.bf16.msra.mxu0 0
  %1325 = vmatprep.mubr.bf16.mxu0 0
  %1326 = vmatmul.mubr.bf16.gmra.mxu0 %v1291
  %v1327 = vpop.f32.mrf.mxu0
  %v1328 = vadd.f32 0.0, %v1327
  %v1329 = vpop.f32.mrf.mxu0
  %v1330 = vpop.f32.mrf.mxu0
  %v1331 = vpop.f32.mrf.mxu0
  %1332 = vdwg.mxu0
  %v1334 = vsel %vm71, %v1287, 0
  %1336 = vmatprep.subr.bf16.mxu0 0
  %1337 = vmatpush1.bf16.msra.mxu0 0
  %1338 = vmatprep.subr.bf16.mxu0 0
  %1339 = vmatpush1.bf16.msra.mxu0 0
  %1340 = vmatprep.subr.bf16.mxu0 0
  %1341 = vmatpush1.bf16.msra.mxu0 0
  %1342 = vmatprep.subr.bf16.mxu0 0
  %1343 = vmatpush1.bf16.msra.mxu0 0
  %1344 = vmatprep.subr.bf16.mxu0 0
  %1345 = vmatpush1.bf16.msra.mxu0 0
  %1346 = vmatprep.subr.bf16.mxu0 0
  %1347 = vmatpush1.bf16.msra.mxu0 0
  %1348 = vmatprep.subr.bf16.mxu0 0
  %1349 = vmatpush1.bf16.msra.mxu0 %v124
  %1350 = vmatprep.subr.bf16.mxu0 0
  %1351 = vmatpush1.bf16.msra.mxu0 %v123
  %1352 = vmatprep.subr.bf16.mxu0 0
  %1353 = vmatpush2.bf16.msra.mxu0 0
  %1354 = vmatprep.subr.bf16.mxu0 0
  %1355 = vmatpush2.bf16.msra.mxu0 0
  %1356 = vmatprep.subr.bf16.mxu0 0
  %1357 = vmatpush2.bf16.msra.mxu0 0
  %1358 = vmatprep.subr.bf16.mxu0 0
  %1359 = vmatpush2.bf16.msra.mxu0 0
  %1360 = vmatprep.subr.bf16.mxu0 0
  %1361 = vmatpush2.bf16.msra.mxu0 0
  %1362 = vmatprep.subr.bf16.mxu0 0
  %1363 = vmatpush2.bf16.msra.mxu0 0
  %1364 = vmatprep.subr.bf16.mxu0 0
  %1365 = vmatpush2.bf16.msra.mxu0 0
  %1366 = vmatprep.subr.bf16.mxu0 0
  %1367 = vmatpush2.bf16.msra.mxu0 0
  %1368 = vmatprep.mubr.bf16.mxu0 0
  %1369 = vmatmul.mubr.bf16.gmra.mxu0 %v1334
  %v1370 = vpop.f32.mrf.mxu0
  %v1371 = vadd.f32 %v1328, %v1370
  %v1372 = vpop.f32.mrf.mxu0
  %v1373 = vpop.f32.mrf.mxu0
  %v1374 = vpop.f32.mrf.mxu0
  %1375 = vdwg.mxu0
  %v1376 = vpack.c.bf16 %v1285, %v1285
  %1378 = vrot.lane.b32.xlu0 %v1376, 32
  %v1379 = vpop.permute.xlu0 %1378
  %v1381 = vsel %vm71, %v1379, 0
  %1383 = vmatprep.subr.bf16.mxu0 0
  %1384 = vmatpush1.bf16.msra.mxu0 0
  %1385 = vmatprep.subr.bf16.mxu0 0
  %1386 = vmatpush1.bf16.msra.mxu0 0
  %1387 = vmatprep.subr.bf16.mxu0 0
  %1388 = vmatpush1.bf16.msra.mxu0 0
  %1389 = vmatprep.subr.bf16.mxu0 0
  %1390 = vmatpush1.bf16.msra.mxu0 0
  %1391 = vmatprep.subr.bf16.mxu0 0
  %1392 = vmatpush1.bf16.msra.mxu0 0
  %1393 = vmatprep.subr.bf16.mxu0 0
  %1394 = vmatpush1.bf16.msra.mxu0 0
  %1395 = vmatprep.subr.bf16.mxu0 0
  %1396 = vmatpush1.bf16.msra.mxu0 %v183
  %1397 = vmatprep.subr.bf16.mxu0 0
  %1398 = vmatpush1.bf16.msra.mxu0 %v182
  %1399 = vmatprep.subr.bf16.mxu0 0
  %1400 = vmatpush2.bf16.msra.mxu0 0
  %1401 = vmatprep.subr.bf16.mxu0 0
  %1402 = vmatpush2.bf16.msra.mxu0 0
  %1403 = vmatprep.subr.bf16.mxu0 0
  %1404 = vmatpush2.bf16.msra.mxu0 0
  %1405 = vmatprep.subr.bf16.mxu0 0
  %1406 = vmatpush2.bf16.msra.mxu0 0
  %1407 = vmatprep.subr.bf16.mxu0 0
  %1408 = vmatpush2.bf16.msra.mxu0 0
  %1409 = vmatprep.subr.bf16.mxu0 0
  %1410 = vmatpush2.bf16.msra.mxu0 0
  %1411 = vmatprep.subr.bf16.mxu0 0
  %1412 = vmatpush2.bf16.msra.mxu0 0
  %1413 = vmatprep.subr.bf16.mxu0 0
  %1414 = vmatpush2.bf16.msra.mxu0 0
  %1415 = vmatprep.mubr.bf16.mxu0 0
  %1416 = vmatmul.mubr.bf16.gmra.mxu0 %v1381
  %v1417 = vpop.f32.mrf.mxu0
  %v1418 = vadd.f32 0.0, %v1417
  %v1419 = vpop.f32.mrf.mxu0
  %v1420 = vpop.f32.mrf.mxu0
  %v1421 = vpop.f32.mrf.mxu0
  %1422 = vdwg.mxu0
  %v1423 = vadd.f32 %v1371, %v1418
  %v1424 = vadd.f32 %v1423, %v234
  %v1425 = vxor.u32 %v1424, 2147483648
  %v1426 = vmul.f32 %v1425, 1.442695
  %v1427 = vpow.pop %v1426
  %v1428 = vadd.f32 %v1427, 1.0
  %v1429 = vrcp.pop %v1428
  %v1430 = vmul.f32 1.0, %v1429
  %v1431 = vtanh.pop %v1424
  %v1432 = vmul.f32 %v1430, %v1279
  %1434 = vrot.lane.b32.xlu0 %v1431, 64
  %v1435 = vpop.permute.xlu0 %1434
  %v1437 = vmul.f32 %v1430, %v1435
  %1439 = vrot.lane.b32.xlu0 %v1437, 32
  %v1440 = vpop.permute.xlu0 %1439
  %v1442 = vadd.f32 %v1432, %v1440
  %v1443 = vtanh.pop %v1442
  %1445 = vrot.lane.b32.xlu0 %v1443, 64
  %v1446 = vpop.permute.xlu0 %1445
  %v1448 = vmul.f32 %v1430, %v1446
  %1449 = vmatprep.subr.bf16.mxu0 0
  %1450 = vmatpush1.bf16.msra.mxu0 0
  %1451 = vmatprep.subr.bf16.mxu0 0
  %1452 = vmatpush1.bf16.msra.mxu0 0
  %1453 = vmatprep.subr.bf16.mxu0 0
  %1454 = vmatpush1.bf16.msra.mxu0 0
  %1455 = vmatprep.subr.bf16.mxu0 0
  %1456 = vmatpush1.bf16.msra.mxu0 0
  %1457 = vmatprep.subr.bf16.mxu0 0
  %1458 = vmatpush1.bf16.msra.mxu0 0
  %1459 = vmatprep.subr.bf16.mxu0 0
  %1460 = vmatpush1.bf16.msra.mxu0 0
  %1461 = vmatprep.subr.bf16.mxu0 0
  %1462 = vmatpush1.bf16.msra.mxu0 %v68
  %1463 = vmatprep.subr.bf16.mxu0 0
  %1464 = vmatpush1.bf16.msra.mxu0 %v67
  %1465 = vmatprep.subr.bf16.mxu0 0
  %1466 = vmatpush2.bf16.msra.mxu0 0
  %1467 = vmatprep.subr.bf16.mxu0 0
  %1468 = vmatpush2.bf16.msra.mxu0 0
  %1469 = vmatprep.subr.bf16.mxu0 0
  %1470 = vmatpush2.bf16.msra.mxu0 0
  %1471 = vmatprep.subr.bf16.mxu0 0
  %1472 = vmatpush2.bf16.msra.mxu0 0
  %1473 = vmatprep.subr.bf16.mxu0 0
  %1474 = vmatpush2.bf16.msra.mxu0 0
  %1475 = vmatprep.subr.bf16.mxu0 0
  %1476 = vmatpush2.bf16.msra.mxu0 0
  %1477 = vmatprep.subr.bf16.mxu0 0
  %1478 = vmatpush2.bf16.msra.mxu0 0
  %1479 = vmatprep.subr.bf16.mxu0 0
  %1480 = vmatpush2.bf16.msra.mxu0 0
  %1481 = vmatprep.mubr.bf16.mxu0 0
  %1482 = vmatmul.mubr.bf16.gmra.mxu0 %v262
  %v1483 = vpop.f32.mrf.mxu0
  %v1484 = vadd.f32 0.0, %v1483
  %v1485 = vpop.f32.mrf.mxu0
  %v1486 = vpop.f32.mrf.mxu0
  %v1487 = vpop.f32.mrf.mxu0
  %1488 = vdwg.mxu0
  %1489 = vmatprep.subr.bf16.mxu0 0
  %1490 = vmatpush1.bf16.msra.mxu0 0
  %1491 = vmatprep.subr.bf16.mxu0 0
  %1492 = vmatpush1.bf16.msra.mxu0 0
  %1493 = vmatprep.subr.bf16.mxu0 0
  %1494 = vmatpush1.bf16.msra.mxu0 0
  %1495 = vmatprep.subr.bf16.mxu0 0
  %1496 = vmatpush1.bf16.msra.mxu0 0
  %1497 = vmatprep.subr.bf16.mxu0 0
  %1498 = vmatpush1.bf16.msra.mxu0 0
  %1499 = vmatprep.subr.bf16.mxu0 0
  %1500 = vmatpush1.bf16.msra.mxu0 0
  %1501 = vmatprep.subr.bf16.mxu0 0
  %1502 = vmatpush1.bf16.msra.mxu0 %v124
  %1503 = vmatprep.subr.bf16.mxu0 0
  %1504 = vmatpush1.bf16.msra.mxu0 %v123
  %1505 = vmatprep.subr.bf16.mxu0 0
  %1506 = vmatpush2.bf16.msra.mxu0 0
  %1507 = vmatprep.subr.bf16.mxu0 0
  %1508 = vmatpush2.bf16.msra.mxu0 0
  %1509 = vmatprep.subr.bf16.mxu0 0
  %1510 = vmatpush2.bf16.msra.mxu0 0
  %1511 = vmatprep.subr.bf16.mxu0 0
  %1512 = vmatpush2.bf16.msra.mxu0 0
  %1513 = vmatprep.subr.bf16.mxu0 0
  %1514 = vmatpush2.bf16.msra.mxu0 0
  %1515 = vmatprep.subr.bf16.mxu0 0
  %1516 = vmatpush2.bf16.msra.mxu0 0
  %1517 = vmatprep.subr.bf16.mxu0 0
  %1518 = vmatpush2.bf16.msra.mxu0 0
  %1519 = vmatprep.subr.bf16.mxu0 0
  %1520 = vmatpush2.bf16.msra.mxu0 0
  %1521 = vmatprep.mubr.bf16.mxu0 0
  %1522 = vmatmul.mubr.bf16.gmra.mxu0 %v317
  %v1523 = vpop.f32.mrf.mxu0
  %v1524 = vadd.f32 %v1484, %v1523
  %v1525 = vpop.f32.mrf.mxu0
  %v1526 = vpop.f32.mrf.mxu0
  %v1527 = vpop.f32.mrf.mxu0
  %1528 = vdwg.mxu0
  %v1529 = vpack.c.bf16 %v1448, %v1448
  %1531 = vrot.lane.b32.xlu0 %v1529, 32
  %v1532 = vpop.permute.xlu0 %1531
  %v1534 = vsel %vm71, %v1532, 0
  %1536 = vmatprep.subr.bf16.mxu0 0
  %1537 = vmatpush1.bf16.msra.mxu0 0
  %1538 = vmatprep.subr.bf16.mxu0 0
  %1539 = vmatpush1.bf16.msra.mxu0 0
  %1540 = vmatprep.subr.bf16.mxu0 0
  %1541 = vmatpush1.bf16.msra.mxu0 0
  %1542 = vmatprep.subr.bf16.mxu0 0
  %1543 = vmatpush1.bf16.msra.mxu0 0
  %1544 = vmatprep.subr.bf16.mxu0 0
  %1545 = vmatpush1.bf16.msra.mxu0 0
  %1546 = vmatprep.subr.bf16.mxu0 0
  %1547 = vmatpush1.bf16.msra.mxu0 0
  %1548 = vmatprep.subr.bf16.mxu0 0
  %1549 = vmatpush1.bf16.msra.mxu0 %v183
  %1550 = vmatprep.subr.bf16.mxu0 0
  %1551 = vmatpush1.bf16.msra.mxu0 %v182
  %1552 = vmatprep.subr.bf16.mxu0 0
  %1553 = vmatpush2.bf16.msra.mxu0 0
  %1554 = vmatprep.subr.bf16.mxu0 0
  %1555 = vmatpush2.bf16.msra.mxu0 0
  %1556 = vmatprep.subr.bf16.mxu0 0
  %1557 = vmatpush2.bf16.msra.mxu0 0
  %1558 = vmatprep.subr.bf16.mxu0 0
  %1559 = vmatpush2.bf16.msra.mxu0 0
  %1560 = vmatprep.subr.bf16.mxu0 0
  %1561 = vmatpush2.bf16.msra.mxu0 0
  %1562 = vmatprep.subr.bf16.mxu0 0
  %1563 = vmatpush2.bf16.msra.mxu0 0
  %1564 = vmatprep.subr.bf16.mxu0 0
  %1565 = vmatpush2.bf16.msra.mxu0 0
  %1566 = vmatprep.subr.bf16.mxu0 0
  %1567 = vmatpush2.bf16.msra.mxu0 0
  %1568 = vmatprep.mubr.bf16.mxu0 0
  %1569 = vmatmul.mubr.bf16.gmra.mxu0 %v1534
  %v1570 = vpop.f32.mrf.mxu0
  %v1571 = vadd.f32 0.0, %v1570
  %v1572 = vpop.f32.mrf.mxu0
  %v1573 = vpop.f32.mrf.mxu0
  %v1574 = vpop.f32.mrf.mxu0
  %1575 = vdwg.mxu0
  %v1576 = vadd.f32 %v1524, %v1571
  %v1577 = vadd.f32 %v1576, %v234
  %v1578 = vxor.u32 %v1577, 2147483648
  %v1579 = vmul.f32 %v1578, 1.442695
  %v1580 = vpow.pop %v1579
  %v1581 = vadd.f32 %v1580, 1.0
  %v1582 = vrcp.pop %v1581
  %v1583 = vmul.f32 1.0, %v1582
  %v1584 = vtanh.pop %v1577
  %v1585 = vmul.f32 %v1583, %v1442
  %1587 = vrot.lane.b32.xlu0 %v1584, 64
  %v1588 = vpop.permute.xlu0 %1587
  %v1590 = vmul.f32 %v1583, %v1588
  %1592 = vrot.lane.b32.xlu0 %v1590, 32
  %v1593 = vpop.permute.xlu0 %1592
  %v1595 = vadd.f32 %v1585, %v1593
  %v1596 = vtanh.pop %v1595
  %1598 = vrot.lane.b32.xlu0 %v1596, 64
  %v1599 = vpop.permute.xlu0 %1598
  %v1601 = vmul.f32 %v1583, %v1599
  %v1602 = vld [vmem:[%s10] sm:$0x1]
  %v1604 = vlaneseq
  %v1605 = vshrl.u32 %v1604, 7
  %v1606 = vsub.s32 0, %v1605
  %v1607 = vrot.slane %v1602, %v1606
  %1608 = vrot.lane.b32.xlu0 %v1607, 96
  %v1609 = vpop.permute.xlu0 %1608
  %v1611 = vmul.f32 %v1601, %v1609
  %1613 = vrot.lane.b32.xlu0 %v1611, 32
  %v1614 = vpop.permute.xlu0 %1613
  %vm1616 = vcmask 254976
  %v1617 = vsel %vm1616, %v1614, 0.0
  %1618 = vadd.xlane.f32.xlu0 %v1617
  %v1619 = vpop.xlane.xlu0 %1618
  %v1620 = vld [vmem:[%s11] sm:$0x1]
  %v1622 = vlaneseq
  %v1623 = vshrl.u32 %v1622, 7
  %v1624 = vsub.s32 0, %v1623
  %v1625 = vrot.slane %v1620, %v1624
  %1626 = vrot.lane.b32.xlu0 %v1625, 96
  %v1627 = vpop.permute.xlu0 %1626
  %v1629 = vmul.f32 %v470, %v1627
  %1631 = vrot.lane.b32.xlu0 %v1629, 32
  %v1632 = vpop.permute.xlu0 %1631
  %v1634 = vsel %vm1616, %v1632, 0.0
  %1635 = vadd.xlane.f32.xlu0 %v1634
  %v1636 = vpop.xlane.xlu0 %1635
  %v1637 = vadd.f32 %v1619, %v1636
  %v1638 = vld [vmem:[#allocation2] sm:$0x1]
  %v1640 = vlaneseq
  %v1641 = vshrl.u32 %v1640, 7
  %v1642 = vsub.s32 0, %v1641
  %v1643 = vrot.slane %v1638, %v1642
  %v1645 = vadd.f32 %v1637, %v1643
  %v1646 = vxor.u32 %v1645, 2147483648
  %v1647 = vmul.f32 %v1646, 1.442695
  %v1648 = vpow.pop %v1647
  %v1649 = vadd.f32 %v1648, 1.0
  %v1650 = vrcp.pop %v1649
  %v1651 = vmul.f32 1.0, %v1650
  %vm1652 = vcmask 1024
  %1653 = vst.msk [vmem:[%s13] sm:$0x3] %vm1652, %v1651
  // Predicated region
  $region54: #{lstm_model_forward.3} parent=0 // pred_check
    _
  $region55: #{lstm_model_forward.3} parent=0 // pred_check_branch
    %1655 = sbr.rel (0) target = $region57
  $region56: #{lstm_model_forward.3} parent=0 // pred_region
    _
  $region57: #{lstm_model_forward.3} parent=0 // pred_fallthru
    _
  // Predicated region
  $region58: #{lstm_model_forward.3} parent=0 // pred_check
    _
  $region59: #{lstm_model_forward.3} parent=0 // pred_check_branch
    %1657 = sbr.rel (0) target = $region61
  $region60: #{lstm_model_forward.3} parent=0 // pred_region
    _
  $region61: #{lstm_model_forward.3} parent=0 // pred_fallthru
    _

// kernel: lstm_model_forward.2
$region0: #{lstm_model_forward.2}
  #allocation0 [shape = 'u32[]', space=smem, size = 0x4, offset = 0x4, fixed_abs, tag = 'smem constant byte address 0x4 - core index']
  #allocation1 [shape = 'u32[144,128]{1,0:T(1,128)}', space=vmem, size = 0x12000, scoped, tag = 'internal scratch']
  %s0 = inlined_call_operand.vmem [shape: bf16[8,2,16], index: 0, kind: input, shape index: {}]
  %s1 = inlined_call_operand.vmem [shape: bf16[16,128], index: 1, kind: input, shape index: {}]
  %s2 = inlined_call_operand.vmem [shape: bf16[16,128], index: 2, kind: input, shape index: {}]
  %s3 = inlined_call_operand.vmem [shape: bf16[32,128], index: 3, kind: input, shape index: {}]
  %s4 = inlined_call_operand.vmem [shape: bf16[32,128], index: 4, kind: input, shape index: {}]
  %s5 = inlined_call_operand.vmem [shape: f32[1,128], index: 5, kind: input, shape index: {}]
  %s6 = inlined_call_operand.vmem [shape: f32[1,128], index: 6, kind: input, shape index: {}]
  %s7 = inlined_call_operand.vmem [shape: bf16[8,2,32], index: 7, kind: output, shape index: {0}]
  %s8 = inlined_call_operand.vmem [shape: bf16[8,2,32], index: 8, kind: output, shape index: {1}]
  %9 = xla_tuple %s7, %s8
  %s10 = sld [smem:[#allocation0]]
  $region46: #{lstm_model_forward.2} parent=0
    _
  %s12 = ssub.s32 1, %s10
  %s13 = scalar_select 0, %s12, %s10
  // Predicated region
  $region2: #{lstm_model_forward.2} parent=0 // pred_check
    _
  $region3: #{lstm_model_forward.2} parent=0 // pred_check_branch
    %15 = sbr.rel (0) target = $region5
  $region4: #{lstm_model_forward.2} parent=0 // pred_region
    _
  $region5: #{lstm_model_forward.2} parent=0 // pred_fallthru
    _
  // Predicated region
  $region6: #{lstm_model_forward.2} parent=0 // pred_check
    _
  $region7: #{lstm_model_forward.2} parent=0 // pred_check_branch
    %17 = sbr.rel (0) target = $region9
  $region8: #{lstm_model_forward.2} parent=0 // pred_region
    _
  $region9: #{lstm_model_forward.2} parent=0 // pred_fallthru
    _
  // Predicated region
  $region10: #{lstm_model_forward.2} parent=0 // pred_check
    _
  $region11: #{lstm_model_forward.2} parent=0 // pred_check_branch
    %19 = sbr.rel (0) target = $region13
  $region12: #{lstm_model_forward.2} parent=0 // pred_region
    _
  $region13: #{lstm_model_forward.2} parent=0 // pred_fallthru
    _
  // Predicated region
  $region14: #{lstm_model_forward.2} parent=0 // pred_check
    _
  $region15: #{lstm_model_forward.2} parent=0 // pred_check_branch
    %21 = sbr.rel (0) target = $region17
  $region16: #{lstm_model_forward.2} parent=0 // pred_region
    _
  $region17: #{lstm_model_forward.2} parent=0 // pred_fallthru
    _
  // Predicated region
  $region18: #{lstm_model_forward.2} parent=0 // pred_check
    _
  $region19: #{lstm_model_forward.2} parent=0 // pred_check_branch
    %23 = sbr.rel (0) target = $region21
  $region20: #{lstm_model_forward.2} parent=0 // pred_region
    _
  $region21: #{lstm_model_forward.2} parent=0 // pred_fallthru
    _
  // Predicated region
  $region22: #{lstm_model_forward.2} parent=0 // pred_check
    _
  $region23: #{lstm_model_forward.2} parent=0 // pred_check_branch
    %25 = sbr.rel (0) target = $region25
  $region24: #{lstm_model_forward.2} parent=0 // pred_region
    _
  $region25: #{lstm_model_forward.2} parent=0 // pred_fallthru
    _
  // Predicated region
  $region26: #{lstm_model_forward.2} parent=0 // pred_check
    _
  $region27: #{lstm_model_forward.2} parent=0 // pred_check_branch
    %27 = sbr.rel (0) target = $region29
  $region28: #{lstm_model_forward.2} parent=0 // pred_region
    _
  $region29: #{lstm_model_forward.2} parent=0 // pred_fallthru
    _
  %v29 = vld [vmem:[%s5] sm:$0x1]
  %v30 = vld [vmem:[%s6] sm:$0x1]
  %v31 = vld [vmem:[%s0] sm:$0x1]
  %v32 = vld [vmem:[%s1] sm:$0xf]
  %v33 = vld [vmem:[%s1 + $0x4] sm:$0xf]
  %v34 = vld [vmem:[%s3] sm:$0xf]
  %v35 = vld [vmem:[%s3 + $0x4] sm:$0xf]
  %v36 = vld [vmem:[%s3 + $0x8] sm:$0xf]
  %v37 = vld [vmem:[%s3 + $0xc] sm:$0xf]
  %v42 = vunpack.c.l.b16 %v34
  %v43 = vunpack.c.l.b16 %v35
  %v44 = vunpack.c.l.b16 %v36
  %v45 = vunpack.c.l.b16 %v37
  %v46 = vpack.c.b16 %v43, %v42
  %v47 = vpack.c.b16 %v45, %v44
  %vm50 = vcmask 261120
  %v52 = vsel %vm50, 0, 0
  %54 = vmatprep.subr.bf16.mxu0 0
  %55 = vmatpush1.bf16.msra.mxu0 0
  %56 = vmatprep.subr.bf16.mxu0 0
  %57 = vmatpush1.bf16.msra.mxu0 0
  %58 = vmatprep.subr.bf16.mxu0 0
  %59 = vmatpush1.bf16.msra.mxu0 0
  %60 = vmatprep.subr.bf16.mxu0 0
  %61 = vmatpush1.bf16.msra.mxu0 0
  %62 = vmatprep.subr.bf16.mxu0 0
  %63 = vmatpush1.bf16.msra.mxu0 0
  %64 = vmatprep.subr.bf16.mxu0 0
  %65 = vmatpush1.bf16.msra.mxu0 0
  %66 = vmatprep.subr.bf16.mxu0 0
  %67 = vmatpush1.bf16.msra.mxu0 %v47
  %68 = vmatprep.subr.bf16.mxu0 0
  %69 = vmatpush1.bf16.msra.mxu0 %v46
  %70 = vmatprep.subr.bf16.mxu0 0
  %71 = vmatpush2.bf16.msra.mxu0 0
  %72 = vmatprep.subr.bf16.mxu0 0
  %73 = vmatpush2.bf16.msra.mxu0 0
  %74 = vmatprep.subr.bf16.mxu0 0
  %75 = vmatpush2.bf16.msra.mxu0 0
  %76 = vmatprep.subr.bf16.mxu0 0
  %77 = vmatpush2.bf16.msra.mxu0 0
  %78 = vmatprep.subr.bf16.mxu0 0
  %79 = vmatpush2.bf16.msra.mxu0 0
  %80 = vmatprep.subr.bf16.mxu0 0
  %81 = vmatpush2.bf16.msra.mxu0 0
  %82 = vmatprep.subr.bf16.mxu0 0
  %83 = vmatpush2.bf16.msra.mxu0 0
  %84 = vmatprep.subr.bf16.mxu0 0
  %85 = vmatpush2.bf16.msra.mxu0 0
  %86 = vmatprep.mubr.bf16.mxu0 0
  %87 = vmatmul.mubr.bf16.gmra.mxu0 %v52
  %v88 = vpop.f32.mrf.mxu0
  %v89 = vadd.f32 0.0, %v88
  %v90 = vpop.f32.mrf.mxu0
  %v91 = vpop.f32.mrf.mxu0
  %v92 = vpop.f32.mrf.mxu0
  %93 = vdwg.mxu0
  %v96 = vunpack.c.l.b16 %v32
  %v97 = vunpack.c.l.b16 %v33
  %v98 = vpack.c.b16 %v97, %v96
  %vm100 = vcmask 130048
  %v102 = vsel %vm100, %v31, 0
  %104 = vmatprep.subr.bf16.mxu0 0
  %105 = vmatpush1.bf16.msra.mxu0 0
  %106 = vmatprep.subr.bf16.mxu0 0
  %107 = vmatpush1.bf16.msra.mxu0 0
  %108 = vmatprep.subr.bf16.mxu0 0
  %109 = vmatpush1.bf16.msra.mxu0 0
  %110 = vmatprep.subr.bf16.mxu0 0
  %111 = vmatpush1.bf16.msra.mxu0 0
  %112 = vmatprep.subr.bf16.mxu0 0
  %113 = vmatpush1.bf16.msra.mxu0 0
  %114 = vmatprep.subr.bf16.mxu0 0
  %115 = vmatpush1.bf16.msra.mxu0 0
  %116 = vmatprep.subr.bf16.mxu0 0
  %117 = vmatpush1.bf16.msra.mxu0 0
  %118 = vmatprep.subr.bf16.mxu0 0
  %119 = vmatpush1.bf16.msra.mxu0 %v98
  %120 = vmatprep.subr.bf16.mxu0 0
  %121 = vmatpush2.bf16.msra.mxu0 0
  %122 = vmatprep.subr.bf16.mxu0 0
  %123 = vmatpush2.bf16.msra.mxu0 0
  %124 = vmatprep.subr.bf16.mxu0 0
  %125 = vmatpush2.bf16.msra.mxu0 0
  %126 = vmatprep.subr.bf16.mxu0 0
  %127 = vmatpush2.bf16.msra.mxu0 0
  %128 = vmatprep.subr.bf16.mxu0 0
  %129 = vmatpush2.bf16.msra.mxu0 0
  %130 = vmatprep.subr.bf16.mxu0 0
  %131 = vmatpush2.bf16.msra.mxu0 0
  %132 = vmatprep.subr.bf16.mxu0 0
  %133 = vmatpush2.bf16.msra.mxu0 0
  %134 = vmatprep.subr.bf16.mxu0 0
  %135 = vmatpush2.bf16.msra.mxu0 0
  %136 = vmatprep.mubr.bf16.mxu0 0
  %137 = vmatmul.mubr.bf16.gmra.mxu0 %v102
  %v138 = vpop.f32.mrf.mxu0
  %v139 = vadd.f32 %v89, %v138
  %v140 = vpop.f32.mrf.mxu0
  %v141 = vpop.f32.mrf.mxu0
  %v142 = vpop.f32.mrf.mxu0
  %143 = vdwg.mxu0
  %v145 = vlaneseq
  %v146 = vshrl.u32 %v145, 7
  %v147 = vsub.s32 0, %v146
  %v148 = vrot.slane %v29, %v147
  %v150 = vadd.f32 %v139, %v148
  %s151 = scalar_lea.vmem %s0, 7
  %v152 = vld [vmem:[%s151] sm:$0x1]
  %v153 = vld [vmem:[%s2] sm:$0xf]
  %v154 = vld [vmem:[%s2 + $0x4] sm:$0xf]
  %v155 = vld [vmem:[%s4] sm:$0xf]
  %v156 = vld [vmem:[%s4 + $0x4] sm:$0xf]
  %v157 = vld [vmem:[%s4 + $0x8] sm:$0xf]
  %v158 = vld [vmem:[%s4 + $0xc] sm:$0xf]
  %v163 = vunpack.c.l.b16 %v155
  %v164 = vunpack.c.l.b16 %v156
  %v165 = vunpack.c.l.b16 %v157
  %v166 = vunpack.c.l.b16 %v158
  %v167 = vpack.c.b16 %v164, %v163
  %v168 = vpack.c.b16 %v166, %v165
  %171 = vmatprep.subr.bf16.mxu0 0
  %172 = vmatpush1.bf16.msra.mxu0 0
  %173 = vmatprep.subr.bf16.mxu0 0
  %174 = vmatpush1.bf16.msra.mxu0 0
  %175 = vmatprep.subr.bf16.mxu0 0
  %176 = vmatpush1.bf16.msra.mxu0 0
  %177 = vmatprep.subr.bf16.mxu0 0
  %178 = vmatpush1.bf16.msra.mxu0 0
  %179 = vmatprep.subr.bf16.mxu0 0
  %180 = vmatpush1.bf16.msra.mxu0 0
  %181 = vmatprep.subr.bf16.mxu0 0
  %182 = vmatpush1.bf16.msra.mxu0 0
  %183 = vmatprep.subr.bf16.mxu0 0
  %184 = vmatpush1.bf16.msra.mxu0 %v168
  %185 = vmatprep.subr.bf16.mxu0 0
  %186 = vmatpush1.bf16.msra.mxu0 %v167
  %187 = vmatprep.subr.bf16.mxu0 0
  %188 = vmatpush2.bf16.msra.mxu0 0
  %189 = vmatprep.subr.bf16.mxu0 0
  %190 = vmatpush2.bf16.msra.mxu0 0
  %191 = vmatprep.subr.bf16.mxu0 0
  %192 = vmatpush2.bf16.msra.mxu0 0
  %193 = vmatprep.subr.bf16.mxu0 0
  %194 = vmatpush2.bf16.msra.mxu0 0
  %195 = vmatprep.subr.bf16.mxu0 0
  %196 = vmatpush2.bf16.msra.mxu0 0
  %197 = vmatprep.subr.bf16.mxu0 0
  %198 = vmatpush2.bf16.msra.mxu0 0
  %199 = vmatprep.subr.bf16.mxu0 0
  %200 = vmatpush2.bf16.msra.mxu0 0
  %201 = vmatprep.subr.bf16.mxu0 0
  %202 = vmatpush2.bf16.msra.mxu0 0
  %203 = vmatprep.mubr.bf16.mxu0 0
  %204 = vmatmul.mubr.bf16.gmra.mxu0 %v52
  %v205 = vpop.f32.mrf.mxu0
  %v206 = vadd.f32 0.0, %v205
  %v207 = vpop.f32.mrf.mxu0
  %v208 = vpop.f32.mrf.mxu0
  %v209 = vpop.f32.mrf.mxu0
  %210 = vdwg.mxu0
  %v213 = vunpack.c.l.b16 %v153
  %v214 = vunpack.c.l.b16 %v154
  %v215 = vpack.c.b16 %v214, %v213
  %v218 = vsel %vm100, %v152, 0
  %220 = vmatprep.subr.bf16.mxu0 0
  %221 = vmatpush1.bf16.msra.mxu0 0
  %222 = vmatprep.subr.bf16.mxu0 0
  %223 = vmatpush1.bf16.msra.mxu0 0
  %224 = vmatprep.subr.bf16.mxu0 0
  %225 = vmatpush1.bf16.msra.mxu0 0
  %226 = vmatprep.subr.bf16.mxu0 0
  %227 = vmatpush1.bf16.msra.mxu0 0
  %228 = vmatprep.subr.bf16.mxu0 0
  %229 = vmatpush1.bf16.msra.mxu0 0
  %230 = vmatprep.subr.bf16.mxu0 0
  %231 = vmatpush1.bf16.msra.mxu0 0
  %232 = vmatprep.subr.bf16.mxu0 0
  %233 = vmatpush1.bf16.msra.mxu0 0
  %234 = vmatprep.subr.bf16.mxu0 0
  %235 = vmatpush1.bf16.msra.mxu0 %v215
  %236 = vmatprep.subr.bf16.mxu0 0
  %237 = vmatpush2.bf16.msra.mxu0 0
  %238 = vmatprep.subr.bf16.mxu0 0
  %239 = vmatpush2.bf16.msra.mxu0 0
  %240 = vmatprep.subr.bf16.mxu0 0
  %241 = vmatpush2.bf16.msra.mxu0 0
  %242 = vmatprep.subr.bf16.mxu0 0
  %243 = vmatpush2.bf16.msra.mxu0 0
  %244 = vmatprep.subr.bf16.mxu0 0
  %245 = vmatpush2.bf16.msra.mxu0 0
  %246 = vmatprep.subr.bf16.mxu0 0
  %247 = vmatpush2.bf16.msra.mxu0 0
  %248 = vmatprep.subr.bf16.mxu0 0
  %249 = vmatpush2.bf16.msra.mxu0 0
  %250 = vmatprep.subr.bf16.mxu0 0
  %251 = vmatpush2.bf16.msra.mxu0 0
  %252 = vmatprep.mubr.bf16.mxu0 0
  %253 = vmatmul.mubr.bf16.gmra.mxu0 %v218
  %v254 = vpop.f32.mrf.mxu0
  %v255 = vadd.f32 %v206, %v254
  %v256 = vpop.f32.mrf.mxu0
  %v257 = vpop.f32.mrf.mxu0
  %v258 = vpop.f32.mrf.mxu0
  %259 = vdwg.mxu0
  %v261 = vlaneseq
  %v262 = vshrl.u32 %v261, 7
  %v263 = vsub.s32 0, %v262
  %v264 = vrot.slane %v30, %v263
  %v266 = vadd.f32 %v255, %v264
  %v267 = vxor.u32 %v150, 2147483648
  %v268 = vmul.f32 %v267, 1.442695
  %v269 = vpow.pop %v268
  %v270 = vadd.f32 %v269, 1.0
  %v271 = vrcp.pop %v270
  %v272 = vmul.f32 1.0, %v271
  %v273 = vtanh.pop %v150
  %v274 = vmul.f32 %v272, 0.0
  %276 = vrot.lane.b32.xlu0 %v273, 64
  %v277 = vpop.permute.xlu0 %276
  %v279 = vmul.f32 %v272, %v277
  %281 = vrot.lane.b32.xlu0 %v279, 32
  %v282 = vpop.permute.xlu0 %281
  %v284 = vadd.f32 %v274, %v282
  %v285 = vtanh.pop %v284
  %287 = vrot.lane.b32.xlu0 %v285, 64
  %v288 = vpop.permute.xlu0 %287
  %v290 = vmul.f32 %v272, %v288
  %v291 = vxor.u32 %v266, 2147483648
  %v292 = vmul.f32 %v291, 1.442695
  %v293 = vpow.pop %v292
  %v294 = vadd.f32 %v293, 1.0
  %v295 = vrcp.pop %v294
  %v296 = vmul.f32 1.0, %v295
  %v297 = vtanh.pop %v266
  %v298 = vmul.f32 %v296, 0.0
  %300 = vrot.lane.b32.xlu0 %v297, 64
  %v301 = vpop.permute.xlu0 %300
  %v303 = vmul.f32 %v296, %v301
  %305 = vrot.lane.b32.xlu0 %v303, 32
  %v306 = vpop.permute.xlu0 %305
  %v308 = vadd.f32 %v298, %v306
  %v309 = vtanh.pop %v308
  %311 = vrot.lane.b32.xlu0 %v309, 64
  %v312 = vpop.permute.xlu0 %311
  %v314 = vmul.f32 %v296, %v312
  %v315 = vpack.c.bf16 %v290, %v290
  %v318 = vunpack.c.l.s4 1966171168
  %v319 = vunpack.c.0.s8 %v318
  %v320 = vlaneseq
  %v321 = vshrl.u32 %v320, 7
  %v322 = vsub.s32 %v319, %v321
  %v323 = vrot.slane %v315, %v322
  %v325 = vunpack.c.l.s4 1966171168
  %v326 = vunpack.c.0.s8 %v325
  %v327 = vlaneseq
  %v328 = vshrl.u32 %v327, 7
  %v329 = vsub.s32 %v326, %v328
  %v330 = vrot.slane %v323, %v329
  %331 = vrot.lane.b32.xlu0 %v330, 32
  %v332 = vpop.permute.xlu0 %331
  %vm334 = vcmask 253952
  %335 = vst.msk [vmem:[%s7] sm:$0x1] %vm334, %v332
  %v336 = vpack.c.bf16 %v314, %v314
  %v339 = vunpack.c.l.s4 1966171168
  %v340 = vunpack.c.0.s8 %v339
  %v341 = vlaneseq
  %v342 = vshrl.u32 %v341, 7
  %v343 = vsub.s32 %v340, %v342
  %v344 = vrot.slane %v336, %v343
  %v346 = vunpack.c.l.s4 1966171168
  %v347 = vunpack.c.0.s8 %v346
  %v348 = vlaneseq
  %v349 = vshrl.u32 %v348, 7
  %v350 = vsub.s32 %v347, %v349
  %v351 = vrot.slane %v344, %v350
  %352 = vrot.lane.b32.xlu0 %v351, 32
  %v353 = vpop.permute.xlu0 %352
  %s355 = scalar_lea.vmem %s8, 7
  %356 = vst.msk [vmem:[%s355] sm:$0x1] %vm334, %v353
  %s357 = scalar_lea.vmem %s0, 1
  %v358 = vld [vmem:[%s357] sm:$0x1]
  %v359 = vld [vmem:[%s1] sm:$0xf]
  %v360 = vld [vmem:[%s1 + $0x4] sm:$0xf]
  %v361 = vld [vmem:[%s3] sm:$0xf]
  %v362 = vld [vmem:[%s3 + $0x4] sm:$0xf]
  %v363 = vld [vmem:[%s3 + $0x8] sm:$0xf]
  %v364 = vld [vmem:[%s3 + $0xc] sm:$0xf]
  %365 = vrot.lane.b32.xlu0 %v315, 32
  %v366 = vpop.permute.xlu0 %365
  %v371 = vunpack.c.l.b16 %v361
  %v372 = vunpack.c.l.b16 %v362
  %v373 = vunpack.c.l.b16 %v363
  %v374 = vunpack.c.l.b16 %v364
  %v375 = vpack.c.b16 %v372, %v371
  %v376 = vpack.c.b16 %v374, %v373
  %v380 = vsel %vm50, %v366, 0
  %382 = vmatprep.subr.bf16.mxu0 0
  %383 = vmatpush1.bf16.msra.mxu0 0
  %384 = vmatprep.subr.bf16.mxu0 0
  %385 = vmatpush1.bf16.msra.mxu0 0
  %386 = vmatprep.subr.bf16.mxu0 0
  %387 = vmatpush1.bf16.msra.mxu0 0
  %388 = vmatprep.subr.bf16.mxu0 0
  %389 = vmatpush1.bf16.msra.mxu0 0
  %390 = vmatprep.subr.bf16.mxu0 0
  %391 = vmatpush1.bf16.msra.mxu0 0
  %392 = vmatprep.subr.bf16.mxu0 0
  %393 = vmatpush1.bf16.msra.mxu0 0
  %394 = vmatprep.subr.bf16.mxu0 0
  %395 = vmatpush1.bf16.msra.mxu0 %v376
  %396 = vmatprep.subr.bf16.mxu0 0
  %397 = vmatpush1.bf16.msra.mxu0 %v375
  %398 = vmatprep.subr.bf16.mxu0 0
  %399 = vmatpush2.bf16.msra.mxu0 0
  %400 = vmatprep.subr.bf16.mxu0 0
  %401 = vmatpush2.bf16.msra.mxu0 0
  %402 = vmatprep.subr.bf16.mxu0 0
  %403 = vmatpush2.bf16.msra.mxu0 0
  %404 = vmatprep.subr.bf16.mxu0 0
  %405 = vmatpush2.bf16.msra.mxu0 0
  %406 = vmatprep.subr.bf16.mxu0 0
  %407 = vmatpush2.bf16.msra.mxu0 0
  %408 = vmatprep.subr.bf16.mxu0 0
  %409 = vmatpush2.bf16.msra.mxu0 0
  %410 = vmatprep.subr.bf16.mxu0 0
  %411 = vmatpush2.bf16.msra.mxu0 0
  %412 = vmatprep.subr.bf16.mxu0 0
  %413 = vmatpush2.bf16.msra.mxu0 0
  %414 = vmatprep.mubr.bf16.mxu0 0
  %415 = vmatmul.mubr.bf16.gmra.mxu0 %v380
  %v416 = vpop.f32.mrf.mxu0
  %v417 = vadd.f32 0.0, %v416
  %v418 = vpop.f32.mrf.mxu0
  %v419 = vpop.f32.mrf.mxu0
  %v420 = vpop.f32.mrf.mxu0
  %421 = vdwg.mxu0
  %v424 = vunpack.c.l.b16 %v359
  %v425 = vunpack.c.l.b16 %v360
  %v426 = vpack.c.b16 %v425, %v424
  %v429 = vsel %vm100, %v358, 0
  %431 = vmatprep.subr.bf16.mxu0 0
  %432 = vmatpush1.bf16.msra.mxu0 0
  %433 = vmatprep.subr.bf16.mxu0 0
  %434 = vmatpush1.bf16.msra.mxu0 0
  %435 = vmatprep.subr.bf16.mxu0 0
  %436 = vmatpush1.bf16.msra.mxu0 0
  %437 = vmatprep.subr.bf16.mxu0 0
  %438 = vmatpush1.bf16.msra.mxu0 0
  %439 = vmatprep.subr.bf16.mxu0 0
  %440 = vmatpush1.bf16.msra.mxu0 0
  %441 = vmatprep.subr.bf16.mxu0 0
  %442 = vmatpush1.bf16.msra.mxu0 0
  %443 = vmatprep.subr.bf16.mxu0 0
  %444 = vmatpush1.bf16.msra.mxu0 0
  %445 = vmatprep.subr.bf16.mxu0 0
  %446 = vmatpush1.bf16.msra.mxu0 %v426
  %447 = vmatprep.subr.bf16.mxu0 0
  %448 = vmatpush2.bf16.msra.mxu0 0
  %449 = vmatprep.subr.bf16.mxu0 0
  %450 = vmatpush2.bf16.msra.mxu0 0
  %451 = vmatprep.subr.bf16.mxu0 0
  %452 = vmatpush2.bf16.msra.mxu0 0
  %453 = vmatprep.subr.bf16.mxu0 0
  %454 = vmatpush2.bf16.msra.mxu0 0
  %455 = vmatprep.subr.bf16.mxu0 0
  %456 = vmatpush2.bf16.msra.mxu0 0
  %457 = vmatprep.subr.bf16.mxu0 0
  %458 = vmatpush2.bf16.msra.mxu0 0
  %459 = vmatprep.subr.bf16.mxu0 0
  %460 = vmatpush2.bf16.msra.mxu0 0
  %461 = vmatprep.subr.bf16.mxu0 0
  %462 = vmatpush2.bf16.msra.mxu0 0
  %463 = vmatprep.mubr.bf16.mxu0 0
  %464 = vmatmul.mubr.bf16.gmra.mxu0 %v429
  %v465 = vpop.f32.mrf.mxu0
  %v466 = vadd.f32 %v417, %v465
  %v467 = vpop.f32.mrf.mxu0
  %v468 = vpop.f32.mrf.mxu0
  %v469 = vpop.f32.mrf.mxu0
  %470 = vdwg.mxu0
  %v471 = vadd.f32 %v466, %v148
  %s472 = scalar_lea.vmem %s0, 6
  %v473 = vld [vmem:[%s472] sm:$0x1]
  %v474 = vld [vmem:[%s2] sm:$0xf]
  %v475 = vld [vmem:[%s2 + $0x4] sm:$0xf]
  %v476 = vld [vmem:[%s4] sm:$0xf]
  %v477 = vld [vmem:[%s4 + $0x4] sm:$0xf]
  %v478 = vld [vmem:[%s4 + $0x8] sm:$0xf]
  %v479 = vld [vmem:[%s4 + $0xc] sm:$0xf]
  %480 = vrot.lane.b32.xlu0 %v336, 32
  %v481 = vpop.permute.xlu0 %480
  %v486 = vunpack.c.l.b16 %v476
  %v487 = vunpack.c.l.b16 %v477
  %v488 = vunpack.c.l.b16 %v478
  %v489 = vunpack.c.l.b16 %v479
  %v490 = vpack.c.b16 %v487, %v486
  %v491 = vpack.c.b16 %v489, %v488
  %v495 = vsel %vm50, %v481, 0
  %497 = vmatprep.subr.bf16.mxu0 0
  %498 = vmatpush1.bf16.msra.mxu0 0
  %499 = vmatprep.subr.bf16.mxu0 0
  %500 = vmatpush1.bf16.msra.mxu0 0
  %501 = vmatprep.subr.bf16.mxu0 0
  %502 = vmatpush1.bf16.msra.mxu0 0
  %503 = vmatprep.subr.bf16.mxu0 0
  %504 = vmatpush1.bf16.msra.mxu0 0
  %505 = vmatprep.subr.bf16.mxu0 0
  %506 = vmatpush1.bf16.msra.mxu0 0
  %507 = vmatprep.subr.bf16.mxu0 0
  %508 = vmatpush1.bf16.msra.mxu0 0
  %509 = vmatprep.subr.bf16.mxu0 0
  %510 = vmatpush1.bf16.msra.mxu0 %v491
  %511 = vmatprep.subr.bf16.mxu0 0
  %512 = vmatpush1.bf16.msra.mxu0 %v490
  %513 = vmatprep.subr.bf16.mxu0 0
  %514 = vmatpush2.bf16.msra.mxu0 0
  %515 = vmatprep.subr.bf16.mxu0 0
  %516 = vmatpush2.bf16.msra.mxu0 0
  %517 = vmatprep.subr.bf16.mxu0 0
  %518 = vmatpush2.bf16.msra.mxu0 0
  %519 = vmatprep.subr.bf16.mxu0 0
  %520 = vmatpush2.bf16.msra.mxu0 0
  %521 = vmatprep.subr.bf16.mxu0 0
  %522 = vmatpush2.bf16.msra.mxu0 0
  %523 = vmatprep.subr.bf16.mxu0 0
  %524 = vmatpush2.bf16.msra.mxu0 0
  %525 = vmatprep.subr.bf16.mxu0 0
  %526 = vmatpush2.bf16.msra.mxu0 0
  %527 = vmatprep.subr.bf16.mxu0 0
  %528 = vmatpush2.bf16.msra.mxu0 0
  %529 = vmatprep.mubr.bf16.mxu0 0
  %530 = vmatmul.mubr.bf16.gmra.mxu0 %v495
  %v531 = vpop.f32.mrf.mxu0
  %v532 = vadd.f32 0.0, %v531
  %v533 = vpop.f32.mrf.mxu0
  %v534 = vpop.f32.mrf.mxu0
  %v535 = vpop.f32.mrf.mxu0
  %536 = vdwg.mxu0
  %v539 = vunpack.c.l.b16 %v474
  %v540 = vunpack.c.l.b16 %v475
  %v541 = vpack.c.b16 %v540, %v539
  %v544 = vsel %vm100, %v473, 0
  %546 = vmatprep.subr.bf16.mxu0 0
  %547 = vmatpush1.bf16.msra.mxu0 0
  %548 = vmatprep.subr.bf16.mxu0 0
  %549 = vmatpush1.bf16.msra.mxu0 0
  %550 = vmatprep.subr.bf16.mxu0 0
  %551 = vmatpush1.bf16.msra.mxu0 0
  %552 = vmatprep.subr.bf16.mxu0 0
  %553 = vmatpush1.bf16.msra.mxu0 0
  %554 = vmatprep.subr.bf16.mxu0 0
  %555 = vmatpush1.bf16.msra.mxu0 0
  %556 = vmatprep.subr.bf16.mxu0 0
  %557 = vmatpush1.bf16.msra.mxu0 0
  %558 = vmatprep.subr.bf16.mxu0 0
  %559 = vmatpush1.bf16.msra.mxu0 0
  %560 = vmatprep.subr.bf16.mxu0 0
  %561 = vmatpush1.bf16.msra.mxu0 %v541
  %562 = vmatprep.subr.bf16.mxu0 0
  %563 = vmatpush2.bf16.msra.mxu0 0
  %564 = vmatprep.subr.bf16.mxu0 0
  %565 = vmatpush2.bf16.msra.mxu0 0
  %566 = vmatprep.subr.bf16.mxu0 0
  %567 = vmatpush2.bf16.msra.mxu0 0
  %568 = vmatprep.subr.bf16.mxu0 0
  %569 = vmatpush2.bf16.msra.mxu0 0
  %570 = vmatprep.subr.bf16.mxu0 0
  %571 = vmatpush2.bf16.msra.mxu0 0
  %572 = vmatprep.subr.bf16.mxu0 0
  %573 = vmatpush2.bf16.msra.mxu0 0
  %574 = vmatprep.subr.bf16.mxu0 0
  %575 = vmatpush2.bf16.msra.mxu0 0
  %576 = vmatprep.subr.bf16.mxu0 0
  %577 = vmatpush2.bf16.msra.mxu0 0
  %578 = vmatprep.mubr.bf16.mxu0 0
  %579 = vmatmul.mubr.bf16.gmra.mxu0 %v544
  %v580 = vpop.f32.mrf.mxu0
  %v581 = vadd.f32 %v532, %v580
  %v582 = vpop.f32.mrf.mxu0
  %v583 = vpop.f32.mrf.mxu0
  %v584 = vpop.f32.mrf.mxu0
  %585 = vdwg.mxu0
  %v586 = vadd.f32 %v581, %v264
  %v587 = vxor.u32 %v471, 2147483648
  %v588 = vmul.f32 %v587, 1.442695
  %v589 = vpow.pop %v588
  %v590 = vadd.f32 %v589, 1.0
  %v591 = vrcp.pop %v590
  %v592 = vmul.f32 1.0, %v591
  %v593 = vtanh.pop %v471
  %v594 = vmul.f32 %v592, %v284
  %596 = vrot.lane.b32.xlu0 %v593, 64
  %v597 = vpop.permute.xlu0 %596
  %v599 = vmul.f32 %v592, %v597
  %601 = vrot.lane.b32.xlu0 %v599, 32
  %v602 = vpop.permute.xlu0 %601
  %v604 = vadd.f32 %v594, %v602
  %v605 = vtanh.pop %v604
  %607 = vrot.lane.b32.xlu0 %v605, 64
  %v608 = vpop.permute.xlu0 %607
  %v610 = vmul.f32 %v592, %v608
  %v611 = vxor.u32 %v586, 2147483648
  %v612 = vmul.f32 %v611, 1.442695
  %v613 = vpow.pop %v612
  %v614 = vadd.f32 %v613, 1.0
  %v615 = vrcp.pop %v614
  %v616 = vmul.f32 1.0, %v615
  %v617 = vtanh.pop %v586
  %v618 = vmul.f32 %v616, %v308
  %620 = vrot.lane.b32.xlu0 %v617, 64
  %v621 = vpop.permute.xlu0 %620
  %v623 = vmul.f32 %v616, %v621
  %625 = vrot.lane.b32.xlu0 %v623, 32
  %v626 = vpop.permute.xlu0 %625
  %v628 = vadd.f32 %v618, %v626
  %v629 = vtanh.pop %v628
  %631 = vrot.lane.b32.xlu0 %v629, 64
  %v632 = vpop.permute.xlu0 %631
  %v634 = vmul.f32 %v616, %v632
  %v635 = vpack.c.bf16 %v610, %v610
  %v638 = vunpack.c.l.s4 1966171168
  %v639 = vunpack.c.0.s8 %v638
  %v640 = vlaneseq
  %v641 = vshrl.u32 %v640, 7
  %v642 = vsub.s32 %v639, %v641
  %v643 = vrot.slane %v635, %v642
  %v645 = vunpack.c.l.s4 1966171168
  %v646 = vunpack.c.0.s8 %v645
  %v647 = vlaneseq
  %v648 = vshrl.u32 %v647, 7
  %v649 = vsub.s32 %v646, %v648
  %v650 = vrot.slane %v643, %v649
  %651 = vrot.lane.b32.xlu0 %v650, 32
  %v652 = vpop.permute.xlu0 %651
  %s654 = scalar_lea.vmem %s7, 1
  %655 = vst.msk [vmem:[%s654] sm:$0x1] %vm334, %v652
  %v656 = vpack.c.bf16 %v634, %v634
  %v659 = vunpack.c.l.s4 1966171168
  %v660 = vunpack.c.0.s8 %v659
  %v661 = vlaneseq
  %v662 = vshrl.u32 %v661, 7
  %v663 = vsub.s32 %v660, %v662
  %v664 = vrot.slane %v656, %v663
  %v666 = vunpack.c.l.s4 1966171168
  %v667 = vunpack.c.0.s8 %v666
  %v668 = vlaneseq
  %v669 = vshrl.u32 %v668, 7
  %v670 = vsub.s32 %v667, %v669
  %v671 = vrot.slane %v664, %v670
  %672 = vrot.lane.b32.xlu0 %v671, 32
  %v673 = vpop.permute.xlu0 %672
  %s675 = scalar_lea.vmem %s8, 6
  %676 = vst.msk [vmem:[%s675] sm:$0x1] %vm334, %v673
  %s677 = scalar_lea.vmem %s0, 2
  %v678 = vld [vmem:[%s677] sm:$0x1]
  %v679 = vld [vmem:[%s1] sm:$0xf]
  %v680 = vld [vmem:[%s1 + $0x4] sm:$0xf]
  %v681 = vld [vmem:[%s3] sm:$0xf]
  %v682 = vld [vmem:[%s3 + $0x4] sm:$0xf]
  %v683 = vld [vmem:[%s3 + $0x8] sm:$0xf]
  %v684 = vld [vmem:[%s3 + $0xc] sm:$0xf]
  %685 = vrot.lane.b32.xlu0 %v635, 32
  %v686 = vpop.permute.xlu0 %685
  %v691 = vunpack.c.l.b16 %v681
  %v692 = vunpack.c.l.b16 %v682
  %v693 = vunpack.c.l.b16 %v683
  %v694 = vunpack.c.l.b16 %v684
  %v695 = vpack.c.b16 %v692, %v691
  %v696 = vpack.c.b16 %v694, %v693
  %v700 = vsel %vm50, %v686, 0
  %702 = vmatprep.subr.bf16.mxu0 0
  %703 = vmatpush1.bf16.msra.mxu0 0
  %704 = vmatprep.subr.bf16.mxu0 0
  %705 = vmatpush1.bf16.msra.mxu0 0
  %706 = vmatprep.subr.bf16.mxu0 0
  %707 = vmatpush1.bf16.msra.mxu0 0
  %708 = vmatprep.subr.bf16.mxu0 0
  %709 = vmatpush1.bf16.msra.mxu0 0
  %710 = vmatprep.subr.bf16.mxu0 0
  %711 = vmatpush1.bf16.msra.mxu0 0
  %712 = vmatprep.subr.bf16.mxu0 0
  %713 = vmatpush1.bf16.msra.mxu0 0
  %714 = vmatprep.subr.bf16.mxu0 0
  %715 = vmatpush1.bf16.msra.mxu0 %v696
  %716 = vmatprep.subr.bf16.mxu0 0
  %717 = vmatpush1.bf16.msra.mxu0 %v695
  %718 = vmatprep.subr.bf16.mxu0 0
  %719 = vmatpush2.bf16.msra.mxu0 0
  %720 = vmatprep.subr.bf16.mxu0 0
  %721 = vmatpush2.bf16.msra.mxu0 0
  %722 = vmatprep.subr.bf16.mxu0 0
  %723 = vmatpush2.bf16.msra.mxu0 0
  %724 = vmatprep.subr.bf16.mxu0 0
  %725 = vmatpush2.bf16.msra.mxu0 0
  %726 = vmatprep.subr.bf16.mxu0 0
  %727 = vmatpush2.bf16.msra.mxu0 0
  %728 = vmatprep.subr.bf16.mxu0 0
  %729 = vmatpush2.bf16.msra.mxu0 0
  %730 = vmatprep.subr.bf16.mxu0 0
  %731 = vmatpush2.bf16.msra.mxu0 0
  %732 = vmatprep.subr.bf16.mxu0 0
  %733 = vmatpush2.bf16.msra.mxu0 0
  %734 = vmatprep.mubr.bf16.mxu0 0
  %735 = vmatmul.mubr.bf16.gmra.mxu0 %v700
  %v736 = vpop.f32.mrf.mxu0
  %v737 = vadd.f32 0.0, %v736
  %v738 = vpop.f32.mrf.mxu0
  %v739 = vpop.f32.mrf.mxu0
  %v740 = vpop.f32.mrf.mxu0
  %741 = vdwg.mxu0
  %v744 = vunpack.c.l.b16 %v679
  %v745 = vunpack.c.l.b16 %v680
  %v746 = vpack.c.b16 %v745, %v744
  %v749 = vsel %vm100, %v678, 0
  %751 = vmatprep.subr.bf16.mxu0 0
  %752 = vmatpush1.bf16.msra.mxu0 0
  %753 = vmatprep.subr.bf16.mxu0 0
  %754 = vmatpush1.bf16.msra.mxu0 0
  %755 = vmatprep.subr.bf16.mxu0 0
  %756 = vmatpush1.bf16.msra.mxu0 0
  %757 = vmatprep.subr.bf16.mxu0 0
  %758 = vmatpush1.bf16.msra.mxu0 0
  %759 = vmatprep.subr.bf16.mxu0 0
  %760 = vmatpush1.bf16.msra.mxu0 0
  %761 = vmatprep.subr.bf16.mxu0 0
  %762 = vmatpush1.bf16.msra.mxu0 0
  %763 = vmatprep.subr.bf16.mxu0 0
  %764 = vmatpush1.bf16.msra.mxu0 0
  %765 = vmatprep.subr.bf16.mxu0 0
  %766 = vmatpush1.bf16.msra.mxu0 %v746
  %767 = vmatprep.subr.bf16.mxu0 0
  %768 = vmatpush2.bf16.msra.mxu0 0
  %769 = vmatprep.subr.bf16.mxu0 0
  %770 = vmatpush2.bf16.msra.mxu0 0
  %771 = vmatprep.subr.bf16.mxu0 0
  %772 = vmatpush2.bf16.msra.mxu0 0
  %773 = vmatprep.subr.bf16.mxu0 0
  %774 = vmatpush2.bf16.msra.mxu0 0
  %775 = vmatprep.subr.bf16.mxu0 0
  %776 = vmatpush2.bf16.msra.mxu0 0
  %777 = vmatprep.subr.bf16.mxu0 0
  %778 = vmatpush2.bf16.msra.mxu0 0
  %779 = vmatprep.subr.bf16.mxu0 0
  %780 = vmatpush2.bf16.msra.mxu0 0
  %781 = vmatprep.subr.bf16.mxu0 0
  %782 = vmatpush2.bf16.msra.mxu0 0
  %783 = vmatprep.mubr.bf16.mxu0 0
  %784 = vmatmul.mubr.bf16.gmra.mxu0 %v749
  %v785 = vpop.f32.mrf.mxu0
  %v786 = vadd.f32 %v737, %v785
  %v787 = vpop.f32.mrf.mxu0
  %v788 = vpop.f32.mrf.mxu0
  %v789 = vpop.f32.mrf.mxu0
  %790 = vdwg.mxu0
  %v791 = vadd.f32 %v786, %v148
  %s792 = scalar_lea.vmem %s0, 5
  %v793 = vld [vmem:[%s792] sm:$0x1]
  %v794 = vld [vmem:[%s2] sm:$0xf]
  %v795 = vld [vmem:[%s2 + $0x4] sm:$0xf]
  %v796 = vld [vmem:[%s4] sm:$0xf]
  %v797 = vld [vmem:[%s4 + $0x4] sm:$0xf]
  %v798 = vld [vmem:[%s4 + $0x8] sm:$0xf]
  %v799 = vld [vmem:[%s4 + $0xc] sm:$0xf]
  %800 = vrot.lane.b32.xlu0 %v656, 32
  %v801 = vpop.permute.xlu0 %800
  %v806 = vunpack.c.l.b16 %v796
  %v807 = vunpack.c.l.b16 %v797
  %v808 = vunpack.c.l.b16 %v798
  %v809 = vunpack.c.l.b16 %v799
  %v810 = vpack.c.b16 %v807, %v806
  %v811 = vpack.c.b16 %v809, %v808
  %v815 = vsel %vm50, %v801, 0
  %817 = vmatprep.subr.bf16.mxu0 0
  %818 = vmatpush1.bf16.msra.mxu0 0
  %819 = vmatprep.subr.bf16.mxu0 0
  %820 = vmatpush1.bf16.msra.mxu0 0
  %821 = vmatprep.subr.bf16.mxu0 0
  %822 = vmatpush1.bf16.msra.mxu0 0
  %823 = vmatprep.subr.bf16.mxu0 0
  %824 = vmatpush1.bf16.msra.mxu0 0
  %825 = vmatprep.subr.bf16.mxu0 0
  %826 = vmatpush1.bf16.msra.mxu0 0
  %827 = vmatprep.subr.bf16.mxu0 0
  %828 = vmatpush1.bf16.msra.mxu0 0
  %829 = vmatprep.subr.bf16.mxu0 0
  %830 = vmatpush1.bf16.msra.mxu0 %v811
  %831 = vmatprep.subr.bf16.mxu0 0
  %832 = vmatpush1.bf16.msra.mxu0 %v810
  %833 = vmatprep.subr.bf16.mxu0 0
  %834 = vmatpush2.bf16.msra.mxu0 0
  %835 = vmatprep.subr.bf16.mxu0 0
  %836 = vmatpush2.bf16.msra.mxu0 0
  %837 = vmatprep.subr.bf16.mxu0 0
  %838 = vmatpush2.bf16.msra.mxu0 0
  %839 = vmatprep.subr.bf16.mxu0 0
  %840 = vmatpush2.bf16.msra.mxu0 0
  %841 = vmatprep.subr.bf16.mxu0 0
  %842 = vmatpush2.bf16.msra.mxu0 0
  %843 = vmatprep.subr.bf16.mxu0 0
  %844 = vmatpush2.bf16.msra.mxu0 0
  %845 = vmatprep.subr.bf16.mxu0 0
  %846 = vmatpush2.bf16.msra.mxu0 0
  %847 = vmatprep.subr.bf16.mxu0 0
  %848 = vmatpush2.bf16.msra.mxu0 0
  %849 = vmatprep.mubr.bf16.mxu0 0
  %850 = vmatmul.mubr.bf16.gmra.mxu0 %v815
  %v851 = vpop.f32.mrf.mxu0
  %v852 = vadd.f32 0.0, %v851
  %v853 = vpop.f32.mrf.mxu0
  %v854 = vpop.f32.mrf.mxu0
  %v855 = vpop.f32.mrf.mxu0
  %856 = vdwg.mxu0
  %v859 = vunpack.c.l.b16 %v794
  %v860 = vunpack.c.l.b16 %v795
  %v861 = vpack.c.b16 %v860, %v859
  %v864 = vsel %vm100, %v793, 0
  %866 = vmatprep.subr.bf16.mxu0 0
  %867 = vmatpush1.bf16.msra.mxu0 0
  %868 = vmatprep.subr.bf16.mxu0 0
  %869 = vmatpush1.bf16.msra.mxu0 0
  %870 = vmatprep.subr.bf16.mxu0 0
  %871 = vmatpush1.bf16.msra.mxu0 0
  %872 = vmatprep.subr.bf16.mxu0 0
  %873 = vmatpush1.bf16.msra.mxu0 0
  %874 = vmatprep.subr.bf16.mxu0 0
  %875 = vmatpush1.bf16.msra.mxu0 0
  %876 = vmatprep.subr.bf16.mxu0 0
  %877 = vmatpush1.bf16.msra.mxu0 0
  %878 = vmatprep.subr.bf16.mxu0 0
  %879 = vmatpush1.bf16.msra.mxu0 0
  %880 = vmatprep.subr.bf16.mxu0 0
  %881 = vmatpush1.bf16.msra.mxu0 %v861
  %882 = vmatprep.subr.bf16.mxu0 0
  %883 = vmatpush2.bf16.msra.mxu0 0
  %884 = vmatprep.subr.bf16.mxu0 0
  %885 = vmatpush2.bf16.msra.mxu0 0
  %886 = vmatprep.subr.bf16.mxu0 0
  %887 = vmatpush2.bf16.msra.mxu0 0
  %888 = vmatprep.subr.bf16.mxu0 0
  %889 = vmatpush2.bf16.msra.mxu0 0
  %890 = vmatprep.subr.bf16.mxu0 0
  %891 = vmatpush2.bf16.msra.mxu0 0
  %892 = vmatprep.subr.bf16.mxu0 0
  %893 = vmatpush2.bf16.msra.mxu0 0
  %894 = vmatprep.subr.bf16.mxu0 0
  %895 = vmatpush2.bf16.msra.mxu0 0
  %896 = vmatprep.subr.bf16.mxu0 0
  %897 = vmatpush2.bf16.msra.mxu0 0
  %898 = vmatprep.mubr.bf16.mxu0 0
  %899 = vmatmul.mubr.bf16.gmra.mxu0 %v864
  %v900 = vpop.f32.mrf.mxu0
  %v901 = vadd.f32 %v852, %v900
  %v902 = vpop.f32.mrf.mxu0
  %v903 = vpop.f32.mrf.mxu0
  %v904 = vpop.f32.mrf.mxu0
  %905 = vdwg.mxu0
  %v906 = vadd.f32 %v901, %v264
  %v907 = vxor.u32 %v791, 2147483648
  %v908 = vmul.f32 %v907, 1.442695
  %v909 = vpow.pop %v908
  %v910 = vadd.f32 %v909, 1.0
  %v911 = vrcp.pop %v910
  %v912 = vmul.f32 1.0, %v911
  %v913 = vtanh.pop %v791
  %v914 = vmul.f32 %v912, %v604
  %916 = vrot.lane.b32.xlu0 %v913, 64
  %v917 = vpop.permute.xlu0 %916
  %v919 = vmul.f32 %v912, %v917
  %921 = vrot.lane.b32.xlu0 %v919, 32
  %v922 = vpop.permute.xlu0 %921
  %v924 = vadd.f32 %v914, %v922
  %v925 = vtanh.pop %v924
  %927 = vrot.lane.b32.xlu0 %v925, 64
  %v928 = vpop.permute.xlu0 %927
  %v930 = vmul.f32 %v912, %v928
  %v931 = vxor.u32 %v906, 2147483648
  %v932 = vmul.f32 %v931, 1.442695
  %v933 = vpow.pop %v932
  %v934 = vadd.f32 %v933, 1.0
  %v935 = vrcp.pop %v934
  %v936 = vmul.f32 1.0, %v935
  %v937 = vtanh.pop %v906
  %v938 = vmul.f32 %v936, %v628
  %940 = vrot.lane.b32.xlu0 %v937, 64
  %v941 = vpop.permute.xlu0 %940
  %v943 = vmul.f32 %v936, %v941
  %945 = vrot.lane.b32.xlu0 %v943, 32
  %v946 = vpop.permute.xlu0 %945
  %v948 = vadd.f32 %v938, %v946
  %v949 = vtanh.pop %v948
  %951 = vrot.lane.b32.xlu0 %v949, 64
  %v952 = vpop.permute.xlu0 %951
  %v954 = vmul.f32 %v936, %v952
  %v955 = vpack.c.bf16 %v930, %v930
  %v958 = vunpack.c.l.s4 1966171168
  %v959 = vunpack.c.0.s8 %v958
  %v960 = vlaneseq
  %v961 = vshrl.u32 %v960, 7
  %v962 = vsub.s32 %v959, %v961
  %v963 = vrot.slane %v955, %v962
  %v965 = vunpack.c.l.s4 1966171168
  %v966 = vunpack.c.0.s8 %v965
  %v967 = vlaneseq
  %v968 = vshrl.u32 %v967, 7
  %v969 = vsub.s32 %v966, %v968
  %v970 = vrot.slane %v963, %v969
  %971 = vrot.lane.b32.xlu0 %v970, 32
  %v972 = vpop.permute.xlu0 %971
  %s974 = scalar_lea.vmem %s7, 2
  %975 = vst.msk [vmem:[%s974] sm:$0x1] %vm334, %v972
  %v976 = vpack.c.bf16 %v954, %v954
  %v979 = vunpack.c.l.s4 1966171168
  %v980 = vunpack.c.0.s8 %v979
  %v981 = vlaneseq
  %v982 = vshrl.u32 %v981, 7
  %v983 = vsub.s32 %v980, %v982
  %v984 = vrot.slane %v976, %v983
  %v986 = vunpack.c.l.s4 1966171168
  %v987 = vunpack.c.0.s8 %v986
  %v988 = vlaneseq
  %v989 = vshrl.u32 %v988, 7
  %v990 = vsub.s32 %v987, %v989
  %v991 = vrot.slane %v984, %v990
  %992 = vrot.lane.b32.xlu0 %v991, 32
  %v993 = vpop.permute.xlu0 %992
  %s995 = scalar_lea.vmem %s8, 5
  %996 = vst.msk [vmem:[%s995] sm:$0x1] %vm334, %v993
  %s997 = scalar_lea.vmem %s0, 3
  %v998 = vld [vmem:[%s997] sm:$0x1]
  %v999 = vld [vmem:[%s1] sm:$0xf]
  %v1000 = vld [vmem:[%s1 + $0x4] sm:$0xf]
  %v1001 = vld [vmem:[%s3] sm:$0xf]
  %v1002 = vld [vmem:[%s3 + $0x4] sm:$0xf]
  %v1003 = vld [vmem:[%s3 + $0x8] sm:$0xf]
  %v1004 = vld [vmem:[%s3 + $0xc] sm:$0xf]
  %1005 = vrot.lane.b32.xlu0 %v955, 32
  %v1006 = vpop.permute.xlu0 %1005
  %v1011 = vunpack.c.l.b16 %v1001
  %v1012 = vunpack.c.l.b16 %v1002
  %v1013 = vunpack.c.l.b16 %v1003
  %v1014 = vunpack.c.l.b16 %v1004
  %v1015 = vpack.c.b16 %v1012, %v1011
  %v1016 = vpack.c.b16 %v1014, %v1013
  %v1020 = vsel %vm50, %v1006, 0
  %1022 = vmatprep.subr.bf16.mxu0 0
  %1023 = vmatpush1.bf16.msra.mxu0 0
  %1024 = vmatprep.subr.bf16.mxu0 0
  %1025 = vmatpush1.bf16.msra.mxu0 0
  %1026 = vmatprep.subr.bf16.mxu0 0
  %1027 = vmatpush1.bf16.msra.mxu0 0
  %1028 = vmatprep.subr.bf16.mxu0 0
  %1029 = vmatpush1.bf16.msra.mxu0 0
  %1030 = vmatprep.subr.bf16.mxu0 0
  %1031 = vmatpush1.bf16.msra.mxu0 0
  %1032 = vmatprep.subr.bf16.mxu0 0
  %1033 = vmatpush1.bf16.msra.mxu0 0
  %1034 = vmatprep.subr.bf16.mxu0 0
  %1035 = vmatpush1.bf16.msra.mxu0 %v1016
  %1036 = vmatprep.subr.bf16.mxu0 0
  %1037 = vmatpush1.bf16.msra.mxu0 %v1015
  %1038 = vmatprep.subr.bf16.mxu0 0
  %1039 = vmatpush2.bf16.msra.mxu0 0
  %1040 = vmatprep.subr.bf16.mxu0 0
  %1041 = vmatpush2.bf16.msra.mxu0 0
  %1042 = vmatprep.subr.bf16.mxu0 0
  %1043 = vmatpush2.bf16.msra.mxu0 0
  %1044 = vmatprep.subr.bf16.mxu0 0
  %1045 = vmatpush2.bf16.msra.mxu0 0
  %1046 = vmatprep.subr.bf16.mxu0 0
  %1047 = vmatpush2.bf16.msra.mxu0 0
  %1048 = vmatprep.subr.bf16.mxu0 0
  %1049 = vmatpush2.bf16.msra.mxu0 0
  %1050 = vmatprep.subr.bf16.mxu0 0
  %1051 = vmatpush2.bf16.msra.mxu0 0
  %1052 = vmatprep.subr.bf16.mxu0 0
  %1053 = vmatpush2.bf16.msra.mxu0 0
  %1054 = vmatprep.mubr.bf16.mxu0 0
  %1055 = vmatmul.mubr.bf16.gmra.mxu0 %v1020
  %v1056 = vpop.f32.mrf.mxu0
  %v1057 = vadd.f32 0.0, %v1056
  %v1058 = vpop.f32.mrf.mxu0
  %v1059 = vpop.f32.mrf.mxu0
  %v1060 = vpop.f32.mrf.mxu0
  %1061 = vdwg.mxu0
  %v1064 = vunpack.c.l.b16 %v999
  %v1065 = vunpack.c.l.b16 %v1000
  %v1066 = vpack.c.b16 %v1065, %v1064
  %v1069 = vsel %vm100, %v998, 0
  %1071 = vmatprep.subr.bf16.mxu0 0
  %1072 = vmatpush1.bf16.msra.mxu0 0
  %1073 = vmatprep.subr.bf16.mxu0 0
  %1074 = vmatpush1.bf16.msra.mxu0 0
  %1075 = vmatprep.subr.bf16.mxu0 0
  %1076 = vmatpush1.bf16.msra.mxu0 0
  %1077 = vmatprep.subr.bf16.mxu0 0
  %1078 = vmatpush1.bf16.msra.mxu0 0
  %1079 = vmatprep.subr.bf16.mxu0 0
  %1080 = vmatpush1.bf16.msra.mxu0 0
  %1081 = vmatprep.subr.bf16.mxu0 0
  %1082 = vmatpush1.bf16.msra.mxu0 0
  %1083 = vmatprep.subr.bf16.mxu0 0
  %1084 = vmatpush1.bf16.msra.mxu0 0
  %1085 = vmatprep.subr.bf16.mxu0 0
  %1086 = vmatpush1.bf16.msra.mxu0 %v1066
  %1087 = vmatprep.subr.bf16.mxu0 0
  %1088 = vmatpush2.bf16.msra.mxu0 0
  %1089 = vmatprep.subr.bf16.mxu0 0
  %1090 = vmatpush2.bf16.msra.mxu0 0
  %1091 = vmatprep.subr.bf16.mxu0 0
  %1092 = vmatpush2.bf16.msra.mxu0 0
  %1093 = vmatprep.subr.bf16.mxu0 0
  %1094 = vmatpush2.bf16.msra.mxu0 0
  %1095 = vmatprep.subr.bf16.mxu0 0
  %1096 = vmatpush2.bf16.msra.mxu0 0
  %1097 = vmatprep.subr.bf16.mxu0 0
  %1098 = vmatpush2.bf16.msra.mxu0 0
  %1099 = vmatprep.subr.bf16.mxu0 0
  %1100 = vmatpush2.bf16.msra.mxu0 0
  %1101 = vmatprep.subr.bf16.mxu0 0
  %1102 = vmatpush2.bf16.msra.mxu0 0
  %1103 = vmatprep.mubr.bf16.mxu0 0
  %1104 = vmatmul.mubr.bf16.gmra.mxu0 %v1069
  %v1105 = vpop.f32.mrf.mxu0
  %v1106 = vadd.f32 %v1057, %v1105
  %v1107 = vpop.f32.mrf.mxu0
  %v1108 = vpop.f32.mrf.mxu0
  %v1109 = vpop.f32.mrf.mxu0
  %1110 = vdwg.mxu0
  %v1111 = vadd.f32 %v1106, %v148
  %s1112 = scalar_lea.vmem %s0, 4
  %v1113 = vld [vmem:[%s1112] sm:$0x1]
  %v1114 = vld [vmem:[%s2] sm:$0xf]
  %v1115 = vld [vmem:[%s2 + $0x4] sm:$0xf]
  %v1116 = vld [vmem:[%s4] sm:$0xf]
  %v1117 = vld [vmem:[%s4 + $0x4] sm:$0xf]
  %v1118 = vld [vmem:[%s4 + $0x8] sm:$0xf]
  %v1119 = vld [vmem:[%s4 + $0xc] sm:$0xf]
  %1120 = vrot.lane.b32.xlu0 %v976, 32
  %v1121 = vpop.permute.xlu0 %1120
  %v1126 = vunpack.c.l.b16 %v1116
  %v1127 = vunpack.c.l.b16 %v1117
  %v1128 = vunpack.c.l.b16 %v1118
  %v1129 = vunpack.c.l.b16 %v1119
  %v1130 = vpack.c.b16 %v1127, %v1126
  %v1131 = vpack.c.b16 %v1129, %v1128
  %v1135 = vsel %vm50, %v1121, 0
  %1137 = vmatprep.subr.bf16.mxu0 0
  %1138 = vmatpush1.bf16.msra.mxu0 0
  %1139 = vmatprep.subr.bf16.mxu0 0
  %1140 = vmatpush1.bf16.msra.mxu0 0
  %1141 = vmatprep.subr.bf16.mxu0 0
  %1142 = vmatpush1.bf16.msra.mxu0 0
  %1143 = vmatprep.subr.bf16.mxu0 0
  %1144 = vmatpush1.bf16.msra.mxu0 0
  %1145 = vmatprep.subr.bf16.mxu0 0
  %1146 = vmatpush1.bf16.msra.mxu0 0
  %1147 = vmatprep.subr.bf16.mxu0 0
  %1148 = vmatpush1.bf16.msra.mxu0 0
  %1149 = vmatprep.subr.bf16.mxu0 0
  %1150 = vmatpush1.bf16.msra.mxu0 %v1131
  %1151 = vmatprep.subr.bf16.mxu0 0
  %1152 = vmatpush1.bf16.msra.mxu0 %v1130
  %1153 = vmatprep.subr.bf16.mxu0 0
  %1154 = vmatpush2.bf16.msra.mxu0 0
  %1155 = vmatprep.subr.bf16.mxu0 0
  %1156 = vmatpush2.bf16.msra.mxu0 0
  %1157 = vmatprep.subr.bf16.mxu0 0
  %1158 = vmatpush2.bf16.msra.mxu0 0
  %1159 = vmatprep.subr.bf16.mxu0 0
  %1160 = vmatpush2.bf16.msra.mxu0 0
  %1161 = vmatprep.subr.bf16.mxu0 0
  %1162 = vmatpush2.bf16.msra.mxu0 0
  %1163 = vmatprep.subr.bf16.mxu0 0
  %1164 = vmatpush2.bf16.msra.mxu0 0
  %1165 = vmatprep.subr.bf16.mxu0 0
  %1166 = vmatpush2.bf16.msra.mxu0 0
  %1167 = vmatprep.subr.bf16.mxu0 0
  %1168 = vmatpush2.bf16.msra.mxu0 0
  %1169 = vmatprep.mubr.bf16.mxu0 0
  %1170 = vmatmul.mubr.bf16.gmra.mxu0 %v1135
  %v1171 = vpop.f32.mrf.mxu0
  %v1172 = vadd.f32 0.0, %v1171
  %v1173 = vpop.f32.mrf.mxu0
  %v1174 = vpop.f32.mrf.mxu0
  %v1175 = vpop.f32.mrf.mxu0
  %1176 = vdwg.mxu0
  %v1179 = vunpack.c.l.b16 %v1114
  %v1180 = vunpack.c.l.b16 %v1115
  %v1181 = vpack.c.b16 %v1180, %v1179
  %v1184 = vsel %vm100, %v1113, 0
  %1186 = vmatprep.subr.bf16.mxu0 0
  %1187 = vmatpush1.bf16.msra.mxu0 0
  %1188 = vmatprep.subr.bf16.mxu0 0
  %1189 = vmatpush1.bf16.msra.mxu0 0
  %1190 = vmatprep.subr.bf16.mxu0 0
  %1191 = vmatpush1.bf16.msra.mxu0 0
  %1192 = vmatprep.subr.bf16.mxu0 0
  %1193 = vmatpush1.bf16.msra.mxu0 0
  %1194 = vmatprep.subr.bf16.mxu0 0
  %1195 = vmatpush1.bf16.msra.mxu0 0
  %1196 = vmatprep.subr.bf16.mxu0 0
  %1197 = vmatpush1.bf16.msra.mxu0 0
  %1198 = vmatprep.subr.bf16.mxu0 0
  %1199 = vmatpush1.bf16.msra.mxu0 0
  %1200 = vmatprep.subr.bf16.mxu0 0
  %1201 = vmatpush1.bf16.msra.mxu0 %v1181
  %1202 = vmatprep.subr.bf16.mxu0 0
  %1203 = vmatpush2.bf16.msra.mxu0 0
  %1204 = vmatprep.subr.bf16.mxu0 0
  %1205 = vmatpush2.bf16.msra.mxu0 0
  %1206 = vmatprep.subr.bf16.mxu0 0
  %1207 = vmatpush2.bf16.msra.mxu0 0
  %1208 = vmatprep.subr.bf16.mxu0 0
  %1209 = vmatpush2.bf16.msra.mxu0 0
  %1210 = vmatprep.subr.bf16.mxu0 0
  %1211 = vmatpush2.bf16.msra.mxu0 0
  %1212 = vmatprep.subr.bf16.mxu0 0
  %1213 = vmatpush2.bf16.msra.mxu0 0
  %1214 = vmatprep.subr.bf16.mxu0 0
  %1215 = vmatpush2.bf16.msra.mxu0 0
  %1216 = vmatprep.subr.bf16.mxu0 0
  %1217 = vmatpush2.bf16.msra.mxu0 0
  %1218 = vmatprep.mubr.bf16.mxu0 0
  %1219 = vmatmul.mubr.bf16.gmra.mxu0 %v1184
  %v1220 = vpop.f32.mrf.mxu0
  %v1221 = vadd.f32 %v1172, %v1220
  %v1222 = vpop.f32.mrf.mxu0
  %v1223 = vpop.f32.mrf.mxu0
  %v1224 = vpop.f32.mrf.mxu0
  %1225 = vdwg.mxu0
  %v1226 = vadd.f32 %v1221, %v264
  %v1227 = vxor.u32 %v1111, 2147483648
  %v1228 = vmul.f32 %v1227, 1.442695
  %v1229 = vpow.pop %v1228
  %v1230 = vadd.f32 %v1229, 1.0
  %v1231 = vrcp.pop %v1230
  %v1232 = vmul.f32 1.0, %v1231
  %v1233 = vtanh.pop %v1111
  %v1234 = vmul.f32 %v1232, %v924
  %1236 = vrot.lane.b32.xlu0 %v1233, 64
  %v1237 = vpop.permute.xlu0 %1236
  %v1239 = vmul.f32 %v1232, %v1237
  %1241 = vrot.lane.b32.xlu0 %v1239, 32
  %v1242 = vpop.permute.xlu0 %1241
  %v1244 = vadd.f32 %v1234, %v1242
  %v1245 = vtanh.pop %v1244
  %1247 = vrot.lane.b32.xlu0 %v1245, 64
  %v1248 = vpop.permute.xlu0 %1247
  %v1250 = vmul.f32 %v1232, %v1248
  %v1251 = vxor.u32 %v1226, 2147483648
  %v1252 = vmul.f32 %v1251, 1.442695
  %v1253 = vpow.pop %v1252
  %v1254 = vadd.f32 %v1253, 1.0
  %v1255 = vrcp.pop %v1254
  %v1256 = vmul.f32 1.0, %v1255
  %v1257 = vtanh.pop %v1226
  %v1258 = vmul.f32 %v1256, %v948
  %1260 = vrot.lane.b32.xlu0 %v1257, 64
  %v1261 = vpop.permute.xlu0 %1260
  %v1263 = vmul.f32 %v1256, %v1261
  %1265 = vrot.lane.b32.xlu0 %v1263, 32
  %v1266 = vpop.permute.xlu0 %1265
  %v1268 = vadd.f32 %v1258, %v1266
  %v1269 = vtanh.pop %v1268
  %1271 = vrot.lane.b32.xlu0 %v1269, 64
  %v1272 = vpop.permute.xlu0 %1271
  %v1274 = vmul.f32 %v1256, %v1272
  %v1275 = vpack.c.bf16 %v1250, %v1250
  %v1278 = vunpack.c.l.s4 1966171168
  %v1279 = vunpack.c.0.s8 %v1278
  %v1280 = vlaneseq
  %v1281 = vshrl.u32 %v1280, 7
  %v1282 = vsub.s32 %v1279, %v1281
  %v1283 = vrot.slane %v1275, %v1282
  %v1285 = vunpack.c.l.s4 1966171168
  %v1286 = vunpack.c.0.s8 %v1285
  %v1287 = vlaneseq
  %v1288 = vshrl.u32 %v1287, 7
  %v1289 = vsub.s32 %v1286, %v1288
  %v1290 = vrot.slane %v1283, %v1289
  %1291 = vrot.lane.b32.xlu0 %v1290, 32
  %v1292 = vpop.permute.xlu0 %1291
  %s1294 = scalar_lea.vmem %s7, 3
  %1295 = vst.msk [vmem:[%s1294] sm:$0x1] %vm334, %v1292
  %v1296 = vpack.c.bf16 %v1274, %v1274
  %v1299 = vunpack.c.l.s4 1966171168
  %v1300 = vunpack.c.0.s8 %v1299
  %v1301 = vlaneseq
  %v1302 = vshrl.u32 %v1301, 7
  %v1303 = vsub.s32 %v1300, %v1302
  %v1304 = vrot.slane %v1296, %v1303
  %v1306 = vunpack.c.l.s4 1966171168
  %v1307 = vunpack.c.0.s8 %v1306
  %v1308 = vlaneseq
  %v1309 = vshrl.u32 %v1308, 7
  %v1310 = vsub.s32 %v1307, %v1309
  %v1311 = vrot.slane %v1304, %v1310
  %1312 = vrot.lane.b32.xlu0 %v1311, 32
  %v1313 = vpop.permute.xlu0 %1312
  %s1315 = scalar_lea.vmem %s8, 4
  %1316 = vst.msk [vmem:[%s1315] sm:$0x1] %vm334, %v1313
  %v1317 = vld [vmem:[%s1112] sm:$0x1]
  %v1318 = vld [vmem:[%s1] sm:$0xf]
  %v1319 = vld [vmem:[%s1 + $0x4] sm:$0xf]
  %v1320 = vld [vmem:[%s3] sm:$0xf]
  %v1321 = vld [vmem:[%s3 + $0x4] sm:$0xf]
  %v1322 = vld [vmem:[%s3 + $0x8] sm:$0xf]
  %v1323 = vld [vmem:[%s3 + $0xc] sm:$0xf]
  %1324 = vrot.lane.b32.xlu0 %v1275, 32
  %v1325 = vpop.permute.xlu0 %1324
  %v1330 = vunpack.c.l.b16 %v1320
  %v1331 = vunpack.c.l.b16 %v1321
  %v1332 = vunpack.c.l.b16 %v1322
  %v1333 = vunpack.c.l.b16 %v1323
  %v1334 = vpack.c.b16 %v1331, %v1330
  %v1335 = vpack.c.b16 %v1333, %v1332
  %v1339 = vsel %vm50, %v1325, 0
  %1341 = vmatprep.subr.bf16.mxu0 0
  %1342 = vmatpush1.bf16.msra.mxu0 0
  %1343 = vmatprep.subr.bf16.mxu0 0
  %1344 = vmatpush1.bf16.msra.mxu0 0
  %1345 = vmatprep.subr.bf16.mxu0 0
  %1346 = vmatpush1.bf16.msra.mxu0 0
  %1347 = vmatprep.subr.bf16.mxu0 0
  %1348 = vmatpush1.bf16.msra.mxu0 0
  %1349 = vmatprep.subr.bf16.mxu0 0
  %1350 = vmatpush1.bf16.msra.mxu0 0
  %1351 = vmatprep.subr.bf16.mxu0 0
  %1352 = vmatpush1.bf16.msra.mxu0 0
  %1353 = vmatprep.subr.bf16.mxu0 0
  %1354 = vmatpush1.bf16.msra.mxu0 %v1335
  %1355 = vmatprep.subr.bf16.mxu0 0
  %1356 = vmatpush1.bf16.msra.mxu0 %v1334
  %1357 = vmatprep.subr.bf16.mxu0 0
  %1358 = vmatpush2.bf16.msra.mxu0 0
  %1359 = vmatprep.subr.bf16.mxu0 0
  %1360 = vmatpush2.bf16.msra.mxu0 0
  %1361 = vmatprep.subr.bf16.mxu0 0
  %1362 = vmatpush2.bf16.msra.mxu0 0
  %1363 = vmatprep.subr.bf16.mxu0 0
  %1364 = vmatpush2.bf16.msra.mxu0 0
  %1365 = vmatprep.subr.bf16.mxu0 0
  %1366 = vmatpush2.bf16.msra.mxu0 0
  %1367 = vmatprep.subr.bf16.mxu0 0
  %1368 = vmatpush2.bf16.msra.mxu0 0
  %1369 = vmatprep.subr.bf16.mxu0 0
  %1370 = vmatpush2.bf16.msra.mxu0 0
  %1371 = vmatprep.subr.bf16.mxu0 0
  %1372 = vmatpush2.bf16.msra.mxu0 0
  %1373 = vmatprep.mubr.bf16.mxu0 0
  %1374 = vmatmul.mubr.bf16.gmra.mxu0 %v1339
  %v1375 = vpop.f32.mrf.mxu0
  %v1376 = vadd.f32 0.0, %v1375
  %v1377 = vpop.f32.mrf.mxu0
  %v1378 = vpop.f32.mrf.mxu0
  %v1379 = vpop.f32.mrf.mxu0
  %1380 = vdwg.mxu0
  %v1383 = vunpack.c.l.b16 %v1318
  %v1384 = vunpack.c.l.b16 %v1319
  %v1385 = vpack.c.b16 %v1384, %v1383
  %v1388 = vsel %vm100, %v1317, 0
  %1390 = vmatprep.subr.bf16.mxu0 0
  %1391 = vmatpush1.bf16.msra.mxu0 0
  %1392 = vmatprep.subr.bf16.mxu0 0
  %1393 = vmatpush1.bf16.msra.mxu0 0
  %1394 = vmatprep.subr.bf16.mxu0 0
  %1395 = vmatpush1.bf16.msra.mxu0 0
  %1396 = vmatprep.subr.bf16.mxu0 0
  %1397 = vmatpush1.bf16.msra.mxu0 0
  %1398 = vmatprep.subr.bf16.mxu0 0
  %1399 = vmatpush1.bf16.msra.mxu0 0
  %1400 = vmatprep.subr.bf16.mxu0 0
  %1401 = vmatpush1.bf16.msra.mxu0 0
  %1402 = vmatprep.subr.bf16.mxu0 0
  %1403 = vmatpush1.bf16.msra.mxu0 0
  %1404 = vmatprep.subr.bf16.mxu0 0
  %1405 = vmatpush1.bf16.msra.mxu0 %v1385
  %1406 = vmatprep.subr.bf16.mxu0 0
  %1407 = vmatpush2.bf16.msra.mxu0 0
  %1408 = vmatprep.subr.bf16.mxu0 0
  %1409 = vmatpush2.bf16.msra.mxu0 0
  %1410 = vmatprep.subr.bf16.mxu0 0
  %1411 = vmatpush2.bf16.msra.mxu0 0
  %1412 = vmatprep.subr.bf16.mxu0 0
  %1413 = vmatpush2.bf16.msra.mxu0 0
  %1414 = vmatprep.subr.bf16.mxu0 0
  %1415 = vmatpush2.bf16.msra.mxu0 0
  %1416 = vmatprep.subr.bf16.mxu0 0
  %1417 = vmatpush2.bf16.msra.mxu0 0
  %1418 = vmatprep.subr.bf16.mxu0 0
  %1419 = vmatpush2.bf16.msra.mxu0 0
  %1420 = vmatprep.subr.bf16.mxu0 0
  %1421 = vmatpush2.bf16.msra.mxu0 0
  %1422 = vmatprep.mubr.bf16.mxu0 0
  %1423 = vmatmul.mubr.bf16.gmra.mxu0 %v1388
  %v1424 = vpop.f32.mrf.mxu0
  %v1425 = vadd.f32 %v1376, %v1424
  %v1426 = vpop.f32.mrf.mxu0
  %v1427 = vpop.f32.mrf.mxu0
  %v1428 = vpop.f32.mrf.mxu0
  %1429 = vdwg.mxu0
  %v1430 = vadd.f32 %v1425, %v148
  %v1431 = vld [vmem:[%s997] sm:$0x1]
  %v1432 = vld [vmem:[%s2] sm:$0xf]
  %v1433 = vld [vmem:[%s2 + $0x4] sm:$0xf]
  %v1434 = vld [vmem:[%s4] sm:$0xf]
  %v1435 = vld [vmem:[%s4 + $0x4] sm:$0xf]
  %v1436 = vld [vmem:[%s4 + $0x8] sm:$0xf]
  %v1437 = vld [vmem:[%s4 + $0xc] sm:$0xf]
  %1438 = vrot.lane.b32.xlu0 %v1296, 32
  %v1439 = vpop.permute.xlu0 %1438
  %v1444 = vunpack.c.l.b16 %v1434
  %v1445 = vunpack.c.l.b16 %v1435
  %v1446 = vunpack.c.l.b16 %v1436
  %v1447 = vunpack.c.l.b16 %v1437
  %v1448 = vpack.c.b16 %v1445, %v1444
  %v1449 = vpack.c.b16 %v1447, %v1446
  %v1453 = vsel %vm50, %v1439, 0
  %1455 = vmatprep.subr.bf16.mxu0 0
  %1456 = vmatpush1.bf16.msra.mxu0 0
  %1457 = vmatprep.subr.bf16.mxu0 0
  %1458 = vmatpush1.bf16.msra.mxu0 0
  %1459 = vmatprep.subr.bf16.mxu0 0
  %1460 = vmatpush1.bf16.msra.mxu0 0
  %1461 = vmatprep.subr.bf16.mxu0 0
  %1462 = vmatpush1.bf16.msra.mxu0 0
  %1463 = vmatprep.subr.bf16.mxu0 0
  %1464 = vmatpush1.bf16.msra.mxu0 0
  %1465 = vmatprep.subr.bf16.mxu0 0
  %1466 = vmatpush1.bf16.msra.mxu0 0
  %1467 = vmatprep.subr.bf16.mxu0 0
  %1468 = vmatpush1.bf16.msra.mxu0 %v1449
  %1469 = vmatprep.subr.bf16.mxu0 0
  %1470 = vmatpush1.bf16.msra.mxu0 %v1448
  %1471 = vmatprep.subr.bf16.mxu0 0
  %1472 = vmatpush2.bf16.msra.mxu0 0
  %1473 = vmatprep.subr.bf16.mxu0 0
  %1474 = vmatpush2.bf16.msra.mxu0 0
  %1475 = vmatprep.subr.bf16.mxu0 0
  %1476 = vmatpush2.bf16.msra.mxu0 0
  %1477 = vmatprep.subr.bf16.mxu0 0
  %1478 = vmatpush2.bf16.msra.mxu0 0
  %1479 = vmatprep.subr.bf16.mxu0 0
  %1480 = vmatpush2.bf16.msra.mxu0 0
  %1481 = vmatprep.subr.bf16.mxu0 0
  %1482 = vmatpush2.bf16.msra.mxu0 0
  %1483 = vmatprep.subr.bf16.mxu0 0
  %1484 = vmatpush2.bf16.msra.mxu0 0
  %1485 = vmatprep.subr.bf16.mxu0 0
  %1486 = vmatpush2.bf16.msra.mxu0 0
  %1487 = vmatprep.mubr.bf16.mxu0 0
  %1488 = vmatmul.mubr.bf16.gmra.mxu0 %v1453
  %v1489 = vpop.f32.mrf.mxu0
  %v1490 = vadd.f32 0.0, %v1489
  %v1491 = vpop.f32.mrf.mxu0
  %v1492 = vpop.f32.mrf.mxu0
  %v1493 = vpop.f32.mrf.mxu0
  %1494 = vdwg.mxu0
  %v1497 = vunpack.c.l.b16 %v1432
  %v1498 = vunpack.c.l.b16 %v1433
  %v1499 = vpack.c.b16 %v1498, %v1497
  %v1502 = vsel %vm100, %v1431, 0
  %1504 = vmatprep.subr.bf16.mxu0 0
  %1505 = vmatpush1.bf16.msra.mxu0 0
  %1506 = vmatprep.subr.bf16.mxu0 0
  %1507 = vmatpush1.bf16.msra.mxu0 0
  %1508 = vmatprep.subr.bf16.mxu0 0
  %1509 = vmatpush1.bf16.msra.mxu0 0
  %1510 = vmatprep.subr.bf16.mxu0 0
  %1511 = vmatpush1.bf16.msra.mxu0 0
  %1512 = vmatprep.subr.bf16.mxu0 0
  %1513 = vmatpush1.bf16.msra.mxu0 0
  %1514 = vmatprep.subr.bf16.mxu0 0
  %1515 = vmatpush1.bf16.msra.mxu0 0
  %1516 = vmatprep.subr.bf16.mxu0 0
  %1517 = vmatpush1.bf16.msra.mxu0 0
  %1518 = vmatprep.subr.bf16.mxu0 0
  %1519 = vmatpush1.bf16.msra.mxu0 %v1499
  %1520 = vmatprep.subr.bf16.mxu0 0
  %1521 = vmatpush2.bf16.msra.mxu0 0
  %1522 = vmatprep.subr.bf16.mxu0 0
  %1523 = vmatpush2.bf16.msra.mxu0 0
  %1524 = vmatprep.subr.bf16.mxu0 0
  %1525 = vmatpush2.bf16.msra.mxu0 0
  %1526 = vmatprep.subr.bf16.mxu0 0
  %1527 = vmatpush2.bf16.msra.mxu0 0
  %1528 = vmatprep.subr.bf16.mxu0 0
  %1529 = vmatpush2.bf16.msra.mxu0 0
  %1530 = vmatprep.subr.bf16.mxu0 0
  %1531 = vmatpush2.bf16.msra.mxu0 0
  %1532 = vmatprep.subr.bf16.mxu0 0
  %1533 = vmatpush2.bf16.msra.mxu0 0
  %1534 = vmatprep.subr.bf16.mxu0 0
  %1535 = vmatpush2.bf16.msra.mxu0 0
  %1536 = vmatprep.mubr.bf16.mxu0 0
  %1537 = vmatmul.mubr.bf16.gmra.mxu0 %v1502
  %v1538 = vpop.f32.mrf.mxu0
  %v1539 = vadd.f32 %v1490, %v1538
  %v1540 = vpop.f32.mrf.mxu0
  %v1541 = vpop.f32.mrf.mxu0
  %v1542 = vpop.f32.mrf.mxu0
  %1543 = vdwg.mxu0
  %v1544 = vadd.f32 %v1539, %v264
  %v1545 = vxor.u32 %v1430, 2147483648
  %v1546 = vmul.f32 %v1545, 1.442695
  %v1547 = vpow.pop %v1546
  %v1548 = vadd.f32 %v1547, 1.0
  %v1549 = vrcp.pop %v1548
  %v1550 = vmul.f32 1.0, %v1549
  %v1551 = vtanh.pop %v1430
  %v1552 = vmul.f32 %v1550, %v1244
  %1554 = vrot.lane.b32.xlu0 %v1551, 64
  %v1555 = vpop.permute.xlu0 %1554
  %v1557 = vmul.f32 %v1550, %v1555
  %1559 = vrot.lane.b32.xlu0 %v1557, 32
  %v1560 = vpop.permute.xlu0 %1559
  %v1562 = vadd.f32 %v1552, %v1560
  %v1563 = vtanh.pop %v1562
  %1565 = vrot.lane.b32.xlu0 %v1563, 64
  %v1566 = vpop.permute.xlu0 %1565
  %v1568 = vmul.f32 %v1550, %v1566
  %v1569 = vxor.u32 %v1544, 2147483648
  %v1570 = vmul.f32 %v1569, 1.442695
  %v1571 = vpow.pop %v1570
  %v1572 = vadd.f32 %v1571, 1.0
  %v1573 = vrcp.pop %v1572
  %v1574 = vmul.f32 1.0, %v1573
  %v1575 = vtanh.pop %v1544
  %v1576 = vmul.f32 %v1574, %v1268
  %1578 = vrot.lane.b32.xlu0 %v1575, 64
  %v1579 = vpop.permute.xlu0 %1578
  %v1581 = vmul.f32 %v1574, %v1579
  %1583 = vrot.lane.b32.xlu0 %v1581, 32
  %v1584 = vpop.permute.xlu0 %1583
  %v1586 = vadd.f32 %v1576, %v1584
  %v1587 = vtanh.pop %v1586
  %1589 = vrot.lane.b32.xlu0 %v1587, 64
  %v1590 = vpop.permute.xlu0 %1589
  %v1592 = vmul.f32 %v1574, %v1590
  %v1593 = vpack.c.bf16 %v1568, %v1568
  %v1596 = vunpack.c.l.s4 1966171168
  %v1597 = vunpack.c.0.s8 %v1596
  %v1598 = vlaneseq
  %v1599 = vshrl.u32 %v1598, 7
  %v1600 = vsub.s32 %v1597, %v1599
  %v1601 = vrot.slane %v1593, %v1600
  %v1603 = vunpack.c.l.s4 1966171168
  %v1604 = vunpack.c.0.s8 %v1603
  %v1605 = vlaneseq
  %v1606 = vshrl.u32 %v1605, 7
  %v1607 = vsub.s32 %v1604, %v1606
  %v1608 = vrot.slane %v1601, %v1607
  %1609 = vrot.lane.b32.xlu0 %v1608, 32
  %v1610 = vpop.permute.xlu0 %1609
  %s1612 = scalar_lea.vmem %s7, 4
  %1613 = vst.msk [vmem:[%s1612] sm:$0x1] %vm334, %v1610
  %v1614 = vpack.c.bf16 %v1592, %v1592
  %v1617 = vunpack.c.l.s4 1966171168
  %v1618 = vunpack.c.0.s8 %v1617
  %v1619 = vlaneseq
  %v1620 = vshrl.u32 %v1619, 7
  %v1621 = vsub.s32 %v1618, %v1620
  %v1622 = vrot.slane %v1614, %v1621
  %v1624 = vunpack.c.l.s4 1966171168
  %v1625 = vunpack.c.0.s8 %v1624
  %v1626 = vlaneseq
  %v1627 = vshrl.u32 %v1626, 7
  %v1628 = vsub.s32 %v1625, %v1627
  %v1629 = vrot.slane %v1622, %v1628
  %1630 = vrot.lane.b32.xlu0 %v1629, 32
  %v1631 = vpop.permute.xlu0 %1630
  %s1633 = scalar_lea.vmem %s8, 3
  %1634 = vst.msk [vmem:[%s1633] sm:$0x1] %vm334, %v1631
  %v1635 = vld [vmem:[%s792] sm:$0x1]
  %v1636 = vld [vmem:[%s1] sm:$0xf]
  %v1637 = vld [vmem:[%s1 + $0x4] sm:$0xf]
  %v1638 = vld [vmem:[%s3] sm:$0xf]
  %v1639 = vld [vmem:[%s3 + $0x4] sm:$0xf]
  %v1640 = vld [vmem:[%s3 + $0x8] sm:$0xf]
  %v1641 = vld [vmem:[%s3 + $0xc] sm:$0xf]
  %1642 = vrot.lane.b32.xlu0 %v1593, 32
  %v1643 = vpop.permute.xlu0 %1642
  %v1648 = vunpack.c.l.b16 %v1638
  %v1649 = vunpack.c.l.b16 %v1639
  %v1650 = vunpack.c.l.b16 %v1640
  %v1651 = vunpack.c.l.b16 %v1641
  %v1652 = vpack.c.b16 %v1649, %v1648
  %v1653 = vpack.c.b16 %v1651, %v1650
  %v1657 = vsel %vm50, %v1643, 0
  %1659 = vmatprep.subr.bf16.mxu0 0
  %1660 = vmatpush1.bf16.msra.mxu0 0
  %1661 = vmatprep.subr.bf16.mxu0 0
  %1662 = vmatpush1.bf16.msra.mxu0 0
  %1663 = vmatprep.subr.bf16.mxu0 0
  %1664 = vmatpush1.bf16.msra.mxu0 0
  %1665 = vmatprep.subr.bf16.mxu0 0
  %1666 = vmatpush1.bf16.msra.mxu0 0
  %1667 = vmatprep.subr.bf16.mxu0 0
  %1668 = vmatpush1.bf16.msra.mxu0 0
  %1669 = vmatprep.subr.bf16.mxu0 0
  %1670 = vmatpush1.bf16.msra.mxu0 0
  %1671 = vmatprep.subr.bf16.mxu0 0
  %1672 = vmatpush1.bf16.msra.mxu0 %v1653
  %1673 = vmatprep.subr.bf16.mxu0 0
  %1674 = vmatpush1.bf16.msra.mxu0 %v1652
  %1675 = vmatprep.subr.bf16.mxu0 0
  %1676 = vmatpush2.bf16.msra.mxu0 0
  %1677 = vmatprep.subr.bf16.mxu0 0
  %1678 = vmatpush2.bf16.msra.mxu0 0
  %1679 = vmatprep.subr.bf16.mxu0 0
  %1680 = vmatpush2.bf16.msra.mxu0 0
  %1681 = vmatprep.subr.bf16.mxu0 0
  %1682 = vmatpush2.bf16.msra.mxu0 0
  %1683 = vmatprep.subr.bf16.mxu0 0
  %1684 = vmatpush2.bf16.msra.mxu0 0
  %1685 = vmatprep.subr.bf16.mxu0 0
  %1686 = vmatpush2.bf16.msra.mxu0 0
  %1687 = vmatprep.subr.bf16.mxu0 0
  %1688 = vmatpush2.bf16.msra.mxu0 0
  %1689 = vmatprep.subr.bf16.mxu0 0
  %1690 = vmatpush2.bf16.msra.mxu0 0
  %1691 = vmatprep.mubr.bf16.mxu0 0
  %1692 = vmatmul.mubr.bf16.gmra.mxu0 %v1657
  %v1693 = vpop.f32.mrf.mxu0
  %v1694 = vadd.f32 0.0, %v1693
  %v1695 = vpop.f32.mrf.mxu0
  %v1696 = vpop.f32.mrf.mxu0
  %v1697 = vpop.f32.mrf.mxu0
  %1698 = vdwg.mxu0
  %v1701 = vunpack.c.l.b16 %v1636
  %v1702 = vunpack.c.l.b16 %v1637
  %v1703 = vpack.c.b16 %v1702, %v1701
  %v1706 = vsel %vm100, %v1635, 0
  %1708 = vmatprep.subr.bf16.mxu0 0
  %1709 = vmatpush1.bf16.msra.mxu0 0
  %1710 = vmatprep.subr.bf16.mxu0 0
  %1711 = vmatpush1.bf16.msra.mxu0 0
  %1712 = vmatprep.subr.bf16.mxu0 0
  %1713 = vmatpush1.bf16.msra.mxu0 0
  %1714 = vmatprep.subr.bf16.mxu0 0
  %1715 = vmatpush1.bf16.msra.mxu0 0
  %1716 = vmatprep.subr.bf16.mxu0 0
  %1717 = vmatpush1.bf16.msra.mxu0 0
  %1718 = vmatprep.subr.bf16.mxu0 0
  %1719 = vmatpush1.bf16.msra.mxu0 0
  %1720 = vmatprep.subr.bf16.mxu0 0
  %1721 = vmatpush1.bf16.msra.mxu0 0
  %1722 = vmatprep.subr.bf16.mxu0 0
  %1723 = vmatpush1.bf16.msra.mxu0 %v1703
  %1724 = vmatprep.subr.bf16.mxu0 0
  %1725 = vmatpush2.bf16.msra.mxu0 0
  %1726 = vmatprep.subr.bf16.mxu0 0
  %1727 = vmatpush2.bf16.msra.mxu0 0
  %1728 = vmatprep.subr.bf16.mxu0 0
  %1729 = vmatpush2.bf16.msra.mxu0 0
  %1730 = vmatprep.subr.bf16.mxu0 0
  %1731 = vmatpush2.bf16.msra.mxu0 0
  %1732 = vmatprep.subr.bf16.mxu0 0
  %1733 = vmatpush2.bf16.msra.mxu0 0
  %1734 = vmatprep.subr.bf16.mxu0 0
  %1735 = vmatpush2.bf16.msra.mxu0 0
  %1736 = vmatprep.subr.bf16.mxu0 0
  %1737 = vmatpush2.bf16.msra.mxu0 0
  %1738 = vmatprep.subr.bf16.mxu0 0
  %1739 = vmatpush2.bf16.msra.mxu0 0
  %1740 = vmatprep.mubr.bf16.mxu0 0
  %1741 = vmatmul.mubr.bf16.gmra.mxu0 %v1706
  %v1742 = vpop.f32.mrf.mxu0
  %v1743 = vadd.f32 %v1694, %v1742
  %v1744 = vpop.f32.mrf.mxu0
  %v1745 = vpop.f32.mrf.mxu0
  %v1746 = vpop.f32.mrf.mxu0
  %1747 = vdwg.mxu0
  %v1748 = vadd.f32 %v1743, %v148
  %v1749 = vld [vmem:[%s677] sm:$0x1]
  %v1750 = vld [vmem:[%s2] sm:$0xf]
  %v1751 = vld [vmem:[%s2 + $0x4] sm:$0xf]
  %v1752 = vld [vmem:[%s4] sm:$0xf]
  %v1753 = vld [vmem:[%s4 + $0x4] sm:$0xf]
  %v1754 = vld [vmem:[%s4 + $0x8] sm:$0xf]
  %v1755 = vld [vmem:[%s4 + $0xc] sm:$0xf]
  %1756 = vrot.lane.b32.xlu0 %v1614, 32
  %v1757 = vpop.permute.xlu0 %1756
  %v1762 = vunpack.c.l.b16 %v1752
  %v1763 = vunpack.c.l.b16 %v1753
  %v1764 = vunpack.c.l.b16 %v1754
  %v1765 = vunpack.c.l.b16 %v1755
  %v1766 = vpack.c.b16 %v1763, %v1762
  %v1767 = vpack.c.b16 %v1765, %v1764
  %v1771 = vsel %vm50, %v1757, 0
  %1773 = vmatprep.subr.bf16.mxu0 0
  %1774 = vmatpush1.bf16.msra.mxu0 0
  %1775 = vmatprep.subr.bf16.mxu0 0
  %1776 = vmatpush1.bf16.msra.mxu0 0
  %1777 = vmatprep.subr.bf16.mxu0 0
  %1778 = vmatpush1.bf16.msra.mxu0 0
  %1779 = vmatprep.subr.bf16.mxu0 0
  %1780 = vmatpush1.bf16.msra.mxu0 0
  %1781 = vmatprep.subr.bf16.mxu0 0
  %1782 = vmatpush1.bf16.msra.mxu0 0
  %1783 = vmatprep.subr.bf16.mxu0 0
  %1784 = vmatpush1.bf16.msra.mxu0 0
  %1785 = vmatprep.subr.bf16.mxu0 0
  %1786 = vmatpush1.bf16.msra.mxu0 %v1767
  %1787 = vmatprep.subr.bf16.mxu0 0
  %1788 = vmatpush1.bf16.msra.mxu0 %v1766
  %1789 = vmatprep.subr.bf16.mxu0 0
  %1790 = vmatpush2.bf16.msra.mxu0 0
  %1791 = vmatprep.subr.bf16.mxu0 0
  %1792 = vmatpush2.bf16.msra.mxu0 0
  %1793 = vmatprep.subr.bf16.mxu0 0
  %1794 = vmatpush2.bf16.msra.mxu0 0
  %1795 = vmatprep.subr.bf16.mxu0 0
  %1796 = vmatpush2.bf16.msra.mxu0 0
  %1797 = vmatprep.subr.bf16.mxu0 0
  %1798 = vmatpush2.bf16.msra.mxu0 0
  %1799 = vmatprep.subr.bf16.mxu0 0
  %1800 = vmatpush2.bf16.msra.mxu0 0
  %1801 = vmatprep.subr.bf16.mxu0 0
  %1802 = vmatpush2.bf16.msra.mxu0 0
  %1803 = vmatprep.subr.bf16.mxu0 0
  %1804 = vmatpush2.bf16.msra.mxu0 0
  %1805 = vmatprep.mubr.bf16.mxu0 0
  %1806 = vmatmul.mubr.bf16.gmra.mxu0 %v1771
  %v1807 = vpop.f32.mrf.mxu0
  %v1808 = vadd.f32 0.0, %v1807
  %v1809 = vpop.f32.mrf.mxu0
  %v1810 = vpop.f32.mrf.mxu0
  %v1811 = vpop.f32.mrf.mxu0
  %1812 = vdwg.mxu0
  %v1815 = vunpack.c.l.b16 %v1750
  %v1816 = vunpack.c.l.b16 %v1751
  %v1817 = vpack.c.b16 %v1816, %v1815
  %v1820 = vsel %vm100, %v1749, 0
  %1822 = vmatprep.subr.bf16.mxu0 0
  %1823 = vmatpush1.bf16.msra.mxu0 0
  %1824 = vmatprep.subr.bf16.mxu0 0
  %1825 = vmatpush1.bf16.msra.mxu0 0
  %1826 = vmatprep.subr.bf16.mxu0 0
  %1827 = vmatpush1.bf16.msra.mxu0 0
  %1828 = vmatprep.subr.bf16.mxu0 0
  %1829 = vmatpush1.bf16.msra.mxu0 0
  %1830 = vmatprep.subr.bf16.mxu0 0
  %1831 = vmatpush1.bf16.msra.mxu0 0
  %1832 = vmatprep.subr.bf16.mxu0 0
  %1833 = vmatpush1.bf16.msra.mxu0 0
  %1834 = vmatprep.subr.bf16.mxu0 0
  %1835 = vmatpush1.bf16.msra.mxu0 0
  %1836 = vmatprep.subr.bf16.mxu0 0
  %1837 = vmatpush1.bf16.msra.mxu0 %v1817
  %1838 = vmatprep.subr.bf16.mxu0 0
  %1839 = vmatpush2.bf16.msra.mxu0 0
  %1840 = vmatprep.subr.bf16.mxu0 0
  %1841 = vmatpush2.bf16.msra.mxu0 0
  %1842 = vmatprep.subr.bf16.mxu0 0
  %1843 = vmatpush2.bf16.msra.mxu0 0
  %1844 = vmatprep.subr.bf16.mxu0 0
  %1845 = vmatpush2.bf16.msra.mxu0 0
  %1846 = vmatprep.subr.bf16.mxu0 0
  %1847 = vmatpush2.bf16.msra.mxu0 0
  %1848 = vmatprep.subr.bf16.mxu0 0
  %1849 = vmatpush2.bf16.msra.mxu0 0
  %1850 = vmatprep.subr.bf16.mxu0 0
  %1851 = vmatpush2.bf16.msra.mxu0 0
  %1852 = vmatprep.subr.bf16.mxu0 0
  %1853 = vmatpush2.bf16.msra.mxu0 0
  %1854 = vmatprep.mubr.bf16.mxu0 0
  %1855 = vmatmul.mubr.bf16.gmra.mxu0 %v1820
  %v1856 = vpop.f32.mrf.mxu0
  %v1857 = vadd.f32 %v1808, %v1856
  %v1858 = vpop.f32.mrf.mxu0
  %v1859 = vpop.f32.mrf.mxu0
  %v1860 = vpop.f32.mrf.mxu0
  %1861 = vdwg.mxu0
  %v1862 = vadd.f32 %v1857, %v264
  %v1863 = vxor.u32 %v1748, 2147483648
  %v1864 = vmul.f32 %v1863, 1.442695
  %v1865 = vpow.pop %v1864
  %v1866 = vadd.f32 %v1865, 1.0
  %v1867 = vrcp.pop %v1866
  %v1868 = vmul.f32 1.0, %v1867
  %v1869 = vtanh.pop %v1748
  %v1870 = vmul.f32 %v1868, %v1562
  %1872 = vrot.lane.b32.xlu0 %v1869, 64
  %v1873 = vpop.permute.xlu0 %1872
  %v1875 = vmul.f32 %v1868, %v1873
  %1877 = vrot.lane.b32.xlu0 %v1875, 32
  %v1878 = vpop.permute.xlu0 %1877
  %v1880 = vadd.f32 %v1870, %v1878
  %v1881 = vtanh.pop %v1880
  %1883 = vrot.lane.b32.xlu0 %v1881, 64
  %v1884 = vpop.permute.xlu0 %1883
  %v1886 = vmul.f32 %v1868, %v1884
  %v1887 = vxor.u32 %v1862, 2147483648
  %v1888 = vmul.f32 %v1887, 1.442695
  %v1889 = vpow.pop %v1888
  %v1890 = vadd.f32 %v1889, 1.0
  %v1891 = vrcp.pop %v1890
  %v1892 = vmul.f32 1.0, %v1891
  %v1893 = vtanh.pop %v1862
  %v1894 = vmul.f32 %v1892, %v1586
  %1896 = vrot.lane.b32.xlu0 %v1893, 64
  %v1897 = vpop.permute.xlu0 %1896
  %v1899 = vmul.f32 %v1892, %v1897
  %1901 = vrot.lane.b32.xlu0 %v1899, 32
  %v1902 = vpop.permute.xlu0 %1901
  %v1904 = vadd.f32 %v1894, %v1902
  %v1905 = vtanh.pop %v1904
  %1907 = vrot.lane.b32.xlu0 %v1905, 64
  %v1908 = vpop.permute.xlu0 %1907
  %v1910 = vmul.f32 %v1892, %v1908
  %v1911 = vpack.c.bf16 %v1886, %v1886
  %v1914 = vunpack.c.l.s4 1966171168
  %v1915 = vunpack.c.0.s8 %v1914
  %v1916 = vlaneseq
  %v1917 = vshrl.u32 %v1916, 7
  %v1918 = vsub.s32 %v1915, %v1917
  %v1919 = vrot.slane %v1911, %v1918
  %v1921 = vunpack.c.l.s4 1966171168
  %v1922 = vunpack.c.0.s8 %v1921
  %v1923 = vlaneseq
  %v1924 = vshrl.u32 %v1923, 7
  %v1925 = vsub.s32 %v1922, %v1924
  %v1926 = vrot.slane %v1919, %v1925
  %1927 = vrot.lane.b32.xlu0 %v1926, 32
  %v1928 = vpop.permute.xlu0 %1927
  %s1930 = scalar_lea.vmem %s7, 5
  %1931 = vst.msk [vmem:[%s1930] sm:$0x1] %vm334, %v1928
  %v1932 = vpack.c.bf16 %v1910, %v1910
  %v1935 = vunpack.c.l.s4 1966171168
  %v1936 = vunpack.c.0.s8 %v1935
  %v1937 = vlaneseq
  %v1938 = vshrl.u32 %v1937, 7
  %v1939 = vsub.s32 %v1936, %v1938
  %v1940 = vrot.slane %v1932, %v1939
  %v1942 = vunpack.c.l.s4 1966171168
  %v1943 = vunpack.c.0.s8 %v1942
  %v1944 = vlaneseq
  %v1945 = vshrl.u32 %v1944, 7
  %v1946 = vsub.s32 %v1943, %v1945
  %v1947 = vrot.slane %v1940, %v1946
  %1948 = vrot.lane.b32.xlu0 %v1947, 32
  %v1949 = vpop.permute.xlu0 %1948
  %s1951 = scalar_lea.vmem %s8, 2
  %1952 = vst.msk [vmem:[%s1951] sm:$0x1] %vm334, %v1949
  %v1953 = vld [vmem:[%s472] sm:$0x1]
  %v1954 = vld [vmem:[%s1] sm:$0xf]
  %v1955 = vld [vmem:[%s1 + $0x4] sm:$0xf]
  %v1956 = vld [vmem:[%s3] sm:$0xf]
  %v1957 = vld [vmem:[%s3 + $0x4] sm:$0xf]
  %v1958 = vld [vmem:[%s3 + $0x8] sm:$0xf]
  %v1959 = vld [vmem:[%s3 + $0xc] sm:$0xf]
  %1960 = vrot.lane.b32.xlu0 %v1911, 32
  %v1961 = vpop.permute.xlu0 %1960
  %v1966 = vunpack.c.l.b16 %v1956
  %v1967 = vunpack.c.l.b16 %v1957
  %v1968 = vunpack.c.l.b16 %v1958
  %v1969 = vunpack.c.l.b16 %v1959
  %v1970 = vpack.c.b16 %v1967, %v1966
  %v1971 = vpack.c.b16 %v1969, %v1968
  %v1975 = vsel %vm50, %v1961, 0
  %1977 = vmatprep.subr.bf16.mxu0 0
  %1978 = vmatpush1.bf16.msra.mxu0 0
  %1979 = vmatprep.subr.bf16.mxu0 0
  %1980 = vmatpush1.bf16.msra.mxu0 0
  %1981 = vmatprep.subr.bf16.mxu0 0
  %1982 = vmatpush1.bf16.msra.mxu0 0
  %1983 = vmatprep.subr.bf16.mxu0 0
  %1984 = vmatpush1.bf16.msra.mxu0 0
  %1985 = vmatprep.subr.bf16.mxu0 0
  %1986 = vmatpush1.bf16.msra.mxu0 0
  %1987 = vmatprep.subr.bf16.mxu0 0
  %1988 = vmatpush1.bf16.msra.mxu0 0
  %1989 = vmatprep.subr.bf16.mxu0 0
  %1990 = vmatpush1.bf16.msra.mxu0 %v1971
  %1991 = vmatprep.subr.bf16.mxu0 0
  %1992 = vmatpush1.bf16.msra.mxu0 %v1970
  %1993 = vmatprep.subr.bf16.mxu0 0
  %1994 = vmatpush2.bf16.msra.mxu0 0
  %1995 = vmatprep.subr.bf16.mxu0 0
  %1996 = vmatpush2.bf16.msra.mxu0 0
  %1997 = vmatprep.subr.bf16.mxu0 0
  %1998 = vmatpush2.bf16.msra.mxu0 0
  %1999 = vmatprep.subr.bf16.mxu0 0
  %2000 = vmatpush2.bf16.msra.mxu0 0
  %2001 = vmatprep.subr.bf16.mxu0 0
  %2002 = vmatpush2.bf16.msra.mxu0 0
  %2003 = vmatprep.subr.bf16.mxu0 0
  %2004 = vmatpush2.bf16.msra.mxu0 0
  %2005 = vmatprep.subr.bf16.mxu0 0
  %2006 = vmatpush2.bf16.msra.mxu0 0
  %2007 = vmatprep.subr.bf16.mxu0 0
  %2008 = vmatpush2.bf16.msra.mxu0 0
  %2009 = vmatprep.mubr.bf16.mxu0 0
  %2010 = vmatmul.mubr.bf16.gmra.mxu0 %v1975
  %v2011 = vpop.f32.mrf.mxu0
  %v2012 = vadd.f32 0.0, %v2011
  %v2013 = vpop.f32.mrf.mxu0
  %v2014 = vpop.f32.mrf.mxu0
  %v2015 = vpop.f32.mrf.mxu0
  %2016 = vdwg.mxu0
  %v2019 = vunpack.c.l.b16 %v1954
  %v2020 = vunpack.c.l.b16 %v1955
  %v2021 = vpack.c.b16 %v2020, %v2019
  %v2024 = vsel %vm100, %v1953, 0
  %2026 = vmatprep.subr.bf16.mxu0 0
  %2027 = vmatpush1.bf16.msra.mxu0 0
  %2028 = vmatprep.subr.bf16.mxu0 0
  %2029 = vmatpush1.bf16.msra.mxu0 0
  %2030 = vmatprep.subr.bf16.mxu0 0
  %2031 = vmatpush1.bf16.msra.mxu0 0
  %2032 = vmatprep.subr.bf16.mxu0 0
  %2033 = vmatpush1.bf16.msra.mxu0 0
  %2034 = vmatprep.subr.bf16.mxu0 0
  %2035 = vmatpush1.bf16.msra.mxu0 0
  %2036 = vmatprep.subr.bf16.mxu0 0
  %2037 = vmatpush1.bf16.msra.mxu0 0
  %2038 = vmatprep.subr.bf16.mxu0 0
  %2039 = vmatpush1.bf16.msra.mxu0 0
  %2040 = vmatprep.subr.bf16.mxu0 0
  %2041 = vmatpush1.bf16.msra.mxu0 %v2021
  %2042 = vmatprep.subr.bf16.mxu0 0
  %2043 = vmatpush2.bf16.msra.mxu0 0
  %2044 = vmatprep.subr.bf16.mxu0 0
  %2045 = vmatpush2.bf16.msra.mxu0 0
  %2046 = vmatprep.subr.bf16.mxu0 0
  %2047 = vmatpush2.bf16.msra.mxu0 0
  %2048 = vmatprep.subr.bf16.mxu0 0
  %2049 = vmatpush2.bf16.msra.mxu0 0
  %2050 = vmatprep.subr.bf16.mxu0 0
  %2051 = vmatpush2.bf16.msra.mxu0 0
  %2052 = vmatprep.subr.bf16.mxu0 0
  %2053 = vmatpush2.bf16.msra.mxu0 0
  %2054 = vmatprep.subr.bf16.mxu0 0
  %2055 = vmatpush2.bf16.msra.mxu0 0
  %2056 = vmatprep.subr.bf16.mxu0 0
  %2057 = vmatpush2.bf16.msra.mxu0 0
  %2058 = vmatprep.mubr.bf16.mxu0 0
  %2059 = vmatmul.mubr.bf16.gmra.mxu0 %v2024
  %v2060 = vpop.f32.mrf.mxu0
  %v2061 = vadd.f32 %v2012, %v2060
  %v2062 = vpop.f32.mrf.mxu0
  %v2063 = vpop.f32.mrf.mxu0
  %v2064 = vpop.f32.mrf.mxu0
  %2065 = vdwg.mxu0
  %v2066 = vadd.f32 %v2061, %v148
  %v2067 = vld [vmem:[%s357] sm:$0x1]
  %v2068 = vld [vmem:[%s2] sm:$0xf]
  %v2069 = vld [vmem:[%s2 + $0x4] sm:$0xf]
  %v2070 = vld [vmem:[%s4] sm:$0xf]
  %v2071 = vld [vmem:[%s4 + $0x4] sm:$0xf]
  %v2072 = vld [vmem:[%s4 + $0x8] sm:$0xf]
  %v2073 = vld [vmem:[%s4 + $0xc] sm:$0xf]
  %2074 = vrot.lane.b32.xlu0 %v1932, 32
  %v2075 = vpop.permute.xlu0 %2074
  %v2080 = vunpack.c.l.b16 %v2070
  %v2081 = vunpack.c.l.b16 %v2071
  %v2082 = vunpack.c.l.b16 %v2072
  %v2083 = vunpack.c.l.b16 %v2073
  %v2084 = vpack.c.b16 %v2081, %v2080
  %v2085 = vpack.c.b16 %v2083, %v2082
  %v2089 = vsel %vm50, %v2075, 0
  %2091 = vmatprep.subr.bf16.mxu0 0
  %2092 = vmatpush1.bf16.msra.mxu0 0
  %2093 = vmatprep.subr.bf16.mxu0 0
  %2094 = vmatpush1.bf16.msra.mxu0 0
  %2095 = vmatprep.subr.bf16.mxu0 0
  %2096 = vmatpush1.bf16.msra.mxu0 0
  %2097 = vmatprep.subr.bf16.mxu0 0
  %2098 = vmatpush1.bf16.msra.mxu0 0
  %2099 = vmatprep.subr.bf16.mxu0 0
  %2100 = vmatpush1.bf16.msra.mxu0 0
  %2101 = vmatprep.subr.bf16.mxu0 0
  %2102 = vmatpush1.bf16.msra.mxu0 0
  %2103 = vmatprep.subr.bf16.mxu0 0
  %2104 = vmatpush1.bf16.msra.mxu0 %v2085
  %2105 = vmatprep.subr.bf16.mxu0 0
  %2106 = vmatpush1.bf16.msra.mxu0 %v2084
  %2107 = vmatprep.subr.bf16.mxu0 0
  %2108 = vmatpush2.bf16.msra.mxu0 0
  %2109 = vmatprep.subr.bf16.mxu0 0
  %2110 = vmatpush2.bf16.msra.mxu0 0
  %2111 = vmatprep.subr.bf16.mxu0 0
  %2112 = vmatpush2.bf16.msra.mxu0 0
  %2113 = vmatprep.subr.bf16.mxu0 0
  %2114 = vmatpush2.bf16.msra.mxu0 0
  %2115 = vmatprep.subr.bf16.mxu0 0
  %2116 = vmatpush2.bf16.msra.mxu0 0
  %2117 = vmatprep.subr.bf16.mxu0 0
  %2118 = vmatpush2.bf16.msra.mxu0 0
  %2119 = vmatprep.subr.bf16.mxu0 0
  %2120 = vmatpush2.bf16.msra.mxu0 0
  %2121 = vmatprep.subr.bf16.mxu0 0
  %2122 = vmatpush2.bf16.msra.mxu0 0
  %2123 = vmatprep.mubr.bf16.mxu0 0
  %2124 = vmatmul.mubr.bf16.gmra.mxu0 %v2089
  %v2125 = vpop.f32.mrf.mxu0
  %v2126 = vadd.f32 0.0, %v2125
  %v2127 = vpop.f32.mrf.mxu0
  %v2128 = vpop.f32.mrf.mxu0
  %v2129 = vpop.f32.mrf.mxu0
  %2130 = vdwg.mxu0
  %v2133 = vunpack.c.l.b16 %v2068
  %v2134 = vunpack.c.l.b16 %v2069
  %v2135 = vpack.c.b16 %v2134, %v2133
  %v2138 = vsel %vm100, %v2067, 0
  %2140 = vmatprep.subr.bf16.mxu0 0
  %2141 = vmatpush1.bf16.msra.mxu0 0
  %2142 = vmatprep.subr.bf16.mxu0 0
  %2143 = vmatpush1.bf16.msra.mxu0 0
  %2144 = vmatprep.subr.bf16.mxu0 0
  %2145 = vmatpush1.bf16.msra.mxu0 0
  %2146 = vmatprep.subr.bf16.mxu0 0
  %2147 = vmatpush1.bf16.msra.mxu0 0
  %2148 = vmatprep.subr.bf16.mxu0 0
  %2149 = vmatpush1.bf16.msra.mxu0 0
  %2150 = vmatprep.subr.bf16.mxu0 0
  %2151 = vmatpush1.bf16.msra.mxu0 0
  %2152 = vmatprep.subr.bf16.mxu0 0
  %2153 = vmatpush1.bf16.msra.mxu0 0
  %2154 = vmatprep.subr.bf16.mxu0 0
  %2155 = vmatpush1.bf16.msra.mxu0 %v2135
  %2156 = vmatprep.subr.bf16.mxu0 0
  %2157 = vmatpush2.bf16.msra.mxu0 0
  %2158 = vmatprep.subr.bf16.mxu0 0
  %2159 = vmatpush2.bf16.msra.mxu0 0
  %2160 = vmatprep.subr.bf16.mxu0 0
  %2161 = vmatpush2.bf16.msra.mxu0 0
  %2162 = vmatprep.subr.bf16.mxu0 0
  %2163 = vmatpush2.bf16.msra.mxu0 0
  %2164 = vmatprep.subr.bf16.mxu0 0
  %2165 = vmatpush2.bf16.msra.mxu0 0
  %2166 = vmatprep.subr.bf16.mxu0 0
  %2167 = vmatpush2.bf16.msra.mxu0 0
  %2168 = vmatprep.subr.bf16.mxu0 0
  %2169 = vmatpush2.bf16.msra.mxu0 0
  %2170 = vmatprep.subr.bf16.mxu0 0
  %2171 = vmatpush2.bf16.msra.mxu0 0
  %2172 = vmatprep.mubr.bf16.mxu0 0
  %2173 = vmatmul.mubr.bf16.gmra.mxu0 %v2138
  %v2174 = vpop.f32.mrf.mxu0
  %v2175 = vadd.f32 %v2126, %v2174
  %v2176 = vpop.f32.mrf.mxu0
  %v2177 = vpop.f32.mrf.mxu0
  %v2178 = vpop.f32.mrf.mxu0
  %2179 = vdwg.mxu0
  %v2180 = vadd.f32 %v2175, %v264
  %v2181 = vxor.u32 %v2066, 2147483648
  %v2182 = vmul.f32 %v2181, 1.442695
  %v2183 = vpow.pop %v2182
  %v2184 = vadd.f32 %v2183, 1.0
  %v2185 = vrcp.pop %v2184
  %v2186 = vmul.f32 1.0, %v2185
  %v2187 = vtanh.pop %v2066
  %v2188 = vmul.f32 %v2186, %v1880
  %2190 = vrot.lane.b32.xlu0 %v2187, 64
  %v2191 = vpop.permute.xlu0 %2190
  %v2193 = vmul.f32 %v2186, %v2191
  %2195 = vrot.lane.b32.xlu0 %v2193, 32
  %v2196 = vpop.permute.xlu0 %2195
  %v2198 = vadd.f32 %v2188, %v2196
  %v2199 = vtanh.pop %v2198
  %2201 = vrot.lane.b32.xlu0 %v2199, 64
  %v2202 = vpop.permute.xlu0 %2201
  %v2204 = vmul.f32 %v2186, %v2202
  %v2205 = vxor.u32 %v2180, 2147483648
  %v2206 = vmul.f32 %v2205, 1.442695
  %v2207 = vpow.pop %v2206
  %v2208 = vadd.f32 %v2207, 1.0
  %v2209 = vrcp.pop %v2208
  %v2210 = vmul.f32 1.0, %v2209
  %v2211 = vtanh.pop %v2180
  %v2212 = vmul.f32 %v2210, %v1904
  %2214 = vrot.lane.b32.xlu0 %v2211, 64
  %v2215 = vpop.permute.xlu0 %2214
  %v2217 = vmul.f32 %v2210, %v2215
  %2219 = vrot.lane.b32.xlu0 %v2217, 32
  %v2220 = vpop.permute.xlu0 %2219
  %v2222 = vadd.f32 %v2212, %v2220
  %v2223 = vtanh.pop %v2222
  %2225 = vrot.lane.b32.xlu0 %v2223, 64
  %v2226 = vpop.permute.xlu0 %2225
  %v2228 = vmul.f32 %v2210, %v2226
  %v2229 = vpack.c.bf16 %v2204, %v2204
  %v2232 = vunpack.c.l.s4 1966171168
  %v2233 = vunpack.c.0.s8 %v2232
  %v2234 = vlaneseq
  %v2235 = vshrl.u32 %v2234, 7
  %v2236 = vsub.s32 %v2233, %v2235
  %v2237 = vrot.slane %v2229, %v2236
  %v2239 = vunpack.c.l.s4 1966171168
  %v2240 = vunpack.c.0.s8 %v2239
  %v2241 = vlaneseq
  %v2242 = vshrl.u32 %v2241, 7
  %v2243 = vsub.s32 %v2240, %v2242
  %v2244 = vrot.slane %v2237, %v2243
  %2245 = vrot.lane.b32.xlu0 %v2244, 32
  %v2246 = vpop.permute.xlu0 %2245
  %s2248 = scalar_lea.vmem %s7, 6
  %2249 = vst.msk [vmem:[%s2248] sm:$0x1] %vm334, %v2246
  %v2250 = vpack.c.bf16 %v2228, %v2228
  %v2253 = vunpack.c.l.s4 1966171168
  %v2254 = vunpack.c.0.s8 %v2253
  %v2255 = vlaneseq
  %v2256 = vshrl.u32 %v2255, 7
  %v2257 = vsub.s32 %v2254, %v2256
  %v2258 = vrot.slane %v2250, %v2257
  %v2260 = vunpack.c.l.s4 1966171168
  %v2261 = vunpack.c.0.s8 %v2260
  %v2262 = vlaneseq
  %v2263 = vshrl.u32 %v2262, 7
  %v2264 = vsub.s32 %v2261, %v2263
  %v2265 = vrot.slane %v2258, %v2264
  %2266 = vrot.lane.b32.xlu0 %v2265, 32
  %v2267 = vpop.permute.xlu0 %2266
  %s2269 = scalar_lea.vmem %s8, 1
  %2270 = vst.msk [vmem:[%s2269] sm:$0x1] %vm334, %v2267
  %v2271 = vld [vmem:[%s151] sm:$0x1]
  %v2272 = vld [vmem:[%s1] sm:$0xf]
  %v2273 = vld [vmem:[%s1 + $0x4] sm:$0xf]
  %v2274 = vld [vmem:[%s3] sm:$0xf]
  %v2275 = vld [vmem:[%s3 + $0x4] sm:$0xf]
  %v2276 = vld [vmem:[%s3 + $0x8] sm:$0xf]
  %v2277 = vld [vmem:[%s3 + $0xc] sm:$0xf]
  %2278 = vrot.lane.b32.xlu0 %v2229, 32
  %v2279 = vpop.permute.xlu0 %2278
  %v2284 = vunpack.c.l.b16 %v2274
  %v2285 = vunpack.c.l.b16 %v2275
  %v2286 = vunpack.c.l.b16 %v2276
  %v2287 = vunpack.c.l.b16 %v2277
  %v2288 = vpack.c.b16 %v2285, %v2284
  %v2289 = vpack.c.b16 %v2287, %v2286
  %v2293 = vsel %vm50, %v2279, 0
  %2295 = vmatprep.subr.bf16.mxu0 0
  %2296 = vmatpush1.bf16.msra.mxu0 0
  %2297 = vmatprep.subr.bf16.mxu0 0
  %2298 = vmatpush1.bf16.msra.mxu0 0
  %2299 = vmatprep.subr.bf16.mxu0 0
  %2300 = vmatpush1.bf16.msra.mxu0 0
  %2301 = vmatprep.subr.bf16.mxu0 0
  %2302 = vmatpush1.bf16.msra.mxu0 0
  %2303 = vmatprep.subr.bf16.mxu0 0
  %2304 = vmatpush1.bf16.msra.mxu0 0
  %2305 = vmatprep.subr.bf16.mxu0 0
  %2306 = vmatpush1.bf16.msra.mxu0 0
  %2307 = vmatprep.subr.bf16.mxu0 0
  %2308 = vmatpush1.bf16.msra.mxu0 %v2289
  %2309 = vmatprep.subr.bf16.mxu0 0
  %2310 = vmatpush1.bf16.msra.mxu0 %v2288
  %2311 = vmatprep.subr.bf16.mxu0 0
  %2312 = vmatpush2.bf16.msra.mxu0 0
  %2313 = vmatprep.subr.bf16.mxu0 0
  %2314 = vmatpush2.bf16.msra.mxu0 0
  %2315 = vmatprep.subr.bf16.mxu0 0
  %2316 = vmatpush2.bf16.msra.mxu0 0
  %2317 = vmatprep.subr.bf16.mxu0 0
  %2318 = vmatpush2.bf16.msra.mxu0 0
  %2319 = vmatprep.subr.bf16.mxu0 0
  %2320 = vmatpush2.bf16.msra.mxu0 0
  %2321 = vmatprep.subr.bf16.mxu0 0
  %2322 = vmatpush2.bf16.msra.mxu0 0
  %2323 = vmatprep.subr.bf16.mxu0 0
  %2324 = vmatpush2.bf16.msra.mxu0 0
  %2325 = vmatprep.subr.bf16.mxu0 0
  %2326 = vmatpush2.bf16.msra.mxu0 0
  %2327 = vmatprep.mubr.bf16.mxu0 0
  %2328 = vmatmul.mubr.bf16.gmra.mxu0 %v2293
  %v2329 = vpop.f32.mrf.mxu0
  %v2330 = vadd.f32 0.0, %v2329
  %v2331 = vpop.f32.mrf.mxu0
  %v2332 = vpop.f32.mrf.mxu0
  %v2333 = vpop.f32.mrf.mxu0
  %2334 = vdwg.mxu0
  %v2337 = vunpack.c.l.b16 %v2272
  %v2338 = vunpack.c.l.b16 %v2273
  %v2339 = vpack.c.b16 %v2338, %v2337
  %v2342 = vsel %vm100, %v2271, 0
  %2344 = vmatprep.subr.bf16.mxu0 0
  %2345 = vmatpush1.bf16.msra.mxu0 0
  %2346 = vmatprep.subr.bf16.mxu0 0
  %2347 = vmatpush1.bf16.msra.mxu0 0
  %2348 = vmatprep.subr.bf16.mxu0 0
  %2349 = vmatpush1.bf16.msra.mxu0 0
  %2350 = vmatprep.subr.bf16.mxu0 0
  %2351 = vmatpush1.bf16.msra.mxu0 0
  %2352 = vmatprep.subr.bf16.mxu0 0
  %2353 = vmatpush1.bf16.msra.mxu0 0
  %2354 = vmatprep.subr.bf16.mxu0 0
  %2355 = vmatpush1.bf16.msra.mxu0 0
  %2356 = vmatprep.subr.bf16.mxu0 0
  %2357 = vmatpush1.bf16.msra.mxu0 0
  %2358 = vmatprep.subr.bf16.mxu0 0
  %2359 = vmatpush1.bf16.msra.mxu0 %v2339
  %2360 = vmatprep.subr.bf16.mxu0 0
  %2361 = vmatpush2.bf16.msra.mxu0 0
  %2362 = vmatprep.subr.bf16.mxu0 0
  %2363 = vmatpush2.bf16.msra.mxu0 0
  %2364 = vmatprep.subr.bf16.mxu0 0
  %2365 = vmatpush2.bf16.msra.mxu0 0
  %2366 = vmatprep.subr.bf16.mxu0 0
  %2367 = vmatpush2.bf16.msra.mxu0 0
  %2368 = vmatprep.subr.bf16.mxu0 0
  %2369 = vmatpush2.bf16.msra.mxu0 0
  %2370 = vmatprep.subr.bf16.mxu0 0
  %2371 = vmatpush2.bf16.msra.mxu0 0
  %2372 = vmatprep.subr.bf16.mxu0 0
  %2373 = vmatpush2.bf16.msra.mxu0 0
  %2374 = vmatprep.subr.bf16.mxu0 0
  %2375 = vmatpush2.bf16.msra.mxu0 0
  %2376 = vmatprep.mubr.bf16.mxu0 0
  %2377 = vmatmul.mubr.bf16.gmra.mxu0 %v2342
  %v2378 = vpop.f32.mrf.mxu0
  %v2379 = vadd.f32 %v2330, %v2378
  %v2380 = vpop.f32.mrf.mxu0
  %v2381 = vpop.f32.mrf.mxu0
  %v2382 = vpop.f32.mrf.mxu0
  %2383 = vdwg.mxu0
  %v2384 = vadd.f32 %v2379, %v148
  %v2385 = vld [vmem:[%s0] sm:$0x1]
  %v2386 = vld [vmem:[%s2] sm:$0xf]
  %v2387 = vld [vmem:[%s2 + $0x4] sm:$0xf]
  %v2388 = vld [vmem:[%s4] sm:$0xf]
  %v2389 = vld [vmem:[%s4 + $0x4] sm:$0xf]
  %v2390 = vld [vmem:[%s4 + $0x8] sm:$0xf]
  %v2391 = vld [vmem:[%s4 + $0xc] sm:$0xf]
  %2392 = vrot.lane.b32.xlu0 %v2250, 32
  %v2393 = vpop.permute.xlu0 %2392
  %v2398 = vunpack.c.l.b16 %v2388
  %v2399 = vunpack.c.l.b16 %v2389
  %v2400 = vunpack.c.l.b16 %v2390
  %v2401 = vunpack.c.l.b16 %v2391
  %v2402 = vpack.c.b16 %v2399, %v2398
  %v2403 = vpack.c.b16 %v2401, %v2400
  %v2407 = vsel %vm50, %v2393, 0
  %2409 = vmatprep.subr.bf16.mxu0 0
  %2410 = vmatpush1.bf16.msra.mxu0 0
  %2411 = vmatprep.subr.bf16.mxu0 0
  %2412 = vmatpush1.bf16.msra.mxu0 0
  %2413 = vmatprep.subr.bf16.mxu0 0
  %2414 = vmatpush1.bf16.msra.mxu0 0
  %2415 = vmatprep.subr.bf16.mxu0 0
  %2416 = vmatpush1.bf16.msra.mxu0 0
  %2417 = vmatprep.subr.bf16.mxu0 0
  %2418 = vmatpush1.bf16.msra.mxu0 0
  %2419 = vmatprep.subr.bf16.mxu0 0
  %2420 = vmatpush1.bf16.msra.mxu0 0
  %2421 = vmatprep.subr.bf16.mxu0 0
  %2422 = vmatpush1.bf16.msra.mxu0 %v2403
  %2423 = vmatprep.subr.bf16.mxu0 0
  %2424 = vmatpush1.bf16.msra.mxu0 %v2402
  %2425 = vmatprep.subr.bf16.mxu0 0
  %2426 = vmatpush2.bf16.msra.mxu0 0
  %2427 = vmatprep.subr.bf16.mxu0 0
  %2428 = vmatpush2.bf16.msra.mxu0 0
  %2429 = vmatprep.subr.bf16.mxu0 0
  %2430 = vmatpush2.bf16.msra.mxu0 0
  %2431 = vmatprep.subr.bf16.mxu0 0
  %2432 = vmatpush2.bf16.msra.mxu0 0
  %2433 = vmatprep.subr.bf16.mxu0 0
  %2434 = vmatpush2.bf16.msra.mxu0 0
  %2435 = vmatprep.subr.bf16.mxu0 0
  %2436 = vmatpush2.bf16.msra.mxu0 0
  %2437 = vmatprep.subr.bf16.mxu0 0
  %2438 = vmatpush2.bf16.msra.mxu0 0
  %2439 = vmatprep.subr.bf16.mxu0 0
  %2440 = vmatpush2.bf16.msra.mxu0 0
  %2441 = vmatprep.mubr.bf16.mxu0 0
  %2442 = vmatmul.mubr.bf16.gmra.mxu0 %v2407
  %v2443 = vpop.f32.mrf.mxu0
  %v2444 = vadd.f32 0.0, %v2443
  %v2445 = vpop.f32.mrf.mxu0
  %v2446 = vpop.f32.mrf.mxu0
  %v2447 = vpop.f32.mrf.mxu0
  %2448 = vdwg.mxu0
  %v2451 = vunpack.c.l.b16 %v2386
  %v2452 = vunpack.c.l.b16 %v2387
  %v2453 = vpack.c.b16 %v2452, %v2451
  %v2456 = vsel %vm100, %v2385, 0
  %2458 = vmatprep.subr.bf16.mxu0 0
  %2459 = vmatpush1.bf16.msra.mxu0 0
  %2460 = vmatprep.subr.bf16.mxu0 0
  %2461 = vmatpush1.bf16.msra.mxu0 0
  %2462 = vmatprep.subr.bf16.mxu0 0
  %2463 = vmatpush1.bf16.msra.mxu0 0
  %2464 = vmatprep.subr.bf16.mxu0 0
  %2465 = vmatpush1.bf16.msra.mxu0 0
  %2466 = vmatprep.subr.bf16.mxu0 0
  %2467 = vmatpush1.bf16.msra.mxu0 0
  %2468 = vmatprep.subr.bf16.mxu0 0
  %2469 = vmatpush1.bf16.msra.mxu0 0
  %2470 = vmatprep.subr.bf16.mxu0 0
  %2471 = vmatpush1.bf16.msra.mxu0 0
  %2472 = vmatprep.subr.bf16.mxu0 0
  %2473 = vmatpush1.bf16.msra.mxu0 %v2453
  %2474 = vmatprep.subr.bf16.mxu0 0
  %2475 = vmatpush2.bf16.msra.mxu0 0
  %2476 = vmatprep.subr.bf16.mxu0 0
  %2477 = vmatpush2.bf16.msra.mxu0 0
  %2478 = vmatprep.subr.bf16.mxu0 0
  %2479 = vmatpush2.bf16.msra.mxu0 0
  %2480 = vmatprep.subr.bf16.mxu0 0
  %2481 = vmatpush2.bf16.msra.mxu0 0
  %2482 = vmatprep.subr.bf16.mxu0 0
  %2483 = vmatpush2.bf16.msra.mxu0 0
  %2484 = vmatprep.subr.bf16.mxu0 0
  %2485 = vmatpush2.bf16.msra.mxu0 0
  %2486 = vmatprep.subr.bf16.mxu0 0
  %2487 = vmatpush2.bf16.msra.mxu0 0
  %2488 = vmatprep.subr.bf16.mxu0 0
  %2489 = vmatpush2.bf16.msra.mxu0 0
  %2490 = vmatprep.mubr.bf16.mxu0 0
  %2491 = vmatmul.mubr.bf16.gmra.mxu0 %v2456
  %v2492 = vpop.f32.mrf.mxu0
  %v2493 = vadd.f32 %v2444, %v2492
  %v2494 = vpop.f32.mrf.mxu0
  %v2495 = vpop.f32.mrf.mxu0
  %v2496 = vpop.f32.mrf.mxu0
  %2497 = vdwg.mxu0
  %v2498 = vadd.f32 %v2493, %v264
  %v2499 = vxor.u32 %v2384, 2147483648
  %v2500 = vmul.f32 %v2499, 1.442695
  %v2501 = vpow.pop %v2500
  %v2502 = vadd.f32 %v2501, 1.0
  %v2503 = vrcp.pop %v2502
  %v2504 = vmul.f32 1.0, %v2503
  %v2505 = vtanh.pop %v2384
  %v2506 = vmul.f32 %v2504, %v2198
  %2508 = vrot.lane.b32.xlu0 %v2505, 64
  %v2509 = vpop.permute.xlu0 %2508
  %v2511 = vmul.f32 %v2504, %v2509
  %2513 = vrot.lane.b32.xlu0 %v2511, 32
  %v2514 = vpop.permute.xlu0 %2513
  %v2516 = vadd.f32 %v2506, %v2514
  %v2517 = vtanh.pop %v2516
  %2519 = vrot.lane.b32.xlu0 %v2517, 64
  %v2520 = vpop.permute.xlu0 %2519
  %v2522 = vmul.f32 %v2504, %v2520
  %v2523 = vxor.u32 %v2498, 2147483648
  %v2524 = vmul.f32 %v2523, 1.442695
  %v2525 = vpow.pop %v2524
  %v2526 = vadd.f32 %v2525, 1.0
  %v2527 = vrcp.pop %v2526
  %v2528 = vmul.f32 1.0, %v2527
  %v2529 = vtanh.pop %v2498
  %v2530 = vmul.f32 %v2528, %v2222
  %2532 = vrot.lane.b32.xlu0 %v2529, 64
  %v2533 = vpop.permute.xlu0 %2532
  %v2535 = vmul.f32 %v2528, %v2533
  %2537 = vrot.lane.b32.xlu0 %v2535, 32
  %v2538 = vpop.permute.xlu0 %2537
  %v2540 = vadd.f32 %v2530, %v2538
  %v2541 = vtanh.pop %v2540
  %2543 = vrot.lane.b32.xlu0 %v2541, 64
  %v2544 = vpop.permute.xlu0 %2543
  %v2546 = vmul.f32 %v2528, %v2544
  %v2547 = vpack.c.bf16 %v2522, %v2522
  %v2550 = vunpack.c.l.s4 1966171168
  %v2551 = vunpack.c.0.s8 %v2550
  %v2552 = vlaneseq
  %v2553 = vshrl.u32 %v2552, 7
  %v2554 = vsub.s32 %v2551, %v2553
  %v2555 = vrot.slane %v2547, %v2554
  %v2557 = vunpack.c.l.s4 1966171168
  %v2558 = vunpack.c.0.s8 %v2557
  %v2559 = vlaneseq
  %v2560 = vshrl.u32 %v2559, 7
  %v2561 = vsub.s32 %v2558, %v2560
  %v2562 = vrot.slane %v2555, %v2561
  %2563 = vrot.lane.b32.xlu0 %v2562, 32
  %v2564 = vpop.permute.xlu0 %2563
  %s2566 = scalar_lea.vmem %s7, 7
  %2567 = vst.msk [vmem:[%s2566] sm:$0x1] %vm334, %v2564
  %v2568 = vpack.c.bf16 %v2546, %v2546
  %v2571 = vunpack.c.l.s4 1966171168
  %v2572 = vunpack.c.0.s8 %v2571
  %v2573 = vlaneseq
  %v2574 = vshrl.u32 %v2573, 7
  %v2575 = vsub.s32 %v2572, %v2574
  %v2576 = vrot.slane %v2568, %v2575
  %v2578 = vunpack.c.l.s4 1966171168
  %v2579 = vunpack.c.0.s8 %v2578
  %v2580 = vlaneseq
  %v2581 = vshrl.u32 %v2580, 7
  %v2582 = vsub.s32 %v2579, %v2581
  %v2583 = vrot.slane %v2576, %v2582
  %2584 = vrot.lane.b32.xlu0 %v2583, 32
  %v2585 = vpop.permute.xlu0 %2584
  %2587 = vst.msk [vmem:[%s8] sm:$0x1] %vm334, %v2585
  // Predicated region
  $region30: #{lstm_model_forward.2} parent=0 // pred_check
    _
  $region31: #{lstm_model_forward.2} parent=0 // pred_check_branch
    %2589 = sbr.rel (0) target = $region33
  $region32: #{lstm_model_forward.2} parent=0 // pred_region
    _
  $region33: #{lstm_model_forward.2} parent=0 // pred_fallthru
    _
  // Predicated region
  $region34: #{lstm_model_forward.2} parent=0 // pred_check
    _
  $region35: #{lstm_model_forward.2} parent=0 // pred_check_branch
    %2591 = sbr.rel (0) target = $region37
  $region36: #{lstm_model_forward.2} parent=0 // pred_region
    _
  $region37: #{lstm_model_forward.2} parent=0 // pred_fallthru
    _
  // Predicated region
  $region38: #{lstm_model_forward.2} parent=0 // pred_check
    _
  $region39: #{lstm_model_forward.2} parent=0 // pred_check_branch
    %2593 = sbr.rel (0) target = $region41
  $region40: #{lstm_model_forward.2} parent=0 // pred_region
    _
  $region41: #{lstm_model_forward.2} parent=0 // pred_fallthru
    _
  // Predicated region
  $region42: #{lstm_model_forward.2} parent=0 // pred_check
    _
  $region43: #{lstm_model_forward.2} parent=0 // pred_check_branch
    %2595 = sbr.rel (0) target = $region45
  $region44: #{lstm_model_forward.2} parent=0 // pred_region
    _
  $region45: #{lstm_model_forward.2} parent=0 // pred_fallthru
    _

</llo_original>
